<compile_context>
chip_gen: v6e
topology: v6e:2x2x1
jax: 0.10.0
libtpu: 0.0.40
codegen_flags: <defaults>
</compile_context>

<pallas_src>
import math

import jax
import jax.numpy as jnp
from jax import lax
from jax.experimental import pallas as pl
from jax.experimental.pallas import tpu as pltpu

DIM = 256
DEPTH = 4
NUM_HEADS = 8
HEAD_DIM = DIM // NUM_HEADS
MLP_HIDDEN = int(DIM * 4.0)
LN_EPS = 1e-6


# ----------------------------- shared math (jnp-only, used in kernel & reference) ----

def _layernorm(x, gamma, beta):
    mu = jnp.mean(x, axis=-1, keepdims=True)
    xc = x - mu
    var = jnp.mean(xc * xc, axis=-1, keepdims=True)
    return xc * lax.rsqrt(var + LN_EPS) * gamma + beta


def _gelu(x):
    # TODO(synk): PyTorch nn.GELU defaults to exact erf-GELU; tanh approximation is
    # used here (guaranteed Mosaic/EUP lowering), max deviation ~1e-3.
    c = math.sqrt(2.0 / math.pi)
    return 0.5 * x * (1.0 + jnp.tanh(c * (x + 0.044715 * x * x * x)))


# ----------------------------- fused Pallas kernel -----------------------------------

def _transformer_stack_kernel(x_ref,
                              ln1w_ref, ln1b_ref, wqkv_ref, bqkv_ref,
                              wproj_ref, bproj_ref,
                              ln2w_ref, ln2b_ref, wfc1_ref, bfc1_ref,
                              wfc2_ref, bfc2_ref,
                              o_ref):
    """All `depth` transformer blocks for one (bt, N, C) batch tile, VMEM-resident."""
    bt, n_tok, c = x_ref.shape
    rows = bt * n_tok                            # big projections run on the row slab
    depth = wqkv_ref.shape[0]

    def layer(l, x):                             # x: (rows, c) f32 residual stream
        # ---------------- attention sublayer ----------------
        y = _layernorm(x, ln1w_ref[l], ln1b_ref[l]).astype(jnp.bfloat16)
        # 1/sqrt(head_dim) is pre-folded into the q columns of wqkv/bqkv at init.
        qkv = jnp.dot(y, wqkv_ref[l], preferred_element_type=jnp.float32) + bqkv_ref[l]
        q = qkv[:, 0 * c:1 * c].astype(jnp.bfloat16)   # 128-lane aligned slices
        k = qkv[:, 1 * c:2 * c].astype(jnp.bfloat16)
        v = qkv[:, 2 * c:3 * c].astype(jnp.bfloat16)

        wproj = wproj_ref[l]
        attn = jnp.zeros((rows, c), jnp.float32)
        for h in range(NUM_HEADS):               # static 8-way; slices are compile-time
            lo = h * HEAD_DIM
            qh = q[:, lo:lo + HEAD_DIM].reshape(bt, n_tok, HEAD_DIM)
            kh = k[:, lo:lo + HEAD_DIM].reshape(bt, n_tok, HEAD_DIM)
            vh = v[:, lo:lo + HEAD_DIM].reshape(bt, n_tok, HEAD_DIM)
            # batched over the folded batch dim; bf16 MXU operands, f32 accumulate
            s = jnp.einsum('bqd,bkd->bqk', qh, kh,
                           preferred_element_type=jnp.float32)
            s = s - jnp.max(s, axis=-1, keepdims=True)
            p = jnp.exp(s)
            p = p * pl.reciprocal(jnp.sum(p, axis=-1, keepdims=True), approx=True)
            oh = jnp.einsum('bqk,bkd->bqd', p.astype(jnp.bfloat16), vh,
                            preferred_element_type=jnp.float32)
            # no lane-offset concat: accumulate this head through its wproj row block
            attn = attn + jnp.dot(oh.reshape(rows, HEAD_DIM).astype(jnp.bfloat16),
                                  wproj[lo:lo + HEAD_DIM, :],
                                  preferred_element_type=jnp.float32)
        x = x + attn + bproj_ref[l]                                       # residual

        # ---------------- MLP sublayer ----------------
        y = _layernorm(x, ln2w_ref[l], ln2b_ref[l]).astype(jnp.bfloat16)
        h1 = jnp.dot(y, wfc1_ref[l], preferred_element_type=jnp.float32) + bfc1_ref[l]
        h1 = _gelu(h1).astype(jnp.bfloat16)
        h2 = jnp.dot(h1, wfc2_ref[l], preferred_element_type=jnp.float32) + bfc2_ref[l]
        return x + h2

    x = x_ref[...].reshape(rows, c)              # tile-aligned merge (N % 8 == 0)
    x = lax.fori_loop(0, depth, layer, x)
    o_ref[...] = x.reshape(bt, n_tok, c).astype(o_ref.dtype)


def self_attention_block_forward(x, params):
    """x: (B, N, DIM) f32 -> (B, N, DIM) f32."""
    B, N, C = x.shape

    # Fold as many batch elements as possible into one grid step: the big projections
    # then see bt*N rows on the MXU, and for small B there is a single grid step so
    # the ~6.3 MiB bf16 weight set is DMA'd exactly once.
    bt = max(1, min(B, max(1, 1024 // N)))
    while B % bt:
        bt -= 1
    grid = (B // bt,)

    w_args = (
        params["ln1_w"], params["ln1_b"], params["wqkv"], params["bqkv"],
        params["wproj"], params["bproj"],
        params["ln2_w"], params["ln2_b"], params["wfc1"], params["bfc1"],
        params["wfc2"], params["bfc2"],
    )

    def full_spec(arr):
        # Whole array resident per step; constant block index so it is fetched once.
        # (On larger configs these could also be marked pipeline_mode=pl.Buffered(1)
        #  to drop the second weight buffer.)
        nd = arr.ndim
        return pl.BlockSpec(arr.shape, lambda b, _nd=nd: (0,) * _nd)

    in_specs = [pl.BlockSpec((bt, N, C), lambda b: (b, 0, 0))]
    in_specs += [full_spec(w) for w in w_args]

    return pl.pallas_call(
        _transformer_stack_kernel,
        out_shape=jax.ShapeDtypeStruct((B, N, C), jnp.float32),
        grid=grid,
        in_specs=in_specs,
        out_specs=pl.BlockSpec((bt, N, C), lambda b: (b, 0, 0)),
        compiler_params=pltpu.CompilerParams(
            # Weight DMA dominates at small batch: keep the grid short instead of
            # splitting a tiny batch across TensorCores (which would duplicate it).
            dimension_semantics=("arbitrary",),
            vmem_limit_bytes=32 * 1024 * 1024,   # v5e scoped default (16 MiB) too small
        ),
    )(x, *w_args)


# ----------------------------- pure-JAX reference ------------------------------------

def reference_forward(x, params):
    B, N, C = x.shape
    L = params["wqkv"].shape[0]
    H, hd = NUM_HEADS, HEAD_DIM
    hi = jax.lax.Precision.HIGHEST
    f32 = lambda a: a.astype(jnp.float32)
    for l in range(L):
        y = _layernorm(x, params["ln1_w"][l], params["ln1_b"][l])
        qkv = jnp.dot(y, f32(params["wqkv"][l]), precision=hi) + params["bqkv"][l]
        qkv = qkv.reshape(B, N, 3, H, hd)
        q = jnp.transpose(qkv[:, :, 0], (0, 2, 1, 3))                     # (B,H,N,hd)
        k = jnp.transpose(qkv[:, :, 1], (0, 2, 1, 3))
        v = jnp.transpose(qkv[:, :, 2], (0, 2, 1, 3))
        s = jnp.einsum("bhnd,bhmd->bhnm", q, k, precision=hi)             # scale folded
        p = jax.nn.softmax(s, axis=-1)
        o = jnp.einsum("bhnm,bhmd->bhnd", p, v, precision=hi)
        o = jnp.transpose(o, (0, 2, 1, 3)).reshape(B, N, C)
        o = jnp.dot(o, f32(params["wproj"][l]), precision=hi) + params["bproj"][l]
        x = x + o
        y = _layernorm(x, params["ln2_w"][l], params["ln2_b"][l])
        h1 = _gelu(jnp.dot(y, f32(params["wfc1"][l]), precision=hi) + params["bfc1"][l])
        x = x + jnp.dot(h1, f32(params["wfc2"][l]), precision=hi) + params["bfc2"][l]
    return x


# ----------------------------- deterministic params ----------------------------------

def init_params(key, *, dim=DIM, depth=DEPTH, num_heads=NUM_HEADS, hidden=MLP_HIDDEN):
    """Matches the PyTorch _init_weights: xavier_uniform Linear weights, zero biases,
    LayerNorm weight=1 / bias=0. MXU-facing weights are stored in bf16 once here."""
    head_dim = dim // num_heads

    def xavier(k, shape):
        fan_in, fan_out = shape[-2], shape[-1]
        lim = math.sqrt(6.0 / (fan_in + fan_out))
        return jax.random.uniform(k, shape, jnp.float32, -lim, lim)

    ks = jax.random.split(key, 4)

    # Fold the 1/sqrt(head_dim) attention scale into the q projection (weights + bias)
    # once at init so the kernel never multiplies the (N, N) score tiles.
    scale = 1.0 / math.sqrt(head_dim)
    q_scale = jnp.concatenate([jnp.full((dim,), scale, jnp.float32),
                               jnp.ones((2 * dim,), jnp.float32)])
    wqkv = xavier(ks[0], (depth, dim, 3 * dim)) * q_scale
    bqkv = jnp.zeros((depth, 1, 3 * dim), jnp.float32) * q_scale

    return {
        "ln1_w": jnp.ones((depth, 1, dim), jnp.float32),
        "ln1_b": jnp.zeros((depth, 1, dim), jnp.float32),
        "ln2_w": jnp.ones((depth, 1, dim), jnp.float32),
        "ln2_b": jnp.zeros((depth, 1, dim), jnp.float32),
        "wqkv": wqkv.astype(jnp.bfloat16),
        "bqkv": bqkv,
        "wproj": xavier(ks[1], (depth, dim, dim)).astype(jnp.bfloat16),
        "bproj": jnp.zeros((depth, 1, dim), jnp.float32),
        "wfc1": xavier(ks[2], (depth, dim, hidden)).astype(jnp.bfloat16),
        "bfc1": jnp.zeros((depth, 1, hidden), jnp.float32),
        "wfc2": xavier(ks[3], (depth, hidden, dim)).astype(jnp.bfloat16),
        "bfc2": jnp.zeros((depth, 1, dim), jnp.float32),
    }


# ----------------------------- main ---------------------------------------------------

if __name__ == "__main__":
    key = jax.random.PRNGKey(0)
    kx, kp = jax.random.split(key)

    B, N = 2, 16                       # small: 2 batch elements, 16 tokens, dim=256
    x = jax.random.normal(kx, (B, N, DIM), jnp.float32)
    params = init_params(kp)

    fwd = jax.jit(self_attention_block_forward)
    out = jax.block_until_ready(fwd(x, params))

    assert out.shape == (B, N, DIM), out.shape
    assert bool(jnp.all(jnp.isfinite(out)))

    # correctness vs pure-JAX f32 reference (weights shared in bf16; kernel additionally
    # feeds the MXU bf16 activations, f32 accumulation)
    ref = jax.block_until_ready(jax.jit(reference_forward)(x, params))
    max_err = float(jnp.max(jnp.abs(out - ref)))
    assert jnp.allclose(out, ref, rtol=3e-2, atol=3e-2), max_err

    print("KERNEL_OK")
</pallas_src>

<mosaic_0001>
module attributes {stable_mosaic.version = 11 : i64} {
  func.func @_transformer_stack_kernel(%arg0: i32, %arg1: memref<2x16x256xf32, #tpu.memory_space<vmem>>, %arg2: memref<4x1x256xf32, #tpu.memory_space<vmem>>, %arg3: memref<4x1x256xf32, #tpu.memory_space<vmem>>, %arg4: memref<4x256x768xbf16, #tpu.memory_space<vmem>>, %arg5: memref<4x1x768xf32, #tpu.memory_space<vmem>>, %arg6: memref<4x256x256xbf16, #tpu.memory_space<vmem>>, %arg7: memref<4x1x256xf32, #tpu.memory_space<vmem>>, %arg8: memref<4x1x256xf32, #tpu.memory_space<vmem>>, %arg9: memref<4x1x256xf32, #tpu.memory_space<vmem>>, %arg10: memref<4x256x1024xbf16, #tpu.memory_space<vmem>>, %arg11: memref<4x1x1024xf32, #tpu.memory_space<vmem>>, %arg12: memref<4x1024x256xbf16, #tpu.memory_space<vmem>>, %arg13: memref<4x1x256xf32, #tpu.memory_space<vmem>>, %arg14: memref<2x16x256xf32, #tpu.memory_space<vmem>>) attributes {dimension_semantics = [#tpu.dimension_semantics<arbitrary>], iteration_bounds = array<i64: 1>, scalar_prefetch = 0 : i64, scratch_operands = 0 : i64, tpu.core_type = #tpu.core_type<tc>, window_params = [{transform_indices = @transform_0, window_bounds = array<i64: 2, 16, 256>}, {pipeline_mode = #tpu.pipeline_mode<synchronous>, transform_indices = @transform_1, window_bounds = array<i64: 4, 1, 256>}, {pipeline_mode = #tpu.pipeline_mode<synchronous>, transform_indices = @transform_2, window_bounds = array<i64: 4, 1, 256>}, {pipeline_mode = #tpu.pipeline_mode<synchronous>, transform_indices = @transform_3, window_bounds = array<i64: 4, 256, 768>}, {pipeline_mode = #tpu.pipeline_mode<synchronous>, transform_indices = @transform_4, window_bounds = array<i64: 4, 1, 768>}, {pipeline_mode = #tpu.pipeline_mode<synchronous>, transform_indices = @transform_5, window_bounds = array<i64: 4, 256, 256>}, {pipeline_mode = #tpu.pipeline_mode<synchronous>, transform_indices = @transform_6, window_bounds = array<i64: 4, 1, 256>}, {pipeline_mode = #tpu.pipeline_mode<synchronous>, transform_indices = @transform_7, window_bounds = array<i64: 4, 1, 256>}, {pipeline_mode = #tpu.pipeline_mode<synchronous>, transform_indices = @transform_8, window_bounds = array<i64: 4, 1, 256>}, {pipeline_mode = #tpu.pipeline_mode<synchronous>, transform_indices = @transform_9, window_bounds = array<i64: 4, 256, 1024>}, {pipeline_mode = #tpu.pipeline_mode<synchronous>, transform_indices = @transform_10, window_bounds = array<i64: 4, 1, 1024>}, {pipeline_mode = #tpu.pipeline_mode<synchronous>, transform_indices = @transform_11, window_bounds = array<i64: 4, 1024, 256>}, {pipeline_mode = #tpu.pipeline_mode<synchronous>, transform_indices = @transform_12, window_bounds = array<i64: 4, 1, 256>}, {transform_indices = @transform_13, window_bounds = array<i64: 2, 16, 256>}]} {
    %c0 = arith.constant 0 : index
    %c0_0 = arith.constant 0 : index
    %c0_1 = arith.constant 0 : index
    %0 = vector.load %arg1[%c0, %c0_0, %c0_1] : memref<2x16x256xf32, #tpu.memory_space<vmem>>, vector<2x16x256xf32>
    %1 = vector.shape_cast %0 : vector<2x16x256xf32> to vector<32x256xf32>
    %c0_i32 = arith.constant 0 : i32
    %c4_i32 = arith.constant 4 : i32
    %2 = arith.addi %c0_i32, %c4_i32 : i32
    %c1_i32 = arith.constant 1 : i32
    %3 = scf.for %arg15 = %c0_i32 to %2 step %c1_i32 iter_args(%arg16 = %1) -> (vector<32x256xf32>)  : i32 {
      %6 = arith.index_cast %arg15 : i32 to index
      %c0_6 = arith.constant 0 : index
      %c0_7 = arith.constant 0 : index
      %7 = vector.load %arg2[%6, %c0_6, %c0_7] : memref<4x1x256xf32, #tpu.memory_space<vmem>>, vector<1x1x256xf32>
      %8 = vector.shape_cast %7 : vector<1x1x256xf32> to vector<1x256xf32>
      %9 = arith.index_cast %arg15 : i32 to index
      %c0_8 = arith.constant 0 : index
      %c0_9 = arith.constant 0 : index
      %10 = vector.load %arg3[%9, %c0_8, %c0_9] : memref<4x1x256xf32, #tpu.memory_space<vmem>>, vector<1x1x256xf32>
      %11 = vector.shape_cast %10 : vector<1x1x256xf32> to vector<1x256xf32>
      %cst = arith.constant dense<0.000000e+00> : vector<32xf32>
      %12 = vector.multi_reduction <add>, %arg16, %cst [1] : vector<32x256xf32> to vector<32xf32>
      %13 = vector.shape_cast %12 : vector<32xf32> to vector<32x1xf32>
      %cst_10 = arith.constant 2.560000e+02 : f32
      %14 = vector.broadcast %cst_10 : f32 to vector<32x1xf32>
      %15 = arith.divf %13, %14 : vector<32x1xf32>
      %16 = vector.broadcast %15 : vector<32x1xf32> to vector<32x256xf32>
      %17 = arith.subf %arg16, %16 : vector<32x256xf32>
      %18 = arith.mulf %17, %17 : vector<32x256xf32>
      %cst_11 = arith.constant dense<0.000000e+00> : vector<32xf32>
      %19 = vector.multi_reduction <add>, %18, %cst_11 [1] : vector<32x256xf32> to vector<32xf32>
      %20 = vector.shape_cast %19 : vector<32xf32> to vector<32x1xf32>
      %cst_12 = arith.constant 2.560000e+02 : f32
      %21 = vector.broadcast %cst_12 : f32 to vector<32x1xf32>
      %22 = arith.divf %20, %21 : vector<32x1xf32>
      %cst_13 = arith.constant 9.99999997E-7 : f32
      %23 = vector.broadcast %cst_13 : f32 to vector<32x1xf32>
      %24 = arith.addf %22, %23 : vector<32x1xf32>
      %25 = math.rsqrt %24 : vector<32x1xf32>
      %26 = vector.broadcast %25 : vector<32x1xf32> to vector<32x256xf32>
      %27 = arith.mulf %17, %26 : vector<32x256xf32>
      %28 = vector.broadcast %8 : vector<1x256xf32> to vector<32x256xf32>
      %29 = arith.mulf %27, %28 : vector<32x256xf32>
      %30 = vector.broadcast %11 : vector<1x256xf32> to vector<32x256xf32>
      %31 = arith.addf %29, %30 : vector<32x256xf32>
      %32 = arith.truncf %31 : vector<32x256xf32> to vector<32x256xbf16>
      %33 = arith.index_cast %arg15 : i32 to index
      %c0_14 = arith.constant 0 : index
      %c0_15 = arith.constant 0 : index
      %34 = vector.load %arg4[%33, %c0_14, %c0_15] : memref<4x256x768xbf16, #tpu.memory_space<vmem>>, vector<1x256x768xbf16>
      %35 = vector.shape_cast %34 : vector<1x256x768xbf16> to vector<256x768xbf16>
      %cst_16 = arith.constant dense<0.000000e+00> : vector<32x768xf32>
      %36 = tpu.matmul %32, %35, %cst_16 {dimension_numbers = #tpu.dot_dimension_numbers<[1], [0], [0], [1], [0, 0, 1, 1], [], []>} : vector<32x256xbf16>, vector<256x768xbf16>, vector<32x768xf32> -> vector<32x768xf32>
      %37 = arith.index_cast %arg15 : i32 to index
      %c0_17 = arith.constant 0 : index
      %c0_18 = arith.constant 0 : index
      %38 = vector.load %arg5[%37, %c0_17, %c0_18] : memref<4x1x768xf32, #tpu.memory_space<vmem>>, vector<1x1x768xf32>
      %39 = vector.shape_cast %38 : vector<1x1x768xf32> to vector<1x768xf32>
      %40 = vector.broadcast %39 : vector<1x768xf32> to vector<32x768xf32>
      %41 = arith.addf %36, %40 : vector<32x768xf32>
      %42 = vector.extract_strided_slice %41 {offsets = [0, 0], sizes = [32, 256], strides = [1, 1]} : vector<32x768xf32> to vector<32x256xf32>
      %43 = arith.truncf %42 : vector<32x256xf32> to vector<32x256xbf16>
      %44 = vector.extract_strided_slice %41 {offsets = [0, 256], sizes = [32, 256], strides = [1, 1]} : vector<32x768xf32> to vector<32x256xf32>
      %45 = arith.truncf %44 : vector<32x256xf32> to vector<32x256xbf16>
      %46 = vector.extract_strided_slice %41 {offsets = [0, 512], sizes = [32, 256], strides = [1, 1]} : vector<32x768xf32> to vector<32x256xf32>
      %47 = arith.truncf %46 : vector<32x256xf32> to vector<32x256xbf16>
      %48 = arith.index_cast %arg15 : i32 to index
      %c0_19 = arith.constant 0 : index
      %c0_20 = arith.constant 0 : index
      %49 = vector.load %arg6[%48, %c0_19, %c0_20] : memref<4x256x256xbf16, #tpu.memory_space<vmem>>, vector<1x256x256xbf16>
      %50 = vector.shape_cast %49 : vector<1x256x256xbf16> to vector<256x256xbf16>
      %cst_21 = arith.constant 0.000000e+00 : f32
      %51 = vector.broadcast %cst_21 : f32 to vector<32x256xf32>
      %52 = vector.extract_strided_slice %43 {offsets = [0, 0], sizes = [32, 32], strides = [1, 1]} : vector<32x256xbf16> to vector<32x32xbf16>
      %53 = vector.shape_cast %52 : vector<32x32xbf16> to vector<2x16x32xbf16>
      %54 = vector.extract_strided_slice %45 {offsets = [0, 0], sizes = [32, 32], strides = [1, 1]} : vector<32x256xbf16> to vector<32x32xbf16>
      %55 = vector.shape_cast %54 : vector<32x32xbf16> to vector<2x16x32xbf16>
      %56 = vector.extract_strided_slice %47 {offsets = [0, 0], sizes = [32, 32], strides = [1, 1]} : vector<32x256xbf16> to vector<32x32xbf16>
      %57 = vector.shape_cast %56 : vector<32x32xbf16> to vector<2x16x32xbf16>
      "tpu.trace_start"() <{level = 10 : i32, message = "bqd,bkd->bqk"}> : () -> ()
      %cst_22 = arith.constant dense<0.000000e+00> : vector<2x16x16xf32>
      %58 = tpu.matmul %53, %55, %cst_22 {dimension_numbers = #tpu.dot_dimension_numbers<[2], [2], [1], [1], [0, 0, 0, 1, 1, 1], [0], [0]>} : vector<2x16x32xbf16>, vector<2x16x32xbf16>, vector<2x16x16xf32> -> vector<2x16x16xf32>
      "tpu.trace_stop"() : () -> ()
      %cst_23 = arith.constant dense<0xFF800000> : vector<2x16xf32>
      %59 = vector.multi_reduction <maximumf>, %58, %cst_23 [2] : vector<2x16x16xf32> to vector<2x16xf32>
      %60 = vector.shape_cast %59 : vector<2x16xf32> to vector<2x16x1xf32>
      %61 = vector.broadcast %60 : vector<2x16x1xf32> to vector<2x16x16xf32>
      %62 = arith.subf %58, %61 : vector<2x16x16xf32>
      %63 = math.exp %62 : vector<2x16x16xf32>
      %cst_24 = arith.constant dense<0.000000e+00> : vector<2x16xf32>
      %64 = vector.multi_reduction <add>, %63, %cst_24 [2] : vector<2x16x16xf32> to vector<2x16xf32>
      %65 = vector.shape_cast %64 : vector<2x16xf32> to vector<2x16x1xf32>
      %66 = tpu.reciprocal %65 {approx = true} : vector<2x16x1xf32> -> vector<2x16x1xf32>
      %67 = vector.broadcast %66 : vector<2x16x1xf32> to vector<2x16x16xf32>
      %68 = arith.mulf %63, %67 : vector<2x16x16xf32>
      %69 = arith.truncf %68 : vector<2x16x16xf32> to vector<2x16x16xbf16>
      "tpu.trace_start"() <{level = 10 : i32, message = "bqk,bkd->bqd"}> : () -> ()
      %cst_25 = arith.constant dense<0.000000e+00> : vector<2x16x32xf32>
      %70 = tpu.matmul %69, %57, %cst_25 {dimension_numbers = #tpu.dot_dimension_numbers<[2], [1], [1], [2], [0, 0, 0, 1, 1, 2], [0], [0]>} : vector<2x16x16xbf16>, vector<2x16x32xbf16>, vector<2x16x32xf32> -> vector<2x16x32xf32>
      "tpu.trace_stop"() : () -> ()
      %71 = vector.shape_cast %70 : vector<2x16x32xf32> to vector<32x32xf32>
      %72 = arith.truncf %71 : vector<32x32xf32> to vector<32x32xbf16>
      %73 = vector.extract_strided_slice %50 {offsets = [0, 0], sizes = [32, 256], strides = [1, 1]} : vector<256x256xbf16> to vector<32x256xbf16>
      %cst_26 = arith.constant dense<0.000000e+00> : vector<32x256xf32>
      %74 = tpu.matmul %72, %73, %cst_26 {dimension_numbers = #tpu.dot_dimension_numbers<[1], [0], [0], [1], [0, 0, 1, 1], [], []>} : vector<32x32xbf16>, vector<32x256xbf16>, vector<32x256xf32> -> vector<32x256xf32>
      %75 = arith.addf %51, %74 : vector<32x256xf32>
      %76 = vector.extract_strided_slice %43 {offsets = [0, 32], sizes = [32, 32], strides = [1, 1]} : vector<32x256xbf16> to vector<32x32xbf16>
      %77 = vector.shape_cast %76 : vector<32x32xbf16> to vector<2x16x32xbf16>
      %78 = vector.extract_strided_slice %45 {offsets = [0, 32], sizes = [32, 32], strides = [1, 1]} : vector<32x256xbf16> to vector<32x32xbf16>
      %79 = vector.shape_cast %78 : vector<32x32xbf16> to vector<2x16x32xbf16>
      %80 = vector.extract_strided_slice %47 {offsets = [0, 32], sizes = [32, 32], strides = [1, 1]} : vector<32x256xbf16> to vector<32x32xbf16>
      %81 = vector.shape_cast %80 : vector<32x32xbf16> to vector<2x16x32xbf16>
      "tpu.trace_start"() <{level = 10 : i32, message = "bqd,bkd->bqk"}> : () -> ()
      %cst_27 = arith.constant dense<0.000000e+00> : vector<2x16x16xf32>
      %82 = tpu.matmul %77, %79, %cst_27 {dimension_numbers = #tpu.dot_dimension_numbers<[2], [2], [1], [1], [0, 0, 0, 1, 1, 1], [0], [0]>} : vector<2x16x32xbf16>, vector<2x16x32xbf16>, vector<2x16x16xf32> -> vector<2x16x16xf32>
      "tpu.trace_stop"() : () -> ()
      %cst_28 = arith.constant dense<0xFF800000> : vector<2x16xf32>
      %83 = vector.multi_reduction <maximumf>, %82, %cst_28 [2] : vector<2x16x16xf32> to vector<2x16xf32>
      %84 = vector.shape_cast %83 : vector<2x16xf32> to vector<2x16x1xf32>
      %85 = vector.broadcast %84 : vector<2x16x1xf32> to vector<2x16x16xf32>
      %86 = arith.subf %82, %85 : vector<2x16x16xf32>
      %87 = math.exp %86 : vector<2x16x16xf32>
      %cst_29 = arith.constant dense<0.000000e+00> : vector<2x16xf32>
      %88 = vector.multi_reduction <add>, %87, %cst_29 [2] : vector<2x16x16xf32> to vector<2x16xf32>
      %89 = vector.shape_cast %88 : vector<2x16xf32> to vector<2x16x1xf32>
      %90 = tpu.reciprocal %89 {approx = true} : vector<2x16x1xf32> -> vector<2x16x1xf32>
      %91 = vector.broadcast %90 : vector<2x16x1xf32> to vector<2x16x16xf32>
      %92 = arith.mulf %87, %91 : vector<2x16x16xf32>
      %93 = arith.truncf %92 : vector<2x16x16xf32> to vector<2x16x16xbf16>
      "tpu.trace_start"() <{level = 10 : i32, message = "bqk,bkd->bqd"}> : () -> ()
      %cst_30 = arith.constant dense<0.000000e+00> : vector<2x16x32xf32>
      %94 = tpu.matmul %93, %81, %cst_30 {dimension_numbers = #tpu.dot_dimension_numbers<[2], [1], [1], [2], [0, 0, 0, 1, 1, 2], [0], [0]>} : vector<2x16x16xbf16>, vector<2x16x32xbf16>, vector<2x16x32xf32> -> vector<2x16x32xf32>
      "tpu.trace_stop"() : () -> ()
      %95 = vector.shape_cast %94 : vector<2x16x32xf32> to vector<32x32xf32>
      %96 = arith.truncf %95 : vector<32x32xf32> to vector<32x32xbf16>
      %97 = vector.extract_strided_slice %50 {offsets = [32, 0], sizes = [32, 256], strides = [1, 1]} : vector<256x256xbf16> to vector<32x256xbf16>
      %cst_31 = arith.constant dense<0.000000e+00> : vector<32x256xf32>
      %98 = tpu.matmul %96, %97, %cst_31 {dimension_numbers = #tpu.dot_dimension_numbers<[1], [0], [0], [1], [0, 0, 1, 1], [], []>} : vector<32x32xbf16>, vector<32x256xbf16>, vector<32x256xf32> -> vector<32x256xf32>
      %99 = arith.addf %75, %98 : vector<32x256xf32>
      %100 = vector.extract_strided_slice %43 {offsets = [0, 64], sizes = [32, 32], strides = [1, 1]} : vector<32x256xbf16> to vector<32x32xbf16>
      %101 = vector.shape_cast %100 : vector<32x32xbf16> to vector<2x16x32xbf16>
      %102 = vector.extract_strided_slice %45 {offsets = [0, 64], sizes = [32, 32], strides = [1, 1]} : vector<32x256xbf16> to vector<32x32xbf16>
      %103 = vector.shape_cast %102 : vector<32x32xbf16> to vector<2x16x32xbf16>
      %104 = vector.extract_strided_slice %47 {offsets = [0, 64], sizes = [32, 32], strides = [1, 1]} : vector<32x256xbf16> to vector<32x32xbf16>
      %105 = vector.shape_cast %104 : vector<32x32xbf16> to vector<2x16x32xbf16>
      "tpu.trace_start"() <{level = 10 : i32, message = "bqd,bkd->bqk"}> : () -> ()
      %cst_32 = arith.constant dense<0.000000e+00> : vector<2x16x16xf32>
      %106 = tpu.matmul %101, %103, %cst_32 {dimension_numbers = #tpu.dot_dimension_numbers<[2], [2], [1], [1], [0, 0, 0, 1, 1, 1], [0], [0]>} : vector<2x16x32xbf16>, vector<2x16x32xbf16>, vector<2x16x16xf32> -> vector<2x16x16xf32>
      "tpu.trace_stop"() : () -> ()
      %cst_33 = arith.constant dense<0xFF800000> : vector<2x16xf32>
      %107 = vector.multi_reduction <maximumf>, %106, %cst_33 [2] : vector<2x16x16xf32> to vector<2x16xf32>
      %108 = vector.shape_cast %107 : vector<2x16xf32> to vector<2x16x1xf32>
      %109 = vector.broadcast %108 : vector<2x16x1xf32> to vector<2x16x16xf32>
      %110 = arith.subf %106, %109 : vector<2x16x16xf32>
      %111 = math.exp %110 : vector<2x16x16xf32>
      %cst_34 = arith.constant dense<0.000000e+00> : vector<2x16xf32>
      %112 = vector.multi_reduction <add>, %111, %cst_34 [2] : vector<2x16x16xf32> to vector<2x16xf32>
      %113 = vector.shape_cast %112 : vector<2x16xf32> to vector<2x16x1xf32>
      %114 = tpu.reciprocal %113 {approx = true} : vector<2x16x1xf32> -> vector<2x16x1xf32>
      %115 = vector.broadcast %114 : vector<2x16x1xf32> to vector<2x16x16xf32>
      %116 = arith.mulf %111, %115 : vector<2x16x16xf32>
      %117 = arith.truncf %116 : vector<2x16x16xf32> to vector<2x16x16xbf16>
      "tpu.trace_start"() <{level = 10 : i32, message = "bqk,bkd->bqd"}> : () -> ()
      %cst_35 = arith.constant dense<0.000000e+00> : vector<2x16x32xf32>
      %118 = tpu.matmul %117, %105, %cst_35 {dimension_numbers = #tpu.dot_dimension_numbers<[2], [1], [1], [2], [0, 0, 0, 1, 1, 2], [0], [0]>} : vector<2x16x16xbf16>, vector<2x16x32xbf16>, vector<2x16x32xf32> -> vector<2x16x32xf32>
      "tpu.trace_stop"() : () -> ()
      %119 = vector.shape_cast %118 : vector<2x16x32xf32> to vector<32x32xf32>
      %120 = arith.truncf %119 : vector<32x32xf32> to vector<32x32xbf16>
      %121 = vector.extract_strided_slice %50 {offsets = [64, 0], sizes = [32, 256], strides = [1, 1]} : vector<256x256xbf16> to vector<32x256xbf16>
      %cst_36 = arith.constant dense<0.000000e+00> : vector<32x256xf32>
      %122 = tpu.matmul %120, %121, %cst_36 {dimension_numbers = #tpu.dot_dimension_numbers<[1], [0], [0], [1], [0, 0, 1, 1], [], []>} : vector<32x32xbf16>, vector<32x256xbf16>, vector<32x256xf32> -> vector<32x256xf32>
      %123 = arith.addf %99, %122 : vector<32x256xf32>
      %124 = vector.extract_strided_slice %43 {offsets = [0, 96], sizes = [32, 32], strides = [1, 1]} : vector<32x256xbf16> to vector<32x32xbf16>
      %125 = vector.shape_cast %124 : vector<32x32xbf16> to vector<2x16x32xbf16>
      %126 = vector.extract_strided_slice %45 {offsets = [0, 96], sizes = [32, 32], strides = [1, 1]} : vector<32x256xbf16> to vector<32x32xbf16>
      %127 = vector.shape_cast %126 : vector<32x32xbf16> to vector<2x16x32xbf16>
      %128 = vector.extract_strided_slice %47 {offsets = [0, 96], sizes = [32, 32], strides = [1, 1]} : vector<32x256xbf16> to vector<32x32xbf16>
      %129 = vector.shape_cast %128 : vector<32x32xbf16> to vector<2x16x32xbf16>
      "tpu.trace_start"() <{level = 10 : i32, message = "bqd,bkd->bqk"}> : () -> ()
      %cst_37 = arith.constant dense<0.000000e+00> : vector<2x16x16xf32>
      %130 = tpu.matmul %125, %127, %cst_37 {dimension_numbers = #tpu.dot_dimension_numbers<[2], [2], [1], [1], [0, 0, 0, 1, 1, 1], [0], [0]>} : vector<2x16x32xbf16>, vector<2x16x32xbf16>, vector<2x16x16xf32> -> vector<2x16x16xf32>
      "tpu.trace_stop"() : () -> ()
      %cst_38 = arith.constant dense<0xFF800000> : vector<2x16xf32>
      %131 = vector.multi_reduction <maximumf>, %130, %cst_38 [2] : vector<2x16x16xf32> to vector<2x16xf32>
      %132 = vector.shape_cast %131 : vector<2x16xf32> to vector<2x16x1xf32>
      %133 = vector.broadcast %132 : vector<2x16x1xf32> to vector<2x16x16xf32>
      %134 = arith.subf %130, %133 : vector<2x16x16xf32>
      %135 = math.exp %134 : vector<2x16x16xf32>
      %cst_39 = arith.constant dense<0.000000e+00> : vector<2x16xf32>
      %136 = vector.multi_reduction <add>, %135, %cst_39 [2] : vector<2x16x16xf32> to vector<2x16xf32>
      %137 = vector.shape_cast %136 : vector<2x16xf32> to vector<2x16x1xf32>
      %138 = tpu.reciprocal %137 {approx = true} : vector<2x16x1xf32> -> vector<2x16x1xf32>
      %139 = vector.broadcast %138 : vector<2x16x1xf32> to vector<2x16x16xf32>
      %140 = arith.mulf %135, %139 : vector<2x16x16xf32>
      %141 = arith.truncf %140 : vector<2x16x16xf32> to vector<2x16x16xbf16>
      "tpu.trace_start"() <{level = 10 : i32, message = "bqk,bkd->bqd"}> : () -> ()
      %cst_40 = arith.constant dense<0.000000e+00> : vector<2x16x32xf32>
      %142 = tpu.matmul %141, %129, %cst_40 {dimension_numbers = #tpu.dot_dimension_numbers<[2], [1], [1], [2], [0, 0, 0, 1, 1, 2], [0], [0]>} : vector<2x16x16xbf16>, vector<2x16x32xbf16>, vector<2x16x32xf32> -> vector<2x16x32xf32>
      "tpu.trace_stop"() : () -> ()
      %143 = vector.shape_cast %142 : vector<2x16x32xf32> to vector<32x32xf32>
      %144 = arith.truncf %143 : vector<32x32xf32> to vector<32x32xbf16>
      %145 = vector.extract_strided_slice %50 {offsets = [96, 0], sizes = [32, 256], strides = [1, 1]} : vector<256x256xbf16> to vector<32x256xbf16>
      %cst_41 = arith.constant dense<0.000000e+00> : vector<32x256xf32>
      %146 = tpu.matmul %144, %145, %cst_41 {dimension_numbers = #tpu.dot_dimension_numbers<[1], [0], [0], [1], [0, 0, 1, 1], [], []>} : vector<32x32xbf16>, vector<32x256xbf16>, vector<32x256xf32> -> vector<32x256xf32>
      %147 = arith.addf %123, %146 : vector<32x256xf32>
      %148 = vector.extract_strided_slice %43 {offsets = [0, 128], sizes = [32, 32], strides = [1, 1]} : vector<32x256xbf16> to vector<32x32xbf16>
      %149 = vector.shape_cast %148 : vector<32x32xbf16> to vector<2x16x32xbf16>
      %150 = vector.extract_strided_slice %45 {offsets = [0, 128], sizes = [32, 32], strides = [1, 1]} : vector<32x256xbf16> to vector<32x32xbf16>
      %151 = vector.shape_cast %150 : vector<32x32xbf16> to vector<2x16x32xbf16>
      %152 = vector.extract_strided_slice %47 {offsets = [0, 128], sizes = [32, 32], strides = [1, 1]} : vector<32x256xbf16> to vector<32x32xbf16>
      %153 = vector.shape_cast %152 : vector<32x32xbf16> to vector<2x16x32xbf16>
      "tpu.trace_start"() <{level = 10 : i32, message = "bqd,bkd->bqk"}> : () -> ()
      %cst_42 = arith.constant dense<0.000000e+00> : vector<2x16x16xf32>
      %154 = tpu.matmul %149, %151, %cst_42 {dimension_numbers = #tpu.dot_dimension_numbers<[2], [2], [1], [1], [0, 0, 0, 1, 1, 1], [0], [0]>} : vector<2x16x32xbf16>, vector<2x16x32xbf16>, vector<2x16x16xf32> -> vector<2x16x16xf32>
      "tpu.trace_stop"() : () -> ()
      %cst_43 = arith.constant dense<0xFF800000> : vector<2x16xf32>
      %155 = vector.multi_reduction <maximumf>, %154, %cst_43 [2] : vector<2x16x16xf32> to vector<2x16xf32>
      %156 = vector.shape_cast %155 : vector<2x16xf32> to vector<2x16x1xf32>
      %157 = vector.broadcast %156 : vector<2x16x1xf32> to vector<2x16x16xf32>
      %158 = arith.subf %154, %157 : vector<2x16x16xf32>
      %159 = math.exp %158 : vector<2x16x16xf32>
      %cst_44 = arith.constant dense<0.000000e+00> : vector<2x16xf32>
      %160 = vector.multi_reduction <add>, %159, %cst_44 [2] : vector<2x16x16xf32> to vector<2x16xf32>
      %161 = vector.shape_cast %160 : vector<2x16xf32> to vector<2x16x1xf32>
      %162 = tpu.reciprocal %161 {approx = true} : vector<2x16x1xf32> -> vector<2x16x1xf32>
      %163 = vector.broadcast %162 : vector<2x16x1xf32> to vector<2x16x16xf32>
      %164 = arith.mulf %159, %163 : vector<2x16x16xf32>
      %165 = arith.truncf %164 : vector<2x16x16xf32> to vector<2x16x16xbf16>
      "tpu.trace_start"() <{level = 10 : i32, message = "bqk,bkd->bqd"}> : () -> ()
      %cst_45 = arith.constant dense<0.000000e+00> : vector<2x16x32xf32>
      %166 = tpu.matmul %165, %153, %cst_45 {dimension_numbers = #tpu.dot_dimension_numbers<[2], [1], [1], [2], [0, 0, 0, 1, 1, 2], [0], [0]>} : vector<2x16x16xbf16>, vector<2x16x32xbf16>, vector<2x16x32xf32> -> vector<2x16x32xf32>
      "tpu.trace_stop"() : () -> ()
      %167 = vector.shape_cast %166 : vector<2x16x32xf32> to vector<32x32xf32>
      %168 = arith.truncf %167 : vector<32x32xf32> to vector<32x32xbf16>
      %169 = vector.extract_strided_slice %50 {offsets = [128, 0], sizes = [32, 256], strides = [1, 1]} : vector<256x256xbf16> to vector<32x256xbf16>
      %cst_46 = arith.constant dense<0.000000e+00> : vector<32x256xf32>
      %170 = tpu.matmul %168, %169, %cst_46 {dimension_numbers = #tpu.dot_dimension_numbers<[1], [0], [0], [1], [0, 0, 1, 1], [], []>} : vector<32x32xbf16>, vector<32x256xbf16>, vector<32x256xf32> -> vector<32x256xf32>
      %171 = arith.addf %147, %170 : vector<32x256xf32>
      %172 = vector.extract_strided_slice %43 {offsets = [0, 160], sizes = [32, 32], strides = [1, 1]} : vector<32x256xbf16> to vector<32x32xbf16>
      %173 = vector.shape_cast %172 : vector<32x32xbf16> to vector<2x16x32xbf16>
      %174 = vector.extract_strided_slice %45 {offsets = [0, 160], sizes = [32, 32], strides = [1, 1]} : vector<32x256xbf16> to vector<32x32xbf16>
      %175 = vector.shape_cast %174 : vector<32x32xbf16> to vector<2x16x32xbf16>
      %176 = vector.extract_strided_slice %47 {offsets = [0, 160], sizes = [32, 32], strides = [1, 1]} : vector<32x256xbf16> to vector<32x32xbf16>
      %177 = vector.shape_cast %176 : vector<32x32xbf16> to vector<2x16x32xbf16>
      "tpu.trace_start"() <{level = 10 : i32, message = "bqd,bkd->bqk"}> : () -> ()
      %cst_47 = arith.constant dense<0.000000e+00> : vector<2x16x16xf32>
      %178 = tpu.matmul %173, %175, %cst_47 {dimension_numbers = #tpu.dot_dimension_numbers<[2], [2], [1], [1], [0, 0, 0, 1, 1, 1], [0], [0]>} : vector<2x16x32xbf16>, vector<2x16x32xbf16>, vector<2x16x16xf32> -> vector<2x16x16xf32>
      "tpu.trace_stop"() : () -> ()
      %cst_48 = arith.constant dense<0xFF800000> : vector<2x16xf32>
      %179 = vector.multi_reduction <maximumf>, %178, %cst_48 [2] : vector<2x16x16xf32> to vector<2x16xf32>
      %180 = vector.shape_cast %179 : vector<2x16xf32> to vector<2x16x1xf32>
      %181 = vector.broadcast %180 : vector<2x16x1xf32> to vector<2x16x16xf32>
      %182 = arith.subf %178, %181 : vector<2x16x16xf32>
      %183 = math.exp %182 : vector<2x16x16xf32>
      %cst_49 = arith.constant dense<0.000000e+00> : vector<2x16xf32>
      %184 = vector.multi_reduction <add>, %183, %cst_49 [2] : vector<2x16x16xf32> to vector<2x16xf32>
      %185 = vector.shape_cast %184 : vector<2x16xf32> to vector<2x16x1xf32>
      %186 = tpu.reciprocal %185 {approx = true} : vector<2x16x1xf32> -> vector<2x16x1xf32>
      %187 = vector.broadcast %186 : vector<2x16x1xf32> to vector<2x16x16xf32>
      %188 = arith.mulf %183, %187 : vector<2x16x16xf32>
      %189 = arith.truncf %188 : vector<2x16x16xf32> to vector<2x16x16xbf16>
      "tpu.trace_start"() <{level = 10 : i32, message = "bqk,bkd->bqd"}> : () -> ()
      %cst_50 = arith.constant dense<0.000000e+00> : vector<2x16x32xf32>
      %190 = tpu.matmul %189, %177, %cst_50 {dimension_numbers = #tpu.dot_dimension_numbers<[2], [1], [1], [2], [0, 0, 0, 1, 1, 2], [0], [0]>} : vector<2x16x16xbf16>, vector<2x16x32xbf16>, vector<2x16x32xf32> -> vector<2x16x32xf32>
      "tpu.trace_stop"() : () -> ()
      %191 = vector.shape_cast %190 : vector<2x16x32xf32> to vector<32x32xf32>
      %192 = arith.truncf %191 : vector<32x32xf32> to vector<32x32xbf16>
      %193 = vector.extract_strided_slice %50 {offsets = [160, 0], sizes = [32, 256], strides = [1, 1]} : vector<256x256xbf16> to vector<32x256xbf16>
      %cst_51 = arith.constant dense<0.000000e+00> : vector<32x256xf32>
      %194 = tpu.matmul %192, %193, %cst_51 {dimension_numbers = #tpu.dot_dimension_numbers<[1], [0], [0], [1], [0, 0, 1, 1], [], []>} : vector<32x32xbf16>, vector<32x256xbf16>, vector<32x256xf32> -> vector<32x256xf32>
      %195 = arith.addf %171, %194 : vector<32x256xf32>
      %196 = vector.extract_strided_slice %43 {offsets = [0, 192], sizes = [32, 32], strides = [1, 1]} : vector<32x256xbf16> to vector<32x32xbf16>
      %197 = vector.shape_cast %196 : vector<32x32xbf16> to vector<2x16x32xbf16>
      %198 = vector.extract_strided_slice %45 {offsets = [0, 192], sizes = [32, 32], strides = [1, 1]} : vector<32x256xbf16> to vector<32x32xbf16>
      %199 = vector.shape_cast %198 : vector<32x32xbf16> to vector<2x16x32xbf16>
      %200 = vector.extract_strided_slice %47 {offsets = [0, 192], sizes = [32, 32], strides = [1, 1]} : vector<32x256xbf16> to vector<32x32xbf16>
      %201 = vector.shape_cast %200 : vector<32x32xbf16> to vector<2x16x32xbf16>
      "tpu.trace_start"() <{level = 10 : i32, message = "bqd,bkd->bqk"}> : () -> ()
      %cst_52 = arith.constant dense<0.000000e+00> : vector<2x16x16xf32>
      %202 = tpu.matmul %197, %199, %cst_52 {dimension_numbers = #tpu.dot_dimension_numbers<[2], [2], [1], [1], [0, 0, 0, 1, 1, 1], [0], [0]>} : vector<2x16x32xbf16>, vector<2x16x32xbf16>, vector<2x16x16xf32> -> vector<2x16x16xf32>
      "tpu.trace_stop"() : () -> ()
      %cst_53 = arith.constant dense<0xFF800000> : vector<2x16xf32>
      %203 = vector.multi_reduction <maximumf>, %202, %cst_53 [2] : vector<2x16x16xf32> to vector<2x16xf32>
      %204 = vector.shape_cast %203 : vector<2x16xf32> to vector<2x16x1xf32>
      %205 = vector.broadcast %204 : vector<2x16x1xf32> to vector<2x16x16xf32>
      %206 = arith.subf %202, %205 : vector<2x16x16xf32>
      %207 = math.exp %206 : vector<2x16x16xf32>
      %cst_54 = arith.constant dense<0.000000e+00> : vector<2x16xf32>
      %208 = vector.multi_reduction <add>, %207, %cst_54 [2] : vector<2x16x16xf32> to vector<2x16xf32>
      %209 = vector.shape_cast %208 : vector<2x16xf32> to vector<2x16x1xf32>
      %210 = tpu.reciprocal %209 {approx = true} : vector<2x16x1xf32> -> vector<2x16x1xf32>
      %211 = vector.broadcast %210 : vector<2x16x1xf32> to vector<2x16x16xf32>
      %212 = arith.mulf %207, %211 : vector<2x16x16xf32>
      %213 = arith.truncf %212 : vector<2x16x16xf32> to vector<2x16x16xbf16>
      "tpu.trace_start"() <{level = 10 : i32, message = "bqk,bkd->bqd"}> : () -> ()
      %cst_55 = arith.constant dense<0.000000e+00> : vector<2x16x32xf32>
      %214 = tpu.matmul %213, %201, %cst_55 {dimension_numbers = #tpu.dot_dimension_numbers<[2], [1], [1], [2], [0, 0, 0, 1, 1, 2], [0], [0]>} : vector<2x16x16xbf16>, vector<2x16x32xbf16>, vector<2x16x32xf32> -> vector<2x16x32xf32>
      "tpu.trace_stop"() : () -> ()
      %215 = vector.shape_cast %214 : vector<2x16x32xf32> to vector<32x32xf32>
      %216 = arith.truncf %215 : vector<32x32xf32> to vector<32x32xbf16>
      %217 = vector.extract_strided_slice %50 {offsets = [192, 0], sizes = [32, 256], strides = [1, 1]} : vector<256x256xbf16> to vector<32x256xbf16>
      %cst_56 = arith.constant dense<0.000000e+00> : vector<32x256xf32>
      %218 = tpu.matmul %216, %217, %cst_56 {dimension_numbers = #tpu.dot_dimension_numbers<[1], [0], [0], [1], [0, 0, 1, 1], [], []>} : vector<32x32xbf16>, vector<32x256xbf16>, vector<32x256xf32> -> vector<32x256xf32>
      %219 = arith.addf %195, %218 : vector<32x256xf32>
      %220 = vector.extract_strided_slice %43 {offsets = [0, 224], sizes = [32, 32], strides = [1, 1]} : vector<32x256xbf16> to vector<32x32xbf16>
      %221 = vector.shape_cast %220 : vector<32x32xbf16> to vector<2x16x32xbf16>
      %222 = vector.extract_strided_slice %45 {offsets = [0, 224], sizes = [32, 32], strides = [1, 1]} : vector<32x256xbf16> to vector<32x32xbf16>
      %223 = vector.shape_cast %222 : vector<32x32xbf16> to vector<2x16x32xbf16>
      %224 = vector.extract_strided_slice %47 {offsets = [0, 224], sizes = [32, 32], strides = [1, 1]} : vector<32x256xbf16> to vector<32x32xbf16>
      %225 = vector.shape_cast %224 : vector<32x32xbf16> to vector<2x16x32xbf16>
      "tpu.trace_start"() <{level = 10 : i32, message = "bqd,bkd->bqk"}> : () -> ()
      %cst_57 = arith.constant dense<0.000000e+00> : vector<2x16x16xf32>
      %226 = tpu.matmul %221, %223, %cst_57 {dimension_numbers = #tpu.dot_dimension_numbers<[2], [2], [1], [1], [0, 0, 0, 1, 1, 1], [0], [0]>} : vector<2x16x32xbf16>, vector<2x16x32xbf16>, vector<2x16x16xf32> -> vector<2x16x16xf32>
      "tpu.trace_stop"() : () -> ()
      %cst_58 = arith.constant dense<0xFF800000> : vector<2x16xf32>
      %227 = vector.multi_reduction <maximumf>, %226, %cst_58 [2] : vector<2x16x16xf32> to vector<2x16xf32>
      %228 = vector.shape_cast %227 : vector<2x16xf32> to vector<2x16x1xf32>
      %229 = vector.broadcast %228 : vector<2x16x1xf32> to vector<2x16x16xf32>
      %230 = arith.subf %226, %229 : vector<2x16x16xf32>
      %231 = math.exp %230 : vector<2x16x16xf32>
      %cst_59 = arith.constant dense<0.000000e+00> : vector<2x16xf32>
      %232 = vector.multi_reduction <add>, %231, %cst_59 [2] : vector<2x16x16xf32> to vector<2x16xf32>
      %233 = vector.shape_cast %232 : vector<2x16xf32> to vector<2x16x1xf32>
      %234 = tpu.reciprocal %233 {approx = true} : vector<2x16x1xf32> -> vector<2x16x1xf32>
      %235 = vector.broadcast %234 : vector<2x16x1xf32> to vector<2x16x16xf32>
      %236 = arith.mulf %231, %235 : vector<2x16x16xf32>
      %237 = arith.truncf %236 : vector<2x16x16xf32> to vector<2x16x16xbf16>
      "tpu.trace_start"() <{level = 10 : i32, message = "bqk,bkd->bqd"}> : () -> ()
      %cst_60 = arith.constant dense<0.000000e+00> : vector<2x16x32xf32>
      %238 = tpu.matmul %237, %225, %cst_60 {dimension_numbers = #tpu.dot_dimension_numbers<[2], [1], [1], [2], [0, 0, 0, 1, 1, 2], [0], [0]>} : vector<2x16x16xbf16>, vector<2x16x32xbf16>, vector<2x16x32xf32> -> vector<2x16x32xf32>
      "tpu.trace_stop"() : () -> ()
      %239 = vector.shape_cast %238 : vector<2x16x32xf32> to vector<32x32xf32>
      %240 = arith.truncf %239 : vector<32x32xf32> to vector<32x32xbf16>
      %241 = vector.extract_strided_slice %50 {offsets = [224, 0], sizes = [32, 256], strides = [1, 1]} : vector<256x256xbf16> to vector<32x256xbf16>
      %cst_61 = arith.constant dense<0.000000e+00> : vector<32x256xf32>
      %242 = tpu.matmul %240, %241, %cst_61 {dimension_numbers = #tpu.dot_dimension_numbers<[1], [0], [0], [1], [0, 0, 1, 1], [], []>} : vector<32x32xbf16>, vector<32x256xbf16>, vector<32x256xf32> -> vector<32x256xf32>
      %243 = arith.addf %219, %242 : vector<32x256xf32>
      %244 = arith.addf %arg16, %243 : vector<32x256xf32>
      %245 = arith.index_cast %arg15 : i32 to index
      %c0_62 = arith.constant 0 : index
      %c0_63 = arith.constant 0 : index
      %246 = vector.load %arg7[%245, %c0_62, %c0_63] : memref<4x1x256xf32, #tpu.memory_space<vmem>>, vector<1x1x256xf32>
      %247 = vector.shape_cast %246 : vector<1x1x256xf32> to vector<1x256xf32>
      %248 = vector.broadcast %247 : vector<1x256xf32> to vector<32x256xf32>
      %249 = arith.addf %244, %248 : vector<32x256xf32>
      %250 = arith.index_cast %arg15 : i32 to index
      %c0_64 = arith.constant 0 : index
      %c0_65 = arith.constant 0 : index
      %251 = vector.load %arg8[%250, %c0_64, %c0_65] : memref<4x1x256xf32, #tpu.memory_space<vmem>>, vector<1x1x256xf32>
      %252 = vector.shape_cast %251 : vector<1x1x256xf32> to vector<1x256xf32>
      %253 = arith.index_cast %arg15 : i32 to index
      %c0_66 = arith.constant 0 : index
      %c0_67 = arith.constant 0 : index
      %254 = vector.load %arg9[%253, %c0_66, %c0_67] : memref<4x1x256xf32, #tpu.memory_space<vmem>>, vector<1x1x256xf32>
      %255 = vector.shape_cast %254 : vector<1x1x256xf32> to vector<1x256xf32>
      %cst_68 = arith.constant dense<0.000000e+00> : vector<32xf32>
      %256 = vector.multi_reduction <add>, %249, %cst_68 [1] : vector<32x256xf32> to vector<32xf32>
      %257 = vector.shape_cast %256 : vector<32xf32> to vector<32x1xf32>
      %cst_69 = arith.constant 2.560000e+02 : f32
      %258 = vector.broadcast %cst_69 : f32 to vector<32x1xf32>
      %259 = arith.divf %257, %258 : vector<32x1xf32>
      %260 = vector.broadcast %259 : vector<32x1xf32> to vector<32x256xf32>
      %261 = arith.subf %249, %260 : vector<32x256xf32>
      %262 = arith.mulf %261, %261 : vector<32x256xf32>
      %cst_70 = arith.constant dense<0.000000e+00> : vector<32xf32>
      %263 = vector.multi_reduction <add>, %262, %cst_70 [1] : vector<32x256xf32> to vector<32xf32>
      %264 = vector.shape_cast %263 : vector<32xf32> to vector<32x1xf32>
      %cst_71 = arith.constant 2.560000e+02 : f32
      %265 = vector.broadcast %cst_71 : f32 to vector<32x1xf32>
      %266 = arith.divf %264, %265 : vector<32x1xf32>
      %cst_72 = arith.constant 9.99999997E-7 : f32
      %267 = vector.broadcast %cst_72 : f32 to vector<32x1xf32>
      %268 = arith.addf %266, %267 : vector<32x1xf32>
      %269 = math.rsqrt %268 : vector<32x1xf32>
      %270 = vector.broadcast %269 : vector<32x1xf32> to vector<32x256xf32>
      %271 = arith.mulf %261, %270 : vector<32x256xf32>
      %272 = vector.broadcast %252 : vector<1x256xf32> to vector<32x256xf32>
      %273 = arith.mulf %271, %272 : vector<32x256xf32>
      %274 = vector.broadcast %255 : vector<1x256xf32> to vector<32x256xf32>
      %275 = arith.addf %273, %274 : vector<32x256xf32>
      %276 = arith.truncf %275 : vector<32x256xf32> to vector<32x256xbf16>
      %277 = arith.index_cast %arg15 : i32 to index
      %c0_73 = arith.constant 0 : index
      %c0_74 = arith.constant 0 : index
      %278 = vector.load %arg10[%277, %c0_73, %c0_74] : memref<4x256x1024xbf16, #tpu.memory_space<vmem>>, vector<1x256x1024xbf16>
      %279 = vector.shape_cast %278 : vector<1x256x1024xbf16> to vector<256x1024xbf16>
      %cst_75 = arith.constant dense<0.000000e+00> : vector<32x1024xf32>
      %280 = tpu.matmul %276, %279, %cst_75 {dimension_numbers = #tpu.dot_dimension_numbers<[1], [0], [0], [1], [0, 0, 1, 1], [], []>} : vector<32x256xbf16>, vector<256x1024xbf16>, vector<32x1024xf32> -> vector<32x1024xf32>
      %281 = arith.index_cast %arg15 : i32 to index
      %c0_76 = arith.constant 0 : index
      %c0_77 = arith.constant 0 : index
      %282 = vector.load %arg11[%281, %c0_76, %c0_77] : memref<4x1x1024xf32, #tpu.memory_space<vmem>>, vector<1x1x1024xf32>
      %283 = vector.shape_cast %282 : vector<1x1x1024xf32> to vector<1x1024xf32>
      %284 = vector.broadcast %283 : vector<1x1024xf32> to vector<32x1024xf32>
      %285 = arith.addf %280, %284 : vector<32x1024xf32>
      %cst_78 = arith.constant 5.000000e-01 : f32
      %286 = vector.broadcast %cst_78 : f32 to vector<32x1024xf32>
      %287 = arith.mulf %286, %285 : vector<32x1024xf32>
      %cst_79 = arith.constant 4.471500e-02 : f32
      %288 = vector.broadcast %cst_79 : f32 to vector<32x1024xf32>
      %289 = arith.mulf %288, %285 : vector<32x1024xf32>
      %290 = arith.mulf %289, %285 : vector<32x1024xf32>
      %291 = arith.mulf %290, %285 : vector<32x1024xf32>
      %292 = arith.addf %285, %291 : vector<32x1024xf32>
      %cst_80 = arith.constant 0.797884583 : f32
      %293 = vector.broadcast %cst_80 : f32 to vector<32x1024xf32>
      %294 = arith.mulf %293, %292 : vector<32x1024xf32>
      %295 = math.tanh %294 : vector<32x1024xf32>
      %cst_81 = arith.constant 1.000000e+00 : f32
      %296 = vector.broadcast %cst_81 : f32 to vector<32x1024xf32>
      %297 = arith.addf %296, %295 : vector<32x1024xf32>
      %298 = arith.mulf %287, %297 : vector<32x1024xf32>
      %299 = arith.truncf %298 : vector<32x1024xf32> to vector<32x1024xbf16>
      %300 = arith.index_cast %arg15 : i32 to index
      %c0_82 = arith.constant 0 : index
      %c0_83 = arith.constant 0 : index
      %301 = vector.load %arg12[%300, %c0_82, %c0_83] : memref<4x1024x256xbf16, #tpu.memory_space<vmem>>, vector<1x1024x256xbf16>
      %302 = vector.shape_cast %301 : vector<1x1024x256xbf16> to vector<1024x256xbf16>
      %cst_84 = arith.constant dense<0.000000e+00> : vector<32x256xf32>
      %303 = tpu.matmul %299, %302, %cst_84 {dimension_numbers = #tpu.dot_dimension_numbers<[1], [0], [0], [1], [0, 0, 1, 1], [], []>} : vector<32x1024xbf16>, vector<1024x256xbf16>, vector<32x256xf32> -> vector<32x256xf32>
      %304 = arith.index_cast %arg15 : i32 to index
      %c0_85 = arith.constant 0 : index
      %c0_86 = arith.constant 0 : index
      %305 = vector.load %arg13[%304, %c0_85, %c0_86] : memref<4x1x256xf32, #tpu.memory_space<vmem>>, vector<1x1x256xf32>
      %306 = vector.shape_cast %305 : vector<1x1x256xf32> to vector<1x256xf32>
      %307 = vector.broadcast %306 : vector<1x256xf32> to vector<32x256xf32>
      %308 = arith.addf %303, %307 : vector<32x256xf32>
      %309 = arith.addf %249, %308 : vector<32x256xf32>
      scf.yield %309 : vector<32x256xf32>
    }
    %c4_i32_2 = arith.constant 4 : i32
    %4 = vector.shape_cast %3 : vector<32x256xf32> to vector<2x16x256xf32>
    %c0_3 = arith.constant 0 : index
    %c0_4 = arith.constant 0 : index
    %c0_5 = arith.constant 0 : index
    %5 = vector.load %arg14[%c0_3, %c0_4, %c0_5] : memref<2x16x256xf32, #tpu.memory_space<vmem>>, vector<2x16x256xf32>
    tpu.vector_store %arg14[%c0_3, %c0_4, %c0_5], %4 {strides = array<i32>} : memref<2x16x256xf32, #tpu.memory_space<vmem>>, vector<2x16x256xf32>,
    return
  }
  func.func @transform_0(%arg0: i32) -> (i32, i32, i32) {
    %c0_i32 = arith.constant 0 : i32
    %c0_i32_0 = arith.constant 0 : i32
    %c0_i32_1 = arith.constant 0 : i32
    return %arg0, %c0_i32, %c0_i32_0 : i32, i32, i32
  }
  func.func @transform_1(%arg0: i32) -> (i32, i32, i32) {
    %c0_i32 = arith.constant 0 : i32
    %c0_i32_0 = arith.constant 0 : i32
    %c0_i32_1 = arith.constant 0 : i32
    %c0_i32_2 = arith.constant 0 : i32
    return %c0_i32, %c0_i32_0, %c0_i32_1 : i32, i32, i32
  }
  func.func @transform_2(%arg0: i32) -> (i32, i32, i32) {
    %c0_i32 = arith.constant 0 : i32
    %c0_i32_0 = arith.constant 0 : i32
    %c0_i32_1 = arith.constant 0 : i32
    %c0_i32_2 = arith.constant 0 : i32
    return %c0_i32, %c0_i32_0, %c0_i32_1 : i32, i32, i32
  }
  func.func @transform_3(%arg0: i32) -> (i32, i32, i32) {
    %c0_i32 = arith.constant 0 : i32
    %c0_i32_0 = arith.constant 0 : i32
    %c0_i32_1 = arith.constant 0 : i32
    %c0_i32_2 = arith.constant 0 : i32
    return %c0_i32, %c0_i32_0, %c0_i32_1 : i32, i32, i32
  }
  func.func @transform_4(%arg0: i32) -> (i32, i32, i32) {
    %c0_i32 = arith.constant 0 : i32
    %c0_i32_0 = arith.constant 0 : i32
    %c0_i32_1 = arith.constant 0 : i32
    %c0_i32_2 = arith.constant 0 : i32
    return %c0_i32, %c0_i32_0, %c0_i32_1 : i32, i32, i32
  }
  func.func @transform_5(%arg0: i32) -> (i32, i32, i32) {
    %c0_i32 = arith.constant 0 : i32
    %c0_i32_0 = arith.constant 0 : i32
    %c0_i32_1 = arith.constant 0 : i32
    %c0_i32_2 = arith.constant 0 : i32
    return %c0_i32, %c0_i32_0, %c0_i32_1 : i32, i32, i32
  }
  func.func @transform_6(%arg0: i32) -> (i32, i32, i32) {
    %c0_i32 = arith.constant 0 : i32
    %c0_i32_0 = arith.constant 0 : i32
    %c0_i32_1 = arith.constant 0 : i32
    %c0_i32_2 = arith.constant 0 : i32
    return %c0_i32, %c0_i32_0, %c0_i32_1 : i32, i32, i32
  }
  func.func @transform_7(%arg0: i32) -> (i32, i32, i32) {
    %c0_i32 = arith.constant 0 : i32
    %c0_i32_0 = arith.constant 0 : i32
    %c0_i32_1 = arith.constant 0 : i32
    %c0_i32_2 = arith.constant 0 : i32
    return %c0_i32, %c0_i32_0, %c0_i32_1 : i32, i32, i32
  }
  func.func @transform_8(%arg0: i32) -> (i32, i32, i32) {
    %c0_i32 = arith.constant 0 : i32
    %c0_i32_0 = arith.constant 0 : i32
    %c0_i32_1 = arith.constant 0 : i32
    %c0_i32_2 = arith.constant 0 : i32
    return %c0_i32, %c0_i32_0, %c0_i32_1 : i32, i32, i32
  }
  func.func @transform_9(%arg0: i32) -> (i32, i32, i32) {
    %c0_i32 = arith.constant 0 : i32
    %c0_i32_0 = arith.constant 0 : i32
    %c0_i32_1 = arith.constant 0 : i32
    %c0_i32_2 = arith.constant 0 : i32
    return %c0_i32, %c0_i32_0, %c0_i32_1 : i32, i32, i32
  }
  func.func @transform_10(%arg0: i32) -> (i32, i32, i32) {
    %c0_i32 = arith.constant 0 : i32
    %c0_i32_0 = arith.constant 0 : i32
    %c0_i32_1 = arith.constant 0 : i32
    %c0_i32_2 = arith.constant 0 : i32
    return %c0_i32, %c0_i32_0, %c0_i32_1 : i32, i32, i32
  }
  func.func @transform_11(%arg0: i32) -> (i32, i32, i32) {
    %c0_i32 = arith.constant 0 : i32
    %c0_i32_0 = arith.constant 0 : i32
    %c0_i32_1 = arith.constant 0 : i32
    %c0_i32_2 = arith.constant 0 : i32
    return %c0_i32, %c0_i32_0, %c0_i32_1 : i32, i32, i32
  }
  func.func @transform_12(%arg0: i32) -> (i32, i32, i32) {
    %c0_i32 = arith.constant 0 : i32
    %c0_i32_0 = arith.constant 0 : i32
    %c0_i32_1 = arith.constant 0 : i32
    %c0_i32_2 = arith.constant 0 : i32
    return %c0_i32, %c0_i32_0, %c0_i32_1 : i32, i32, i32
  }
  func.func @transform_13(%arg0: i32) -> (i32, i32, i32) {
    %c0_i32 = arith.constant 0 : i32
    %c0_i32_0 = arith.constant 0 : i32
    %c0_i32_1 = arith.constant 0 : i32
    return %arg0, %c0_i32, %c0_i32_0 : i32, i32, i32
  }
}

</mosaic_0001>

<llo_original>
// kernel: self_attention_block_forward.1
$region0: #{self_attention_block_forward.1}
  #allocation0 [shape = 'u32[]', space=smem, size = 0x4, offset = 0x4, fixed_abs, tag = 'smem constant byte address 0x4 - core index']
  #allocation1 [shape = 'u32[144,128]{1,0:T(1,128)}', space=vmem, size = 0x12000, scoped, tag = 'internal scratch']
  %s0 = inlined_call_operand.hbm [shape: f32[2,16,256], index: 0, kind: input, shape index: {}]
  %s1 = inlined_call_operand.hbm [shape: f32[4,1,256], index: 1, kind: input, shape index: {}]
  %s2 = inlined_call_operand.hbm [shape: f32[4,1,256], index: 2, kind: input, shape index: {}]
  %s3 = inlined_call_operand.hbm [shape: bf16[4,256,768], index: 3, kind: input, shape index: {}]
  %s4 = inlined_call_operand.hbm [shape: f32[4,1,768], index: 4, kind: input, shape index: {}]
  %s5 = inlined_call_operand.hbm [shape: bf16[4,256,256], index: 5, kind: input, shape index: {}]
  %s6 = inlined_call_operand.hbm [shape: f32[4,1,256], index: 6, kind: input, shape index: {}]
  %s7 = inlined_call_operand.hbm [shape: f32[4,1,256], index: 7, kind: input, shape index: {}]
  %s8 = inlined_call_operand.hbm [shape: f32[4,1,256], index: 8, kind: input, shape index: {}]
  %s9 = inlined_call_operand.hbm [shape: bf16[4,256,1024], index: 9, kind: input, shape index: {}]
  %s10 = inlined_call_operand.hbm [shape: f32[4,1,1024], index: 10, kind: input, shape index: {}]
  %s11 = inlined_call_operand.hbm [shape: bf16[4,1024,256], index: 11, kind: input, shape index: {}]
  %s12 = inlined_call_operand.hbm [shape: f32[4,1,256], index: 12, kind: input, shape index: {}]
  %s13 = inlined_call_operand.hbm [shape: f32[2,16,256], index: 13, kind: output, shape index: {}]
  %s14 = sld [smem:[#allocation0]]
  $region121: #{self_attention_block_forward.1} parent=0
    _
  %s16 = ssub.s32 1, %s14
  %s17 = scalar_select 0, %s16, %s14
  $region1: #{self_attention_block_forward.1} parent=0
    #allocation2 [shape = 'u8[32768]{0}', space=vmem, size = 0x8000, scoped, tag = 'input window, operand 0, single buffered']
    #allocation3 [shape = 's32[1]{0}', space=sflag, size = 0x4, scoped, tag = 'scoped memory for self_attention_block_forward.1']
    #allocation4 [shape = 's32[1]{0}', space=sflag, size = 0x4, scoped, tag = 'scoped memory for self_attention_block_forward.1']
    #allocation5 [shape = 'u8[4096]{0}', space=vmem, size = 0x1000, scoped, tag = 'input window, operand 1, single buffered']
    #allocation6 [shape = 's32[1]{0}', space=sflag, size = 0x4, scoped, tag = 'scoped memory for self_attention_block_forward.1']
    #allocation7 [shape = 'u8[4096]{0}', space=vmem, size = 0x1000, scoped, tag = 'input window, operand 2, single buffered']
    #allocation8 [shape = 'u8[1572864]{0}', space=vmem, size = 0x180000, scoped, tag = 'input window, operand 3, single buffered']
    #allocation9 [shape = 's32[1]{0}', space=sflag, size = 0x4, scoped, tag = 'scoped memory for self_attention_block_forward.1']
    #allocation10 [shape = 'u8[12288]{0}', space=vmem, size = 0x3000, scoped, tag = 'input window, operand 4, single buffered']
    #allocation11 [shape = 'u8[524288]{0}', space=vmem, size = 0x80000, scoped, tag = 'input window, operand 5, single buffered']
    #allocation12 [shape = 's32[1]{0}', space=sflag, size = 0x4, scoped, tag = 'scoped memory for self_attention_block_forward.1']
    #allocation13 [shape = 'u8[4096]{0}', space=vmem, size = 0x1000, scoped, tag = 'input window, operand 6, single buffered']
    #allocation14 [shape = 'u8[4096]{0}', space=vmem, size = 0x1000, scoped, tag = 'input window, operand 7, single buffered']
    #allocation15 [shape = 's32[1]{0}', space=sflag, size = 0x4, scoped, tag = 'scoped memory for self_attention_block_forward.1']
    #allocation16 [shape = 'u8[4096]{0}', space=vmem, size = 0x1000, scoped, tag = 'input window, operand 8, single buffered']
    #allocation17 [shape = 'u8[2097152]{0}', space=vmem, size = 0x200000, scoped, tag = 'input window, operand 9, single buffered']
    #allocation18 [shape = 's32[1]{0}', space=sflag, size = 0x4, scoped, tag = 'scoped memory for self_attention_block_forward.1']
    #allocation19 [shape = 'u8[16384]{0}', space=vmem, size = 0x4000, scoped, tag = 'input window, operand 10, single buffered']
    #allocation20 [shape = 'u8[2097152]{0}', space=vmem, size = 0x200000, scoped, tag = 'input window, operand 11, single buffered']
    #allocation21 [shape = 's32[1]{0}', space=sflag, size = 0x4, scoped, tag = 'scoped memory for self_attention_block_forward.1']
    #allocation22 [shape = 'u8[4096]{0}', space=vmem, size = 0x1000, scoped, tag = 'input window, operand 12, single buffered']
    #allocation23 [shape = 'u8[32768]{0}', space=vmem, size = 0x8000, scoped, tag = 'output window, operand 0, single buffered']
    %18 = vsyncpa [#allocation3], 0
    %19 = vsyncpa [#allocation6], 0
    %20 = vsyncpa [#allocation9], 0
    %21 = vsyncpa [#allocation12], 0
    %22 = vsyncpa [#allocation15], 0
    %23 = vsyncpa [#allocation18], 0
    %24 = vsyncpa [#allocation21], 0
    %25 = vsyncpa [#allocation4], 0
    // Predicated region
    $region2: #{self_attention_block_forward.1} parent=1 // pred_check
      _
    $region3: #{self_attention_block_forward.1} parent=1 // pred_check_branch
      %27 = sbr.rel (0) target = $region5
    $region4: #{self_attention_block_forward.1} parent=1 // pred_region
      %s29 = ssub.s32 1024, 1024
      %30 = vsyncadd [#allocation3], %s29
      %s31 = sshll.u32 [#allocation2], 4
      %s32 = int_to_ptr.vmem [resolvable:$true] %s31
      %37 = dma.hbm_to_vmem [thread:$0]  %s0, 1024, %s32, [#allocation3], 256, 256, 16
    $region5: #{self_attention_block_forward.1} parent=1 // pred_fallthru
      _
    // Predicated region
    $region6: #{self_attention_block_forward.1} parent=1 // pred_check
      _
    $region7: #{self_attention_block_forward.1} parent=1 // pred_check_branch
      %39 = sbr.rel (0) target = $region9
    $region8: #{self_attention_block_forward.1} parent=1 // pred_region
      %s41 = ssub.s32 128, 128
      %42 = vsyncadd [#allocation6], %s41
      %s43 = sshll.u32 [#allocation5], 4
      %s44 = int_to_ptr.vmem [resolvable:$true] %s43
      %49 = dma.hbm_to_vmem [thread:$0]  %s1, 128, %s44, [#allocation6], 32, 32, 2
    $region9: #{self_attention_block_forward.1} parent=1 // pred_fallthru
      _
    // Predicated region
    $region10: #{self_attention_block_forward.1} parent=1 // pred_check
      _
    $region11: #{self_attention_block_forward.1} parent=1 // pred_check_branch
      %51 = sbr.rel (0) target = $region13
    $region12: #{self_attention_block_forward.1} parent=1 // pred_region
      %s53 = ssub.s32 128, 128
      %54 = vsyncadd [#allocation6], %s53
      %s55 = sshll.u32 [#allocation7], 4
      %s56 = int_to_ptr.vmem [resolvable:$true] %s55
      %61 = dma.hbm_to_vmem [thread:$0]  %s2, 128, %s56, [#allocation6], 32, 32, 2
    $region13: #{self_attention_block_forward.1} parent=1 // pred_fallthru
      _
    // Predicated region
    $region14: #{self_attention_block_forward.1} parent=1 // pred_check
      _
    $region15: #{self_attention_block_forward.1} parent=1 // pred_check_branch
      %63 = sbr.rel (0) target = $region17
    $region16: #{self_attention_block_forward.1} parent=1 // pred_region
      %s65 = ssub.s32 49152, 49152
      %66 = vsyncadd [#allocation9], %s65
      %s67 = sshll.u32 [#allocation8], 4
      %s68 = int_to_ptr.vmem [resolvable:$true] %s67
      %73 = dma.hbm_to_vmem [thread:$0]  %s3, 49152, %s68, [#allocation9], 384, 384, 24
    $region17: #{self_attention_block_forward.1} parent=1 // pred_fallthru
      _
    // Predicated region
    $region18: #{self_attention_block_forward.1} parent=1 // pred_check
      _
    $region19: #{self_attention_block_forward.1} parent=1 // pred_check_branch
      %75 = sbr.rel (0) target = $region21
    $region20: #{self_attention_block_forward.1} parent=1 // pred_region
      %s77 = ssub.s32 384, 384
      %78 = vsyncadd [#allocation9], %s77
      %s79 = sshll.u32 [#allocation10], 4
      %s80 = int_to_ptr.vmem [resolvable:$true] %s79
      %85 = dma.hbm_to_vmem [thread:$0]  %s4, 384, %s80, [#allocation9], 96, 96, 6
    $region21: #{self_attention_block_forward.1} parent=1 // pred_fallthru
      _
    // Predicated region
    $region22: #{self_attention_block_forward.1} parent=1 // pred_check
      _
    $region23: #{self_attention_block_forward.1} parent=1 // pred_check_branch
      %87 = sbr.rel (0) target = $region25
    $region24: #{self_attention_block_forward.1} parent=1 // pred_region
      %s89 = ssub.s32 16384, 16384
      %90 = vsyncadd [#allocation12], %s89
      %s91 = sshll.u32 [#allocation11], 4
      %s92 = int_to_ptr.vmem [resolvable:$true] %s91
      %97 = dma.hbm_to_vmem [thread:$0]  %s5, 16384, %s92, [#allocation12], 128, 128, 8
    $region25: #{self_attention_block_forward.1} parent=1 // pred_fallthru
      _
    // Predicated region
    $region26: #{self_attention_block_forward.1} parent=1 // pred_check
      _
    $region27: #{self_attention_block_forward.1} parent=1 // pred_check_branch
      %99 = sbr.rel (0) target = $region29
    $region28: #{self_attention_block_forward.1} parent=1 // pred_region
      %s101 = ssub.s32 128, 128
      %102 = vsyncadd [#allocation12], %s101
      %s103 = sshll.u32 [#allocation13], 4
      %s104 = int_to_ptr.vmem [resolvable:$true] %s103
      %109 = dma.hbm_to_vmem [thread:$0]  %s6, 128, %s104, [#allocation12], 32, 32, 2
    $region29: #{self_attention_block_forward.1} parent=1 // pred_fallthru
      _
    // Predicated region
    $region30: #{self_attention_block_forward.1} parent=1 // pred_check
      _
    $region31: #{self_attention_block_forward.1} parent=1 // pred_check_branch
      %111 = sbr.rel (0) target = $region33
    $region32: #{self_attention_block_forward.1} parent=1 // pred_region
      %s113 = ssub.s32 128, 128
      %114 = vsyncadd [#allocation15], %s113
      %s115 = sshll.u32 [#allocation14], 4
      %s116 = int_to_ptr.vmem [resolvable:$true] %s115
      %121 = dma.hbm_to_vmem [thread:$0]  %s7, 128, %s116, [#allocation15], 32, 32, 2
    $region33: #{self_attention_block_forward.1} parent=1 // pred_fallthru
      _
    // Predicated region
    $region34: #{self_attention_block_forward.1} parent=1 // pred_check
      _
    $region35: #{self_attention_block_forward.1} parent=1 // pred_check_branch
      %123 = sbr.rel (0) target = $region37
    $region36: #{self_attention_block_forward.1} parent=1 // pred_region
      %s125 = ssub.s32 128, 128
      %126 = vsyncadd [#allocation15], %s125
      %s127 = sshll.u32 [#allocation16], 4
      %s128 = int_to_ptr.vmem [resolvable:$true] %s127
      %133 = dma.hbm_to_vmem [thread:$0]  %s8, 128, %s128, [#allocation15], 32, 32, 2
    $region37: #{self_attention_block_forward.1} parent=1 // pred_fallthru
      _
    // Predicated region
    $region38: #{self_attention_block_forward.1} parent=1 // pred_check
      _
    $region39: #{self_attention_block_forward.1} parent=1 // pred_check_branch
      %135 = sbr.rel (0) target = $region41
    $region40: #{self_attention_block_forward.1} parent=1 // pred_region
      %s137 = ssub.s32 65536, 65536
      %138 = vsyncadd [#allocation18], %s137
      %s139 = sshll.u32 [#allocation17], 4
      %s140 = int_to_ptr.vmem [resolvable:$true] %s139
      %145 = dma.hbm_to_vmem [thread:$0]  %s9, 65536, %s140, [#allocation18], 512, 512, 32
    $region41: #{self_attention_block_forward.1} parent=1 // pred_fallthru
      _
    // Predicated region
    $region42: #{self_attention_block_forward.1} parent=1 // pred_check
      _
    $region43: #{self_attention_block_forward.1} parent=1 // pred_check_branch
      %147 = sbr.rel (0) target = $region45
    $region44: #{self_attention_block_forward.1} parent=1 // pred_region
      %s149 = ssub.s32 512, 512
      %150 = vsyncadd [#allocation18], %s149
      %s151 = sshll.u32 [#allocation19], 4
      %s152 = int_to_ptr.vmem [resolvable:$true] %s151
      %157 = dma.hbm_to_vmem [thread:$0]  %s10, 512, %s152, [#allocation18], 128, 128, 8
    $region45: #{self_attention_block_forward.1} parent=1 // pred_fallthru
      _
    // Predicated region
    $region46: #{self_attention_block_forward.1} parent=1 // pred_check
      _
    $region47: #{self_attention_block_forward.1} parent=1 // pred_check_branch
      %159 = sbr.rel (0) target = $region49
    $region48: #{self_attention_block_forward.1} parent=1 // pred_region
      %s161 = ssub.s32 65536, 65536
      %162 = vsyncadd [#allocation21], %s161
      %s163 = sshll.u32 [#allocation20], 4
      %s164 = int_to_ptr.vmem [resolvable:$true] %s163
      %169 = dma.hbm_to_vmem [thread:$0]  %s11, 65536, %s164, [#allocation21], 128, 128, 8
    $region49: #{self_attention_block_forward.1} parent=1 // pred_fallthru
      _
    // Predicated region
    $region50: #{self_attention_block_forward.1} parent=1 // pred_check
      _
    $region51: #{self_attention_block_forward.1} parent=1 // pred_check_branch
      %171 = sbr.rel (0) target = $region53
    $region52: #{self_attention_block_forward.1} parent=1 // pred_region
      %s173 = ssub.s32 128, 128
      %174 = vsyncadd [#allocation21], %s173
      %s175 = sshll.u32 [#allocation22], 4
      %s176 = int_to_ptr.vmem [resolvable:$true] %s175
      %181 = dma.hbm_to_vmem [thread:$0]  %s12, 128, %s176, [#allocation21], 32, 32, 2
    $region53: #{self_attention_block_forward.1} parent=1 // pred_fallthru
      _
    // Predicated region
    $region54: #{self_attention_block_forward.1} parent=1 // pred_check
      _
    $region55: #{self_attention_block_forward.1} parent=1 // pred_check_branch
      %183 = sbr.rel (0) target = $region57
    $region56: #{self_attention_block_forward.1} parent=1 // pred_region
      %184 = dma.done [#allocation3], 1024
    $region57: #{self_attention_block_forward.1} parent=1 // pred_fallthru
      _
    // Predicated region
    $region58: #{self_attention_block_forward.1} parent=1 // pred_check
      _
    $region59: #{self_attention_block_forward.1} parent=1 // pred_check_branch
      %186 = sbr.rel (0) target = $region61
    $region60: #{self_attention_block_forward.1} parent=1 // pred_region
      %187 = dma.done [#allocation6], 128
    $region61: #{self_attention_block_forward.1} parent=1 // pred_fallthru
      _
    // Predicated region
    $region62: #{self_attention_block_forward.1} parent=1 // pred_check
      _
    $region63: #{self_attention_block_forward.1} parent=1 // pred_check_branch
      %189 = sbr.rel (0) target = $region65
    $region64: #{self_attention_block_forward.1} parent=1 // pred_region
      %190 = dma.done [#allocation6], 128
    $region65: #{self_attention_block_forward.1} parent=1 // pred_fallthru
      _
    // Predicated region
    $region66: #{self_attention_block_forward.1} parent=1 // pred_check
      _
    $region67: #{self_attention_block_forward.1} parent=1 // pred_check_branch
      %192 = sbr.rel (0) target = $region69
    $region68: #{self_attention_block_forward.1} parent=1 // pred_region
      %193 = dma.done [#allocation9], 49152
    $region69: #{self_attention_block_forward.1} parent=1 // pred_fallthru
      _
    // Predicated region
    $region70: #{self_attention_block_forward.1} parent=1 // pred_check
      _
    $region71: #{self_attention_block_forward.1} parent=1 // pred_check_branch
      %195 = sbr.rel (0) target = $region73
    $region72: #{self_attention_block_forward.1} parent=1 // pred_region
      %196 = dma.done [#allocation9], 384
    $region73: #{self_attention_block_forward.1} parent=1 // pred_fallthru
      _
    // Predicated region
    $region74: #{self_attention_block_forward.1} parent=1 // pred_check
      _
    $region75: #{self_attention_block_forward.1} parent=1 // pred_check_branch
      %198 = sbr.rel (0) target = $region77
    $region76: #{self_attention_block_forward.1} parent=1 // pred_region
      %199 = dma.done [#allocation12], 16384
    $region77: #{self_attention_block_forward.1} parent=1 // pred_fallthru
      _
    // Predicated region
    $region78: #{self_attention_block_forward.1} parent=1 // pred_check
      _
    $region79: #{self_attention_block_forward.1} parent=1 // pred_check_branch
      %201 = sbr.rel (0) target = $region81
    $region80: #{self_attention_block_forward.1} parent=1 // pred_region
      %202 = dma.done [#allocation12], 128
    $region81: #{self_attention_block_forward.1} parent=1 // pred_fallthru
      _
    // Predicated region
    $region82: #{self_attention_block_forward.1} parent=1 // pred_check
      _
    $region83: #{self_attention_block_forward.1} parent=1 // pred_check_branch
      %204 = sbr.rel (0) target = $region85
    $region84: #{self_attention_block_forward.1} parent=1 // pred_region
      %205 = dma.done [#allocation15], 128
    $region85: #{self_attention_block_forward.1} parent=1 // pred_fallthru
      _
    // Predicated region
    $region86: #{self_attention_block_forward.1} parent=1 // pred_check
      _
    $region87: #{self_attention_block_forward.1} parent=1 // pred_check_branch
      %207 = sbr.rel (0) target = $region89
    $region88: #{self_attention_block_forward.1} parent=1 // pred_region
      %208 = dma.done [#allocation15], 128
    $region89: #{self_attention_block_forward.1} parent=1 // pred_fallthru
      _
    // Predicated region
    $region90: #{self_attention_block_forward.1} parent=1 // pred_check
      _
    $region91: #{self_attention_block_forward.1} parent=1 // pred_check_branch
      %210 = sbr.rel (0) target = $region93
    $region92: #{self_attention_block_forward.1} parent=1 // pred_region
      %211 = dma.done [#allocation18], 65536
    $region93: #{self_attention_block_forward.1} parent=1 // pred_fallthru
      _
    // Predicated region
    $region94: #{self_attention_block_forward.1} parent=1 // pred_check
      _
    $region95: #{self_attention_block_forward.1} parent=1 // pred_check_branch
      %213 = sbr.rel (0) target = $region97
    $region96: #{self_attention_block_forward.1} parent=1 // pred_region
      %214 = dma.done [#allocation18], 512
    $region97: #{self_attention_block_forward.1} parent=1 // pred_fallthru
      _
    // Predicated region
    $region98: #{self_attention_block_forward.1} parent=1 // pred_check
      _
    $region99: #{self_attention_block_forward.1} parent=1 // pred_check_branch
      %216 = sbr.rel (0) target = $region101
    $region100: #{self_attention_block_forward.1} parent=1 // pred_region
      %217 = dma.done [#allocation21], 65536
    $region101: #{self_attention_block_forward.1} parent=1 // pred_fallthru
      _
    // Predicated region
    $region102: #{self_attention_block_forward.1} parent=1 // pred_check
      _
    $region103: #{self_attention_block_forward.1} parent=1 // pred_check_branch
      %219 = sbr.rel (0) target = $region105
    $region104: #{self_attention_block_forward.1} parent=1 // pred_region
      %220 = dma.done [#allocation21], 128
    $region105: #{self_attention_block_forward.1} parent=1 // pred_fallthru
      _
    %v222 = vld [vmem:[#allocation2] sm:$0xff]
    %v223 = vld [vmem:[#allocation2 + $0x8] sm:$0xff]
    %v224 = vld [vmem:[#allocation2 + $0x10] sm:$0xff]
    %v225 = vld [vmem:[#allocation2 + $0x18] sm:$0xff]
    %v226 = vld [vmem:[#allocation2 + $0x20] sm:$0xff]
    %v227 = vld [vmem:[#allocation2 + $0x28] sm:$0xff]
    %v228 = vld [vmem:[#allocation2 + $0x30] sm:$0xff]
    %v229 = vld [vmem:[#allocation2 + $0x38] sm:$0xff]
    loop: start=0, step=1, limit=4
    $region106: #{self_attention_block_forward.1} parent=1 // loop_pre_header
      _
    $region107: #{self_attention_block_forward.1} parent=1 // loop_header
      %s231 = sphi 0, %s235
      %p232 = scmp.ge.s32.totalorder %s231, 4
      %v236 = vphi %v222, %v6258
      %v237 = vphi %v223, %v6259
      %v238 = vphi %v224, %v6260
      %v239 = vphi %v225, %v6261
      %v240 = vphi %v226, %v6262
      %v241 = vphi %v227, %v6263
      %v242 = vphi %v228, %v6264
      %v243 = vphi %v229, %v6265
    $region108: #{self_attention_block_forward.1} parent=1 // loop_header_branch
      %234 = sbr.rel (%p232) target = $region112
    $region109: #{self_attention_block_forward.1} parent=1 // loop_body
      %s244 = smul.u32 %s231, 2
      %s245 = scalar_lea.vmem [#allocation5], %s244
      %v246 = vld [vmem:[%s245] sm:$0x3]
      %s247 = scalar_lea.vmem [#allocation7], %s244
      %v248 = vld [vmem:[%s247] sm:$0x3]
      %v249 = vadd.f32 %v236, %v237
      %250 = vadd.xlane.f32.xlu0 %v249
      %v251 = vpop.xlane.xlu0 %250
      %v252 = vadd.f32 %v238, %v239
      %253 = vadd.xlane.f32.xlu0 %v252
      %v254 = vpop.xlane.xlu0 %253
      %v255 = vadd.f32 %v240, %v241
      %256 = vadd.xlane.f32.xlu0 %v255
      %v257 = vpop.xlane.xlu0 %256
      %v258 = vadd.f32 %v242, %v243
      %259 = vadd.xlane.f32.xlu0 %v258
      %v260 = vpop.xlane.xlu0 %259
      %v261 = vrcp.pop 256.0
      %v262 = vmul.f32 %v251, %v261
      %v263 = vmul.f32 %v254, %v261
      %v264 = vmul.f32 %v257, %v261
      %v265 = vmul.f32 %v260, %v261
      %v266 = vsub.f32 %v236, %v262
      %v267 = vsub.f32 %v237, %v262
      %v268 = vsub.f32 %v238, %v263
      %v269 = vsub.f32 %v239, %v263
      %v270 = vsub.f32 %v240, %v264
      %v271 = vsub.f32 %v241, %v264
      %v272 = vsub.f32 %v242, %v265
      %v273 = vsub.f32 %v243, %v265
      %v274 = vmul.f32 %v266, %v266
      %v275 = vmul.f32 %v267, %v267
      %v276 = vmul.f32 %v268, %v268
      %v277 = vmul.f32 %v269, %v269
      %v278 = vmul.f32 %v270, %v270
      %v279 = vmul.f32 %v271, %v271
      %v280 = vmul.f32 %v272, %v272
      %v281 = vmul.f32 %v273, %v273
      %v282 = vadd.f32 %v274, %v275
      %283 = vadd.xlane.f32.xlu0 %v282
      %v284 = vpop.xlane.xlu0 %283
      %v285 = vadd.f32 %v276, %v277
      %286 = vadd.xlane.f32.xlu0 %v285
      %v287 = vpop.xlane.xlu0 %286
      %v288 = vadd.f32 %v278, %v279
      %289 = vadd.xlane.f32.xlu0 %v288
      %v290 = vpop.xlane.xlu0 %289
      %v291 = vadd.f32 %v280, %v281
      %292 = vadd.xlane.f32.xlu0 %v291
      %v293 = vpop.xlane.xlu0 %292
      %v294 = vmul.f32 %v284, %v261
      %v295 = vmul.f32 %v287, %v261
      %v296 = vmul.f32 %v290, %v261
      %v297 = vmul.f32 %v293, %v261
      %v298 = vadd.f32 %v294, 1e-06
      %v299 = vadd.f32 %v295, 1e-06
      %v300 = vadd.f32 %v296, 1e-06
      %v301 = vadd.f32 %v297, 1e-06
      %v302 = vrsqrt.pop %v298
      %v303 = vrsqrt.pop %v299
      %v304 = vrsqrt.pop %v300
      %v305 = vrsqrt.pop %v301
      %v306 = vmul.f32 %v266, %v302
      %v307 = vmul.f32 %v267, %v302
      %v308 = vmul.f32 %v268, %v303
      %v309 = vmul.f32 %v269, %v303
      %v310 = vmul.f32 %v270, %v304
      %v311 = vmul.f32 %v271, %v304
      %v312 = vmul.f32 %v272, %v305
      %v313 = vmul.f32 %v273, %v305
      %v315 = vlaneseq
      %v316 = vshrl.u32 %v315, 7
      %v317 = vsub.s32 0, %v316
      %v318 = vrot.slane %v246, %v317
      %v319 = vlaneseq
      %v320 = vshrl.u32 %v319, 7
      %v321 = vsub.s32 1, %v320
      %v322 = vrot.slane %v246, %v321
      %v325 = vmul.f32 %v306, %v318
      %v326 = vmul.f32 %v307, %v322
      %v327 = vmul.f32 %v308, %v318
      %v328 = vmul.f32 %v309, %v322
      %v329 = vmul.f32 %v310, %v318
      %v330 = vmul.f32 %v311, %v322
      %v331 = vmul.f32 %v312, %v318
      %v332 = vmul.f32 %v313, %v322
      %v334 = vlaneseq
      %v335 = vshrl.u32 %v334, 7
      %v336 = vsub.s32 0, %v335
      %v337 = vrot.slane %v248, %v336
      %v338 = vlaneseq
      %v339 = vshrl.u32 %v338, 7
      %v340 = vsub.s32 1, %v339
      %v341 = vrot.slane %v248, %v340
      %v344 = vadd.f32 %v325, %v337
      %v345 = vadd.f32 %v326, %v341
      %v346 = vadd.f32 %v327, %v337
      %v347 = vadd.f32 %v328, %v341
      %v348 = vadd.f32 %v329, %v337
      %v349 = vadd.f32 %v330, %v341
      %v350 = vadd.f32 %v331, %v337
      %v351 = vadd.f32 %v332, %v341
      %v352 = vpack.c.bf16 %v346, %v344
      %v353 = vpack.c.bf16 %v347, %v345
      %v354 = vpack.c.bf16 %v350, %v348
      %v355 = vpack.c.bf16 %v351, %v349
      %s356 = smul.u32 %s231, 192
      %s357 = smul.addr %s356, 4
      %s358 = scalar_lea.vmem [#allocation8], %s357
      %v359 = vld [vmem:[%s358] sm:$0xff]
      %v360 = vld [vmem:[%s358 + $0x8] sm:$0xff]
      %v361 = vld [vmem:[%s358 + $0x10] sm:$0xff]
      %v362 = vld [vmem:[%s358 + $0x18] sm:$0xff]
      %v363 = vld [vmem:[%s358 + $0x20] sm:$0xff]
      %v364 = vld [vmem:[%s358 + $0x28] sm:$0xff]
      %v365 = vld [vmem:[%s358 + $0x30] sm:$0xff]
      %v366 = vld [vmem:[%s358 + $0x38] sm:$0xff]
      %v367 = vld [vmem:[%s358 + $0x40] sm:$0xff]
      %v368 = vld [vmem:[%s358 + $0x48] sm:$0xff]
      %v369 = vld [vmem:[%s358 + $0x50] sm:$0xff]
      %v370 = vld [vmem:[%s358 + $0x58] sm:$0xff]
      %v371 = vld [vmem:[%s358 + $0x60] sm:$0xff]
      %v372 = vld [vmem:[%s358 + $0x68] sm:$0xff]
      %v373 = vld [vmem:[%s358 + $0x70] sm:$0xff]
      %v374 = vld [vmem:[%s358 + $0x78] sm:$0xff]
      %v375 = vld [vmem:[%s358 + $0x80] sm:$0xff]
      %v376 = vld [vmem:[%s358 + $0x88] sm:$0xff]
      %v377 = vld [vmem:[%s358 + $0x90] sm:$0xff]
      %v378 = vld [vmem:[%s358 + $0x98] sm:$0xff]
      %v379 = vld [vmem:[%s358 + $0xa0] sm:$0xff]
      %v380 = vld [vmem:[%s358 + $0xa8] sm:$0xff]
      %v381 = vld [vmem:[%s358 + $0xb0] sm:$0xff]
      %v382 = vld [vmem:[%s358 + $0xb8] sm:$0xff]
      %v383 = vld [vmem:[%s358 + $0xc0] sm:$0xff]
      %v384 = vld [vmem:[%s358 + $0xc8] sm:$0xff]
      %v385 = vld [vmem:[%s358 + $0xd0] sm:$0xff]
      %v386 = vld [vmem:[%s358 + $0xd8] sm:$0xff]
      %v387 = vld [vmem:[%s358 + $0xe0] sm:$0xff]
      %v388 = vld [vmem:[%s358 + $0xe8] sm:$0xff]
      %v389 = vld [vmem:[%s358 + $0xf0] sm:$0xff]
      %v390 = vld [vmem:[%s358 + $0xf8] sm:$0xff]
      %v391 = vld [vmem:[%s358 + $0x100] sm:$0xff]
      %v392 = vld [vmem:[%s358 + $0x108] sm:$0xff]
      %v393 = vld [vmem:[%s358 + $0x110] sm:$0xff]
      %v394 = vld [vmem:[%s358 + $0x118] sm:$0xff]
      %v395 = vld [vmem:[%s358 + $0x120] sm:$0xff]
      %v396 = vld [vmem:[%s358 + $0x128] sm:$0xff]
      %v397 = vld [vmem:[%s358 + $0x130] sm:$0xff]
      %v398 = vld [vmem:[%s358 + $0x138] sm:$0xff]
      %v399 = vld [vmem:[%s358 + $0x140] sm:$0xff]
      %v400 = vld [vmem:[%s358 + $0x148] sm:$0xff]
      %v401 = vld [vmem:[%s358 + $0x150] sm:$0xff]
      %v402 = vld [vmem:[%s358 + $0x158] sm:$0xff]
      %v403 = vld [vmem:[%s358 + $0x160] sm:$0xff]
      %v404 = vld [vmem:[%s358 + $0x168] sm:$0xff]
      %v405 = vld [vmem:[%s358 + $0x170] sm:$0xff]
      %v406 = vld [vmem:[%s358 + $0x178] sm:$0xff]
      %v407 = vld [vmem:[%s358 + $0x180] sm:$0xff]
      %v408 = vld [vmem:[%s358 + $0x188] sm:$0xff]
      %v409 = vld [vmem:[%s358 + $0x190] sm:$0xff]
      %v410 = vld [vmem:[%s358 + $0x198] sm:$0xff]
      %v411 = vld [vmem:[%s358 + $0x1a0] sm:$0xff]
      %v412 = vld [vmem:[%s358 + $0x1a8] sm:$0xff]
      %v413 = vld [vmem:[%s358 + $0x1b0] sm:$0xff]
      %v414 = vld [vmem:[%s358 + $0x1b8] sm:$0xff]
      %v415 = vld [vmem:[%s358 + $0x1c0] sm:$0xff]
      %v416 = vld [vmem:[%s358 + $0x1c8] sm:$0xff]
      %v417 = vld [vmem:[%s358 + $0x1d0] sm:$0xff]
      %v418 = vld [vmem:[%s358 + $0x1d8] sm:$0xff]
      %v419 = vld [vmem:[%s358 + $0x1e0] sm:$0xff]
      %v420 = vld [vmem:[%s358 + $0x1e8] sm:$0xff]
      %v421 = vld [vmem:[%s358 + $0x1f0] sm:$0xff]
      %v422 = vld [vmem:[%s358 + $0x1f8] sm:$0xff]
      %v423 = vld [vmem:[%s358 + $0x200] sm:$0xff]
      %v424 = vld [vmem:[%s358 + $0x208] sm:$0xff]
      %v425 = vld [vmem:[%s358 + $0x210] sm:$0xff]
      %v426 = vld [vmem:[%s358 + $0x218] sm:$0xff]
      %v427 = vld [vmem:[%s358 + $0x220] sm:$0xff]
      %v428 = vld [vmem:[%s358 + $0x228] sm:$0xff]
      %v429 = vld [vmem:[%s358 + $0x230] sm:$0xff]
      %v430 = vld [vmem:[%s358 + $0x238] sm:$0xff]
      %v431 = vld [vmem:[%s358 + $0x240] sm:$0xff]
      %v432 = vld [vmem:[%s358 + $0x248] sm:$0xff]
      %v433 = vld [vmem:[%s358 + $0x250] sm:$0xff]
      %v434 = vld [vmem:[%s358 + $0x258] sm:$0xff]
      %v435 = vld [vmem:[%s358 + $0x260] sm:$0xff]
      %v436 = vld [vmem:[%s358 + $0x268] sm:$0xff]
      %v437 = vld [vmem:[%s358 + $0x270] sm:$0xff]
      %v438 = vld [vmem:[%s358 + $0x278] sm:$0xff]
      %v439 = vld [vmem:[%s358 + $0x280] sm:$0xff]
      %v440 = vld [vmem:[%s358 + $0x288] sm:$0xff]
      %v441 = vld [vmem:[%s358 + $0x290] sm:$0xff]
      %v442 = vld [vmem:[%s358 + $0x298] sm:$0xff]
      %v443 = vld [vmem:[%s358 + $0x2a0] sm:$0xff]
      %v444 = vld [vmem:[%s358 + $0x2a8] sm:$0xff]
      %v445 = vld [vmem:[%s358 + $0x2b0] sm:$0xff]
      %v446 = vld [vmem:[%s358 + $0x2b8] sm:$0xff]
      %v447 = vld [vmem:[%s358 + $0x2c0] sm:$0xff]
      %v448 = vld [vmem:[%s358 + $0x2c8] sm:$0xff]
      %v449 = vld [vmem:[%s358 + $0x2d0] sm:$0xff]
      %v450 = vld [vmem:[%s358 + $0x2d8] sm:$0xff]
      %v451 = vld [vmem:[%s358 + $0x2e0] sm:$0xff]
      %v452 = vld [vmem:[%s358 + $0x2e8] sm:$0xff]
      %v453 = vld [vmem:[%s358 + $0x2f0] sm:$0xff]
      %v454 = vld [vmem:[%s358 + $0x2f8] sm:$0xff]
      %s455 = smul.u32 %s231, 6
      %s456 = scalar_lea.vmem [#allocation10], %s455
      %v457 = vld [vmem:[%s456] sm:$0x3f]
      %v459 = vlaneseq
      %v460 = vshrl.u32 %v459, 7
      %v461 = vsub.s32 0, %v460
      %v462 = vrot.slane %v457, %v461
      %v463 = vlaneseq
      %v464 = vshrl.u32 %v463, 7
      %v465 = vsub.s32 1, %v464
      %v466 = vrot.slane %v457, %v465
      %v467 = vlaneseq
      %v468 = vshrl.u32 %v467, 7
      %v469 = vsub.s32 2, %v468
      %v470 = vrot.slane %v457, %v469
      %v471 = vlaneseq
      %v472 = vshrl.u32 %v471, 7
      %v473 = vsub.s32 3, %v472
      %v474 = vrot.slane %v457, %v473
      %v475 = vlaneseq
      %v476 = vshrl.u32 %v475, 7
      %v477 = vsub.s32 4, %v476
      %v478 = vrot.slane %v457, %v477
      %v479 = vlaneseq
      %v480 = vshrl.u32 %v479, 7
      %v481 = vsub.s32 5, %v480
      %v482 = vrot.slane %v457, %v481
      %v585 = vunpack.c.l.b16 %v359
      %v586 = vunpack.c.h.b16 %v359
      %v587 = vunpack.c.l.b16 %v360
      %v588 = vunpack.c.h.b16 %v360
      %v589 = vunpack.c.l.b16 %v361
      %v590 = vunpack.c.h.b16 %v361
      %v591 = vunpack.c.l.b16 %v362
      %v592 = vunpack.c.h.b16 %v362
      %v593 = vunpack.c.l.b16 %v363
      %v594 = vunpack.c.h.b16 %v363
      %v595 = vunpack.c.l.b16 %v364
      %v596 = vunpack.c.h.b16 %v364
      %v597 = vunpack.c.l.b16 %v365
      %v598 = vunpack.c.h.b16 %v365
      %v599 = vunpack.c.l.b16 %v366
      %v600 = vunpack.c.h.b16 %v366
      %v601 = vunpack.c.l.b16 %v367
      %v602 = vunpack.c.h.b16 %v367
      %v603 = vunpack.c.l.b16 %v368
      %v604 = vunpack.c.h.b16 %v368
      %v605 = vunpack.c.l.b16 %v369
      %v606 = vunpack.c.h.b16 %v369
      %v607 = vunpack.c.l.b16 %v370
      %v608 = vunpack.c.h.b16 %v370
      %v609 = vunpack.c.l.b16 %v371
      %v610 = vunpack.c.h.b16 %v371
      %v611 = vunpack.c.l.b16 %v372
      %v612 = vunpack.c.h.b16 %v372
      %v613 = vunpack.c.l.b16 %v373
      %v614 = vunpack.c.h.b16 %v373
      %v615 = vunpack.c.l.b16 %v374
      %v616 = vunpack.c.h.b16 %v374
      %v617 = vunpack.c.l.b16 %v375
      %v618 = vunpack.c.h.b16 %v375
      %v619 = vunpack.c.l.b16 %v376
      %v620 = vunpack.c.h.b16 %v376
      %v621 = vunpack.c.l.b16 %v377
      %v622 = vunpack.c.h.b16 %v377
      %v623 = vunpack.c.l.b16 %v378
      %v624 = vunpack.c.h.b16 %v378
      %v625 = vunpack.c.l.b16 %v379
      %v626 = vunpack.c.h.b16 %v379
      %v627 = vunpack.c.l.b16 %v380
      %v628 = vunpack.c.h.b16 %v380
      %v629 = vunpack.c.l.b16 %v381
      %v630 = vunpack.c.h.b16 %v381
      %v631 = vunpack.c.l.b16 %v382
      %v632 = vunpack.c.h.b16 %v382
      %v633 = vunpack.c.l.b16 %v383
      %v634 = vunpack.c.h.b16 %v383
      %v635 = vunpack.c.l.b16 %v384
      %v636 = vunpack.c.h.b16 %v384
      %v637 = vunpack.c.l.b16 %v385
      %v638 = vunpack.c.h.b16 %v385
      %v639 = vunpack.c.l.b16 %v386
      %v640 = vunpack.c.h.b16 %v386
      %v641 = vunpack.c.l.b16 %v387
      %v642 = vunpack.c.h.b16 %v387
      %v643 = vunpack.c.l.b16 %v388
      %v644 = vunpack.c.h.b16 %v388
      %v645 = vunpack.c.l.b16 %v389
      %v646 = vunpack.c.h.b16 %v389
      %v647 = vunpack.c.l.b16 %v390
      %v648 = vunpack.c.h.b16 %v390
      %v649 = vunpack.c.l.b16 %v391
      %v650 = vunpack.c.h.b16 %v391
      %v651 = vunpack.c.l.b16 %v392
      %v652 = vunpack.c.h.b16 %v392
      %v653 = vunpack.c.l.b16 %v393
      %v654 = vunpack.c.h.b16 %v393
      %v655 = vunpack.c.l.b16 %v394
      %v656 = vunpack.c.h.b16 %v394
      %v657 = vunpack.c.l.b16 %v395
      %v658 = vunpack.c.h.b16 %v395
      %v659 = vunpack.c.l.b16 %v396
      %v660 = vunpack.c.h.b16 %v396
      %v661 = vunpack.c.l.b16 %v397
      %v662 = vunpack.c.h.b16 %v397
      %v663 = vunpack.c.l.b16 %v398
      %v664 = vunpack.c.h.b16 %v398
      %v665 = vunpack.c.l.b16 %v399
      %v666 = vunpack.c.h.b16 %v399
      %v667 = vunpack.c.l.b16 %v400
      %v668 = vunpack.c.h.b16 %v400
      %v669 = vunpack.c.l.b16 %v401
      %v670 = vunpack.c.h.b16 %v401
      %v671 = vunpack.c.l.b16 %v402
      %v672 = vunpack.c.h.b16 %v402
      %v673 = vunpack.c.l.b16 %v403
      %v674 = vunpack.c.h.b16 %v403
      %v675 = vunpack.c.l.b16 %v404
      %v676 = vunpack.c.h.b16 %v404
      %v677 = vunpack.c.l.b16 %v405
      %v678 = vunpack.c.h.b16 %v405
      %v679 = vunpack.c.l.b16 %v406
      %v680 = vunpack.c.h.b16 %v406
      %v681 = vunpack.c.l.b16 %v407
      %v682 = vunpack.c.h.b16 %v407
      %v683 = vunpack.c.l.b16 %v408
      %v684 = vunpack.c.h.b16 %v408
      %v685 = vunpack.c.l.b16 %v409
      %v686 = vunpack.c.h.b16 %v409
      %v687 = vunpack.c.l.b16 %v410
      %v688 = vunpack.c.h.b16 %v410
      %v689 = vunpack.c.l.b16 %v411
      %v690 = vunpack.c.h.b16 %v411
      %v691 = vunpack.c.l.b16 %v412
      %v692 = vunpack.c.h.b16 %v412
      %v693 = vunpack.c.l.b16 %v413
      %v694 = vunpack.c.h.b16 %v413
      %v695 = vunpack.c.l.b16 %v414
      %v696 = vunpack.c.h.b16 %v414
      %v697 = vunpack.c.l.b16 %v415
      %v698 = vunpack.c.h.b16 %v415
      %v699 = vunpack.c.l.b16 %v416
      %v700 = vunpack.c.h.b16 %v416
      %v701 = vunpack.c.l.b16 %v417
      %v702 = vunpack.c.h.b16 %v417
      %v703 = vunpack.c.l.b16 %v418
      %v704 = vunpack.c.h.b16 %v418
      %v705 = vunpack.c.l.b16 %v419
      %v706 = vunpack.c.h.b16 %v419
      %v707 = vunpack.c.l.b16 %v420
      %v708 = vunpack.c.h.b16 %v420
      %v709 = vunpack.c.l.b16 %v421
      %v710 = vunpack.c.h.b16 %v421
      %v711 = vunpack.c.l.b16 %v422
      %v712 = vunpack.c.h.b16 %v422
      %v713 = vunpack.c.l.b16 %v423
      %v714 = vunpack.c.h.b16 %v423
      %v715 = vunpack.c.l.b16 %v424
      %v716 = vunpack.c.h.b16 %v424
      %v717 = vunpack.c.l.b16 %v425
      %v718 = vunpack.c.h.b16 %v425
      %v719 = vunpack.c.l.b16 %v426
      %v720 = vunpack.c.h.b16 %v426
      %v721 = vunpack.c.l.b16 %v427
      %v722 = vunpack.c.h.b16 %v427
      %v723 = vunpack.c.l.b16 %v428
      %v724 = vunpack.c.h.b16 %v428
      %v725 = vunpack.c.l.b16 %v429
      %v726 = vunpack.c.h.b16 %v429
      %v727 = vunpack.c.l.b16 %v430
      %v728 = vunpack.c.h.b16 %v430
      %v729 = vunpack.c.l.b16 %v431
      %v730 = vunpack.c.h.b16 %v431
      %v731 = vunpack.c.l.b16 %v432
      %v732 = vunpack.c.h.b16 %v432
      %v733 = vunpack.c.l.b16 %v433
      %v734 = vunpack.c.h.b16 %v433
      %v735 = vunpack.c.l.b16 %v434
      %v736 = vunpack.c.h.b16 %v434
      %v737 = vunpack.c.l.b16 %v435
      %v738 = vunpack.c.h.b16 %v435
      %v739 = vunpack.c.l.b16 %v436
      %v740 = vunpack.c.h.b16 %v436
      %v741 = vunpack.c.l.b16 %v437
      %v742 = vunpack.c.h.b16 %v437
      %v743 = vunpack.c.l.b16 %v438
      %v744 = vunpack.c.h.b16 %v438
      %v745 = vunpack.c.l.b16 %v439
      %v746 = vunpack.c.h.b16 %v439
      %v747 = vunpack.c.l.b16 %v440
      %v748 = vunpack.c.h.b16 %v440
      %v749 = vunpack.c.l.b16 %v441
      %v750 = vunpack.c.h.b16 %v441
      %v751 = vunpack.c.l.b16 %v442
      %v752 = vunpack.c.h.b16 %v442
      %v753 = vunpack.c.l.b16 %v443
      %v754 = vunpack.c.h.b16 %v443
      %v755 = vunpack.c.l.b16 %v444
      %v756 = vunpack.c.h.b16 %v444
      %v757 = vunpack.c.l.b16 %v445
      %v758 = vunpack.c.h.b16 %v445
      %v759 = vunpack.c.l.b16 %v446
      %v760 = vunpack.c.h.b16 %v446
      %v761 = vunpack.c.l.b16 %v447
      %v762 = vunpack.c.h.b16 %v447
      %v763 = vunpack.c.l.b16 %v448
      %v764 = vunpack.c.h.b16 %v448
      %v765 = vunpack.c.l.b16 %v449
      %v766 = vunpack.c.h.b16 %v449
      %v767 = vunpack.c.l.b16 %v450
      %v768 = vunpack.c.h.b16 %v450
      %v769 = vunpack.c.l.b16 %v451
      %v770 = vunpack.c.h.b16 %v451
      %v771 = vunpack.c.l.b16 %v452
      %v772 = vunpack.c.h.b16 %v452
      %v773 = vunpack.c.l.b16 %v453
      %v774 = vunpack.c.h.b16 %v453
      %v775 = vunpack.c.l.b16 %v454
      %v776 = vunpack.c.h.b16 %v454
      %v777 = vpack.c.b16 %v591, %v585
      %v778 = vpack.c.b16 %v592, %v586
      %v779 = vpack.c.b16 %v593, %v587
      %v780 = vpack.c.b16 %v594, %v588
      %v781 = vpack.c.b16 %v595, %v589
      %v782 = vpack.c.b16 %v596, %v590
      %v783 = vpack.c.b16 %v603, %v597
      %v784 = vpack.c.b16 %v604, %v598
      %v785 = vpack.c.b16 %v605, %v599
      %v786 = vpack.c.b16 %v606, %v600
      %v787 = vpack.c.b16 %v607, %v601
      %v788 = vpack.c.b16 %v608, %v602
      %v789 = vpack.c.b16 %v615, %v609
      %v790 = vpack.c.b16 %v616, %v610
      %v791 = vpack.c.b16 %v617, %v611
      %v792 = vpack.c.b16 %v618, %v612
      %v793 = vpack.c.b16 %v619, %v613
      %v794 = vpack.c.b16 %v620, %v614
      %v795 = vpack.c.b16 %v627, %v621
      %v796 = vpack.c.b16 %v628, %v622
      %v797 = vpack.c.b16 %v629, %v623
      %v798 = vpack.c.b16 %v630, %v624
      %v799 = vpack.c.b16 %v631, %v625
      %v800 = vpack.c.b16 %v632, %v626
      %v801 = vpack.c.b16 %v639, %v633
      %v802 = vpack.c.b16 %v640, %v634
      %v803 = vpack.c.b16 %v641, %v635
      %v804 = vpack.c.b16 %v642, %v636
      %v805 = vpack.c.b16 %v643, %v637
      %v806 = vpack.c.b16 %v644, %v638
      %v807 = vpack.c.b16 %v651, %v645
      %v808 = vpack.c.b16 %v652, %v646
      %v809 = vpack.c.b16 %v653, %v647
      %v810 = vpack.c.b16 %v654, %v648
      %v811 = vpack.c.b16 %v655, %v649
      %v812 = vpack.c.b16 %v656, %v650
      %v813 = vpack.c.b16 %v663, %v657
      %v814 = vpack.c.b16 %v664, %v658
      %v815 = vpack.c.b16 %v665, %v659
      %v816 = vpack.c.b16 %v666, %v660
      %v817 = vpack.c.b16 %v667, %v661
      %v818 = vpack.c.b16 %v668, %v662
      %v819 = vpack.c.b16 %v675, %v669
      %v820 = vpack.c.b16 %v676, %v670
      %v821 = vpack.c.b16 %v677, %v671
      %v822 = vpack.c.b16 %v678, %v672
      %v823 = vpack.c.b16 %v679, %v673
      %v824 = vpack.c.b16 %v680, %v674
      %v825 = vpack.c.b16 %v687, %v681
      %v826 = vpack.c.b16 %v688, %v682
      %v827 = vpack.c.b16 %v689, %v683
      %v828 = vpack.c.b16 %v690, %v684
      %v829 = vpack.c.b16 %v691, %v685
      %v830 = vpack.c.b16 %v692, %v686
      %v831 = vpack.c.b16 %v699, %v693
      %v832 = vpack.c.b16 %v700, %v694
      %v833 = vpack.c.b16 %v701, %v695
      %v834 = vpack.c.b16 %v702, %v696
      %v835 = vpack.c.b16 %v703, %v697
      %v836 = vpack.c.b16 %v704, %v698
      %v837 = vpack.c.b16 %v711, %v705
      %v838 = vpack.c.b16 %v712, %v706
      %v839 = vpack.c.b16 %v713, %v707
      %v840 = vpack.c.b16 %v714, %v708
      %v841 = vpack.c.b16 %v715, %v709
      %v842 = vpack.c.b16 %v716, %v710
      %v843 = vpack.c.b16 %v723, %v717
      %v844 = vpack.c.b16 %v724, %v718
      %v845 = vpack.c.b16 %v725, %v719
      %v846 = vpack.c.b16 %v726, %v720
      %v847 = vpack.c.b16 %v727, %v721
      %v848 = vpack.c.b16 %v728, %v722
      %v849 = vpack.c.b16 %v735, %v729
      %v850 = vpack.c.b16 %v736, %v730
      %v851 = vpack.c.b16 %v737, %v731
      %v852 = vpack.c.b16 %v738, %v732
      %v853 = vpack.c.b16 %v739, %v733
      %v854 = vpack.c.b16 %v740, %v734
      %v855 = vpack.c.b16 %v747, %v741
      %v856 = vpack.c.b16 %v748, %v742
      %v857 = vpack.c.b16 %v749, %v743
      %v858 = vpack.c.b16 %v750, %v744
      %v859 = vpack.c.b16 %v751, %v745
      %v860 = vpack.c.b16 %v752, %v746
      %v861 = vpack.c.b16 %v759, %v753
      %v862 = vpack.c.b16 %v760, %v754
      %v863 = vpack.c.b16 %v761, %v755
      %v864 = vpack.c.b16 %v762, %v756
      %v865 = vpack.c.b16 %v763, %v757
      %v866 = vpack.c.b16 %v764, %v758
      %v867 = vpack.c.b16 %v771, %v765
      %v868 = vpack.c.b16 %v772, %v766
      %v869 = vpack.c.b16 %v773, %v767
      %v870 = vpack.c.b16 %v774, %v768
      %v871 = vpack.c.b16 %v775, %v769
      %v872 = vpack.c.b16 %v776, %v770
      %969 = vmatprep.subr.bf16.mxu0 %v820
      %970 = vmatpush1.bf16.msra.mxu0 %v819
      %971 = vmatprep.subr.bf16.mxu0 %v814
      %972 = vmatpush1.bf16.msra.mxu0 %v813
      %973 = vmatprep.subr.bf16.mxu0 %v808
      %974 = vmatpush1.bf16.msra.mxu0 %v807
      %975 = vmatprep.subr.bf16.mxu0 %v802
      %976 = vmatpush1.bf16.msra.mxu0 %v801
      %977 = vmatprep.subr.bf16.mxu0 %v796
      %978 = vmatpush1.bf16.msra.mxu0 %v795
      %979 = vmatprep.subr.bf16.mxu0 %v790
      %980 = vmatpush1.bf16.msra.mxu0 %v789
      %981 = vmatprep.subr.bf16.mxu0 %v784
      %982 = vmatpush1.bf16.msra.mxu0 %v783
      %983 = vmatprep.subr.bf16.mxu0 %v778
      %984 = vmatpush1.bf16.msra.mxu0 %v777
      %985 = vmatprep.subr.bf16.mxu0 %v868
      %986 = vmatpush2.bf16.msra.mxu0 %v867
      %987 = vmatprep.subr.bf16.mxu0 %v862
      %988 = vmatpush2.bf16.msra.mxu0 %v861
      %989 = vmatprep.subr.bf16.mxu0 %v856
      %990 = vmatpush2.bf16.msra.mxu0 %v855
      %991 = vmatprep.subr.bf16.mxu0 %v850
      %992 = vmatpush2.bf16.msra.mxu0 %v849
      %993 = vmatprep.subr.bf16.mxu0 %v844
      %994 = vmatpush2.bf16.msra.mxu0 %v843
      %995 = vmatprep.subr.bf16.mxu0 %v838
      %996 = vmatpush2.bf16.msra.mxu0 %v837
      %997 = vmatprep.subr.bf16.mxu0 %v832
      %998 = vmatpush2.bf16.msra.mxu0 %v831
      %999 = vmatprep.subr.bf16.mxu0 %v826
      %1000 = vmatpush2.bf16.msra.mxu0 %v825
      %1001 = vmatprep.mubr.bf16.mxu0 %v353
      %1002 = vmatmul.mubr.bf16.gmra.mxu0 %v352
      %v1003 = vpop.f32.mrf.mxu0
      %v1004 = vadd.f32 %v462, %v1003
      %v1005 = vpop.f32.mrf.mxu0
      %v1006 = vadd.f32 %v466, %v1005
      %v1007 = vpop.f32.mrf.mxu0
      %v1008 = vadd.f32 %v462, %v1007
      %v1009 = vpop.f32.mrf.mxu0
      %v1010 = vadd.f32 %v466, %v1009
      %1011 = vmatprep.mubr.bf16.mxu0 %v355
      %1012 = vmatmul.mubr.bf16.gmra.mxu0 %v354
      %v1013 = vpop.f32.mrf.mxu0
      %v1014 = vadd.f32 %v462, %v1013
      %v1015 = vpop.f32.mrf.mxu0
      %v1016 = vadd.f32 %v466, %v1015
      %v1017 = vpop.f32.mrf.mxu0
      %v1018 = vadd.f32 %v462, %v1017
      %v1019 = vpop.f32.mrf.mxu0
      %v1020 = vadd.f32 %v466, %v1019
      %1021 = vdwg.mxu0
      %1022 = vmatprep.subr.bf16.mxu0 %v822
      %1023 = vmatpush1.bf16.msra.mxu0 %v821
      %1024 = vmatprep.subr.bf16.mxu0 %v816
      %1025 = vmatpush1.bf16.msra.mxu0 %v815
      %1026 = vmatprep.subr.bf16.mxu0 %v810
      %1027 = vmatpush1.bf16.msra.mxu0 %v809
      %1028 = vmatprep.subr.bf16.mxu0 %v804
      %1029 = vmatpush1.bf16.msra.mxu0 %v803
      %1030 = vmatprep.subr.bf16.mxu0 %v798
      %1031 = vmatpush1.bf16.msra.mxu0 %v797
      %1032 = vmatprep.subr.bf16.mxu0 %v792
      %1033 = vmatpush1.bf16.msra.mxu0 %v791
      %1034 = vmatprep.subr.bf16.mxu0 %v786
      %1035 = vmatpush1.bf16.msra.mxu0 %v785
      %1036 = vmatprep.subr.bf16.mxu0 %v780
      %1037 = vmatpush1.bf16.msra.mxu0 %v779
      %1038 = vmatprep.subr.bf16.mxu0 %v870
      %1039 = vmatpush2.bf16.msra.mxu0 %v869
      %1040 = vmatprep.subr.bf16.mxu0 %v864
      %1041 = vmatpush2.bf16.msra.mxu0 %v863
      %1042 = vmatprep.subr.bf16.mxu0 %v858
      %1043 = vmatpush2.bf16.msra.mxu0 %v857
      %1044 = vmatprep.subr.bf16.mxu0 %v852
      %1045 = vmatpush2.bf16.msra.mxu0 %v851
      %1046 = vmatprep.subr.bf16.mxu0 %v846
      %1047 = vmatpush2.bf16.msra.mxu0 %v845
      %1048 = vmatprep.subr.bf16.mxu0 %v840
      %1049 = vmatpush2.bf16.msra.mxu0 %v839
      %1050 = vmatprep.subr.bf16.mxu0 %v834
      %1051 = vmatpush2.bf16.msra.mxu0 %v833
      %1052 = vmatprep.subr.bf16.mxu0 %v828
      %1053 = vmatpush2.bf16.msra.mxu0 %v827
      %1054 = vmatprep.mubr.bf16.mxu0 %v353
      %1055 = vmatmul.mubr.bf16.gmra.mxu0 %v352
      %v1056 = vpop.f32.mrf.mxu0
      %v1057 = vadd.f32 %v470, %v1056
      %v1058 = vpop.f32.mrf.mxu0
      %v1059 = vadd.f32 %v474, %v1058
      %v1060 = vpop.f32.mrf.mxu0
      %v1061 = vadd.f32 %v470, %v1060
      %v1062 = vpop.f32.mrf.mxu0
      %v1063 = vadd.f32 %v474, %v1062
      %1064 = vmatprep.mubr.bf16.mxu0 %v355
      %1065 = vmatmul.mubr.bf16.gmra.mxu0 %v354
      %v1066 = vpop.f32.mrf.mxu0
      %v1067 = vadd.f32 %v470, %v1066
      %v1068 = vpop.f32.mrf.mxu0
      %v1069 = vadd.f32 %v474, %v1068
      %v1070 = vpop.f32.mrf.mxu0
      %v1071 = vadd.f32 %v470, %v1070
      %v1072 = vpop.f32.mrf.mxu0
      %v1073 = vadd.f32 %v474, %v1072
      %1074 = vdwg.mxu0
      %1075 = vmatprep.subr.bf16.mxu0 %v824
      %1076 = vmatpush1.bf16.msra.mxu0 %v823
      %1077 = vmatprep.subr.bf16.mxu0 %v818
      %1078 = vmatpush1.bf16.msra.mxu0 %v817
      %1079 = vmatprep.subr.bf16.mxu0 %v812
      %1080 = vmatpush1.bf16.msra.mxu0 %v811
      %1081 = vmatprep.subr.bf16.mxu0 %v806
      %1082 = vmatpush1.bf16.msra.mxu0 %v805
      %1083 = vmatprep.subr.bf16.mxu0 %v800
      %1084 = vmatpush1.bf16.msra.mxu0 %v799
      %1085 = vmatprep.subr.bf16.mxu0 %v794
      %1086 = vmatpush1.bf16.msra.mxu0 %v793
      %1087 = vmatprep.subr.bf16.mxu0 %v788
      %1088 = vmatpush1.bf16.msra.mxu0 %v787
      %1089 = vmatprep.subr.bf16.mxu0 %v782
      %1090 = vmatpush1.bf16.msra.mxu0 %v781
      %1091 = vmatprep.subr.bf16.mxu0 %v872
      %1092 = vmatpush2.bf16.msra.mxu0 %v871
      %1093 = vmatprep.subr.bf16.mxu0 %v866
      %1094 = vmatpush2.bf16.msra.mxu0 %v865
      %1095 = vmatprep.subr.bf16.mxu0 %v860
      %1096 = vmatpush2.bf16.msra.mxu0 %v859
      %1097 = vmatprep.subr.bf16.mxu0 %v854
      %1098 = vmatpush2.bf16.msra.mxu0 %v853
      %1099 = vmatprep.subr.bf16.mxu0 %v848
      %1100 = vmatpush2.bf16.msra.mxu0 %v847
      %1101 = vmatprep.subr.bf16.mxu0 %v842
      %1102 = vmatpush2.bf16.msra.mxu0 %v841
      %1103 = vmatprep.subr.bf16.mxu0 %v836
      %1104 = vmatpush2.bf16.msra.mxu0 %v835
      %1105 = vmatprep.subr.bf16.mxu0 %v830
      %1106 = vmatpush2.bf16.msra.mxu0 %v829
      %1107 = vmatprep.mubr.bf16.mxu0 %v353
      %1108 = vmatmul.mubr.bf16.gmra.mxu0 %v352
      %v1109 = vpop.f32.mrf.mxu0
      %v1110 = vadd.f32 %v478, %v1109
      %v1111 = vpop.f32.mrf.mxu0
      %v1112 = vadd.f32 %v482, %v1111
      %v1113 = vpop.f32.mrf.mxu0
      %v1114 = vadd.f32 %v478, %v1113
      %v1115 = vpop.f32.mrf.mxu0
      %v1116 = vadd.f32 %v482, %v1115
      %1117 = vmatprep.mubr.bf16.mxu0 %v355
      %1118 = vmatmul.mubr.bf16.gmra.mxu0 %v354
      %v1119 = vpop.f32.mrf.mxu0
      %v1120 = vadd.f32 %v478, %v1119
      %v1121 = vpop.f32.mrf.mxu0
      %v1122 = vadd.f32 %v482, %v1121
      %v1123 = vpop.f32.mrf.mxu0
      %v1124 = vadd.f32 %v478, %v1123
      %v1125 = vpop.f32.mrf.mxu0
      %v1126 = vadd.f32 %v482, %v1125
      %1127 = vdwg.mxu0
      %v1128 = vpack.c.bf16 %v1008, %v1004
      %v1129 = vpack.c.bf16 %v1010, %v1006
      %v1130 = vpack.c.bf16 %v1018, %v1014
      %v1131 = vpack.c.bf16 %v1020, %v1016
      %v1132 = vpack.c.bf16 %v1061, %v1057
      %v1133 = vpack.c.bf16 %v1063, %v1059
      %v1134 = vpack.c.bf16 %v1071, %v1067
      %v1135 = vpack.c.bf16 %v1073, %v1069
      %v1136 = vpack.c.bf16 %v1114, %v1110
      %v1137 = vpack.c.bf16 %v1116, %v1112
      %v1138 = vpack.c.bf16 %v1124, %v1120
      %v1139 = vpack.c.bf16 %v1126, %v1122
      %s1140 = smul.u32 %s231, 64
      %s1141 = smul.addr %s1140, 4
      %s1142 = scalar_lea.vmem [#allocation11], %s1141
      %v1143 = vld [vmem:[%s1142] sm:$0xff]
      %v1144 = vld [vmem:[%s1142 + $0x8] sm:$0xff]
      %v1145 = vld [vmem:[%s1142 + $0x10] sm:$0xff]
      %v1146 = vld [vmem:[%s1142 + $0x18] sm:$0xff]
      %v1147 = vld [vmem:[%s1142 + $0x20] sm:$0xff]
      %v1148 = vld [vmem:[%s1142 + $0x28] sm:$0xff]
      %v1149 = vld [vmem:[%s1142 + $0x30] sm:$0xff]
      %v1150 = vld [vmem:[%s1142 + $0x38] sm:$0xff]
      %v1151 = vld [vmem:[%s1142 + $0x40] sm:$0xff]
      %v1152 = vld [vmem:[%s1142 + $0x48] sm:$0xff]
      %v1153 = vld [vmem:[%s1142 + $0x50] sm:$0xff]
      %v1154 = vld [vmem:[%s1142 + $0x58] sm:$0xff]
      %v1155 = vld [vmem:[%s1142 + $0x60] sm:$0xff]
      %v1156 = vld [vmem:[%s1142 + $0x68] sm:$0xff]
      %v1157 = vld [vmem:[%s1142 + $0x70] sm:$0xff]
      %v1158 = vld [vmem:[%s1142 + $0x78] sm:$0xff]
      %v1159 = vld [vmem:[%s1142 + $0x80] sm:$0xff]
      %v1160 = vld [vmem:[%s1142 + $0x88] sm:$0xff]
      %v1161 = vld [vmem:[%s1142 + $0x90] sm:$0xff]
      %v1162 = vld [vmem:[%s1142 + $0x98] sm:$0xff]
      %v1163 = vld [vmem:[%s1142 + $0xa0] sm:$0xff]
      %v1164 = vld [vmem:[%s1142 + $0xa8] sm:$0xff]
      %v1165 = vld [vmem:[%s1142 + $0xb0] sm:$0xff]
      %v1166 = vld [vmem:[%s1142 + $0xb8] sm:$0xff]
      %v1167 = vld [vmem:[%s1142 + $0xc0] sm:$0xff]
      %v1168 = vld [vmem:[%s1142 + $0xc8] sm:$0xff]
      %v1169 = vld [vmem:[%s1142 + $0xd0] sm:$0xff]
      %v1170 = vld [vmem:[%s1142 + $0xd8] sm:$0xff]
      %v1171 = vld [vmem:[%s1142 + $0xe0] sm:$0xff]
      %v1172 = vld [vmem:[%s1142 + $0xe8] sm:$0xff]
      %v1173 = vld [vmem:[%s1142 + $0xf0] sm:$0xff]
      %v1174 = vld [vmem:[%s1142 + $0xf8] sm:$0xff]
      %vm1175 = vcmask 261120
      %v1177 = vsel %vm1175, %v1128, 0
      %v1180 = vsel %vm1175, %v1132, 0
      %1182 = vmatprep.subr.bf16.mxu0 0
      %1183 = vmatpush1.bf16.xpose.msra.mxu0 0
      %1184 = vmatprep.subr.bf16.mxu0 0
      %1185 = vmatpush1.bf16.xpose.msra.mxu0 0
      %1186 = vmatprep.subr.bf16.mxu0 0
      %1187 = vmatpush1.bf16.xpose.msra.mxu0 0
      %1188 = vmatprep.subr.bf16.mxu0 0
      %1189 = vmatpush1.bf16.xpose.msra.mxu0 0
      %1190 = vmatprep.subr.bf16.mxu0 0
      %1191 = vmatpush1.bf16.xpose.msra.mxu0 0
      %1192 = vmatprep.subr.bf16.mxu0 0
      %1193 = vmatpush1.bf16.xpose.msra.mxu0 0
      %1194 = vmatprep.subr.bf16.mxu0 0
      %1195 = vmatpush1.bf16.xpose.msra.mxu0 0
      %1196 = vmatprep.subr.bf16.mxu0 0
      %1197 = vmatpush1.bf16.xpose.msra.mxu0 %v1180
      %1198 = vmatprep.subr.bf16.mxu0 0
      %1199 = vmatpush2.bf16.xpose.msra.mxu0 0
      %1200 = vmatprep.subr.bf16.mxu0 0
      %1201 = vmatpush2.bf16.xpose.msra.mxu0 0
      %1202 = vmatprep.subr.bf16.mxu0 0
      %1203 = vmatpush2.bf16.xpose.msra.mxu0 0
      %1204 = vmatprep.subr.bf16.mxu0 0
      %1205 = vmatpush2.bf16.xpose.msra.mxu0 0
      %1206 = vmatprep.subr.bf16.mxu0 0
      %1207 = vmatpush2.bf16.xpose.msra.mxu0 0
      %1208 = vmatprep.subr.bf16.mxu0 0
      %1209 = vmatpush2.bf16.xpose.msra.mxu0 0
      %1210 = vmatprep.subr.bf16.mxu0 0
      %1211 = vmatpush2.bf16.xpose.msra.mxu0 0
      %1212 = vmatprep.subr.bf16.mxu0 0
      %1213 = vmatpush2.bf16.xpose.msra.mxu0 0
      %1214 = vmatprep.mubr.bf16.mxu0 0
      %1215 = vmatmul.mubr.bf16.gmra.mxu0 %v1177
      %v1216 = vpop.f32.mrf.mxu0
      %v1217 = vadd.f32 0.0, %v1216
      %v1218 = vpop.f32.mrf.mxu0
      %v1219 = vpop.f32.mrf.mxu0
      %v1220 = vadd.f32 0.0, %v1219
      %v1221 = vpop.f32.mrf.mxu0
      %1222 = vdwg.mxu0
      %v1224 = vsel %vm1175, %v1130, 0
      %v1227 = vsel %vm1175, %v1134, 0
      %1229 = vmatprep.subr.bf16.mxu0 0
      %1230 = vmatpush1.bf16.xpose.msra.mxu0 0
      %1231 = vmatprep.subr.bf16.mxu0 0
      %1232 = vmatpush1.bf16.xpose.msra.mxu0 0
      %1233 = vmatprep.subr.bf16.mxu0 0
      %1234 = vmatpush1.bf16.xpose.msra.mxu0 0
      %1235 = vmatprep.subr.bf16.mxu0 0
      %1236 = vmatpush1.bf16.xpose.msra.mxu0 0
      %1237 = vmatprep.subr.bf16.mxu0 0
      %1238 = vmatpush1.bf16.xpose.msra.mxu0 0
      %1239 = vmatprep.subr.bf16.mxu0 0
      %1240 = vmatpush1.bf16.xpose.msra.mxu0 0
      %1241 = vmatprep.subr.bf16.mxu0 0
      %1242 = vmatpush1.bf16.xpose.msra.mxu0 0
      %1243 = vmatprep.subr.bf16.mxu0 0
      %1244 = vmatpush1.bf16.xpose.msra.mxu0 %v1227
      %1245 = vmatprep.subr.bf16.mxu0 0
      %1246 = vmatpush2.bf16.xpose.msra.mxu0 0
      %1247 = vmatprep.subr.bf16.mxu0 0
      %1248 = vmatpush2.bf16.xpose.msra.mxu0 0
      %1249 = vmatprep.subr.bf16.mxu0 0
      %1250 = vmatpush2.bf16.xpose.msra.mxu0 0
      %1251 = vmatprep.subr.bf16.mxu0 0
      %1252 = vmatpush2.bf16.xpose.msra.mxu0 0
      %1253 = vmatprep.subr.bf16.mxu0 0
      %1254 = vmatpush2.bf16.xpose.msra.mxu0 0
      %1255 = vmatprep.subr.bf16.mxu0 0
      %1256 = vmatpush2.bf16.xpose.msra.mxu0 0
      %1257 = vmatprep.subr.bf16.mxu0 0
      %1258 = vmatpush2.bf16.xpose.msra.mxu0 0
      %1259 = vmatprep.subr.bf16.mxu0 0
      %1260 = vmatpush2.bf16.xpose.msra.mxu0 0
      %1261 = vmatprep.mubr.bf16.mxu0 0
      %1262 = vmatmul.mubr.bf16.gmra.mxu0 %v1224
      %v1263 = vpop.f32.mrf.mxu0
      %v1264 = vadd.f32 0.0, %v1263
      %v1265 = vpop.f32.mrf.mxu0
      %v1266 = vpop.f32.mrf.mxu0
      %v1267 = vadd.f32 0.0, %v1266
      %v1268 = vpop.f32.mrf.mxu0
      %1269 = vdwg.mxu0
      %vm1270 = vcmask 130048
      %v1271 = vsel %vm1270, %v1217, -inf
      %1272 = vmax.xlane.f32.xlu0 %v1271
      %v1273 = vpop.xlane.xlu0 %1272
      %v1274 = vsel %vm1270, %v1220, -inf
      %1275 = vmax.xlane.f32.xlu0 %v1274
      %v1276 = vpop.xlane.xlu0 %1275
      %v1277 = vsel %vm1270, %v1264, -inf
      %1278 = vmax.xlane.f32.xlu0 %v1277
      %v1279 = vpop.xlane.xlu0 %1278
      %v1280 = vsel %vm1270, %v1267, -inf
      %1281 = vmax.xlane.f32.xlu0 %v1280
      %v1282 = vpop.xlane.xlu0 %1281
      %v1283 = vsub.f32 %v1217, %v1273
      %v1284 = vsub.f32 %v1220, %v1276
      %v1285 = vsub.f32 %v1264, %v1279
      %v1286 = vsub.f32 %v1267, %v1282
      %v1287 = vmul.f32 %v1283, 1.442695
      %v1288 = vpow.pop %v1287
      %v1289 = vmul.f32 %v1284, 1.442695
      %v1290 = vpow.pop %v1289
      %v1291 = vmul.f32 %v1285, 1.442695
      %v1292 = vpow.pop %v1291
      %v1293 = vmul.f32 %v1286, 1.442695
      %v1294 = vpow.pop %v1293
      %v1295 = vsel %vm1270, %v1288, 0.0
      %1296 = vadd.xlane.f32.xlu0 %v1295
      %v1297 = vpop.xlane.xlu0 %1296
      %v1298 = vsel %vm1270, %v1290, 0.0
      %1299 = vadd.xlane.f32.xlu0 %v1298
      %v1300 = vpop.xlane.xlu0 %1299
      %v1301 = vsel %vm1270, %v1292, 0.0
      %1302 = vadd.xlane.f32.xlu0 %v1301
      %v1303 = vpop.xlane.xlu0 %1302
      %v1304 = vsel %vm1270, %v1294, 0.0
      %1305 = vadd.xlane.f32.xlu0 %v1304
      %v1306 = vpop.xlane.xlu0 %1305
      %v1307 = vrcp.pop %v1297
      %v1308 = vrcp.pop %v1300
      %v1309 = vrcp.pop %v1303
      %v1310 = vrcp.pop %v1306
      %v1311 = vmul.f32 %v1288, %v1307
      %v1312 = vmul.f32 %v1290, %v1308
      %v1313 = vmul.f32 %v1292, %v1309
      %v1314 = vmul.f32 %v1294, %v1310
      %v1315 = vpack.c.bf16 %v1312, %v1311
      %v1316 = vpack.c.bf16 %v1314, %v1313
      %v1318 = vsel %vm1270, %v1315, 0
      %1320 = vmatprep.subr.bf16.mxu0 0
      %1321 = vmatpush1.bf16.msra.mxu0 0
      %1322 = vmatprep.subr.bf16.mxu0 0
      %1323 = vmatpush1.bf16.msra.mxu0 0
      %1324 = vmatprep.subr.bf16.mxu0 0
      %1325 = vmatpush1.bf16.msra.mxu0 0
      %1326 = vmatprep.subr.bf16.mxu0 0
      %1327 = vmatpush1.bf16.msra.mxu0 0
      %1328 = vmatprep.subr.bf16.mxu0 0
      %1329 = vmatpush1.bf16.msra.mxu0 0
      %1330 = vmatprep.subr.bf16.mxu0 0
      %1331 = vmatpush1.bf16.msra.mxu0 0
      %1332 = vmatprep.subr.bf16.mxu0 0
      %1333 = vmatpush1.bf16.msra.mxu0 0
      %1334 = vmatprep.subr.bf16.mxu0 0
      %1335 = vmatpush1.bf16.msra.mxu0 %v1136
      %1336 = vmatprep.subr.bf16.mxu0 0
      %1337 = vmatpush2.bf16.msra.mxu0 0
      %1338 = vmatprep.subr.bf16.mxu0 0
      %1339 = vmatpush2.bf16.msra.mxu0 0
      %1340 = vmatprep.subr.bf16.mxu0 0
      %1341 = vmatpush2.bf16.msra.mxu0 0
      %1342 = vmatprep.subr.bf16.mxu0 0
      %1343 = vmatpush2.bf16.msra.mxu0 0
      %1344 = vmatprep.subr.bf16.mxu0 0
      %1345 = vmatpush2.bf16.msra.mxu0 0
      %1346 = vmatprep.subr.bf16.mxu0 0
      %1347 = vmatpush2.bf16.msra.mxu0 0
      %1348 = vmatprep.subr.bf16.mxu0 0
      %1349 = vmatpush2.bf16.msra.mxu0 0
      %1350 = vmatprep.subr.bf16.mxu0 0
      %1351 = vmatpush2.bf16.msra.mxu0 0
      %1352 = vmatprep.mubr.bf16.mxu0 0
      %1353 = vmatmul.mubr.bf16.gmra.mxu0 %v1318
      %v1354 = vpop.f32.mrf.mxu0
      %v1355 = vadd.f32 0.0, %v1354
      %v1356 = vpop.f32.mrf.mxu0
      %v1357 = vpop.f32.mrf.mxu0
      %v1358 = vadd.f32 0.0, %v1357
      %v1359 = vpop.f32.mrf.mxu0
      %1360 = vdwg.mxu0
      %v1362 = vsel %vm1270, %v1316, 0
      %1364 = vmatprep.subr.bf16.mxu0 0
      %1365 = vmatpush1.bf16.msra.mxu0 0
      %1366 = vmatprep.subr.bf16.mxu0 0
      %1367 = vmatpush1.bf16.msra.mxu0 0
      %1368 = vmatprep.subr.bf16.mxu0 0
      %1369 = vmatpush1.bf16.msra.mxu0 0
      %1370 = vmatprep.subr.bf16.mxu0 0
      %1371 = vmatpush1.bf16.msra.mxu0 0
      %1372 = vmatprep.subr.bf16.mxu0 0
      %1373 = vmatpush1.bf16.msra.mxu0 0
      %1374 = vmatprep.subr.bf16.mxu0 0
      %1375 = vmatpush1.bf16.msra.mxu0 0
      %1376 = vmatprep.subr.bf16.mxu0 0
      %1377 = vmatpush1.bf16.msra.mxu0 0
      %1378 = vmatprep.subr.bf16.mxu0 0
      %1379 = vmatpush1.bf16.msra.mxu0 %v1138
      %1380 = vmatprep.subr.bf16.mxu0 0
      %1381 = vmatpush2.bf16.msra.mxu0 0
      %1382 = vmatprep.subr.bf16.mxu0 0
      %1383 = vmatpush2.bf16.msra.mxu0 0
      %1384 = vmatprep.subr.bf16.mxu0 0
      %1385 = vmatpush2.bf16.msra.mxu0 0
      %1386 = vmatprep.subr.bf16.mxu0 0
      %1387 = vmatpush2.bf16.msra.mxu0 0
      %1388 = vmatprep.subr.bf16.mxu0 0
      %1389 = vmatpush2.bf16.msra.mxu0 0
      %1390 = vmatprep.subr.bf16.mxu0 0
      %1391 = vmatpush2.bf16.msra.mxu0 0
      %1392 = vmatprep.subr.bf16.mxu0 0
      %1393 = vmatpush2.bf16.msra.mxu0 0
      %1394 = vmatprep.subr.bf16.mxu0 0
      %1395 = vmatpush2.bf16.msra.mxu0 0
      %1396 = vmatprep.mubr.bf16.mxu0 0
      %1397 = vmatmul.mubr.bf16.gmra.mxu0 %v1362
      %v1398 = vpop.f32.mrf.mxu0
      %v1399 = vadd.f32 0.0, %v1398
      %v1400 = vpop.f32.mrf.mxu0
      %v1401 = vpop.f32.mrf.mxu0
      %v1402 = vadd.f32 0.0, %v1401
      %v1403 = vpop.f32.mrf.mxu0
      %1404 = vdwg.mxu0
      %v1405 = vpack.c.bf16 %v1358, %v1355
      %v1406 = vpack.c.bf16 %v1402, %v1399
      %1408 = vrot.lane.b32.xlu0 %v1128, 96
      %v1409 = vpop.permute.xlu0 %1408
      %1411 = vrot.lane.b32.xlu0 %v1132, 96
      %v1412 = vpop.permute.xlu0 %1411
      %v1414 = vsel %vm1175, %v1409, 0
      %v1417 = vsel %vm1175, %v1412, 0
      %1419 = vmatprep.subr.bf16.mxu0 0
      %1420 = vmatpush1.bf16.xpose.msra.mxu0 0
      %1421 = vmatprep.subr.bf16.mxu0 0
      %1422 = vmatpush1.bf16.xpose.msra.mxu0 0
      %1423 = vmatprep.subr.bf16.mxu0 0
      %1424 = vmatpush1.bf16.xpose.msra.mxu0 0
      %1425 = vmatprep.subr.bf16.mxu0 0
      %1426 = vmatpush1.bf16.xpose.msra.mxu0 0
      %1427 = vmatprep.subr.bf16.mxu0 0
      %1428 = vmatpush1.bf16.xpose.msra.mxu0 0
      %1429 = vmatprep.subr.bf16.mxu0 0
      %1430 = vmatpush1.bf16.xpose.msra.mxu0 0
      %1431 = vmatprep.subr.bf16.mxu0 0
      %1432 = vmatpush1.bf16.xpose.msra.mxu0 0
      %1433 = vmatprep.subr.bf16.mxu0 0
      %1434 = vmatpush1.bf16.xpose.msra.mxu0 %v1417
      %1435 = vmatprep.subr.bf16.mxu0 0
      %1436 = vmatpush2.bf16.xpose.msra.mxu0 0
      %1437 = vmatprep.subr.bf16.mxu0 0
      %1438 = vmatpush2.bf16.xpose.msra.mxu0 0
      %1439 = vmatprep.subr.bf16.mxu0 0
      %1440 = vmatpush2.bf16.xpose.msra.mxu0 0
      %1441 = vmatprep.subr.bf16.mxu0 0
      %1442 = vmatpush2.bf16.xpose.msra.mxu0 0
      %1443 = vmatprep.subr.bf16.mxu0 0
      %1444 = vmatpush2.bf16.xpose.msra.mxu0 0
      %1445 = vmatprep.subr.bf16.mxu0 0
      %1446 = vmatpush2.bf16.xpose.msra.mxu0 0
      %1447 = vmatprep.subr.bf16.mxu0 0
      %1448 = vmatpush2.bf16.xpose.msra.mxu0 0
      %1449 = vmatprep.subr.bf16.mxu0 0
      %1450 = vmatpush2.bf16.xpose.msra.mxu0 0
      %1451 = vmatprep.mubr.bf16.mxu0 0
      %1452 = vmatmul.mubr.bf16.gmra.mxu0 %v1414
      %v1453 = vpop.f32.mrf.mxu0
      %v1454 = vadd.f32 0.0, %v1453
      %v1455 = vpop.f32.mrf.mxu0
      %v1456 = vpop.f32.mrf.mxu0
      %v1457 = vadd.f32 0.0, %v1456
      %v1458 = vpop.f32.mrf.mxu0
      %1459 = vdwg.mxu0
      %1461 = vrot.lane.b32.xlu0 %v1130, 96
      %v1462 = vpop.permute.xlu0 %1461
      %1464 = vrot.lane.b32.xlu0 %v1134, 96
      %v1465 = vpop.permute.xlu0 %1464
      %v1467 = vsel %vm1175, %v1462, 0
      %v1470 = vsel %vm1175, %v1465, 0
      %1472 = vmatprep.subr.bf16.mxu0 0
      %1473 = vmatpush1.bf16.xpose.msra.mxu0 0
      %1474 = vmatprep.subr.bf16.mxu0 0
      %1475 = vmatpush1.bf16.xpose.msra.mxu0 0
      %1476 = vmatprep.subr.bf16.mxu0 0
      %1477 = vmatpush1.bf16.xpose.msra.mxu0 0
      %1478 = vmatprep.subr.bf16.mxu0 0
      %1479 = vmatpush1.bf16.xpose.msra.mxu0 0
      %1480 = vmatprep.subr.bf16.mxu0 0
      %1481 = vmatpush1.bf16.xpose.msra.mxu0 0
      %1482 = vmatprep.subr.bf16.mxu0 0
      %1483 = vmatpush1.bf16.xpose.msra.mxu0 0
      %1484 = vmatprep.subr.bf16.mxu0 0
      %1485 = vmatpush1.bf16.xpose.msra.mxu0 0
      %1486 = vmatprep.subr.bf16.mxu0 0
      %1487 = vmatpush1.bf16.xpose.msra.mxu0 %v1470
      %1488 = vmatprep.subr.bf16.mxu0 0
      %1489 = vmatpush2.bf16.xpose.msra.mxu0 0
      %1490 = vmatprep.subr.bf16.mxu0 0
      %1491 = vmatpush2.bf16.xpose.msra.mxu0 0
      %1492 = vmatprep.subr.bf16.mxu0 0
      %1493 = vmatpush2.bf16.xpose.msra.mxu0 0
      %1494 = vmatprep.subr.bf16.mxu0 0
      %1495 = vmatpush2.bf16.xpose.msra.mxu0 0
      %1496 = vmatprep.subr.bf16.mxu0 0
      %1497 = vmatpush2.bf16.xpose.msra.mxu0 0
      %1498 = vmatprep.subr.bf16.mxu0 0
      %1499 = vmatpush2.bf16.xpose.msra.mxu0 0
      %1500 = vmatprep.subr.bf16.mxu0 0
      %1501 = vmatpush2.bf16.xpose.msra.mxu0 0
      %1502 = vmatprep.subr.bf16.mxu0 0
      %1503 = vmatpush2.bf16.xpose.msra.mxu0 0
      %1504 = vmatprep.mubr.bf16.mxu0 0
      %1505 = vmatmul.mubr.bf16.gmra.mxu0 %v1467
      %v1506 = vpop.f32.mrf.mxu0
      %v1507 = vadd.f32 0.0, %v1506
      %v1508 = vpop.f32.mrf.mxu0
      %v1509 = vpop.f32.mrf.mxu0
      %v1510 = vadd.f32 0.0, %v1509
      %v1511 = vpop.f32.mrf.mxu0
      %1512 = vdwg.mxu0
      %v1513 = vsel %vm1270, %v1454, -inf
      %1514 = vmax.xlane.f32.xlu0 %v1513
      %v1515 = vpop.xlane.xlu0 %1514
      %v1516 = vsel %vm1270, %v1457, -inf
      %1517 = vmax.xlane.f32.xlu0 %v1516
      %v1518 = vpop.xlane.xlu0 %1517
      %v1519 = vsel %vm1270, %v1507, -inf
      %1520 = vmax.xlane.f32.xlu0 %v1519
      %v1521 = vpop.xlane.xlu0 %1520
      %v1522 = vsel %vm1270, %v1510, -inf
      %1523 = vmax.xlane.f32.xlu0 %v1522
      %v1524 = vpop.xlane.xlu0 %1523
      %v1525 = vsub.f32 %v1454, %v1515
      %v1526 = vsub.f32 %v1457, %v1518
      %v1527 = vsub.f32 %v1507, %v1521
      %v1528 = vsub.f32 %v1510, %v1524
      %v1529 = vmul.f32 %v1525, 1.442695
      %v1530 = vpow.pop %v1529
      %v1531 = vmul.f32 %v1526, 1.442695
      %v1532 = vpow.pop %v1531
      %v1533 = vmul.f32 %v1527, 1.442695
      %v1534 = vpow.pop %v1533
      %v1535 = vmul.f32 %v1528, 1.442695
      %v1536 = vpow.pop %v1535
      %v1537 = vsel %vm1270, %v1530, 0.0
      %1538 = vadd.xlane.f32.xlu0 %v1537
      %v1539 = vpop.xlane.xlu0 %1538
      %v1540 = vsel %vm1270, %v1532, 0.0
      %1541 = vadd.xlane.f32.xlu0 %v1540
      %v1542 = vpop.xlane.xlu0 %1541
      %v1543 = vsel %vm1270, %v1534, 0.0
      %1544 = vadd.xlane.f32.xlu0 %v1543
      %v1545 = vpop.xlane.xlu0 %1544
      %v1546 = vsel %vm1270, %v1536, 0.0
      %1547 = vadd.xlane.f32.xlu0 %v1546
      %v1548 = vpop.xlane.xlu0 %1547
      %v1549 = vrcp.pop %v1539
      %v1550 = vrcp.pop %v1542
      %v1551 = vrcp.pop %v1545
      %v1552 = vrcp.pop %v1548
      %v1553 = vmul.f32 %v1530, %v1549
      %v1554 = vmul.f32 %v1532, %v1550
      %v1555 = vmul.f32 %v1534, %v1551
      %v1556 = vmul.f32 %v1536, %v1552
      %v1557 = vpack.c.bf16 %v1554, %v1553
      %v1558 = vpack.c.bf16 %v1556, %v1555
      %1560 = vrot.lane.b32.xlu0 %v1136, 96
      %v1561 = vpop.permute.xlu0 %1560
      %v1564 = vsel %vm1270, %v1557, 0
      %1566 = vmatprep.subr.bf16.mxu0 0
      %1567 = vmatpush1.bf16.msra.mxu0 0
      %1568 = vmatprep.subr.bf16.mxu0 0
      %1569 = vmatpush1.bf16.msra.mxu0 0
      %1570 = vmatprep.subr.bf16.mxu0 0
      %1571 = vmatpush1.bf16.msra.mxu0 0
      %1572 = vmatprep.subr.bf16.mxu0 0
      %1573 = vmatpush1.bf16.msra.mxu0 0
      %1574 = vmatprep.subr.bf16.mxu0 0
      %1575 = vmatpush1.bf16.msra.mxu0 0
      %1576 = vmatprep.subr.bf16.mxu0 0
      %1577 = vmatpush1.bf16.msra.mxu0 0
      %1578 = vmatprep.subr.bf16.mxu0 0
      %1579 = vmatpush1.bf16.msra.mxu0 0
      %1580 = vmatprep.subr.bf16.mxu0 0
      %1581 = vmatpush1.bf16.msra.mxu0 %v1561
      %1582 = vmatprep.subr.bf16.mxu0 0
      %1583 = vmatpush2.bf16.msra.mxu0 0
      %1584 = vmatprep.subr.bf16.mxu0 0
      %1585 = vmatpush2.bf16.msra.mxu0 0
      %1586 = vmatprep.subr.bf16.mxu0 0
      %1587 = vmatpush2.bf16.msra.mxu0 0
      %1588 = vmatprep.subr.bf16.mxu0 0
      %1589 = vmatpush2.bf16.msra.mxu0 0
      %1590 = vmatprep.subr.bf16.mxu0 0
      %1591 = vmatpush2.bf16.msra.mxu0 0
      %1592 = vmatprep.subr.bf16.mxu0 0
      %1593 = vmatpush2.bf16.msra.mxu0 0
      %1594 = vmatprep.subr.bf16.mxu0 0
      %1595 = vmatpush2.bf16.msra.mxu0 0
      %1596 = vmatprep.subr.bf16.mxu0 0
      %1597 = vmatpush2.bf16.msra.mxu0 0
      %1598 = vmatprep.mubr.bf16.mxu0 0
      %1599 = vmatmul.mubr.bf16.gmra.mxu0 %v1564
      %v1600 = vpop.f32.mrf.mxu0
      %v1601 = vadd.f32 0.0, %v1600
      %v1602 = vpop.f32.mrf.mxu0
      %v1603 = vpop.f32.mrf.mxu0
      %v1604 = vadd.f32 0.0, %v1603
      %v1605 = vpop.f32.mrf.mxu0
      %1606 = vdwg.mxu0
      %1608 = vrot.lane.b32.xlu0 %v1138, 96
      %v1609 = vpop.permute.xlu0 %1608
      %v1612 = vsel %vm1270, %v1558, 0
      %1614 = vmatprep.subr.bf16.mxu0 0
      %1615 = vmatpush1.bf16.msra.mxu0 0
      %1616 = vmatprep.subr.bf16.mxu0 0
      %1617 = vmatpush1.bf16.msra.mxu0 0
      %1618 = vmatprep.subr.bf16.mxu0 0
      %1619 = vmatpush1.bf16.msra.mxu0 0
      %1620 = vmatprep.subr.bf16.mxu0 0
      %1621 = vmatpush1.bf16.msra.mxu0 0
      %1622 = vmatprep.subr.bf16.mxu0 0
      %1623 = vmatpush1.bf16.msra.mxu0 0
      %1624 = vmatprep.subr.bf16.mxu0 0
      %1625 = vmatpush1.bf16.msra.mxu0 0
      %1626 = vmatprep.subr.bf16.mxu0 0
      %1627 = vmatpush1.bf16.msra.mxu0 0
      %1628 = vmatprep.subr.bf16.mxu0 0
      %1629 = vmatpush1.bf16.msra.mxu0 %v1609
      %1630 = vmatprep.subr.bf16.mxu0 0
      %1631 = vmatpush2.bf16.msra.mxu0 0
      %1632 = vmatprep.subr.bf16.mxu0 0
      %1633 = vmatpush2.bf16.msra.mxu0 0
      %1634 = vmatprep.subr.bf16.mxu0 0
      %1635 = vmatpush2.bf16.msra.mxu0 0
      %1636 = vmatprep.subr.bf16.mxu0 0
      %1637 = vmatpush2.bf16.msra.mxu0 0
      %1638 = vmatprep.subr.bf16.mxu0 0
      %1639 = vmatpush2.bf16.msra.mxu0 0
      %1640 = vmatprep.subr.bf16.mxu0 0
      %1641 = vmatpush2.bf16.msra.mxu0 0
      %1642 = vmatprep.subr.bf16.mxu0 0
      %1643 = vmatpush2.bf16.msra.mxu0 0
      %1644 = vmatprep.subr.bf16.mxu0 0
      %1645 = vmatpush2.bf16.msra.mxu0 0
      %1646 = vmatprep.mubr.bf16.mxu0 0
      %1647 = vmatmul.mubr.bf16.gmra.mxu0 %v1612
      %v1648 = vpop.f32.mrf.mxu0
      %v1649 = vadd.f32 0.0, %v1648
      %v1650 = vpop.f32.mrf.mxu0
      %v1651 = vpop.f32.mrf.mxu0
      %v1652 = vadd.f32 0.0, %v1651
      %v1653 = vpop.f32.mrf.mxu0
      %1654 = vdwg.mxu0
      %v1655 = vpack.c.bf16 %v1604, %v1601
      %v1656 = vpack.c.bf16 %v1652, %v1649
      %v1661 = vunpack.c.l.b16 %v1147
      %v1662 = vunpack.c.h.b16 %v1147
      %v1663 = vunpack.c.l.b16 %v1148
      %v1664 = vunpack.c.h.b16 %v1148
      %v1665 = vunpack.c.l.b16 %v1149
      %v1666 = vunpack.c.h.b16 %v1149
      %v1667 = vunpack.c.l.b16 %v1150
      %v1668 = vunpack.c.h.b16 %v1150
      %v1669 = vpack.c.b16 %v1663, %v1661
      %v1670 = vpack.c.b16 %v1664, %v1662
      %v1671 = vpack.c.b16 %v1667, %v1665
      %v1672 = vpack.c.b16 %v1668, %v1666
      %v1678 = vsel %vm1175, %v1655, 0
      %v1681 = vsel %vm1175, %v1656, 0
      %1683 = vmatprep.subr.bf16.mxu0 0
      %1684 = vmatpush1.bf16.msra.mxu0 0
      %1685 = vmatprep.subr.bf16.mxu0 0
      %1686 = vmatpush1.bf16.msra.mxu0 0
      %1687 = vmatprep.subr.bf16.mxu0 0
      %1688 = vmatpush1.bf16.msra.mxu0 0
      %1689 = vmatprep.subr.bf16.mxu0 0
      %1690 = vmatpush1.bf16.msra.mxu0 0
      %1691 = vmatprep.subr.bf16.mxu0 0
      %1692 = vmatpush1.bf16.msra.mxu0 0
      %1693 = vmatprep.subr.bf16.mxu0 0
      %1694 = vmatpush1.bf16.msra.mxu0 0
      %1695 = vmatprep.subr.bf16.mxu0 %v1672
      %1696 = vmatpush1.bf16.msra.mxu0 %v1671
      %1697 = vmatprep.subr.bf16.mxu0 %v1670
      %1698 = vmatpush1.bf16.msra.mxu0 %v1669
      %1699 = vmatprep.subr.bf16.mxu0 0
      %1700 = vmatpush2.bf16.msra.mxu0 0
      %1701 = vmatprep.subr.bf16.mxu0 0
      %1702 = vmatpush2.bf16.msra.mxu0 0
      %1703 = vmatprep.subr.bf16.mxu0 0
      %1704 = vmatpush2.bf16.msra.mxu0 0
      %1705 = vmatprep.subr.bf16.mxu0 0
      %1706 = vmatpush2.bf16.msra.mxu0 0
      %1707 = vmatprep.subr.bf16.mxu0 0
      %1708 = vmatpush2.bf16.msra.mxu0 0
      %1709 = vmatprep.subr.bf16.mxu0 0
      %1710 = vmatpush2.bf16.msra.mxu0 0
      %1711 = vmatprep.subr.bf16.mxu0 0
      %1712 = vmatpush2.bf16.msra.mxu0 0
      %1713 = vmatprep.subr.bf16.mxu0 0
      %1714 = vmatpush2.bf16.msra.mxu0 0
      %1715 = vmatprep.mubr.bf16.mxu0 0
      %1716 = vmatmul.mubr.bf16.gmra.mxu0 %v1678
      %v1717 = vpop.f32.mrf.mxu0
      %v1718 = vadd.f32 0.0, %v1717
      %v1719 = vpop.f32.mrf.mxu0
      %v1720 = vadd.f32 0.0, %v1719
      %v1721 = vpop.f32.mrf.mxu0
      %v1722 = vadd.f32 0.0, %v1721
      %v1723 = vpop.f32.mrf.mxu0
      %v1724 = vadd.f32 0.0, %v1723
      %1725 = vmatprep.mubr.bf16.mxu0 0
      %1726 = vmatmul.mubr.bf16.gmra.mxu0 %v1681
      %v1727 = vpop.f32.mrf.mxu0
      %v1728 = vadd.f32 0.0, %v1727
      %v1729 = vpop.f32.mrf.mxu0
      %v1730 = vadd.f32 0.0, %v1729
      %v1731 = vpop.f32.mrf.mxu0
      %v1732 = vadd.f32 0.0, %v1731
      %v1733 = vpop.f32.mrf.mxu0
      %v1734 = vadd.f32 0.0, %v1733
      %1735 = vdwg.mxu0
      %v1740 = vunpack.c.l.b16 %v1143
      %v1741 = vunpack.c.h.b16 %v1143
      %v1742 = vunpack.c.l.b16 %v1144
      %v1743 = vunpack.c.h.b16 %v1144
      %v1744 = vunpack.c.l.b16 %v1145
      %v1745 = vunpack.c.h.b16 %v1145
      %v1746 = vunpack.c.l.b16 %v1146
      %v1747 = vunpack.c.h.b16 %v1146
      %v1748 = vpack.c.b16 %v1742, %v1740
      %v1749 = vpack.c.b16 %v1743, %v1741
      %v1750 = vpack.c.b16 %v1746, %v1744
      %v1751 = vpack.c.b16 %v1747, %v1745
      %v1757 = vsel %vm1175, %v1405, 0
      %v1760 = vsel %vm1175, %v1406, 0
      %1762 = vmatprep.subr.bf16.mxu0 0
      %1763 = vmatpush1.bf16.msra.mxu0 0
      %1764 = vmatprep.subr.bf16.mxu0 0
      %1765 = vmatpush1.bf16.msra.mxu0 0
      %1766 = vmatprep.subr.bf16.mxu0 0
      %1767 = vmatpush1.bf16.msra.mxu0 0
      %1768 = vmatprep.subr.bf16.mxu0 0
      %1769 = vmatpush1.bf16.msra.mxu0 0
      %1770 = vmatprep.subr.bf16.mxu0 0
      %1771 = vmatpush1.bf16.msra.mxu0 0
      %1772 = vmatprep.subr.bf16.mxu0 0
      %1773 = vmatpush1.bf16.msra.mxu0 0
      %1774 = vmatprep.subr.bf16.mxu0 %v1751
      %1775 = vmatpush1.bf16.msra.mxu0 %v1750
      %1776 = vmatprep.subr.bf16.mxu0 %v1749
      %1777 = vmatpush1.bf16.msra.mxu0 %v1748
      %1778 = vmatprep.subr.bf16.mxu0 0
      %1779 = vmatpush2.bf16.msra.mxu0 0
      %1780 = vmatprep.subr.bf16.mxu0 0
      %1781 = vmatpush2.bf16.msra.mxu0 0
      %1782 = vmatprep.subr.bf16.mxu0 0
      %1783 = vmatpush2.bf16.msra.mxu0 0
      %1784 = vmatprep.subr.bf16.mxu0 0
      %1785 = vmatpush2.bf16.msra.mxu0 0
      %1786 = vmatprep.subr.bf16.mxu0 0
      %1787 = vmatpush2.bf16.msra.mxu0 0
      %1788 = vmatprep.subr.bf16.mxu0 0
      %1789 = vmatpush2.bf16.msra.mxu0 0
      %1790 = vmatprep.subr.bf16.mxu0 0
      %1791 = vmatpush2.bf16.msra.mxu0 0
      %1792 = vmatprep.subr.bf16.mxu0 0
      %1793 = vmatpush2.bf16.msra.mxu0 0
      %1794 = vmatprep.mubr.bf16.mxu0 0
      %1795 = vmatmul.mubr.bf16.gmra.mxu0 %v1757
      %v1796 = vpop.f32.mrf.mxu0
      %v1797 = vadd.f32 %v1718, %v1796
      %v1798 = vpop.f32.mrf.mxu0
      %v1799 = vadd.f32 %v1720, %v1798
      %v1800 = vpop.f32.mrf.mxu0
      %v1801 = vadd.f32 %v1722, %v1800
      %v1802 = vpop.f32.mrf.mxu0
      %v1803 = vadd.f32 %v1724, %v1802
      %1804 = vmatprep.mubr.bf16.mxu0 0
      %1805 = vmatmul.mubr.bf16.gmra.mxu0 %v1760
      %v1806 = vpop.f32.mrf.mxu0
      %v1807 = vadd.f32 %v1728, %v1806
      %v1808 = vpop.f32.mrf.mxu0
      %v1809 = vadd.f32 %v1730, %v1808
      %v1810 = vpop.f32.mrf.mxu0
      %v1811 = vadd.f32 %v1732, %v1810
      %v1812 = vpop.f32.mrf.mxu0
      %v1813 = vadd.f32 %v1734, %v1812
      %1814 = vdwg.mxu0
      %1815 = vrot.lane.b32.xlu0 %v1128, 64
      %v1816 = vpop.permute.xlu0 %1815
      %1817 = vrot.lane.b32.xlu0 %v1132, 64
      %v1818 = vpop.permute.xlu0 %1817
      %v1820 = vsel %vm1175, %v1816, 0
      %v1823 = vsel %vm1175, %v1818, 0
      %1825 = vmatprep.subr.bf16.mxu0 0
      %1826 = vmatpush1.bf16.xpose.msra.mxu0 0
      %1827 = vmatprep.subr.bf16.mxu0 0
      %1828 = vmatpush1.bf16.xpose.msra.mxu0 0
      %1829 = vmatprep.subr.bf16.mxu0 0
      %1830 = vmatpush1.bf16.xpose.msra.mxu0 0
      %1831 = vmatprep.subr.bf16.mxu0 0
      %1832 = vmatpush1.bf16.xpose.msra.mxu0 0
      %1833 = vmatprep.subr.bf16.mxu0 0
      %1834 = vmatpush1.bf16.xpose.msra.mxu0 0
      %1835 = vmatprep.subr.bf16.mxu0 0
      %1836 = vmatpush1.bf16.xpose.msra.mxu0 0
      %1837 = vmatprep.subr.bf16.mxu0 0
      %1838 = vmatpush1.bf16.xpose.msra.mxu0 0
      %1839 = vmatprep.subr.bf16.mxu0 0
      %1840 = vmatpush1.bf16.xpose.msra.mxu0 %v1823
      %1841 = vmatprep.subr.bf16.mxu0 0
      %1842 = vmatpush2.bf16.xpose.msra.mxu0 0
      %1843 = vmatprep.subr.bf16.mxu0 0
      %1844 = vmatpush2.bf16.xpose.msra.mxu0 0
      %1845 = vmatprep.subr.bf16.mxu0 0
      %1846 = vmatpush2.bf16.xpose.msra.mxu0 0
      %1847 = vmatprep.subr.bf16.mxu0 0
      %1848 = vmatpush2.bf16.xpose.msra.mxu0 0
      %1849 = vmatprep.subr.bf16.mxu0 0
      %1850 = vmatpush2.bf16.xpose.msra.mxu0 0
      %1851 = vmatprep.subr.bf16.mxu0 0
      %1852 = vmatpush2.bf16.xpose.msra.mxu0 0
      %1853 = vmatprep.subr.bf16.mxu0 0
      %1854 = vmatpush2.bf16.xpose.msra.mxu0 0
      %1855 = vmatprep.subr.bf16.mxu0 0
      %1856 = vmatpush2.bf16.xpose.msra.mxu0 0
      %1857 = vmatprep.mubr.bf16.mxu0 0
      %1858 = vmatmul.mubr.bf16.gmra.mxu0 %v1820
      %v1859 = vpop.f32.mrf.mxu0
      %v1860 = vadd.f32 0.0, %v1859
      %v1861 = vpop.f32.mrf.mxu0
      %v1862 = vpop.f32.mrf.mxu0
      %v1863 = vadd.f32 0.0, %v1862
      %v1864 = vpop.f32.mrf.mxu0
      %1865 = vdwg.mxu0
      %1866 = vrot.lane.b32.xlu0 %v1130, 64
      %v1867 = vpop.permute.xlu0 %1866
      %1868 = vrot.lane.b32.xlu0 %v1134, 64
      %v1869 = vpop.permute.xlu0 %1868
      %v1871 = vsel %vm1175, %v1867, 0
      %v1874 = vsel %vm1175, %v1869, 0
      %1876 = vmatprep.subr.bf16.mxu0 0
      %1877 = vmatpush1.bf16.xpose.msra.mxu0 0
      %1878 = vmatprep.subr.bf16.mxu0 0
      %1879 = vmatpush1.bf16.xpose.msra.mxu0 0
      %1880 = vmatprep.subr.bf16.mxu0 0
      %1881 = vmatpush1.bf16.xpose.msra.mxu0 0
      %1882 = vmatprep.subr.bf16.mxu0 0
      %1883 = vmatpush1.bf16.xpose.msra.mxu0 0
      %1884 = vmatprep.subr.bf16.mxu0 0
      %1885 = vmatpush1.bf16.xpose.msra.mxu0 0
      %1886 = vmatprep.subr.bf16.mxu0 0
      %1887 = vmatpush1.bf16.xpose.msra.mxu0 0
      %1888 = vmatprep.subr.bf16.mxu0 0
      %1889 = vmatpush1.bf16.xpose.msra.mxu0 0
      %1890 = vmatprep.subr.bf16.mxu0 0
      %1891 = vmatpush1.bf16.xpose.msra.mxu0 %v1874
      %1892 = vmatprep.subr.bf16.mxu0 0
      %1893 = vmatpush2.bf16.xpose.msra.mxu0 0
      %1894 = vmatprep.subr.bf16.mxu0 0
      %1895 = vmatpush2.bf16.xpose.msra.mxu0 0
      %1896 = vmatprep.subr.bf16.mxu0 0
      %1897 = vmatpush2.bf16.xpose.msra.mxu0 0
      %1898 = vmatprep.subr.bf16.mxu0 0
      %1899 = vmatpush2.bf16.xpose.msra.mxu0 0
      %1900 = vmatprep.subr.bf16.mxu0 0
      %1901 = vmatpush2.bf16.xpose.msra.mxu0 0
      %1902 = vmatprep.subr.bf16.mxu0 0
      %1903 = vmatpush2.bf16.xpose.msra.mxu0 0
      %1904 = vmatprep.subr.bf16.mxu0 0
      %1905 = vmatpush2.bf16.xpose.msra.mxu0 0
      %1906 = vmatprep.subr.bf16.mxu0 0
      %1907 = vmatpush2.bf16.xpose.msra.mxu0 0
      %1908 = vmatprep.mubr.bf16.mxu0 0
      %1909 = vmatmul.mubr.bf16.gmra.mxu0 %v1871
      %v1910 = vpop.f32.mrf.mxu0
      %v1911 = vadd.f32 0.0, %v1910
      %v1912 = vpop.f32.mrf.mxu0
      %v1913 = vpop.f32.mrf.mxu0
      %v1914 = vadd.f32 0.0, %v1913
      %v1915 = vpop.f32.mrf.mxu0
      %1916 = vdwg.mxu0
      %v1917 = vsel %vm1270, %v1860, -inf
      %1918 = vmax.xlane.f32.xlu0 %v1917
      %v1919 = vpop.xlane.xlu0 %1918
      %v1920 = vsel %vm1270, %v1863, -inf
      %1921 = vmax.xlane.f32.xlu0 %v1920
      %v1922 = vpop.xlane.xlu0 %1921
      %v1923 = vsel %vm1270, %v1911, -inf
      %1924 = vmax.xlane.f32.xlu0 %v1923
      %v1925 = vpop.xlane.xlu0 %1924
      %v1926 = vsel %vm1270, %v1914, -inf
      %1927 = vmax.xlane.f32.xlu0 %v1926
      %v1928 = vpop.xlane.xlu0 %1927
      %v1929 = vsub.f32 %v1860, %v1919
      %v1930 = vsub.f32 %v1863, %v1922
      %v1931 = vsub.f32 %v1911, %v1925
      %v1932 = vsub.f32 %v1914, %v1928
      %v1933 = vmul.f32 %v1929, 1.442695
      %v1934 = vpow.pop %v1933
      %v1935 = vmul.f32 %v1930, 1.442695
      %v1936 = vpow.pop %v1935
      %v1937 = vmul.f32 %v1931, 1.442695
      %v1938 = vpow.pop %v1937
      %v1939 = vmul.f32 %v1932, 1.442695
      %v1940 = vpow.pop %v1939
      %v1941 = vsel %vm1270, %v1934, 0.0
      %1942 = vadd.xlane.f32.xlu0 %v1941
      %v1943 = vpop.xlane.xlu0 %1942
      %v1944 = vsel %vm1270, %v1936, 0.0
      %1945 = vadd.xlane.f32.xlu0 %v1944
      %v1946 = vpop.xlane.xlu0 %1945
      %v1947 = vsel %vm1270, %v1938, 0.0
      %1948 = vadd.xlane.f32.xlu0 %v1947
      %v1949 = vpop.xlane.xlu0 %1948
      %v1950 = vsel %vm1270, %v1940, 0.0
      %1951 = vadd.xlane.f32.xlu0 %v1950
      %v1952 = vpop.xlane.xlu0 %1951
      %v1953 = vrcp.pop %v1943
      %v1954 = vrcp.pop %v1946
      %v1955 = vrcp.pop %v1949
      %v1956 = vrcp.pop %v1952
      %v1957 = vmul.f32 %v1934, %v1953
      %v1958 = vmul.f32 %v1936, %v1954
      %v1959 = vmul.f32 %v1938, %v1955
      %v1960 = vmul.f32 %v1940, %v1956
      %v1961 = vpack.c.bf16 %v1958, %v1957
      %v1962 = vpack.c.bf16 %v1960, %v1959
      %1963 = vrot.lane.b32.xlu0 %v1136, 64
      %v1964 = vpop.permute.xlu0 %1963
      %v1967 = vsel %vm1270, %v1961, 0
      %1969 = vmatprep.subr.bf16.mxu0 0
      %1970 = vmatpush1.bf16.msra.mxu0 0
      %1971 = vmatprep.subr.bf16.mxu0 0
      %1972 = vmatpush1.bf16.msra.mxu0 0
      %1973 = vmatprep.subr.bf16.mxu0 0
      %1974 = vmatpush1.bf16.msra.mxu0 0
      %1975 = vmatprep.subr.bf16.mxu0 0
      %1976 = vmatpush1.bf16.msra.mxu0 0
      %1977 = vmatprep.subr.bf16.mxu0 0
      %1978 = vmatpush1.bf16.msra.mxu0 0
      %1979 = vmatprep.subr.bf16.mxu0 0
      %1980 = vmatpush1.bf16.msra.mxu0 0
      %1981 = vmatprep.subr.bf16.mxu0 0
      %1982 = vmatpush1.bf16.msra.mxu0 0
      %1983 = vmatprep.subr.bf16.mxu0 0
      %1984 = vmatpush1.bf16.msra.mxu0 %v1964
      %1985 = vmatprep.subr.bf16.mxu0 0
      %1986 = vmatpush2.bf16.msra.mxu0 0
      %1987 = vmatprep.subr.bf16.mxu0 0
      %1988 = vmatpush2.bf16.msra.mxu0 0
      %1989 = vmatprep.subr.bf16.mxu0 0
      %1990 = vmatpush2.bf16.msra.mxu0 0
      %1991 = vmatprep.subr.bf16.mxu0 0
      %1992 = vmatpush2.bf16.msra.mxu0 0
      %1993 = vmatprep.subr.bf16.mxu0 0
      %1994 = vmatpush2.bf16.msra.mxu0 0
      %1995 = vmatprep.subr.bf16.mxu0 0
      %1996 = vmatpush2.bf16.msra.mxu0 0
      %1997 = vmatprep.subr.bf16.mxu0 0
      %1998 = vmatpush2.bf16.msra.mxu0 0
      %1999 = vmatprep.subr.bf16.mxu0 0
      %2000 = vmatpush2.bf16.msra.mxu0 0
      %2001 = vmatprep.mubr.bf16.mxu0 0
      %2002 = vmatmul.mubr.bf16.gmra.mxu0 %v1967
      %v2003 = vpop.f32.mrf.mxu0
      %v2004 = vadd.f32 0.0, %v2003
      %v2005 = vpop.f32.mrf.mxu0
      %v2006 = vpop.f32.mrf.mxu0
      %v2007 = vadd.f32 0.0, %v2006
      %v2008 = vpop.f32.mrf.mxu0
      %2009 = vdwg.mxu0
      %2010 = vrot.lane.b32.xlu0 %v1138, 64
      %v2011 = vpop.permute.xlu0 %2010
      %v2014 = vsel %vm1270, %v1962, 0
      %2016 = vmatprep.subr.bf16.mxu0 0
      %2017 = vmatpush1.bf16.msra.mxu0 0
      %2018 = vmatprep.subr.bf16.mxu0 0
      %2019 = vmatpush1.bf16.msra.mxu0 0
      %2020 = vmatprep.subr.bf16.mxu0 0
      %2021 = vmatpush1.bf16.msra.mxu0 0
      %2022 = vmatprep.subr.bf16.mxu0 0
      %2023 = vmatpush1.bf16.msra.mxu0 0
      %2024 = vmatprep.subr.bf16.mxu0 0
      %2025 = vmatpush1.bf16.msra.mxu0 0
      %2026 = vmatprep.subr.bf16.mxu0 0
      %2027 = vmatpush1.bf16.msra.mxu0 0
      %2028 = vmatprep.subr.bf16.mxu0 0
      %2029 = vmatpush1.bf16.msra.mxu0 0
      %2030 = vmatprep.subr.bf16.mxu0 0
      %2031 = vmatpush1.bf16.msra.mxu0 %v2011
      %2032 = vmatprep.subr.bf16.mxu0 0
      %2033 = vmatpush2.bf16.msra.mxu0 0
      %2034 = vmatprep.subr.bf16.mxu0 0
      %2035 = vmatpush2.bf16.msra.mxu0 0
      %2036 = vmatprep.subr.bf16.mxu0 0
      %2037 = vmatpush2.bf16.msra.mxu0 0
      %2038 = vmatprep.subr.bf16.mxu0 0
      %2039 = vmatpush2.bf16.msra.mxu0 0
      %2040 = vmatprep.subr.bf16.mxu0 0
      %2041 = vmatpush2.bf16.msra.mxu0 0
      %2042 = vmatprep.subr.bf16.mxu0 0
      %2043 = vmatpush2.bf16.msra.mxu0 0
      %2044 = vmatprep.subr.bf16.mxu0 0
      %2045 = vmatpush2.bf16.msra.mxu0 0
      %2046 = vmatprep.subr.bf16.mxu0 0
      %2047 = vmatpush2.bf16.msra.mxu0 0
      %2048 = vmatprep.mubr.bf16.mxu0 0
      %2049 = vmatmul.mubr.bf16.gmra.mxu0 %v2014
      %v2050 = vpop.f32.mrf.mxu0
      %v2051 = vadd.f32 0.0, %v2050
      %v2052 = vpop.f32.mrf.mxu0
      %v2053 = vpop.f32.mrf.mxu0
      %v2054 = vadd.f32 0.0, %v2053
      %v2055 = vpop.f32.mrf.mxu0
      %2056 = vdwg.mxu0
      %v2057 = vpack.c.bf16 %v2007, %v2004
      %v2058 = vpack.c.bf16 %v2054, %v2051
      %v2063 = vunpack.c.l.b16 %v1151
      %v2064 = vunpack.c.h.b16 %v1151
      %v2065 = vunpack.c.l.b16 %v1152
      %v2066 = vunpack.c.h.b16 %v1152
      %v2067 = vunpack.c.l.b16 %v1153
      %v2068 = vunpack.c.h.b16 %v1153
      %v2069 = vunpack.c.l.b16 %v1154
      %v2070 = vunpack.c.h.b16 %v1154
      %v2071 = vpack.c.b16 %v2065, %v2063
      %v2072 = vpack.c.b16 %v2066, %v2064
      %v2073 = vpack.c.b16 %v2069, %v2067
      %v2074 = vpack.c.b16 %v2070, %v2068
      %v2080 = vsel %vm1175, %v2057, 0
      %v2083 = vsel %vm1175, %v2058, 0
      %2085 = vmatprep.subr.bf16.mxu0 0
      %2086 = vmatpush1.bf16.msra.mxu0 0
      %2087 = vmatprep.subr.bf16.mxu0 0
      %2088 = vmatpush1.bf16.msra.mxu0 0
      %2089 = vmatprep.subr.bf16.mxu0 0
      %2090 = vmatpush1.bf16.msra.mxu0 0
      %2091 = vmatprep.subr.bf16.mxu0 0
      %2092 = vmatpush1.bf16.msra.mxu0 0
      %2093 = vmatprep.subr.bf16.mxu0 0
      %2094 = vmatpush1.bf16.msra.mxu0 0
      %2095 = vmatprep.subr.bf16.mxu0 0
      %2096 = vmatpush1.bf16.msra.mxu0 0
      %2097 = vmatprep.subr.bf16.mxu0 %v2074
      %2098 = vmatpush1.bf16.msra.mxu0 %v2073
      %2099 = vmatprep.subr.bf16.mxu0 %v2072
      %2100 = vmatpush1.bf16.msra.mxu0 %v2071
      %2101 = vmatprep.subr.bf16.mxu0 0
      %2102 = vmatpush2.bf16.msra.mxu0 0
      %2103 = vmatprep.subr.bf16.mxu0 0
      %2104 = vmatpush2.bf16.msra.mxu0 0
      %2105 = vmatprep.subr.bf16.mxu0 0
      %2106 = vmatpush2.bf16.msra.mxu0 0
      %2107 = vmatprep.subr.bf16.mxu0 0
      %2108 = vmatpush2.bf16.msra.mxu0 0
      %2109 = vmatprep.subr.bf16.mxu0 0
      %2110 = vmatpush2.bf16.msra.mxu0 0
      %2111 = vmatprep.subr.bf16.mxu0 0
      %2112 = vmatpush2.bf16.msra.mxu0 0
      %2113 = vmatprep.subr.bf16.mxu0 0
      %2114 = vmatpush2.bf16.msra.mxu0 0
      %2115 = vmatprep.subr.bf16.mxu0 0
      %2116 = vmatpush2.bf16.msra.mxu0 0
      %2117 = vmatprep.mubr.bf16.mxu0 0
      %2118 = vmatmul.mubr.bf16.gmra.mxu0 %v2080
      %v2119 = vpop.f32.mrf.mxu0
      %v2120 = vadd.f32 0.0, %v2119
      %v2121 = vpop.f32.mrf.mxu0
      %v2122 = vadd.f32 0.0, %v2121
      %v2123 = vpop.f32.mrf.mxu0
      %v2124 = vadd.f32 0.0, %v2123
      %v2125 = vpop.f32.mrf.mxu0
      %v2126 = vadd.f32 0.0, %v2125
      %2127 = vmatprep.mubr.bf16.mxu0 0
      %2128 = vmatmul.mubr.bf16.gmra.mxu0 %v2083
      %v2129 = vpop.f32.mrf.mxu0
      %v2130 = vadd.f32 0.0, %v2129
      %v2131 = vpop.f32.mrf.mxu0
      %v2132 = vadd.f32 0.0, %v2131
      %v2133 = vpop.f32.mrf.mxu0
      %v2134 = vadd.f32 0.0, %v2133
      %v2135 = vpop.f32.mrf.mxu0
      %v2136 = vadd.f32 0.0, %v2135
      %2137 = vdwg.mxu0
      %v2138 = vadd.f32 %v1797, %v2120
      %v2139 = vadd.f32 %v1799, %v2122
      %v2140 = vadd.f32 %v1801, %v2124
      %v2141 = vadd.f32 %v1803, %v2126
      %v2142 = vadd.f32 %v1807, %v2130
      %v2143 = vadd.f32 %v1809, %v2132
      %v2144 = vadd.f32 %v1811, %v2134
      %v2145 = vadd.f32 %v1813, %v2136
      %2146 = vrot.lane.b32.xlu0 %v1128, 32
      %v2147 = vpop.permute.xlu0 %2146
      %2148 = vrot.lane.b32.xlu0 %v1132, 32
      %v2149 = vpop.permute.xlu0 %2148
      %v2151 = vsel %vm1175, %v2147, 0
      %v2154 = vsel %vm1175, %v2149, 0
      %2156 = vmatprep.subr.bf16.mxu0 0
      %2157 = vmatpush1.bf16.xpose.msra.mxu0 0
      %2158 = vmatprep.subr.bf16.mxu0 0
      %2159 = vmatpush1.bf16.xpose.msra.mxu0 0
      %2160 = vmatprep.subr.bf16.mxu0 0
      %2161 = vmatpush1.bf16.xpose.msra.mxu0 0
      %2162 = vmatprep.subr.bf16.mxu0 0
      %2163 = vmatpush1.bf16.xpose.msra.mxu0 0
      %2164 = vmatprep.subr.bf16.mxu0 0
      %2165 = vmatpush1.bf16.xpose.msra.mxu0 0
      %2166 = vmatprep.subr.bf16.mxu0 0
      %2167 = vmatpush1.bf16.xpose.msra.mxu0 0
      %2168 = vmatprep.subr.bf16.mxu0 0
      %2169 = vmatpush1.bf16.xpose.msra.mxu0 0
      %2170 = vmatprep.subr.bf16.mxu0 0
      %2171 = vmatpush1.bf16.xpose.msra.mxu0 %v2154
      %2172 = vmatprep.subr.bf16.mxu0 0
      %2173 = vmatpush2.bf16.xpose.msra.mxu0 0
      %2174 = vmatprep.subr.bf16.mxu0 0
      %2175 = vmatpush2.bf16.xpose.msra.mxu0 0
      %2176 = vmatprep.subr.bf16.mxu0 0
      %2177 = vmatpush2.bf16.xpose.msra.mxu0 0
      %2178 = vmatprep.subr.bf16.mxu0 0
      %2179 = vmatpush2.bf16.xpose.msra.mxu0 0
      %2180 = vmatprep.subr.bf16.mxu0 0
      %2181 = vmatpush2.bf16.xpose.msra.mxu0 0
      %2182 = vmatprep.subr.bf16.mxu0 0
      %2183 = vmatpush2.bf16.xpose.msra.mxu0 0
      %2184 = vmatprep.subr.bf16.mxu0 0
      %2185 = vmatpush2.bf16.xpose.msra.mxu0 0
      %2186 = vmatprep.subr.bf16.mxu0 0
      %2187 = vmatpush2.bf16.xpose.msra.mxu0 0
      %2188 = vmatprep.mubr.bf16.mxu0 0
      %2189 = vmatmul.mubr.bf16.gmra.mxu0 %v2151
      %v2190 = vpop.f32.mrf.mxu0
      %v2191 = vadd.f32 0.0, %v2190
      %v2192 = vpop.f32.mrf.mxu0
      %v2193 = vpop.f32.mrf.mxu0
      %v2194 = vadd.f32 0.0, %v2193
      %v2195 = vpop.f32.mrf.mxu0
      %2196 = vdwg.mxu0
      %2197 = vrot.lane.b32.xlu0 %v1130, 32
      %v2198 = vpop.permute.xlu0 %2197
      %2199 = vrot.lane.b32.xlu0 %v1134, 32
      %v2200 = vpop.permute.xlu0 %2199
      %v2202 = vsel %vm1175, %v2198, 0
      %v2205 = vsel %vm1175, %v2200, 0
      %2207 = vmatprep.subr.bf16.mxu0 0
      %2208 = vmatpush1.bf16.xpose.msra.mxu0 0
      %2209 = vmatprep.subr.bf16.mxu0 0
      %2210 = vmatpush1.bf16.xpose.msra.mxu0 0
      %2211 = vmatprep.subr.bf16.mxu0 0
      %2212 = vmatpush1.bf16.xpose.msra.mxu0 0
      %2213 = vmatprep.subr.bf16.mxu0 0
      %2214 = vmatpush1.bf16.xpose.msra.mxu0 0
      %2215 = vmatprep.subr.bf16.mxu0 0
      %2216 = vmatpush1.bf16.xpose.msra.mxu0 0
      %2217 = vmatprep.subr.bf16.mxu0 0
      %2218 = vmatpush1.bf16.xpose.msra.mxu0 0
      %2219 = vmatprep.subr.bf16.mxu0 0
      %2220 = vmatpush1.bf16.xpose.msra.mxu0 0
      %2221 = vmatprep.subr.bf16.mxu0 0
      %2222 = vmatpush1.bf16.xpose.msra.mxu0 %v2205
      %2223 = vmatprep.subr.bf16.mxu0 0
      %2224 = vmatpush2.bf16.xpose.msra.mxu0 0
      %2225 = vmatprep.subr.bf16.mxu0 0
      %2226 = vmatpush2.bf16.xpose.msra.mxu0 0
      %2227 = vmatprep.subr.bf16.mxu0 0
      %2228 = vmatpush2.bf16.xpose.msra.mxu0 0
      %2229 = vmatprep.subr.bf16.mxu0 0
      %2230 = vmatpush2.bf16.xpose.msra.mxu0 0
      %2231 = vmatprep.subr.bf16.mxu0 0
      %2232 = vmatpush2.bf16.xpose.msra.mxu0 0
      %2233 = vmatprep.subr.bf16.mxu0 0
      %2234 = vmatpush2.bf16.xpose.msra.mxu0 0
      %2235 = vmatprep.subr.bf16.mxu0 0
      %2236 = vmatpush2.bf16.xpose.msra.mxu0 0
      %2237 = vmatprep.subr.bf16.mxu0 0
      %2238 = vmatpush2.bf16.xpose.msra.mxu0 0
      %2239 = vmatprep.mubr.bf16.mxu0 0
      %2240 = vmatmul.mubr.bf16.gmra.mxu0 %v2202
      %v2241 = vpop.f32.mrf.mxu0
      %v2242 = vadd.f32 0.0, %v2241
      %v2243 = vpop.f32.mrf.mxu0
      %v2244 = vpop.f32.mrf.mxu0
      %v2245 = vadd.f32 0.0, %v2244
      %v2246 = vpop.f32.mrf.mxu0
      %2247 = vdwg.mxu0
      %v2248 = vsel %vm1270, %v2191, -inf
      %2249 = vmax.xlane.f32.xlu0 %v2248
      %v2250 = vpop.xlane.xlu0 %2249
      %v2251 = vsel %vm1270, %v2194, -inf
      %2252 = vmax.xlane.f32.xlu0 %v2251
      %v2253 = vpop.xlane.xlu0 %2252
      %v2254 = vsel %vm1270, %v2242, -inf
      %2255 = vmax.xlane.f32.xlu0 %v2254
      %v2256 = vpop.xlane.xlu0 %2255
      %v2257 = vsel %vm1270, %v2245, -inf
      %2258 = vmax.xlane.f32.xlu0 %v2257
      %v2259 = vpop.xlane.xlu0 %2258
      %v2260 = vsub.f32 %v2191, %v2250
      %v2261 = vsub.f32 %v2194, %v2253
      %v2262 = vsub.f32 %v2242, %v2256
      %v2263 = vsub.f32 %v2245, %v2259
      %v2264 = vmul.f32 %v2260, 1.442695
      %v2265 = vpow.pop %v2264
      %v2266 = vmul.f32 %v2261, 1.442695
      %v2267 = vpow.pop %v2266
      %v2268 = vmul.f32 %v2262, 1.442695
      %v2269 = vpow.pop %v2268
      %v2270 = vmul.f32 %v2263, 1.442695
      %v2271 = vpow.pop %v2270
      %v2272 = vsel %vm1270, %v2265, 0.0
      %2273 = vadd.xlane.f32.xlu0 %v2272
      %v2274 = vpop.xlane.xlu0 %2273
      %v2275 = vsel %vm1270, %v2267, 0.0
      %2276 = vadd.xlane.f32.xlu0 %v2275
      %v2277 = vpop.xlane.xlu0 %2276
      %v2278 = vsel %vm1270, %v2269, 0.0
      %2279 = vadd.xlane.f32.xlu0 %v2278
      %v2280 = vpop.xlane.xlu0 %2279
      %v2281 = vsel %vm1270, %v2271, 0.0
      %2282 = vadd.xlane.f32.xlu0 %v2281
      %v2283 = vpop.xlane.xlu0 %2282
      %v2284 = vrcp.pop %v2274
      %v2285 = vrcp.pop %v2277
      %v2286 = vrcp.pop %v2280
      %v2287 = vrcp.pop %v2283
      %v2288 = vmul.f32 %v2265, %v2284
      %v2289 = vmul.f32 %v2267, %v2285
      %v2290 = vmul.f32 %v2269, %v2286
      %v2291 = vmul.f32 %v2271, %v2287
      %v2292 = vpack.c.bf16 %v2289, %v2288
      %v2293 = vpack.c.bf16 %v2291, %v2290
      %2294 = vrot.lane.b32.xlu0 %v1136, 32
      %v2295 = vpop.permute.xlu0 %2294
      %v2298 = vsel %vm1270, %v2292, 0
      %2300 = vmatprep.subr.bf16.mxu0 0
      %2301 = vmatpush1.bf16.msra.mxu0 0
      %2302 = vmatprep.subr.bf16.mxu0 0
      %2303 = vmatpush1.bf16.msra.mxu0 0
      %2304 = vmatprep.subr.bf16.mxu0 0
      %2305 = vmatpush1.bf16.msra.mxu0 0
      %2306 = vmatprep.subr.bf16.mxu0 0
      %2307 = vmatpush1.bf16.msra.mxu0 0
      %2308 = vmatprep.subr.bf16.mxu0 0
      %2309 = vmatpush1.bf16.msra.mxu0 0
      %2310 = vmatprep.subr.bf16.mxu0 0
      %2311 = vmatpush1.bf16.msra.mxu0 0
      %2312 = vmatprep.subr.bf16.mxu0 0
      %2313 = vmatpush1.bf16.msra.mxu0 0
      %2314 = vmatprep.subr.bf16.mxu0 0
      %2315 = vmatpush1.bf16.msra.mxu0 %v2295
      %2316 = vmatprep.subr.bf16.mxu0 0
      %2317 = vmatpush2.bf16.msra.mxu0 0
      %2318 = vmatprep.subr.bf16.mxu0 0
      %2319 = vmatpush2.bf16.msra.mxu0 0
      %2320 = vmatprep.subr.bf16.mxu0 0
      %2321 = vmatpush2.bf16.msra.mxu0 0
      %2322 = vmatprep.subr.bf16.mxu0 0
      %2323 = vmatpush2.bf16.msra.mxu0 0
      %2324 = vmatprep.subr.bf16.mxu0 0
      %2325 = vmatpush2.bf16.msra.mxu0 0
      %2326 = vmatprep.subr.bf16.mxu0 0
      %2327 = vmatpush2.bf16.msra.mxu0 0
      %2328 = vmatprep.subr.bf16.mxu0 0
      %2329 = vmatpush2.bf16.msra.mxu0 0
      %2330 = vmatprep.subr.bf16.mxu0 0
      %2331 = vmatpush2.bf16.msra.mxu0 0
      %2332 = vmatprep.mubr.bf16.mxu0 0
      %2333 = vmatmul.mubr.bf16.gmra.mxu0 %v2298
      %v2334 = vpop.f32.mrf.mxu0
      %v2335 = vadd.f32 0.0, %v2334
      %v2336 = vpop.f32.mrf.mxu0
      %v2337 = vpop.f32.mrf.mxu0
      %v2338 = vadd.f32 0.0, %v2337
      %v2339 = vpop.f32.mrf.mxu0
      %2340 = vdwg.mxu0
      %2341 = vrot.lane.b32.xlu0 %v1138, 32
      %v2342 = vpop.permute.xlu0 %2341
      %v2345 = vsel %vm1270, %v2293, 0
      %2347 = vmatprep.subr.bf16.mxu0 0
      %2348 = vmatpush1.bf16.msra.mxu0 0
      %2349 = vmatprep.subr.bf16.mxu0 0
      %2350 = vmatpush1.bf16.msra.mxu0 0
      %2351 = vmatprep.subr.bf16.mxu0 0
      %2352 = vmatpush1.bf16.msra.mxu0 0
      %2353 = vmatprep.subr.bf16.mxu0 0
      %2354 = vmatpush1.bf16.msra.mxu0 0
      %2355 = vmatprep.subr.bf16.mxu0 0
      %2356 = vmatpush1.bf16.msra.mxu0 0
      %2357 = vmatprep.subr.bf16.mxu0 0
      %2358 = vmatpush1.bf16.msra.mxu0 0
      %2359 = vmatprep.subr.bf16.mxu0 0
      %2360 = vmatpush1.bf16.msra.mxu0 0
      %2361 = vmatprep.subr.bf16.mxu0 0
      %2362 = vmatpush1.bf16.msra.mxu0 %v2342
      %2363 = vmatprep.subr.bf16.mxu0 0
      %2364 = vmatpush2.bf16.msra.mxu0 0
      %2365 = vmatprep.subr.bf16.mxu0 0
      %2366 = vmatpush2.bf16.msra.mxu0 0
      %2367 = vmatprep.subr.bf16.mxu0 0
      %2368 = vmatpush2.bf16.msra.mxu0 0
      %2369 = vmatprep.subr.bf16.mxu0 0
      %2370 = vmatpush2.bf16.msra.mxu0 0
      %2371 = vmatprep.subr.bf16.mxu0 0
      %2372 = vmatpush2.bf16.msra.mxu0 0
      %2373 = vmatprep.subr.bf16.mxu0 0
      %2374 = vmatpush2.bf16.msra.mxu0 0
      %2375 = vmatprep.subr.bf16.mxu0 0
      %2376 = vmatpush2.bf16.msra.mxu0 0
      %2377 = vmatprep.subr.bf16.mxu0 0
      %2378 = vmatpush2.bf16.msra.mxu0 0
      %2379 = vmatprep.mubr.bf16.mxu0 0
      %2380 = vmatmul.mubr.bf16.gmra.mxu0 %v2345
      %v2381 = vpop.f32.mrf.mxu0
      %v2382 = vadd.f32 0.0, %v2381
      %v2383 = vpop.f32.mrf.mxu0
      %v2384 = vpop.f32.mrf.mxu0
      %v2385 = vadd.f32 0.0, %v2384
      %v2386 = vpop.f32.mrf.mxu0
      %2387 = vdwg.mxu0
      %v2388 = vpack.c.bf16 %v2338, %v2335
      %v2389 = vpack.c.bf16 %v2385, %v2382
      %v2394 = vunpack.c.l.b16 %v1155
      %v2395 = vunpack.c.h.b16 %v1155
      %v2396 = vunpack.c.l.b16 %v1156
      %v2397 = vunpack.c.h.b16 %v1156
      %v2398 = vunpack.c.l.b16 %v1157
      %v2399 = vunpack.c.h.b16 %v1157
      %v2400 = vunpack.c.l.b16 %v1158
      %v2401 = vunpack.c.h.b16 %v1158
      %v2402 = vpack.c.b16 %v2396, %v2394
      %v2403 = vpack.c.b16 %v2397, %v2395
      %v2404 = vpack.c.b16 %v2400, %v2398
      %v2405 = vpack.c.b16 %v2401, %v2399
      %v2411 = vsel %vm1175, %v2388, 0
      %v2414 = vsel %vm1175, %v2389, 0
      %2416 = vmatprep.subr.bf16.mxu0 0
      %2417 = vmatpush1.bf16.msra.mxu0 0
      %2418 = vmatprep.subr.bf16.mxu0 0
      %2419 = vmatpush1.bf16.msra.mxu0 0
      %2420 = vmatprep.subr.bf16.mxu0 0
      %2421 = vmatpush1.bf16.msra.mxu0 0
      %2422 = vmatprep.subr.bf16.mxu0 0
      %2423 = vmatpush1.bf16.msra.mxu0 0
      %2424 = vmatprep.subr.bf16.mxu0 0
      %2425 = vmatpush1.bf16.msra.mxu0 0
      %2426 = vmatprep.subr.bf16.mxu0 0
      %2427 = vmatpush1.bf16.msra.mxu0 0
      %2428 = vmatprep.subr.bf16.mxu0 %v2405
      %2429 = vmatpush1.bf16.msra.mxu0 %v2404
      %2430 = vmatprep.subr.bf16.mxu0 %v2403
      %2431 = vmatpush1.bf16.msra.mxu0 %v2402
      %2432 = vmatprep.subr.bf16.mxu0 0
      %2433 = vmatpush2.bf16.msra.mxu0 0
      %2434 = vmatprep.subr.bf16.mxu0 0
      %2435 = vmatpush2.bf16.msra.mxu0 0
      %2436 = vmatprep.subr.bf16.mxu0 0
      %2437 = vmatpush2.bf16.msra.mxu0 0
      %2438 = vmatprep.subr.bf16.mxu0 0
      %2439 = vmatpush2.bf16.msra.mxu0 0
      %2440 = vmatprep.subr.bf16.mxu0 0
      %2441 = vmatpush2.bf16.msra.mxu0 0
      %2442 = vmatprep.subr.bf16.mxu0 0
      %2443 = vmatpush2.bf16.msra.mxu0 0
      %2444 = vmatprep.subr.bf16.mxu0 0
      %2445 = vmatpush2.bf16.msra.mxu0 0
      %2446 = vmatprep.subr.bf16.mxu0 0
      %2447 = vmatpush2.bf16.msra.mxu0 0
      %2448 = vmatprep.mubr.bf16.mxu0 0
      %2449 = vmatmul.mubr.bf16.gmra.mxu0 %v2411
      %v2450 = vpop.f32.mrf.mxu0
      %v2451 = vadd.f32 0.0, %v2450
      %v2452 = vpop.f32.mrf.mxu0
      %v2453 = vadd.f32 0.0, %v2452
      %v2454 = vpop.f32.mrf.mxu0
      %v2455 = vadd.f32 0.0, %v2454
      %v2456 = vpop.f32.mrf.mxu0
      %v2457 = vadd.f32 0.0, %v2456
      %2458 = vmatprep.mubr.bf16.mxu0 0
      %2459 = vmatmul.mubr.bf16.gmra.mxu0 %v2414
      %v2460 = vpop.f32.mrf.mxu0
      %v2461 = vadd.f32 0.0, %v2460
      %v2462 = vpop.f32.mrf.mxu0
      %v2463 = vadd.f32 0.0, %v2462
      %v2464 = vpop.f32.mrf.mxu0
      %v2465 = vadd.f32 0.0, %v2464
      %v2466 = vpop.f32.mrf.mxu0
      %v2467 = vadd.f32 0.0, %v2466
      %2468 = vdwg.mxu0
      %v2469 = vadd.f32 %v2138, %v2451
      %v2470 = vadd.f32 %v2139, %v2453
      %v2471 = vadd.f32 %v2140, %v2455
      %v2472 = vadd.f32 %v2141, %v2457
      %v2473 = vadd.f32 %v2142, %v2461
      %v2474 = vadd.f32 %v2143, %v2463
      %v2475 = vadd.f32 %v2144, %v2465
      %v2476 = vadd.f32 %v2145, %v2467
      %v2478 = vsel %vm1175, %v1129, 0
      %v2481 = vsel %vm1175, %v1133, 0
      %2483 = vmatprep.subr.bf16.mxu0 0
      %2484 = vmatpush1.bf16.xpose.msra.mxu0 0
      %2485 = vmatprep.subr.bf16.mxu0 0
      %2486 = vmatpush1.bf16.xpose.msra.mxu0 0
      %2487 = vmatprep.subr.bf16.mxu0 0
      %2488 = vmatpush1.bf16.xpose.msra.mxu0 0
      %2489 = vmatprep.subr.bf16.mxu0 0
      %2490 = vmatpush1.bf16.xpose.msra.mxu0 0
      %2491 = vmatprep.subr.bf16.mxu0 0
      %2492 = vmatpush1.bf16.xpose.msra.mxu0 0
      %2493 = vmatprep.subr.bf16.mxu0 0
      %2494 = vmatpush1.bf16.xpose.msra.mxu0 0
      %2495 = vmatprep.subr.bf16.mxu0 0
      %2496 = vmatpush1.bf16.xpose.msra.mxu0 0
      %2497 = vmatprep.subr.bf16.mxu0 0
      %2498 = vmatpush1.bf16.xpose.msra.mxu0 %v2481
      %2499 = vmatprep.subr.bf16.mxu0 0
      %2500 = vmatpush2.bf16.xpose.msra.mxu0 0
      %2501 = vmatprep.subr.bf16.mxu0 0
      %2502 = vmatpush2.bf16.xpose.msra.mxu0 0
      %2503 = vmatprep.subr.bf16.mxu0 0
      %2504 = vmatpush2.bf16.xpose.msra.mxu0 0
      %2505 = vmatprep.subr.bf16.mxu0 0
      %2506 = vmatpush2.bf16.xpose.msra.mxu0 0
      %2507 = vmatprep.subr.bf16.mxu0 0
      %2508 = vmatpush2.bf16.xpose.msra.mxu0 0
      %2509 = vmatprep.subr.bf16.mxu0 0
      %2510 = vmatpush2.bf16.xpose.msra.mxu0 0
      %2511 = vmatprep.subr.bf16.mxu0 0
      %2512 = vmatpush2.bf16.xpose.msra.mxu0 0
      %2513 = vmatprep.subr.bf16.mxu0 0
      %2514 = vmatpush2.bf16.xpose.msra.mxu0 0
      %2515 = vmatprep.mubr.bf16.mxu0 0
      %2516 = vmatmul.mubr.bf16.gmra.mxu0 %v2478
      %v2517 = vpop.f32.mrf.mxu0
      %v2518 = vadd.f32 0.0, %v2517
      %v2519 = vpop.f32.mrf.mxu0
      %v2520 = vpop.f32.mrf.mxu0
      %v2521 = vadd.f32 0.0, %v2520
      %v2522 = vpop.f32.mrf.mxu0
      %2523 = vdwg.mxu0
      %v2525 = vsel %vm1175, %v1131, 0
      %v2528 = vsel %vm1175, %v1135, 0
      %2530 = vmatprep.subr.bf16.mxu0 0
      %2531 = vmatpush1.bf16.xpose.msra.mxu0 0
      %2532 = vmatprep.subr.bf16.mxu0 0
      %2533 = vmatpush1.bf16.xpose.msra.mxu0 0
      %2534 = vmatprep.subr.bf16.mxu0 0
      %2535 = vmatpush1.bf16.xpose.msra.mxu0 0
      %2536 = vmatprep.subr.bf16.mxu0 0
      %2537 = vmatpush1.bf16.xpose.msra.mxu0 0
      %2538 = vmatprep.subr.bf16.mxu0 0
      %2539 = vmatpush1.bf16.xpose.msra.mxu0 0
      %2540 = vmatprep.subr.bf16.mxu0 0
      %2541 = vmatpush1.bf16.xpose.msra.mxu0 0
      %2542 = vmatprep.subr.bf16.mxu0 0
      %2543 = vmatpush1.bf16.xpose.msra.mxu0 0
      %2544 = vmatprep.subr.bf16.mxu0 0
      %2545 = vmatpush1.bf16.xpose.msra.mxu0 %v2528
      %2546 = vmatprep.subr.bf16.mxu0 0
      %2547 = vmatpush2.bf16.xpose.msra.mxu0 0
      %2548 = vmatprep.subr.bf16.mxu0 0
      %2549 = vmatpush2.bf16.xpose.msra.mxu0 0
      %2550 = vmatprep.subr.bf16.mxu0 0
      %2551 = vmatpush2.bf16.xpose.msra.mxu0 0
      %2552 = vmatprep.subr.bf16.mxu0 0
      %2553 = vmatpush2.bf16.xpose.msra.mxu0 0
      %2554 = vmatprep.subr.bf16.mxu0 0
      %2555 = vmatpush2.bf16.xpose.msra.mxu0 0
      %2556 = vmatprep.subr.bf16.mxu0 0
      %2557 = vmatpush2.bf16.xpose.msra.mxu0 0
      %2558 = vmatprep.subr.bf16.mxu0 0
      %2559 = vmatpush2.bf16.xpose.msra.mxu0 0
      %2560 = vmatprep.subr.bf16.mxu0 0
      %2561 = vmatpush2.bf16.xpose.msra.mxu0 0
      %2562 = vmatprep.mubr.bf16.mxu0 0
      %2563 = vmatmul.mubr.bf16.gmra.mxu0 %v2525
      %v2564 = vpop.f32.mrf.mxu0
      %v2565 = vadd.f32 0.0, %v2564
      %v2566 = vpop.f32.mrf.mxu0
      %v2567 = vpop.f32.mrf.mxu0
      %v2568 = vadd.f32 0.0, %v2567
      %v2569 = vpop.f32.mrf.mxu0
      %2570 = vdwg.mxu0
      %v2571 = vsel %vm1270, %v2518, -inf
      %2572 = vmax.xlane.f32.xlu0 %v2571
      %v2573 = vpop.xlane.xlu0 %2572
      %v2574 = vsel %vm1270, %v2521, -inf
      %2575 = vmax.xlane.f32.xlu0 %v2574
      %v2576 = vpop.xlane.xlu0 %2575
      %v2577 = vsel %vm1270, %v2565, -inf
      %2578 = vmax.xlane.f32.xlu0 %v2577
      %v2579 = vpop.xlane.xlu0 %2578
      %v2580 = vsel %vm1270, %v2568, -inf
      %2581 = vmax.xlane.f32.xlu0 %v2580
      %v2582 = vpop.xlane.xlu0 %2581
      %v2583 = vsub.f32 %v2518, %v2573
      %v2584 = vsub.f32 %v2521, %v2576
      %v2585 = vsub.f32 %v2565, %v2579
      %v2586 = vsub.f32 %v2568, %v2582
      %v2587 = vmul.f32 %v2583, 1.442695
      %v2588 = vpow.pop %v2587
      %v2589 = vmul.f32 %v2584, 1.442695
      %v2590 = vpow.pop %v2589
      %v2591 = vmul.f32 %v2585, 1.442695
      %v2592 = vpow.pop %v2591
      %v2593 = vmul.f32 %v2586, 1.442695
      %v2594 = vpow.pop %v2593
      %v2595 = vsel %vm1270, %v2588, 0.0
      %2596 = vadd.xlane.f32.xlu0 %v2595
      %v2597 = vpop.xlane.xlu0 %2596
      %v2598 = vsel %vm1270, %v2590, 0.0
      %2599 = vadd.xlane.f32.xlu0 %v2598
      %v2600 = vpop.xlane.xlu0 %2599
      %v2601 = vsel %vm1270, %v2592, 0.0
      %2602 = vadd.xlane.f32.xlu0 %v2601
      %v2603 = vpop.xlane.xlu0 %2602
      %v2604 = vsel %vm1270, %v2594, 0.0
      %2605 = vadd.xlane.f32.xlu0 %v2604
      %v2606 = vpop.xlane.xlu0 %2605
      %v2607 = vrcp.pop %v2597
      %v2608 = vrcp.pop %v2600
      %v2609 = vrcp.pop %v2603
      %v2610 = vrcp.pop %v2606
      %v2611 = vmul.f32 %v2588, %v2607
      %v2612 = vmul.f32 %v2590, %v2608
      %v2613 = vmul.f32 %v2592, %v2609
      %v2614 = vmul.f32 %v2594, %v2610
      %v2615 = vpack.c.bf16 %v2612, %v2611
      %v2616 = vpack.c.bf16 %v2614, %v2613
      %v2618 = vsel %vm1270, %v2615, 0
      %2620 = vmatprep.subr.bf16.mxu0 0
      %2621 = vmatpush1.bf16.msra.mxu0 0
      %2622 = vmatprep.subr.bf16.mxu0 0
      %2623 = vmatpush1.bf16.msra.mxu0 0
      %2624 = vmatprep.subr.bf16.mxu0 0
      %2625 = vmatpush1.bf16.msra.mxu0 0
      %2626 = vmatprep.subr.bf16.mxu0 0
      %2627 = vmatpush1.bf16.msra.mxu0 0
      %2628 = vmatprep.subr.bf16.mxu0 0
      %2629 = vmatpush1.bf16.msra.mxu0 0
      %2630 = vmatprep.subr.bf16.mxu0 0
      %2631 = vmatpush1.bf16.msra.mxu0 0
      %2632 = vmatprep.subr.bf16.mxu0 0
      %2633 = vmatpush1.bf16.msra.mxu0 0
      %2634 = vmatprep.subr.bf16.mxu0 0
      %2635 = vmatpush1.bf16.msra.mxu0 %v1137
      %2636 = vmatprep.subr.bf16.mxu0 0
      %2637 = vmatpush2.bf16.msra.mxu0 0
      %2638 = vmatprep.subr.bf16.mxu0 0
      %2639 = vmatpush2.bf16.msra.mxu0 0
      %2640 = vmatprep.subr.bf16.mxu0 0
      %2641 = vmatpush2.bf16.msra.mxu0 0
      %2642 = vmatprep.subr.bf16.mxu0 0
      %2643 = vmatpush2.bf16.msra.mxu0 0
      %2644 = vmatprep.subr.bf16.mxu0 0
      %2645 = vmatpush2.bf16.msra.mxu0 0
      %2646 = vmatprep.subr.bf16.mxu0 0
      %2647 = vmatpush2.bf16.msra.mxu0 0
      %2648 = vmatprep.subr.bf16.mxu0 0
      %2649 = vmatpush2.bf16.msra.mxu0 0
      %2650 = vmatprep.subr.bf16.mxu0 0
      %2651 = vmatpush2.bf16.msra.mxu0 0
      %2652 = vmatprep.mubr.bf16.mxu0 0
      %2653 = vmatmul.mubr.bf16.gmra.mxu0 %v2618
      %v2654 = vpop.f32.mrf.mxu0
      %v2655 = vadd.f32 0.0, %v2654
      %v2656 = vpop.f32.mrf.mxu0
      %v2657 = vpop.f32.mrf.mxu0
      %v2658 = vadd.f32 0.0, %v2657
      %v2659 = vpop.f32.mrf.mxu0
      %2660 = vdwg.mxu0
      %v2662 = vsel %vm1270, %v2616, 0
      %2664 = vmatprep.subr.bf16.mxu0 0
      %2665 = vmatpush1.bf16.msra.mxu0 0
      %2666 = vmatprep.subr.bf16.mxu0 0
      %2667 = vmatpush1.bf16.msra.mxu0 0
      %2668 = vmatprep.subr.bf16.mxu0 0
      %2669 = vmatpush1.bf16.msra.mxu0 0
      %2670 = vmatprep.subr.bf16.mxu0 0
      %2671 = vmatpush1.bf16.msra.mxu0 0
      %2672 = vmatprep.subr.bf16.mxu0 0
      %2673 = vmatpush1.bf16.msra.mxu0 0
      %2674 = vmatprep.subr.bf16.mxu0 0
      %2675 = vmatpush1.bf16.msra.mxu0 0
      %2676 = vmatprep.subr.bf16.mxu0 0
      %2677 = vmatpush1.bf16.msra.mxu0 0
      %2678 = vmatprep.subr.bf16.mxu0 0
      %2679 = vmatpush1.bf16.msra.mxu0 %v1139
      %2680 = vmatprep.subr.bf16.mxu0 0
      %2681 = vmatpush2.bf16.msra.mxu0 0
      %2682 = vmatprep.subr.bf16.mxu0 0
      %2683 = vmatpush2.bf16.msra.mxu0 0
      %2684 = vmatprep.subr.bf16.mxu0 0
      %2685 = vmatpush2.bf16.msra.mxu0 0
      %2686 = vmatprep.subr.bf16.mxu0 0
      %2687 = vmatpush2.bf16.msra.mxu0 0
      %2688 = vmatprep.subr.bf16.mxu0 0
      %2689 = vmatpush2.bf16.msra.mxu0 0
      %2690 = vmatprep.subr.bf16.mxu0 0
      %2691 = vmatpush2.bf16.msra.mxu0 0
      %2692 = vmatprep.subr.bf16.mxu0 0
      %2693 = vmatpush2.bf16.msra.mxu0 0
      %2694 = vmatprep.subr.bf16.mxu0 0
      %2695 = vmatpush2.bf16.msra.mxu0 0
      %2696 = vmatprep.mubr.bf16.mxu0 0
      %2697 = vmatmul.mubr.bf16.gmra.mxu0 %v2662
      %v2698 = vpop.f32.mrf.mxu0
      %v2699 = vadd.f32 0.0, %v2698
      %v2700 = vpop.f32.mrf.mxu0
      %v2701 = vpop.f32.mrf.mxu0
      %v2702 = vadd.f32 0.0, %v2701
      %v2703 = vpop.f32.mrf.mxu0
      %2704 = vdwg.mxu0
      %v2705 = vpack.c.bf16 %v2658, %v2655
      %v2706 = vpack.c.bf16 %v2702, %v2699
      %v2711 = vunpack.c.l.b16 %v1159
      %v2712 = vunpack.c.h.b16 %v1159
      %v2713 = vunpack.c.l.b16 %v1160
      %v2714 = vunpack.c.h.b16 %v1160
      %v2715 = vunpack.c.l.b16 %v1161
      %v2716 = vunpack.c.h.b16 %v1161
      %v2717 = vunpack.c.l.b16 %v1162
      %v2718 = vunpack.c.h.b16 %v1162
      %v2719 = vpack.c.b16 %v2713, %v2711
      %v2720 = vpack.c.b16 %v2714, %v2712
      %v2721 = vpack.c.b16 %v2717, %v2715
      %v2722 = vpack.c.b16 %v2718, %v2716
      %v2728 = vsel %vm1175, %v2705, 0
      %v2731 = vsel %vm1175, %v2706, 0
      %2733 = vmatprep.subr.bf16.mxu0 0
      %2734 = vmatpush1.bf16.msra.mxu0 0
      %2735 = vmatprep.subr.bf16.mxu0 0
      %2736 = vmatpush1.bf16.msra.mxu0 0
      %2737 = vmatprep.subr.bf16.mxu0 0
      %2738 = vmatpush1.bf16.msra.mxu0 0
      %2739 = vmatprep.subr.bf16.mxu0 0
      %2740 = vmatpush1.bf16.msra.mxu0 0
      %2741 = vmatprep.subr.bf16.mxu0 0
      %2742 = vmatpush1.bf16.msra.mxu0 0
      %2743 = vmatprep.subr.bf16.mxu0 0
      %2744 = vmatpush1.bf16.msra.mxu0 0
      %2745 = vmatprep.subr.bf16.mxu0 %v2722
      %2746 = vmatpush1.bf16.msra.mxu0 %v2721
      %2747 = vmatprep.subr.bf16.mxu0 %v2720
      %2748 = vmatpush1.bf16.msra.mxu0 %v2719
      %2749 = vmatprep.subr.bf16.mxu0 0
      %2750 = vmatpush2.bf16.msra.mxu0 0
      %2751 = vmatprep.subr.bf16.mxu0 0
      %2752 = vmatpush2.bf16.msra.mxu0 0
      %2753 = vmatprep.subr.bf16.mxu0 0
      %2754 = vmatpush2.bf16.msra.mxu0 0
      %2755 = vmatprep.subr.bf16.mxu0 0
      %2756 = vmatpush2.bf16.msra.mxu0 0
      %2757 = vmatprep.subr.bf16.mxu0 0
      %2758 = vmatpush2.bf16.msra.mxu0 0
      %2759 = vmatprep.subr.bf16.mxu0 0
      %2760 = vmatpush2.bf16.msra.mxu0 0
      %2761 = vmatprep.subr.bf16.mxu0 0
      %2762 = vmatpush2.bf16.msra.mxu0 0
      %2763 = vmatprep.subr.bf16.mxu0 0
      %2764 = vmatpush2.bf16.msra.mxu0 0
      %2765 = vmatprep.mubr.bf16.mxu0 0
      %2766 = vmatmul.mubr.bf16.gmra.mxu0 %v2728
      %v2767 = vpop.f32.mrf.mxu0
      %v2768 = vadd.f32 0.0, %v2767
      %v2769 = vpop.f32.mrf.mxu0
      %v2770 = vadd.f32 0.0, %v2769
      %v2771 = vpop.f32.mrf.mxu0
      %v2772 = vadd.f32 0.0, %v2771
      %v2773 = vpop.f32.mrf.mxu0
      %v2774 = vadd.f32 0.0, %v2773
      %2775 = vmatprep.mubr.bf16.mxu0 0
      %2776 = vmatmul.mubr.bf16.gmra.mxu0 %v2731
      %v2777 = vpop.f32.mrf.mxu0
      %v2778 = vadd.f32 0.0, %v2777
      %v2779 = vpop.f32.mrf.mxu0
      %v2780 = vadd.f32 0.0, %v2779
      %v2781 = vpop.f32.mrf.mxu0
      %v2782 = vadd.f32 0.0, %v2781
      %v2783 = vpop.f32.mrf.mxu0
      %v2784 = vadd.f32 0.0, %v2783
      %2785 = vdwg.mxu0
      %v2786 = vadd.f32 %v2469, %v2768
      %v2787 = vadd.f32 %v2470, %v2770
      %v2788 = vadd.f32 %v2471, %v2772
      %v2789 = vadd.f32 %v2472, %v2774
      %v2790 = vadd.f32 %v2473, %v2778
      %v2791 = vadd.f32 %v2474, %v2780
      %v2792 = vadd.f32 %v2475, %v2782
      %v2793 = vadd.f32 %v2476, %v2784
      %2795 = vrot.lane.b32.xlu0 %v1129, 96
      %v2796 = vpop.permute.xlu0 %2795
      %2798 = vrot.lane.b32.xlu0 %v1133, 96
      %v2799 = vpop.permute.xlu0 %2798
      %v2801 = vsel %vm1175, %v2796, 0
      %v2804 = vsel %vm1175, %v2799, 0
      %2806 = vmatprep.subr.bf16.mxu0 0
      %2807 = vmatpush1.bf16.xpose.msra.mxu0 0
      %2808 = vmatprep.subr.bf16.mxu0 0
      %2809 = vmatpush1.bf16.xpose.msra.mxu0 0
      %2810 = vmatprep.subr.bf16.mxu0 0
      %2811 = vmatpush1.bf16.xpose.msra.mxu0 0
      %2812 = vmatprep.subr.bf16.mxu0 0
      %2813 = vmatpush1.bf16.xpose.msra.mxu0 0
      %2814 = vmatprep.subr.bf16.mxu0 0
      %2815 = vmatpush1.bf16.xpose.msra.mxu0 0
      %2816 = vmatprep.subr.bf16.mxu0 0
      %2817 = vmatpush1.bf16.xpose.msra.mxu0 0
      %2818 = vmatprep.subr.bf16.mxu0 0
      %2819 = vmatpush1.bf16.xpose.msra.mxu0 0
      %2820 = vmatprep.subr.bf16.mxu0 0
      %2821 = vmatpush1.bf16.xpose.msra.mxu0 %v2804
      %2822 = vmatprep.subr.bf16.mxu0 0
      %2823 = vmatpush2.bf16.xpose.msra.mxu0 0
      %2824 = vmatprep.subr.bf16.mxu0 0
      %2825 = vmatpush2.bf16.xpose.msra.mxu0 0
      %2826 = vmatprep.subr.bf16.mxu0 0
      %2827 = vmatpush2.bf16.xpose.msra.mxu0 0
      %2828 = vmatprep.subr.bf16.mxu0 0
      %2829 = vmatpush2.bf16.xpose.msra.mxu0 0
      %2830 = vmatprep.subr.bf16.mxu0 0
      %2831 = vmatpush2.bf16.xpose.msra.mxu0 0
      %2832 = vmatprep.subr.bf16.mxu0 0
      %2833 = vmatpush2.bf16.xpose.msra.mxu0 0
      %2834 = vmatprep.subr.bf16.mxu0 0
      %2835 = vmatpush2.bf16.xpose.msra.mxu0 0
      %2836 = vmatprep.subr.bf16.mxu0 0
      %2837 = vmatpush2.bf16.xpose.msra.mxu0 0
      %2838 = vmatprep.mubr.bf16.mxu0 0
      %2839 = vmatmul.mubr.bf16.gmra.mxu0 %v2801
      %v2840 = vpop.f32.mrf.mxu0
      %v2841 = vadd.f32 0.0, %v2840
      %v2842 = vpop.f32.mrf.mxu0
      %v2843 = vpop.f32.mrf.mxu0
      %v2844 = vadd.f32 0.0, %v2843
      %v2845 = vpop.f32.mrf.mxu0
      %2846 = vdwg.mxu0
      %2848 = vrot.lane.b32.xlu0 %v1131, 96
      %v2849 = vpop.permute.xlu0 %2848
      %2851 = vrot.lane.b32.xlu0 %v1135, 96
      %v2852 = vpop.permute.xlu0 %2851
      %v2854 = vsel %vm1175, %v2849, 0
      %v2857 = vsel %vm1175, %v2852, 0
      %2859 = vmatprep.subr.bf16.mxu0 0
      %2860 = vmatpush1.bf16.xpose.msra.mxu0 0
      %2861 = vmatprep.subr.bf16.mxu0 0
      %2862 = vmatpush1.bf16.xpose.msra.mxu0 0
      %2863 = vmatprep.subr.bf16.mxu0 0
      %2864 = vmatpush1.bf16.xpose.msra.mxu0 0
      %2865 = vmatprep.subr.bf16.mxu0 0
      %2866 = vmatpush1.bf16.xpose.msra.mxu0 0
      %2867 = vmatprep.subr.bf16.mxu0 0
      %2868 = vmatpush1.bf16.xpose.msra.mxu0 0
      %2869 = vmatprep.subr.bf16.mxu0 0
      %2870 = vmatpush1.bf16.xpose.msra.mxu0 0
      %2871 = vmatprep.subr.bf16.mxu0 0
      %2872 = vmatpush1.bf16.xpose.msra.mxu0 0
      %2873 = vmatprep.subr.bf16.mxu0 0
      %2874 = vmatpush1.bf16.xpose.msra.mxu0 %v2857
      %2875 = vmatprep.subr.bf16.mxu0 0
      %2876 = vmatpush2.bf16.xpose.msra.mxu0 0
      %2877 = vmatprep.subr.bf16.mxu0 0
      %2878 = vmatpush2.bf16.xpose.msra.mxu0 0
      %2879 = vmatprep.subr.bf16.mxu0 0
      %2880 = vmatpush2.bf16.xpose.msra.mxu0 0
      %2881 = vmatprep.subr.bf16.mxu0 0
      %2882 = vmatpush2.bf16.xpose.msra.mxu0 0
      %2883 = vmatprep.subr.bf16.mxu0 0
      %2884 = vmatpush2.bf16.xpose.msra.mxu0 0
      %2885 = vmatprep.subr.bf16.mxu0 0
      %2886 = vmatpush2.bf16.xpose.msra.mxu0 0
      %2887 = vmatprep.subr.bf16.mxu0 0
      %2888 = vmatpush2.bf16.xpose.msra.mxu0 0
      %2889 = vmatprep.subr.bf16.mxu0 0
      %2890 = vmatpush2.bf16.xpose.msra.mxu0 0
      %2891 = vmatprep.mubr.bf16.mxu0 0
      %2892 = vmatmul.mubr.bf16.gmra.mxu0 %v2854
      %v2893 = vpop.f32.mrf.mxu0
      %v2894 = vadd.f32 0.0, %v2893
      %v2895 = vpop.f32.mrf.mxu0
      %v2896 = vpop.f32.mrf.mxu0
      %v2897 = vadd.f32 0.0, %v2896
      %v2898 = vpop.f32.mrf.mxu0
      %2899 = vdwg.mxu0
      %v2900 = vsel %vm1270, %v2841, -inf
      %2901 = vmax.xlane.f32.xlu0 %v2900
      %v2902 = vpop.xlane.xlu0 %2901
      %v2903 = vsel %vm1270, %v2844, -inf
      %2904 = vmax.xlane.f32.xlu0 %v2903
      %v2905 = vpop.xlane.xlu0 %2904
      %v2906 = vsel %vm1270, %v2894, -inf
      %2907 = vmax.xlane.f32.xlu0 %v2906
      %v2908 = vpop.xlane.xlu0 %2907
      %v2909 = vsel %vm1270, %v2897, -inf
      %2910 = vmax.xlane.f32.xlu0 %v2909
      %v2911 = vpop.xlane.xlu0 %2910
      %v2912 = vsub.f32 %v2841, %v2902
      %v2913 = vsub.f32 %v2844, %v2905
      %v2914 = vsub.f32 %v2894, %v2908
      %v2915 = vsub.f32 %v2897, %v2911
      %v2916 = vmul.f32 %v2912, 1.442695
      %v2917 = vpow.pop %v2916
      %v2918 = vmul.f32 %v2913, 1.442695
      %v2919 = vpow.pop %v2918
      %v2920 = vmul.f32 %v2914, 1.442695
      %v2921 = vpow.pop %v2920
      %v2922 = vmul.f32 %v2915, 1.442695
      %v2923 = vpow.pop %v2922
      %v2924 = vsel %vm1270, %v2917, 0.0
      %2925 = vadd.xlane.f32.xlu0 %v2924
      %v2926 = vpop.xlane.xlu0 %2925
      %v2927 = vsel %vm1270, %v2919, 0.0
      %2928 = vadd.xlane.f32.xlu0 %v2927
      %v2929 = vpop.xlane.xlu0 %2928
      %v2930 = vsel %vm1270, %v2921, 0.0
      %2931 = vadd.xlane.f32.xlu0 %v2930
      %v2932 = vpop.xlane.xlu0 %2931
      %v2933 = vsel %vm1270, %v2923, 0.0
      %2934 = vadd.xlane.f32.xlu0 %v2933
      %v2935 = vpop.xlane.xlu0 %2934
      %v2936 = vrcp.pop %v2926
      %v2937 = vrcp.pop %v2929
      %v2938 = vrcp.pop %v2932
      %v2939 = vrcp.pop %v2935
      %v2940 = vmul.f32 %v2917, %v2936
      %v2941 = vmul.f32 %v2919, %v2937
      %v2942 = vmul.f32 %v2921, %v2938
      %v2943 = vmul.f32 %v2923, %v2939
      %v2944 = vpack.c.bf16 %v2941, %v2940
      %v2945 = vpack.c.bf16 %v2943, %v2942
      %2947 = vrot.lane.b32.xlu0 %v1137, 96
      %v2948 = vpop.permute.xlu0 %2947
      %v2951 = vsel %vm1270, %v2944, 0
      %2953 = vmatprep.subr.bf16.mxu0 0
      %2954 = vmatpush1.bf16.msra.mxu0 0
      %2955 = vmatprep.subr.bf16.mxu0 0
      %2956 = vmatpush1.bf16.msra.mxu0 0
      %2957 = vmatprep.subr.bf16.mxu0 0
      %2958 = vmatpush1.bf16.msra.mxu0 0
      %2959 = vmatprep.subr.bf16.mxu0 0
      %2960 = vmatpush1.bf16.msra.mxu0 0
      %2961 = vmatprep.subr.bf16.mxu0 0
      %2962 = vmatpush1.bf16.msra.mxu0 0
      %2963 = vmatprep.subr.bf16.mxu0 0
      %2964 = vmatpush1.bf16.msra.mxu0 0
      %2965 = vmatprep.subr.bf16.mxu0 0
      %2966 = vmatpush1.bf16.msra.mxu0 0
      %2967 = vmatprep.subr.bf16.mxu0 0
      %2968 = vmatpush1.bf16.msra.mxu0 %v2948
      %2969 = vmatprep.subr.bf16.mxu0 0
      %2970 = vmatpush2.bf16.msra.mxu0 0
      %2971 = vmatprep.subr.bf16.mxu0 0
      %2972 = vmatpush2.bf16.msra.mxu0 0
      %2973 = vmatprep.subr.bf16.mxu0 0
      %2974 = vmatpush2.bf16.msra.mxu0 0
      %2975 = vmatprep.subr.bf16.mxu0 0
      %2976 = vmatpush2.bf16.msra.mxu0 0
      %2977 = vmatprep.subr.bf16.mxu0 0
      %2978 = vmatpush2.bf16.msra.mxu0 0
      %2979 = vmatprep.subr.bf16.mxu0 0
      %2980 = vmatpush2.bf16.msra.mxu0 0
      %2981 = vmatprep.subr.bf16.mxu0 0
      %2982 = vmatpush2.bf16.msra.mxu0 0
      %2983 = vmatprep.subr.bf16.mxu0 0
      %2984 = vmatpush2.bf16.msra.mxu0 0
      %2985 = vmatprep.mubr.bf16.mxu0 0
      %2986 = vmatmul.mubr.bf16.gmra.mxu0 %v2951
      %v2987 = vpop.f32.mrf.mxu0
      %v2988 = vadd.f32 0.0, %v2987
      %v2989 = vpop.f32.mrf.mxu0
      %v2990 = vpop.f32.mrf.mxu0
      %v2991 = vadd.f32 0.0, %v2990
      %v2992 = vpop.f32.mrf.mxu0
      %2993 = vdwg.mxu0
      %2995 = vrot.lane.b32.xlu0 %v1139, 96
      %v2996 = vpop.permute.xlu0 %2995
      %v2999 = vsel %vm1270, %v2945, 0
      %3001 = vmatprep.subr.bf16.mxu0 0
      %3002 = vmatpush1.bf16.msra.mxu0 0
      %3003 = vmatprep.subr.bf16.mxu0 0
      %3004 = vmatpush1.bf16.msra.mxu0 0
      %3005 = vmatprep.subr.bf16.mxu0 0
      %3006 = vmatpush1.bf16.msra.mxu0 0
      %3007 = vmatprep.subr.bf16.mxu0 0
      %3008 = vmatpush1.bf16.msra.mxu0 0
      %3009 = vmatprep.subr.bf16.mxu0 0
      %3010 = vmatpush1.bf16.msra.mxu0 0
      %3011 = vmatprep.subr.bf16.mxu0 0
      %3012 = vmatpush1.bf16.msra.mxu0 0
      %3013 = vmatprep.subr.bf16.mxu0 0
      %3014 = vmatpush1.bf16.msra.mxu0 0
      %3015 = vmatprep.subr.bf16.mxu0 0
      %3016 = vmatpush1.bf16.msra.mxu0 %v2996
      %3017 = vmatprep.subr.bf16.mxu0 0
      %3018 = vmatpush2.bf16.msra.mxu0 0
      %3019 = vmatprep.subr.bf16.mxu0 0
      %3020 = vmatpush2.bf16.msra.mxu0 0
      %3021 = vmatprep.subr.bf16.mxu0 0
      %3022 = vmatpush2.bf16.msra.mxu0 0
      %3023 = vmatprep.subr.bf16.mxu0 0
      %3024 = vmatpush2.bf16.msra.mxu0 0
      %3025 = vmatprep.subr.bf16.mxu0 0
      %3026 = vmatpush2.bf16.msra.mxu0 0
      %3027 = vmatprep.subr.bf16.mxu0 0
      %3028 = vmatpush2.bf16.msra.mxu0 0
      %3029 = vmatprep.subr.bf16.mxu0 0
      %3030 = vmatpush2.bf16.msra.mxu0 0
      %3031 = vmatprep.subr.bf16.mxu0 0
      %3032 = vmatpush2.bf16.msra.mxu0 0
      %3033 = vmatprep.mubr.bf16.mxu0 0
      %3034 = vmatmul.mubr.bf16.gmra.mxu0 %v2999
      %v3035 = vpop.f32.mrf.mxu0
      %v3036 = vadd.f32 0.0, %v3035
      %v3037 = vpop.f32.mrf.mxu0
      %v3038 = vpop.f32.mrf.mxu0
      %v3039 = vadd.f32 0.0, %v3038
      %v3040 = vpop.f32.mrf.mxu0
      %3041 = vdwg.mxu0
      %v3042 = vpack.c.bf16 %v2991, %v2988
      %v3043 = vpack.c.bf16 %v3039, %v3036
      %v3048 = vunpack.c.l.b16 %v1163
      %v3049 = vunpack.c.h.b16 %v1163
      %v3050 = vunpack.c.l.b16 %v1164
      %v3051 = vunpack.c.h.b16 %v1164
      %v3052 = vunpack.c.l.b16 %v1165
      %v3053 = vunpack.c.h.b16 %v1165
      %v3054 = vunpack.c.l.b16 %v1166
      %v3055 = vunpack.c.h.b16 %v1166
      %v3056 = vpack.c.b16 %v3050, %v3048
      %v3057 = vpack.c.b16 %v3051, %v3049
      %v3058 = vpack.c.b16 %v3054, %v3052
      %v3059 = vpack.c.b16 %v3055, %v3053
      %v3065 = vsel %vm1175, %v3042, 0
      %v3068 = vsel %vm1175, %v3043, 0
      %3070 = vmatprep.subr.bf16.mxu0 0
      %3071 = vmatpush1.bf16.msra.mxu0 0
      %3072 = vmatprep.subr.bf16.mxu0 0
      %3073 = vmatpush1.bf16.msra.mxu0 0
      %3074 = vmatprep.subr.bf16.mxu0 0
      %3075 = vmatpush1.bf16.msra.mxu0 0
      %3076 = vmatprep.subr.bf16.mxu0 0
      %3077 = vmatpush1.bf16.msra.mxu0 0
      %3078 = vmatprep.subr.bf16.mxu0 0
      %3079 = vmatpush1.bf16.msra.mxu0 0
      %3080 = vmatprep.subr.bf16.mxu0 0
      %3081 = vmatpush1.bf16.msra.mxu0 0
      %3082 = vmatprep.subr.bf16.mxu0 %v3059
      %3083 = vmatpush1.bf16.msra.mxu0 %v3058
      %3084 = vmatprep.subr.bf16.mxu0 %v3057
      %3085 = vmatpush1.bf16.msra.mxu0 %v3056
      %3086 = vmatprep.subr.bf16.mxu0 0
      %3087 = vmatpush2.bf16.msra.mxu0 0
      %3088 = vmatprep.subr.bf16.mxu0 0
      %3089 = vmatpush2.bf16.msra.mxu0 0
      %3090 = vmatprep.subr.bf16.mxu0 0
      %3091 = vmatpush2.bf16.msra.mxu0 0
      %3092 = vmatprep.subr.bf16.mxu0 0
      %3093 = vmatpush2.bf16.msra.mxu0 0
      %3094 = vmatprep.subr.bf16.mxu0 0
      %3095 = vmatpush2.bf16.msra.mxu0 0
      %3096 = vmatprep.subr.bf16.mxu0 0
      %3097 = vmatpush2.bf16.msra.mxu0 0
      %3098 = vmatprep.subr.bf16.mxu0 0
      %3099 = vmatpush2.bf16.msra.mxu0 0
      %3100 = vmatprep.subr.bf16.mxu0 0
      %3101 = vmatpush2.bf16.msra.mxu0 0
      %3102 = vmatprep.mubr.bf16.mxu0 0
      %3103 = vmatmul.mubr.bf16.gmra.mxu0 %v3065
      %v3104 = vpop.f32.mrf.mxu0
      %v3105 = vadd.f32 0.0, %v3104
      %v3106 = vpop.f32.mrf.mxu0
      %v3107 = vadd.f32 0.0, %v3106
      %v3108 = vpop.f32.mrf.mxu0
      %v3109 = vadd.f32 0.0, %v3108
      %v3110 = vpop.f32.mrf.mxu0
      %v3111 = vadd.f32 0.0, %v3110
      %3112 = vmatprep.mubr.bf16.mxu0 0
      %3113 = vmatmul.mubr.bf16.gmra.mxu0 %v3068
      %v3114 = vpop.f32.mrf.mxu0
      %v3115 = vadd.f32 0.0, %v3114
      %v3116 = vpop.f32.mrf.mxu0
      %v3117 = vadd.f32 0.0, %v3116
      %v3118 = vpop.f32.mrf.mxu0
      %v3119 = vadd.f32 0.0, %v3118
      %v3120 = vpop.f32.mrf.mxu0
      %v3121 = vadd.f32 0.0, %v3120
      %3122 = vdwg.mxu0
      %v3123 = vadd.f32 %v2786, %v3105
      %v3124 = vadd.f32 %v2787, %v3107
      %v3125 = vadd.f32 %v2788, %v3109
      %v3126 = vadd.f32 %v2789, %v3111
      %v3127 = vadd.f32 %v2790, %v3115
      %v3128 = vadd.f32 %v2791, %v3117
      %v3129 = vadd.f32 %v2792, %v3119
      %v3130 = vadd.f32 %v2793, %v3121
      %3131 = vrot.lane.b32.xlu0 %v1129, 64
      %v3132 = vpop.permute.xlu0 %3131
      %3133 = vrot.lane.b32.xlu0 %v1133, 64
      %v3134 = vpop.permute.xlu0 %3133
      %v3136 = vsel %vm1175, %v3132, 0
      %v3139 = vsel %vm1175, %v3134, 0
      %3141 = vmatprep.subr.bf16.mxu0 0
      %3142 = vmatpush1.bf16.xpose.msra.mxu0 0
      %3143 = vmatprep.subr.bf16.mxu0 0
      %3144 = vmatpush1.bf16.xpose.msra.mxu0 0
      %3145 = vmatprep.subr.bf16.mxu0 0
      %3146 = vmatpush1.bf16.xpose.msra.mxu0 0
      %3147 = vmatprep.subr.bf16.mxu0 0
      %3148 = vmatpush1.bf16.xpose.msra.mxu0 0
      %3149 = vmatprep.subr.bf16.mxu0 0
      %3150 = vmatpush1.bf16.xpose.msra.mxu0 0
      %3151 = vmatprep.subr.bf16.mxu0 0
      %3152 = vmatpush1.bf16.xpose.msra.mxu0 0
      %3153 = vmatprep.subr.bf16.mxu0 0
      %3154 = vmatpush1.bf16.xpose.msra.mxu0 0
      %3155 = vmatprep.subr.bf16.mxu0 0
      %3156 = vmatpush1.bf16.xpose.msra.mxu0 %v3139
      %3157 = vmatprep.subr.bf16.mxu0 0
      %3158 = vmatpush2.bf16.xpose.msra.mxu0 0
      %3159 = vmatprep.subr.bf16.mxu0 0
      %3160 = vmatpush2.bf16.xpose.msra.mxu0 0
      %3161 = vmatprep.subr.bf16.mxu0 0
      %3162 = vmatpush2.bf16.xpose.msra.mxu0 0
      %3163 = vmatprep.subr.bf16.mxu0 0
      %3164 = vmatpush2.bf16.xpose.msra.mxu0 0
      %3165 = vmatprep.subr.bf16.mxu0 0
      %3166 = vmatpush2.bf16.xpose.msra.mxu0 0
      %3167 = vmatprep.subr.bf16.mxu0 0
      %3168 = vmatpush2.bf16.xpose.msra.mxu0 0
      %3169 = vmatprep.subr.bf16.mxu0 0
      %3170 = vmatpush2.bf16.xpose.msra.mxu0 0
      %3171 = vmatprep.subr.bf16.mxu0 0
      %3172 = vmatpush2.bf16.xpose.msra.mxu0 0
      %3173 = vmatprep.mubr.bf16.mxu0 0
      %3174 = vmatmul.mubr.bf16.gmra.mxu0 %v3136
      %v3175 = vpop.f32.mrf.mxu0
      %v3176 = vadd.f32 0.0, %v3175
      %v3177 = vpop.f32.mrf.mxu0
      %v3178 = vpop.f32.mrf.mxu0
      %v3179 = vadd.f32 0.0, %v3178
      %v3180 = vpop.f32.mrf.mxu0
      %3181 = vdwg.mxu0
      %3182 = vrot.lane.b32.xlu0 %v1131, 64
      %v3183 = vpop.permute.xlu0 %3182
      %3184 = vrot.lane.b32.xlu0 %v1135, 64
      %v3185 = vpop.permute.xlu0 %3184
      %v3187 = vsel %vm1175, %v3183, 0
      %v3190 = vsel %vm1175, %v3185, 0
      %3192 = vmatprep.subr.bf16.mxu0 0
      %3193 = vmatpush1.bf16.xpose.msra.mxu0 0
      %3194 = vmatprep.subr.bf16.mxu0 0
      %3195 = vmatpush1.bf16.xpose.msra.mxu0 0
      %3196 = vmatprep.subr.bf16.mxu0 0
      %3197 = vmatpush1.bf16.xpose.msra.mxu0 0
      %3198 = vmatprep.subr.bf16.mxu0 0
      %3199 = vmatpush1.bf16.xpose.msra.mxu0 0
      %3200 = vmatprep.subr.bf16.mxu0 0
      %3201 = vmatpush1.bf16.xpose.msra.mxu0 0
      %3202 = vmatprep.subr.bf16.mxu0 0
      %3203 = vmatpush1.bf16.xpose.msra.mxu0 0
      %3204 = vmatprep.subr.bf16.mxu0 0
      %3205 = vmatpush1.bf16.xpose.msra.mxu0 0
      %3206 = vmatprep.subr.bf16.mxu0 0
      %3207 = vmatpush1.bf16.xpose.msra.mxu0 %v3190
      %3208 = vmatprep.subr.bf16.mxu0 0
      %3209 = vmatpush2.bf16.xpose.msra.mxu0 0
      %3210 = vmatprep.subr.bf16.mxu0 0
      %3211 = vmatpush2.bf16.xpose.msra.mxu0 0
      %3212 = vmatprep.subr.bf16.mxu0 0
      %3213 = vmatpush2.bf16.xpose.msra.mxu0 0
      %3214 = vmatprep.subr.bf16.mxu0 0
      %3215 = vmatpush2.bf16.xpose.msra.mxu0 0
      %3216 = vmatprep.subr.bf16.mxu0 0
      %3217 = vmatpush2.bf16.xpose.msra.mxu0 0
      %3218 = vmatprep.subr.bf16.mxu0 0
      %3219 = vmatpush2.bf16.xpose.msra.mxu0 0
      %3220 = vmatprep.subr.bf16.mxu0 0
      %3221 = vmatpush2.bf16.xpose.msra.mxu0 0
      %3222 = vmatprep.subr.bf16.mxu0 0
      %3223 = vmatpush2.bf16.xpose.msra.mxu0 0
      %3224 = vmatprep.mubr.bf16.mxu0 0
      %3225 = vmatmul.mubr.bf16.gmra.mxu0 %v3187
      %v3226 = vpop.f32.mrf.mxu0
      %v3227 = vadd.f32 0.0, %v3226
      %v3228 = vpop.f32.mrf.mxu0
      %v3229 = vpop.f32.mrf.mxu0
      %v3230 = vadd.f32 0.0, %v3229
      %v3231 = vpop.f32.mrf.mxu0
      %3232 = vdwg.mxu0
      %v3233 = vsel %vm1270, %v3176, -inf
      %3234 = vmax.xlane.f32.xlu0 %v3233
      %v3235 = vpop.xlane.xlu0 %3234
      %v3236 = vsel %vm1270, %v3179, -inf
      %3237 = vmax.xlane.f32.xlu0 %v3236
      %v3238 = vpop.xlane.xlu0 %3237
      %v3239 = vsel %vm1270, %v3227, -inf
      %3240 = vmax.xlane.f32.xlu0 %v3239
      %v3241 = vpop.xlane.xlu0 %3240
      %v3242 = vsel %vm1270, %v3230, -inf
      %3243 = vmax.xlane.f32.xlu0 %v3242
      %v3244 = vpop.xlane.xlu0 %3243
      %v3245 = vsub.f32 %v3176, %v3235
      %v3246 = vsub.f32 %v3179, %v3238
      %v3247 = vsub.f32 %v3227, %v3241
      %v3248 = vsub.f32 %v3230, %v3244
      %v3249 = vmul.f32 %v3245, 1.442695
      %v3250 = vpow.pop %v3249
      %v3251 = vmul.f32 %v3246, 1.442695
      %v3252 = vpow.pop %v3251
      %v3253 = vmul.f32 %v3247, 1.442695
      %v3254 = vpow.pop %v3253
      %v3255 = vmul.f32 %v3248, 1.442695
      %v3256 = vpow.pop %v3255
      %v3257 = vsel %vm1270, %v3250, 0.0
      %3258 = vadd.xlane.f32.xlu0 %v3257
      %v3259 = vpop.xlane.xlu0 %3258
      %v3260 = vsel %vm1270, %v3252, 0.0
      %3261 = vadd.xlane.f32.xlu0 %v3260
      %v3262 = vpop.xlane.xlu0 %3261
      %v3263 = vsel %vm1270, %v3254, 0.0
      %3264 = vadd.xlane.f32.xlu0 %v3263
      %v3265 = vpop.xlane.xlu0 %3264
      %v3266 = vsel %vm1270, %v3256, 0.0
      %3267 = vadd.xlane.f32.xlu0 %v3266
      %v3268 = vpop.xlane.xlu0 %3267
      %v3269 = vrcp.pop %v3259
      %v3270 = vrcp.pop %v3262
      %v3271 = vrcp.pop %v3265
      %v3272 = vrcp.pop %v3268
      %v3273 = vmul.f32 %v3250, %v3269
      %v3274 = vmul.f32 %v3252, %v3270
      %v3275 = vmul.f32 %v3254, %v3271
      %v3276 = vmul.f32 %v3256, %v3272
      %v3277 = vpack.c.bf16 %v3274, %v3273
      %v3278 = vpack.c.bf16 %v3276, %v3275
      %3279 = vrot.lane.b32.xlu0 %v1137, 64
      %v3280 = vpop.permute.xlu0 %3279
      %v3283 = vsel %vm1270, %v3277, 0
      %3285 = vmatprep.subr.bf16.mxu0 0
      %3286 = vmatpush1.bf16.msra.mxu0 0
      %3287 = vmatprep.subr.bf16.mxu0 0
      %3288 = vmatpush1.bf16.msra.mxu0 0
      %3289 = vmatprep.subr.bf16.mxu0 0
      %3290 = vmatpush1.bf16.msra.mxu0 0
      %3291 = vmatprep.subr.bf16.mxu0 0
      %3292 = vmatpush1.bf16.msra.mxu0 0
      %3293 = vmatprep.subr.bf16.mxu0 0
      %3294 = vmatpush1.bf16.msra.mxu0 0
      %3295 = vmatprep.subr.bf16.mxu0 0
      %3296 = vmatpush1.bf16.msra.mxu0 0
      %3297 = vmatprep.subr.bf16.mxu0 0
      %3298 = vmatpush1.bf16.msra.mxu0 0
      %3299 = vmatprep.subr.bf16.mxu0 0
      %3300 = vmatpush1.bf16.msra.mxu0 %v3280
      %3301 = vmatprep.subr.bf16.mxu0 0
      %3302 = vmatpush2.bf16.msra.mxu0 0
      %3303 = vmatprep.subr.bf16.mxu0 0
      %3304 = vmatpush2.bf16.msra.mxu0 0
      %3305 = vmatprep.subr.bf16.mxu0 0
      %3306 = vmatpush2.bf16.msra.mxu0 0
      %3307 = vmatprep.subr.bf16.mxu0 0
      %3308 = vmatpush2.bf16.msra.mxu0 0
      %3309 = vmatprep.subr.bf16.mxu0 0
      %3310 = vmatpush2.bf16.msra.mxu0 0
      %3311 = vmatprep.subr.bf16.mxu0 0
      %3312 = vmatpush2.bf16.msra.mxu0 0
      %3313 = vmatprep.subr.bf16.mxu0 0
      %3314 = vmatpush2.bf16.msra.mxu0 0
      %3315 = vmatprep.subr.bf16.mxu0 0
      %3316 = vmatpush2.bf16.msra.mxu0 0
      %3317 = vmatprep.mubr.bf16.mxu0 0
      %3318 = vmatmul.mubr.bf16.gmra.mxu0 %v3283
      %v3319 = vpop.f32.mrf.mxu0
      %v3320 = vadd.f32 0.0, %v3319
      %v3321 = vpop.f32.mrf.mxu0
      %v3322 = vpop.f32.mrf.mxu0
      %v3323 = vadd.f32 0.0, %v3322
      %v3324 = vpop.f32.mrf.mxu0
      %3325 = vdwg.mxu0
      %3326 = vrot.lane.b32.xlu0 %v1139, 64
      %v3327 = vpop.permute.xlu0 %3326
      %v3330 = vsel %vm1270, %v3278, 0
      %3332 = vmatprep.subr.bf16.mxu0 0
      %3333 = vmatpush1.bf16.msra.mxu0 0
      %3334 = vmatprep.subr.bf16.mxu0 0
      %3335 = vmatpush1.bf16.msra.mxu0 0
      %3336 = vmatprep.subr.bf16.mxu0 0
      %3337 = vmatpush1.bf16.msra.mxu0 0
      %3338 = vmatprep.subr.bf16.mxu0 0
      %3339 = vmatpush1.bf16.msra.mxu0 0
      %3340 = vmatprep.subr.bf16.mxu0 0
      %3341 = vmatpush1.bf16.msra.mxu0 0
      %3342 = vmatprep.subr.bf16.mxu0 0
      %3343 = vmatpush1.bf16.msra.mxu0 0
      %3344 = vmatprep.subr.bf16.mxu0 0
      %3345 = vmatpush1.bf16.msra.mxu0 0
      %3346 = vmatprep.subr.bf16.mxu0 0
      %3347 = vmatpush1.bf16.msra.mxu0 %v3327
      %3348 = vmatprep.subr.bf16.mxu0 0
      %3349 = vmatpush2.bf16.msra.mxu0 0
      %3350 = vmatprep.subr.bf16.mxu0 0
      %3351 = vmatpush2.bf16.msra.mxu0 0
      %3352 = vmatprep.subr.bf16.mxu0 0
      %3353 = vmatpush2.bf16.msra.mxu0 0
      %3354 = vmatprep.subr.bf16.mxu0 0
      %3355 = vmatpush2.bf16.msra.mxu0 0
      %3356 = vmatprep.subr.bf16.mxu0 0
      %3357 = vmatpush2.bf16.msra.mxu0 0
      %3358 = vmatprep.subr.bf16.mxu0 0
      %3359 = vmatpush2.bf16.msra.mxu0 0
      %3360 = vmatprep.subr.bf16.mxu0 0
      %3361 = vmatpush2.bf16.msra.mxu0 0
      %3362 = vmatprep.subr.bf16.mxu0 0
      %3363 = vmatpush2.bf16.msra.mxu0 0
      %3364 = vmatprep.mubr.bf16.mxu0 0
      %3365 = vmatmul.mubr.bf16.gmra.mxu0 %v3330
      %v3366 = vpop.f32.mrf.mxu0
      %v3367 = vadd.f32 0.0, %v3366
      %v3368 = vpop.f32.mrf.mxu0
      %v3369 = vpop.f32.mrf.mxu0
      %v3370 = vadd.f32 0.0, %v3369
      %v3371 = vpop.f32.mrf.mxu0
      %3372 = vdwg.mxu0
      %v3373 = vpack.c.bf16 %v3323, %v3320
      %v3374 = vpack.c.bf16 %v3370, %v3367
      %v3379 = vunpack.c.l.b16 %v1167
      %v3380 = vunpack.c.h.b16 %v1167
      %v3381 = vunpack.c.l.b16 %v1168
      %v3382 = vunpack.c.h.b16 %v1168
      %v3383 = vunpack.c.l.b16 %v1169
      %v3384 = vunpack.c.h.b16 %v1169
      %v3385 = vunpack.c.l.b16 %v1170
      %v3386 = vunpack.c.h.b16 %v1170
      %v3387 = vpack.c.b16 %v3381, %v3379
      %v3388 = vpack.c.b16 %v3382, %v3380
      %v3389 = vpack.c.b16 %v3385, %v3383
      %v3390 = vpack.c.b16 %v3386, %v3384
      %v3396 = vsel %vm1175, %v3373, 0
      %v3399 = vsel %vm1175, %v3374, 0
      %3401 = vmatprep.subr.bf16.mxu0 0
      %3402 = vmatpush1.bf16.msra.mxu0 0
      %3403 = vmatprep.subr.bf16.mxu0 0
      %3404 = vmatpush1.bf16.msra.mxu0 0
      %3405 = vmatprep.subr.bf16.mxu0 0
      %3406 = vmatpush1.bf16.msra.mxu0 0
      %3407 = vmatprep.subr.bf16.mxu0 0
      %3408 = vmatpush1.bf16.msra.mxu0 0
      %3409 = vmatprep.subr.bf16.mxu0 0
      %3410 = vmatpush1.bf16.msra.mxu0 0
      %3411 = vmatprep.subr.bf16.mxu0 0
      %3412 = vmatpush1.bf16.msra.mxu0 0
      %3413 = vmatprep.subr.bf16.mxu0 %v3390
      %3414 = vmatpush1.bf16.msra.mxu0 %v3389
      %3415 = vmatprep.subr.bf16.mxu0 %v3388
      %3416 = vmatpush1.bf16.msra.mxu0 %v3387
      %3417 = vmatprep.subr.bf16.mxu0 0
      %3418 = vmatpush2.bf16.msra.mxu0 0
      %3419 = vmatprep.subr.bf16.mxu0 0
      %3420 = vmatpush2.bf16.msra.mxu0 0
      %3421 = vmatprep.subr.bf16.mxu0 0
      %3422 = vmatpush2.bf16.msra.mxu0 0
      %3423 = vmatprep.subr.bf16.mxu0 0
      %3424 = vmatpush2.bf16.msra.mxu0 0
      %3425 = vmatprep.subr.bf16.mxu0 0
      %3426 = vmatpush2.bf16.msra.mxu0 0
      %3427 = vmatprep.subr.bf16.mxu0 0
      %3428 = vmatpush2.bf16.msra.mxu0 0
      %3429 = vmatprep.subr.bf16.mxu0 0
      %3430 = vmatpush2.bf16.msra.mxu0 0
      %3431 = vmatprep.subr.bf16.mxu0 0
      %3432 = vmatpush2.bf16.msra.mxu0 0
      %3433 = vmatprep.mubr.bf16.mxu0 0
      %3434 = vmatmul.mubr.bf16.gmra.mxu0 %v3396
      %v3435 = vpop.f32.mrf.mxu0
      %v3436 = vadd.f32 0.0, %v3435
      %v3437 = vpop.f32.mrf.mxu0
      %v3438 = vadd.f32 0.0, %v3437
      %v3439 = vpop.f32.mrf.mxu0
      %v3440 = vadd.f32 0.0, %v3439
      %v3441 = vpop.f32.mrf.mxu0
      %v3442 = vadd.f32 0.0, %v3441
      %3443 = vmatprep.mubr.bf16.mxu0 0
      %3444 = vmatmul.mubr.bf16.gmra.mxu0 %v3399
      %v3445 = vpop.f32.mrf.mxu0
      %v3446 = vadd.f32 0.0, %v3445
      %v3447 = vpop.f32.mrf.mxu0
      %v3448 = vadd.f32 0.0, %v3447
      %v3449 = vpop.f32.mrf.mxu0
      %v3450 = vadd.f32 0.0, %v3449
      %v3451 = vpop.f32.mrf.mxu0
      %v3452 = vadd.f32 0.0, %v3451
      %3453 = vdwg.mxu0
      %v3454 = vadd.f32 %v3123, %v3436
      %v3455 = vadd.f32 %v3124, %v3438
      %v3456 = vadd.f32 %v3125, %v3440
      %v3457 = vadd.f32 %v3126, %v3442
      %v3458 = vadd.f32 %v3127, %v3446
      %v3459 = vadd.f32 %v3128, %v3448
      %v3460 = vadd.f32 %v3129, %v3450
      %v3461 = vadd.f32 %v3130, %v3452
      %3462 = vrot.lane.b32.xlu0 %v1129, 32
      %v3463 = vpop.permute.xlu0 %3462
      %3464 = vrot.lane.b32.xlu0 %v1133, 32
      %v3465 = vpop.permute.xlu0 %3464
      %v3467 = vsel %vm1175, %v3463, 0
      %v3470 = vsel %vm1175, %v3465, 0
      %3472 = vmatprep.subr.bf16.mxu0 0
      %3473 = vmatpush1.bf16.xpose.msra.mxu0 0
      %3474 = vmatprep.subr.bf16.mxu0 0
      %3475 = vmatpush1.bf16.xpose.msra.mxu0 0
      %3476 = vmatprep.subr.bf16.mxu0 0
      %3477 = vmatpush1.bf16.xpose.msra.mxu0 0
      %3478 = vmatprep.subr.bf16.mxu0 0
      %3479 = vmatpush1.bf16.xpose.msra.mxu0 0
      %3480 = vmatprep.subr.bf16.mxu0 0
      %3481 = vmatpush1.bf16.xpose.msra.mxu0 0
      %3482 = vmatprep.subr.bf16.mxu0 0
      %3483 = vmatpush1.bf16.xpose.msra.mxu0 0
      %3484 = vmatprep.subr.bf16.mxu0 0
      %3485 = vmatpush1.bf16.xpose.msra.mxu0 0
      %3486 = vmatprep.subr.bf16.mxu0 0
      %3487 = vmatpush1.bf16.xpose.msra.mxu0 %v3470
      %3488 = vmatprep.subr.bf16.mxu0 0
      %3489 = vmatpush2.bf16.xpose.msra.mxu0 0
      %3490 = vmatprep.subr.bf16.mxu0 0
      %3491 = vmatpush2.bf16.xpose.msra.mxu0 0
      %3492 = vmatprep.subr.bf16.mxu0 0
      %3493 = vmatpush2.bf16.xpose.msra.mxu0 0
      %3494 = vmatprep.subr.bf16.mxu0 0
      %3495 = vmatpush2.bf16.xpose.msra.mxu0 0
      %3496 = vmatprep.subr.bf16.mxu0 0
      %3497 = vmatpush2.bf16.xpose.msra.mxu0 0
      %3498 = vmatprep.subr.bf16.mxu0 0
      %3499 = vmatpush2.bf16.xpose.msra.mxu0 0
      %3500 = vmatprep.subr.bf16.mxu0 0
      %3501 = vmatpush2.bf16.xpose.msra.mxu0 0
      %3502 = vmatprep.subr.bf16.mxu0 0
      %3503 = vmatpush2.bf16.xpose.msra.mxu0 0
      %3504 = vmatprep.mubr.bf16.mxu0 0
      %3505 = vmatmul.mubr.bf16.gmra.mxu0 %v3467
      %v3506 = vpop.f32.mrf.mxu0
      %v3507 = vadd.f32 0.0, %v3506
      %v3508 = vpop.f32.mrf.mxu0
      %v3509 = vpop.f32.mrf.mxu0
      %v3510 = vadd.f32 0.0, %v3509
      %v3511 = vpop.f32.mrf.mxu0
      %3512 = vdwg.mxu0
      %3513 = vrot.lane.b32.xlu0 %v1131, 32
      %v3514 = vpop.permute.xlu0 %3513
      %3515 = vrot.lane.b32.xlu0 %v1135, 32
      %v3516 = vpop.permute.xlu0 %3515
      %v3518 = vsel %vm1175, %v3514, 0
      %v3521 = vsel %vm1175, %v3516, 0
      %3523 = vmatprep.subr.bf16.mxu0 0
      %3524 = vmatpush1.bf16.xpose.msra.mxu0 0
      %3525 = vmatprep.subr.bf16.mxu0 0
      %3526 = vmatpush1.bf16.xpose.msra.mxu0 0
      %3527 = vmatprep.subr.bf16.mxu0 0
      %3528 = vmatpush1.bf16.xpose.msra.mxu0 0
      %3529 = vmatprep.subr.bf16.mxu0 0
      %3530 = vmatpush1.bf16.xpose.msra.mxu0 0
      %3531 = vmatprep.subr.bf16.mxu0 0
      %3532 = vmatpush1.bf16.xpose.msra.mxu0 0
      %3533 = vmatprep.subr.bf16.mxu0 0
      %3534 = vmatpush1.bf16.xpose.msra.mxu0 0
      %3535 = vmatprep.subr.bf16.mxu0 0
      %3536 = vmatpush1.bf16.xpose.msra.mxu0 0
      %3537 = vmatprep.subr.bf16.mxu0 0
      %3538 = vmatpush1.bf16.xpose.msra.mxu0 %v3521
      %3539 = vmatprep.subr.bf16.mxu0 0
      %3540 = vmatpush2.bf16.xpose.msra.mxu0 0
      %3541 = vmatprep.subr.bf16.mxu0 0
      %3542 = vmatpush2.bf16.xpose.msra.mxu0 0
      %3543 = vmatprep.subr.bf16.mxu0 0
      %3544 = vmatpush2.bf16.xpose.msra.mxu0 0
      %3545 = vmatprep.subr.bf16.mxu0 0
      %3546 = vmatpush2.bf16.xpose.msra.mxu0 0
      %3547 = vmatprep.subr.bf16.mxu0 0
      %3548 = vmatpush2.bf16.xpose.msra.mxu0 0
      %3549 = vmatprep.subr.bf16.mxu0 0
      %3550 = vmatpush2.bf16.xpose.msra.mxu0 0
      %3551 = vmatprep.subr.bf16.mxu0 0
      %3552 = vmatpush2.bf16.xpose.msra.mxu0 0
      %3553 = vmatprep.subr.bf16.mxu0 0
      %3554 = vmatpush2.bf16.xpose.msra.mxu0 0
      %3555 = vmatprep.mubr.bf16.mxu0 0
      %3556 = vmatmul.mubr.bf16.gmra.mxu0 %v3518
      %v3557 = vpop.f32.mrf.mxu0
      %v3558 = vadd.f32 0.0, %v3557
      %v3559 = vpop.f32.mrf.mxu0
      %v3560 = vpop.f32.mrf.mxu0
      %v3561 = vadd.f32 0.0, %v3560
      %v3562 = vpop.f32.mrf.mxu0
      %3563 = vdwg.mxu0
      %v3564 = vsel %vm1270, %v3507, -inf
      %3565 = vmax.xlane.f32.xlu0 %v3564
      %v3566 = vpop.xlane.xlu0 %3565
      %v3567 = vsel %vm1270, %v3510, -inf
      %3568 = vmax.xlane.f32.xlu0 %v3567
      %v3569 = vpop.xlane.xlu0 %3568
      %v3570 = vsel %vm1270, %v3558, -inf
      %3571 = vmax.xlane.f32.xlu0 %v3570
      %v3572 = vpop.xlane.xlu0 %3571
      %v3573 = vsel %vm1270, %v3561, -inf
      %3574 = vmax.xlane.f32.xlu0 %v3573
      %v3575 = vpop.xlane.xlu0 %3574
      %v3576 = vsub.f32 %v3507, %v3566
      %v3577 = vsub.f32 %v3510, %v3569
      %v3578 = vsub.f32 %v3558, %v3572
      %v3579 = vsub.f32 %v3561, %v3575
      %v3580 = vmul.f32 %v3576, 1.442695
      %v3581 = vpow.pop %v3580
      %v3582 = vmul.f32 %v3577, 1.442695
      %v3583 = vpow.pop %v3582
      %v3584 = vmul.f32 %v3578, 1.442695
      %v3585 = vpow.pop %v3584
      %v3586 = vmul.f32 %v3579, 1.442695
      %v3587 = vpow.pop %v3586
      %v3588 = vsel %vm1270, %v3581, 0.0
      %3589 = vadd.xlane.f32.xlu0 %v3588
      %v3590 = vpop.xlane.xlu0 %3589
      %v3591 = vsel %vm1270, %v3583, 0.0
      %3592 = vadd.xlane.f32.xlu0 %v3591
      %v3593 = vpop.xlane.xlu0 %3592
      %v3594 = vsel %vm1270, %v3585, 0.0
      %3595 = vadd.xlane.f32.xlu0 %v3594
      %v3596 = vpop.xlane.xlu0 %3595
      %v3597 = vsel %vm1270, %v3587, 0.0
      %3598 = vadd.xlane.f32.xlu0 %v3597
      %v3599 = vpop.xlane.xlu0 %3598
      %v3600 = vrcp.pop %v3590
      %v3601 = vrcp.pop %v3593
      %v3602 = vrcp.pop %v3596
      %v3603 = vrcp.pop %v3599
      %v3604 = vmul.f32 %v3581, %v3600
      %v3605 = vmul.f32 %v3583, %v3601
      %v3606 = vmul.f32 %v3585, %v3602
      %v3607 = vmul.f32 %v3587, %v3603
      %v3608 = vpack.c.bf16 %v3605, %v3604
      %v3609 = vpack.c.bf16 %v3607, %v3606
      %3610 = vrot.lane.b32.xlu0 %v1137, 32
      %v3611 = vpop.permute.xlu0 %3610
      %v3614 = vsel %vm1270, %v3608, 0
      %3616 = vmatprep.subr.bf16.mxu0 0
      %3617 = vmatpush1.bf16.msra.mxu0 0
      %3618 = vmatprep.subr.bf16.mxu0 0
      %3619 = vmatpush1.bf16.msra.mxu0 0
      %3620 = vmatprep.subr.bf16.mxu0 0
      %3621 = vmatpush1.bf16.msra.mxu0 0
      %3622 = vmatprep.subr.bf16.mxu0 0
      %3623 = vmatpush1.bf16.msra.mxu0 0
      %3624 = vmatprep.subr.bf16.mxu0 0
      %3625 = vmatpush1.bf16.msra.mxu0 0
      %3626 = vmatprep.subr.bf16.mxu0 0
      %3627 = vmatpush1.bf16.msra.mxu0 0
      %3628 = vmatprep.subr.bf16.mxu0 0
      %3629 = vmatpush1.bf16.msra.mxu0 0
      %3630 = vmatprep.subr.bf16.mxu0 0
      %3631 = vmatpush1.bf16.msra.mxu0 %v3611
      %3632 = vmatprep.subr.bf16.mxu0 0
      %3633 = vmatpush2.bf16.msra.mxu0 0
      %3634 = vmatprep.subr.bf16.mxu0 0
      %3635 = vmatpush2.bf16.msra.mxu0 0
      %3636 = vmatprep.subr.bf16.mxu0 0
      %3637 = vmatpush2.bf16.msra.mxu0 0
      %3638 = vmatprep.subr.bf16.mxu0 0
      %3639 = vmatpush2.bf16.msra.mxu0 0
      %3640 = vmatprep.subr.bf16.mxu0 0
      %3641 = vmatpush2.bf16.msra.mxu0 0
      %3642 = vmatprep.subr.bf16.mxu0 0
      %3643 = vmatpush2.bf16.msra.mxu0 0
      %3644 = vmatprep.subr.bf16.mxu0 0
      %3645 = vmatpush2.bf16.msra.mxu0 0
      %3646 = vmatprep.subr.bf16.mxu0 0
      %3647 = vmatpush2.bf16.msra.mxu0 0
      %3648 = vmatprep.mubr.bf16.mxu0 0
      %3649 = vmatmul.mubr.bf16.gmra.mxu0 %v3614
      %v3650 = vpop.f32.mrf.mxu0
      %v3651 = vadd.f32 0.0, %v3650
      %v3652 = vpop.f32.mrf.mxu0
      %v3653 = vpop.f32.mrf.mxu0
      %v3654 = vadd.f32 0.0, %v3653
      %v3655 = vpop.f32.mrf.mxu0
      %3656 = vdwg.mxu0
      %3657 = vrot.lane.b32.xlu0 %v1139, 32
      %v3658 = vpop.permute.xlu0 %3657
      %v3661 = vsel %vm1270, %v3609, 0
      %3663 = vmatprep.subr.bf16.mxu0 0
      %3664 = vmatpush1.bf16.msra.mxu0 0
      %3665 = vmatprep.subr.bf16.mxu0 0
      %3666 = vmatpush1.bf16.msra.mxu0 0
      %3667 = vmatprep.subr.bf16.mxu0 0
      %3668 = vmatpush1.bf16.msra.mxu0 0
      %3669 = vmatprep.subr.bf16.mxu0 0
      %3670 = vmatpush1.bf16.msra.mxu0 0
      %3671 = vmatprep.subr.bf16.mxu0 0
      %3672 = vmatpush1.bf16.msra.mxu0 0
      %3673 = vmatprep.subr.bf16.mxu0 0
      %3674 = vmatpush1.bf16.msra.mxu0 0
      %3675 = vmatprep.subr.bf16.mxu0 0
      %3676 = vmatpush1.bf16.msra.mxu0 0
      %3677 = vmatprep.subr.bf16.mxu0 0
      %3678 = vmatpush1.bf16.msra.mxu0 %v3658
      %3679 = vmatprep.subr.bf16.mxu0 0
      %3680 = vmatpush2.bf16.msra.mxu0 0
      %3681 = vmatprep.subr.bf16.mxu0 0
      %3682 = vmatpush2.bf16.msra.mxu0 0
      %3683 = vmatprep.subr.bf16.mxu0 0
      %3684 = vmatpush2.bf16.msra.mxu0 0
      %3685 = vmatprep.subr.bf16.mxu0 0
      %3686 = vmatpush2.bf16.msra.mxu0 0
      %3687 = vmatprep.subr.bf16.mxu0 0
      %3688 = vmatpush2.bf16.msra.mxu0 0
      %3689 = vmatprep.subr.bf16.mxu0 0
      %3690 = vmatpush2.bf16.msra.mxu0 0
      %3691 = vmatprep.subr.bf16.mxu0 0
      %3692 = vmatpush2.bf16.msra.mxu0 0
      %3693 = vmatprep.subr.bf16.mxu0 0
      %3694 = vmatpush2.bf16.msra.mxu0 0
      %3695 = vmatprep.mubr.bf16.mxu0 0
      %3696 = vmatmul.mubr.bf16.gmra.mxu0 %v3661
      %v3697 = vpop.f32.mrf.mxu0
      %v3698 = vadd.f32 0.0, %v3697
      %v3699 = vpop.f32.mrf.mxu0
      %v3700 = vpop.f32.mrf.mxu0
      %v3701 = vadd.f32 0.0, %v3700
      %v3702 = vpop.f32.mrf.mxu0
      %3703 = vdwg.mxu0
      %v3704 = vpack.c.bf16 %v3654, %v3651
      %v3705 = vpack.c.bf16 %v3701, %v3698
      %v3710 = vunpack.c.l.b16 %v1171
      %v3711 = vunpack.c.h.b16 %v1171
      %v3712 = vunpack.c.l.b16 %v1172
      %v3713 = vunpack.c.h.b16 %v1172
      %v3714 = vunpack.c.l.b16 %v1173
      %v3715 = vunpack.c.h.b16 %v1173
      %v3716 = vunpack.c.l.b16 %v1174
      %v3717 = vunpack.c.h.b16 %v1174
      %v3718 = vpack.c.b16 %v3712, %v3710
      %v3719 = vpack.c.b16 %v3713, %v3711
      %v3720 = vpack.c.b16 %v3716, %v3714
      %v3721 = vpack.c.b16 %v3717, %v3715
      %v3727 = vsel %vm1175, %v3704, 0
      %v3730 = vsel %vm1175, %v3705, 0
      %3732 = vmatprep.subr.bf16.mxu0 0
      %3733 = vmatpush1.bf16.msra.mxu0 0
      %3734 = vmatprep.subr.bf16.mxu0 0
      %3735 = vmatpush1.bf16.msra.mxu0 0
      %3736 = vmatprep.subr.bf16.mxu0 0
      %3737 = vmatpush1.bf16.msra.mxu0 0
      %3738 = vmatprep.subr.bf16.mxu0 0
      %3739 = vmatpush1.bf16.msra.mxu0 0
      %3740 = vmatprep.subr.bf16.mxu0 0
      %3741 = vmatpush1.bf16.msra.mxu0 0
      %3742 = vmatprep.subr.bf16.mxu0 0
      %3743 = vmatpush1.bf16.msra.mxu0 0
      %3744 = vmatprep.subr.bf16.mxu0 %v3721
      %3745 = vmatpush1.bf16.msra.mxu0 %v3720
      %3746 = vmatprep.subr.bf16.mxu0 %v3719
      %3747 = vmatpush1.bf16.msra.mxu0 %v3718
      %3748 = vmatprep.subr.bf16.mxu0 0
      %3749 = vmatpush2.bf16.msra.mxu0 0
      %3750 = vmatprep.subr.bf16.mxu0 0
      %3751 = vmatpush2.bf16.msra.mxu0 0
      %3752 = vmatprep.subr.bf16.mxu0 0
      %3753 = vmatpush2.bf16.msra.mxu0 0
      %3754 = vmatprep.subr.bf16.mxu0 0
      %3755 = vmatpush2.bf16.msra.mxu0 0
      %3756 = vmatprep.subr.bf16.mxu0 0
      %3757 = vmatpush2.bf16.msra.mxu0 0
      %3758 = vmatprep.subr.bf16.mxu0 0
      %3759 = vmatpush2.bf16.msra.mxu0 0
      %3760 = vmatprep.subr.bf16.mxu0 0
      %3761 = vmatpush2.bf16.msra.mxu0 0
      %3762 = vmatprep.subr.bf16.mxu0 0
      %3763 = vmatpush2.bf16.msra.mxu0 0
      %3764 = vmatprep.mubr.bf16.mxu0 0
      %3765 = vmatmul.mubr.bf16.gmra.mxu0 %v3727
      %v3766 = vpop.f32.mrf.mxu0
      %v3767 = vadd.f32 0.0, %v3766
      %v3768 = vpop.f32.mrf.mxu0
      %v3769 = vadd.f32 0.0, %v3768
      %v3770 = vpop.f32.mrf.mxu0
      %v3771 = vadd.f32 0.0, %v3770
      %v3772 = vpop.f32.mrf.mxu0
      %v3773 = vadd.f32 0.0, %v3772
      %3774 = vmatprep.mubr.bf16.mxu0 0
      %3775 = vmatmul.mubr.bf16.gmra.mxu0 %v3730
      %v3776 = vpop.f32.mrf.mxu0
      %v3777 = vadd.f32 0.0, %v3776
      %v3778 = vpop.f32.mrf.mxu0
      %v3779 = vadd.f32 0.0, %v3778
      %v3780 = vpop.f32.mrf.mxu0
      %v3781 = vadd.f32 0.0, %v3780
      %v3782 = vpop.f32.mrf.mxu0
      %v3783 = vadd.f32 0.0, %v3782
      %3784 = vdwg.mxu0
      %v3785 = vadd.f32 %v3454, %v3767
      %v3786 = vadd.f32 %v3455, %v3769
      %v3787 = vadd.f32 %v3456, %v3771
      %v3788 = vadd.f32 %v3457, %v3773
      %v3789 = vadd.f32 %v3458, %v3777
      %v3790 = vadd.f32 %v3459, %v3779
      %v3791 = vadd.f32 %v3460, %v3781
      %v3792 = vadd.f32 %v3461, %v3783
      %v3793 = vadd.f32 %v236, %v3785
      %v3794 = vadd.f32 %v237, %v3786
      %v3795 = vadd.f32 %v238, %v3787
      %v3796 = vadd.f32 %v239, %v3788
      %v3797 = vadd.f32 %v240, %v3789
      %v3798 = vadd.f32 %v241, %v3790
      %v3799 = vadd.f32 %v242, %v3791
      %v3800 = vadd.f32 %v243, %v3792
      %s3801 = scalar_lea.vmem [#allocation13], %s244
      %v3802 = vld [vmem:[%s3801] sm:$0x3]
      %v3804 = vlaneseq
      %v3805 = vshrl.u32 %v3804, 7
      %v3806 = vsub.s32 0, %v3805
      %v3807 = vrot.slane %v3802, %v3806
      %v3808 = vlaneseq
      %v3809 = vshrl.u32 %v3808, 7
      %v3810 = vsub.s32 1, %v3809
      %v3811 = vrot.slane %v3802, %v3810
      %v3814 = vadd.f32 %v3793, %v3807
      %v3815 = vadd.f32 %v3794, %v3811
      %v3816 = vadd.f32 %v3795, %v3807
      %v3817 = vadd.f32 %v3796, %v3811
      %v3818 = vadd.f32 %v3797, %v3807
      %v3819 = vadd.f32 %v3798, %v3811
      %v3820 = vadd.f32 %v3799, %v3807
      %v3821 = vadd.f32 %v3800, %v3811
      %s3822 = scalar_lea.vmem [#allocation14], %s244
      %v3823 = vld [vmem:[%s3822] sm:$0x3]
      %s3824 = scalar_lea.vmem [#allocation16], %s244
      %v3825 = vld [vmem:[%s3824] sm:$0x3]
      %v3826 = vadd.f32 %v3814, %v3815
      %3827 = vadd.xlane.f32.xlu0 %v3826
      %v3828 = vpop.xlane.xlu0 %3827
      %v3829 = vadd.f32 %v3816, %v3817
      %3830 = vadd.xlane.f32.xlu0 %v3829
      %v3831 = vpop.xlane.xlu0 %3830
      %v3832 = vadd.f32 %v3818, %v3819
      %3833 = vadd.xlane.f32.xlu0 %v3832
      %v3834 = vpop.xlane.xlu0 %3833
      %v3835 = vadd.f32 %v3820, %v3821
      %3836 = vadd.xlane.f32.xlu0 %v3835
      %v3837 = vpop.xlane.xlu0 %3836
      %v3838 = vmul.f32 %v3828, %v261
      %v3839 = vmul.f32 %v3831, %v261
      %v3840 = vmul.f32 %v3834, %v261
      %v3841 = vmul.f32 %v3837, %v261
      %v3842 = vsub.f32 %v3814, %v3838
      %v3843 = vsub.f32 %v3815, %v3838
      %v3844 = vsub.f32 %v3816, %v3839
      %v3845 = vsub.f32 %v3817, %v3839
      %v3846 = vsub.f32 %v3818, %v3840
      %v3847 = vsub.f32 %v3819, %v3840
      %v3848 = vsub.f32 %v3820, %v3841
      %v3849 = vsub.f32 %v3821, %v3841
      %v3850 = vmul.f32 %v3842, %v3842
      %v3851 = vmul.f32 %v3843, %v3843
      %v3852 = vmul.f32 %v3844, %v3844
      %v3853 = vmul.f32 %v3845, %v3845
      %v3854 = vmul.f32 %v3846, %v3846
      %v3855 = vmul.f32 %v3847, %v3847
      %v3856 = vmul.f32 %v3848, %v3848
      %v3857 = vmul.f32 %v3849, %v3849
      %v3858 = vadd.f32 %v3850, %v3851
      %3859 = vadd.xlane.f32.xlu0 %v3858
      %v3860 = vpop.xlane.xlu0 %3859
      %v3861 = vadd.f32 %v3852, %v3853
      %3862 = vadd.xlane.f32.xlu0 %v3861
      %v3863 = vpop.xlane.xlu0 %3862
      %v3864 = vadd.f32 %v3854, %v3855
      %3865 = vadd.xlane.f32.xlu0 %v3864
      %v3866 = vpop.xlane.xlu0 %3865
      %v3867 = vadd.f32 %v3856, %v3857
      %3868 = vadd.xlane.f32.xlu0 %v3867
      %v3869 = vpop.xlane.xlu0 %3868
      %v3870 = vmul.f32 %v3860, %v261
      %v3871 = vmul.f32 %v3863, %v261
      %v3872 = vmul.f32 %v3866, %v261
      %v3873 = vmul.f32 %v3869, %v261
      %v3874 = vadd.f32 %v3870, 1e-06
      %v3875 = vadd.f32 %v3871, 1e-06
      %v3876 = vadd.f32 %v3872, 1e-06
      %v3877 = vadd.f32 %v3873, 1e-06
      %v3878 = vrsqrt.pop %v3874
      %v3879 = vrsqrt.pop %v3875
      %v3880 = vrsqrt.pop %v3876
      %v3881 = vrsqrt.pop %v3877
      %v3882 = vmul.f32 %v3842, %v3878
      %v3883 = vmul.f32 %v3843, %v3878
      %v3884 = vmul.f32 %v3844, %v3879
      %v3885 = vmul.f32 %v3845, %v3879
      %v3886 = vmul.f32 %v3846, %v3880
      %v3887 = vmul.f32 %v3847, %v3880
      %v3888 = vmul.f32 %v3848, %v3881
      %v3889 = vmul.f32 %v3849, %v3881
      %v3891 = vlaneseq
      %v3892 = vshrl.u32 %v3891, 7
      %v3893 = vsub.s32 0, %v3892
      %v3894 = vrot.slane %v3823, %v3893
      %v3895 = vlaneseq
      %v3896 = vshrl.u32 %v3895, 7
      %v3897 = vsub.s32 1, %v3896
      %v3898 = vrot.slane %v3823, %v3897
      %v3901 = vmul.f32 %v3882, %v3894
      %v3902 = vmul.f32 %v3883, %v3898
      %v3903 = vmul.f32 %v3884, %v3894
      %v3904 = vmul.f32 %v3885, %v3898
      %v3905 = vmul.f32 %v3886, %v3894
      %v3906 = vmul.f32 %v3887, %v3898
      %v3907 = vmul.f32 %v3888, %v3894
      %v3908 = vmul.f32 %v3889, %v3898
      %v3910 = vlaneseq
      %v3911 = vshrl.u32 %v3910, 7
      %v3912 = vsub.s32 0, %v3911
      %v3913 = vrot.slane %v3825, %v3912
      %v3914 = vlaneseq
      %v3915 = vshrl.u32 %v3914, 7
      %v3916 = vsub.s32 1, %v3915
      %v3917 = vrot.slane %v3825, %v3916
      %v3920 = vadd.f32 %v3901, %v3913
      %v3921 = vadd.f32 %v3902, %v3917
      %v3922 = vadd.f32 %v3903, %v3913
      %v3923 = vadd.f32 %v3904, %v3917
      %v3924 = vadd.f32 %v3905, %v3913
      %v3925 = vadd.f32 %v3906, %v3917
      %v3926 = vadd.f32 %v3907, %v3913
      %v3927 = vadd.f32 %v3908, %v3917
      %v3928 = vpack.c.bf16 %v3922, %v3920
      %v3929 = vpack.c.bf16 %v3923, %v3921
      %v3930 = vpack.c.bf16 %v3926, %v3924
      %v3931 = vpack.c.bf16 %v3927, %v3925
      %s3932 = smul.u32 %s231, 256
      %s3933 = smul.addr %s3932, 4
      %s3934 = scalar_lea.vmem [#allocation17], %s3933
      %v3935 = vld [vmem:[%s3934] sm:$0xff]
      %v3936 = vld [vmem:[%s3934 + $0x8] sm:$0xff]
      %v3937 = vld [vmem:[%s3934 + $0x10] sm:$0xff]
      %v3938 = vld [vmem:[%s3934 + $0x18] sm:$0xff]
      %v3939 = vld [vmem:[%s3934 + $0x20] sm:$0xff]
      %v3940 = vld [vmem:[%s3934 + $0x28] sm:$0xff]
      %v3941 = vld [vmem:[%s3934 + $0x30] sm:$0xff]
      %v3942 = vld [vmem:[%s3934 + $0x38] sm:$0xff]
      %v3943 = vld [vmem:[%s3934 + $0x40] sm:$0xff]
      %v3944 = vld [vmem:[%s3934 + $0x48] sm:$0xff]
      %v3945 = vld [vmem:[%s3934 + $0x50] sm:$0xff]
      %v3946 = vld [vmem:[%s3934 + $0x58] sm:$0xff]
      %v3947 = vld [vmem:[%s3934 + $0x60] sm:$0xff]
      %v3948 = vld [vmem:[%s3934 + $0x68] sm:$0xff]
      %v3949 = vld [vmem:[%s3934 + $0x70] sm:$0xff]
      %v3950 = vld [vmem:[%s3934 + $0x78] sm:$0xff]
      %v3951 = vld [vmem:[%s3934 + $0x80] sm:$0xff]
      %v3952 = vld [vmem:[%s3934 + $0x88] sm:$0xff]
      %v3953 = vld [vmem:[%s3934 + $0x90] sm:$0xff]
      %v3954 = vld [vmem:[%s3934 + $0x98] sm:$0xff]
      %v3955 = vld [vmem:[%s3934 + $0xa0] sm:$0xff]
      %v3956 = vld [vmem:[%s3934 + $0xa8] sm:$0xff]
      %v3957 = vld [vmem:[%s3934 + $0xb0] sm:$0xff]
      %v3958 = vld [vmem:[%s3934 + $0xb8] sm:$0xff]
      %v3959 = vld [vmem:[%s3934 + $0xc0] sm:$0xff]
      %v3960 = vld [vmem:[%s3934 + $0xc8] sm:$0xff]
      %v3961 = vld [vmem:[%s3934 + $0xd0] sm:$0xff]
      %v3962 = vld [vmem:[%s3934 + $0xd8] sm:$0xff]
      %v3963 = vld [vmem:[%s3934 + $0xe0] sm:$0xff]
      %v3964 = vld [vmem:[%s3934 + $0xe8] sm:$0xff]
      %v3965 = vld [vmem:[%s3934 + $0xf0] sm:$0xff]
      %v3966 = vld [vmem:[%s3934 + $0xf8] sm:$0xff]
      %v3967 = vld [vmem:[%s3934 + $0x100] sm:$0xff]
      %v3968 = vld [vmem:[%s3934 + $0x108] sm:$0xff]
      %v3969 = vld [vmem:[%s3934 + $0x110] sm:$0xff]
      %v3970 = vld [vmem:[%s3934 + $0x118] sm:$0xff]
      %v3971 = vld [vmem:[%s3934 + $0x120] sm:$0xff]
      %v3972 = vld [vmem:[%s3934 + $0x128] sm:$0xff]
      %v3973 = vld [vmem:[%s3934 + $0x130] sm:$0xff]
      %v3974 = vld [vmem:[%s3934 + $0x138] sm:$0xff]
      %v3975 = vld [vmem:[%s3934 + $0x140] sm:$0xff]
      %v3976 = vld [vmem:[%s3934 + $0x148] sm:$0xff]
      %v3977 = vld [vmem:[%s3934 + $0x150] sm:$0xff]
      %v3978 = vld [vmem:[%s3934 + $0x158] sm:$0xff]
      %v3979 = vld [vmem:[%s3934 + $0x160] sm:$0xff]
      %v3980 = vld [vmem:[%s3934 + $0x168] sm:$0xff]
      %v3981 = vld [vmem:[%s3934 + $0x170] sm:$0xff]
      %v3982 = vld [vmem:[%s3934 + $0x178] sm:$0xff]
      %v3983 = vld [vmem:[%s3934 + $0x180] sm:$0xff]
      %v3984 = vld [vmem:[%s3934 + $0x188] sm:$0xff]
      %v3985 = vld [vmem:[%s3934 + $0x190] sm:$0xff]
      %v3986 = vld [vmem:[%s3934 + $0x198] sm:$0xff]
      %v3987 = vld [vmem:[%s3934 + $0x1a0] sm:$0xff]
      %v3988 = vld [vmem:[%s3934 + $0x1a8] sm:$0xff]
      %v3989 = vld [vmem:[%s3934 + $0x1b0] sm:$0xff]
      %v3990 = vld [vmem:[%s3934 + $0x1b8] sm:$0xff]
      %v3991 = vld [vmem:[%s3934 + $0x1c0] sm:$0xff]
      %v3992 = vld [vmem:[%s3934 + $0x1c8] sm:$0xff]
      %v3993 = vld [vmem:[%s3934 + $0x1d0] sm:$0xff]
      %v3994 = vld [vmem:[%s3934 + $0x1d8] sm:$0xff]
      %v3995 = vld [vmem:[%s3934 + $0x1e0] sm:$0xff]
      %v3996 = vld [vmem:[%s3934 + $0x1e8] sm:$0xff]
      %v3997 = vld [vmem:[%s3934 + $0x1f0] sm:$0xff]
      %v3998 = vld [vmem:[%s3934 + $0x1f8] sm:$0xff]
      %v3999 = vld [vmem:[%s3934 + $0x200] sm:$0xff]
      %v4000 = vld [vmem:[%s3934 + $0x208] sm:$0xff]
      %v4001 = vld [vmem:[%s3934 + $0x210] sm:$0xff]
      %v4002 = vld [vmem:[%s3934 + $0x218] sm:$0xff]
      %v4003 = vld [vmem:[%s3934 + $0x220] sm:$0xff]
      %v4004 = vld [vmem:[%s3934 + $0x228] sm:$0xff]
      %v4005 = vld [vmem:[%s3934 + $0x230] sm:$0xff]
      %v4006 = vld [vmem:[%s3934 + $0x238] sm:$0xff]
      %v4007 = vld [vmem:[%s3934 + $0x240] sm:$0xff]
      %v4008 = vld [vmem:[%s3934 + $0x248] sm:$0xff]
      %v4009 = vld [vmem:[%s3934 + $0x250] sm:$0xff]
      %v4010 = vld [vmem:[%s3934 + $0x258] sm:$0xff]
      %v4011 = vld [vmem:[%s3934 + $0x260] sm:$0xff]
      %v4012 = vld [vmem:[%s3934 + $0x268] sm:$0xff]
      %v4013 = vld [vmem:[%s3934 + $0x270] sm:$0xff]
      %v4014 = vld [vmem:[%s3934 + $0x278] sm:$0xff]
      %v4015 = vld [vmem:[%s3934 + $0x280] sm:$0xff]
      %v4016 = vld [vmem:[%s3934 + $0x288] sm:$0xff]
      %v4017 = vld [vmem:[%s3934 + $0x290] sm:$0xff]
      %v4018 = vld [vmem:[%s3934 + $0x298] sm:$0xff]
      %v4019 = vld [vmem:[%s3934 + $0x2a0] sm:$0xff]
      %v4020 = vld [vmem:[%s3934 + $0x2a8] sm:$0xff]
      %v4021 = vld [vmem:[%s3934 + $0x2b0] sm:$0xff]
      %v4022 = vld [vmem:[%s3934 + $0x2b8] sm:$0xff]
      %v4023 = vld [vmem:[%s3934 + $0x2c0] sm:$0xff]
      %v4024 = vld [vmem:[%s3934 + $0x2c8] sm:$0xff]
      %v4025 = vld [vmem:[%s3934 + $0x2d0] sm:$0xff]
      %v4026 = vld [vmem:[%s3934 + $0x2d8] sm:$0xff]
      %v4027 = vld [vmem:[%s3934 + $0x2e0] sm:$0xff]
      %v4028 = vld [vmem:[%s3934 + $0x2e8] sm:$0xff]
      %v4029 = vld [vmem:[%s3934 + $0x2f0] sm:$0xff]
      %v4030 = vld [vmem:[%s3934 + $0x2f8] sm:$0xff]
      %v4031 = vld [vmem:[%s3934 + $0x300] sm:$0xff]
      %v4032 = vld [vmem:[%s3934 + $0x308] sm:$0xff]
      %v4033 = vld [vmem:[%s3934 + $0x310] sm:$0xff]
      %v4034 = vld [vmem:[%s3934 + $0x318] sm:$0xff]
      %v4035 = vld [vmem:[%s3934 + $0x320] sm:$0xff]
      %v4036 = vld [vmem:[%s3934 + $0x328] sm:$0xff]
      %v4037 = vld [vmem:[%s3934 + $0x330] sm:$0xff]
      %v4038 = vld [vmem:[%s3934 + $0x338] sm:$0xff]
      %v4039 = vld [vmem:[%s3934 + $0x340] sm:$0xff]
      %v4040 = vld [vmem:[%s3934 + $0x348] sm:$0xff]
      %v4041 = vld [vmem:[%s3934 + $0x350] sm:$0xff]
      %v4042 = vld [vmem:[%s3934 + $0x358] sm:$0xff]
      %v4043 = vld [vmem:[%s3934 + $0x360] sm:$0xff]
      %v4044 = vld [vmem:[%s3934 + $0x368] sm:$0xff]
      %v4045 = vld [vmem:[%s3934 + $0x370] sm:$0xff]
      %v4046 = vld [vmem:[%s3934 + $0x378] sm:$0xff]
      %v4047 = vld [vmem:[%s3934 + $0x380] sm:$0xff]
      %v4048 = vld [vmem:[%s3934 + $0x388] sm:$0xff]
      %v4049 = vld [vmem:[%s3934 + $0x390] sm:$0xff]
      %v4050 = vld [vmem:[%s3934 + $0x398] sm:$0xff]
      %v4051 = vld [vmem:[%s3934 + $0x3a0] sm:$0xff]
      %v4052 = vld [vmem:[%s3934 + $0x3a8] sm:$0xff]
      %v4053 = vld [vmem:[%s3934 + $0x3b0] sm:$0xff]
      %v4054 = vld [vmem:[%s3934 + $0x3b8] sm:$0xff]
      %v4055 = vld [vmem:[%s3934 + $0x3c0] sm:$0xff]
      %v4056 = vld [vmem:[%s3934 + $0x3c8] sm:$0xff]
      %v4057 = vld [vmem:[%s3934 + $0x3d0] sm:$0xff]
      %v4058 = vld [vmem:[%s3934 + $0x3d8] sm:$0xff]
      %v4059 = vld [vmem:[%s3934 + $0x3e0] sm:$0xff]
      %v4060 = vld [vmem:[%s3934 + $0x3e8] sm:$0xff]
      %v4061 = vld [vmem:[%s3934 + $0x3f0] sm:$0xff]
      %v4062 = vld [vmem:[%s3934 + $0x3f8] sm:$0xff]
      %s4063 = smul.u32 %s231, 8
      %s4064 = scalar_lea.vmem [#allocation19], %s4063
      %v4065 = vld [vmem:[%s4064] sm:$0xff]
      %v4067 = vlaneseq
      %v4068 = vshrl.u32 %v4067, 7
      %v4069 = vsub.s32 0, %v4068
      %v4070 = vrot.slane %v4065, %v4069
      %v4071 = vlaneseq
      %v4072 = vshrl.u32 %v4071, 7
      %v4073 = vsub.s32 1, %v4072
      %v4074 = vrot.slane %v4065, %v4073
      %v4075 = vlaneseq
      %v4076 = vshrl.u32 %v4075, 7
      %v4077 = vsub.s32 2, %v4076
      %v4078 = vrot.slane %v4065, %v4077
      %v4079 = vlaneseq
      %v4080 = vshrl.u32 %v4079, 7
      %v4081 = vsub.s32 3, %v4080
      %v4082 = vrot.slane %v4065, %v4081
      %v4083 = vlaneseq
      %v4084 = vshrl.u32 %v4083, 7
      %v4085 = vsub.s32 4, %v4084
      %v4086 = vrot.slane %v4065, %v4085
      %v4087 = vlaneseq
      %v4088 = vshrl.u32 %v4087, 7
      %v4089 = vsub.s32 5, %v4088
      %v4090 = vrot.slane %v4065, %v4089
      %v4091 = vlaneseq
      %v4092 = vshrl.u32 %v4091, 7
      %v4093 = vsub.s32 6, %v4092
      %v4094 = vrot.slane %v4065, %v4093
      %v4095 = vlaneseq
      %v4096 = vshrl.u32 %v4095, 7
      %v4097 = vsub.s32 7, %v4096
      %v4098 = vrot.slane %v4065, %v4097
      %v4235 = vunpack.c.l.b16 %v3935
      %v4236 = vunpack.c.h.b16 %v3935
      %v4237 = vunpack.c.l.b16 %v3936
      %v4238 = vunpack.c.h.b16 %v3936
      %v4239 = vunpack.c.l.b16 %v3937
      %v4240 = vunpack.c.h.b16 %v3937
      %v4241 = vunpack.c.l.b16 %v3938
      %v4242 = vunpack.c.h.b16 %v3938
      %v4243 = vunpack.c.l.b16 %v3939
      %v4244 = vunpack.c.h.b16 %v3939
      %v4245 = vunpack.c.l.b16 %v3940
      %v4246 = vunpack.c.h.b16 %v3940
      %v4247 = vunpack.c.l.b16 %v3941
      %v4248 = vunpack.c.h.b16 %v3941
      %v4249 = vunpack.c.l.b16 %v3942
      %v4250 = vunpack.c.h.b16 %v3942
      %v4251 = vunpack.c.l.b16 %v3943
      %v4252 = vunpack.c.h.b16 %v3943
      %v4253 = vunpack.c.l.b16 %v3944
      %v4254 = vunpack.c.h.b16 %v3944
      %v4255 = vunpack.c.l.b16 %v3945
      %v4256 = vunpack.c.h.b16 %v3945
      %v4257 = vunpack.c.l.b16 %v3946
      %v4258 = vunpack.c.h.b16 %v3946
      %v4259 = vunpack.c.l.b16 %v3947
      %v4260 = vunpack.c.h.b16 %v3947
      %v4261 = vunpack.c.l.b16 %v3948
      %v4262 = vunpack.c.h.b16 %v3948
      %v4263 = vunpack.c.l.b16 %v3949
      %v4264 = vunpack.c.h.b16 %v3949
      %v4265 = vunpack.c.l.b16 %v3950
      %v4266 = vunpack.c.h.b16 %v3950
      %v4267 = vunpack.c.l.b16 %v3951
      %v4268 = vunpack.c.h.b16 %v3951
      %v4269 = vunpack.c.l.b16 %v3952
      %v4270 = vunpack.c.h.b16 %v3952
      %v4271 = vunpack.c.l.b16 %v3953
      %v4272 = vunpack.c.h.b16 %v3953
      %v4273 = vunpack.c.l.b16 %v3954
      %v4274 = vunpack.c.h.b16 %v3954
      %v4275 = vunpack.c.l.b16 %v3955
      %v4276 = vunpack.c.h.b16 %v3955
      %v4277 = vunpack.c.l.b16 %v3956
      %v4278 = vunpack.c.h.b16 %v3956
      %v4279 = vunpack.c.l.b16 %v3957
      %v4280 = vunpack.c.h.b16 %v3957
      %v4281 = vunpack.c.l.b16 %v3958
      %v4282 = vunpack.c.h.b16 %v3958
      %v4283 = vunpack.c.l.b16 %v3959
      %v4284 = vunpack.c.h.b16 %v3959
      %v4285 = vunpack.c.l.b16 %v3960
      %v4286 = vunpack.c.h.b16 %v3960
      %v4287 = vunpack.c.l.b16 %v3961
      %v4288 = vunpack.c.h.b16 %v3961
      %v4289 = vunpack.c.l.b16 %v3962
      %v4290 = vunpack.c.h.b16 %v3962
      %v4291 = vunpack.c.l.b16 %v3963
      %v4292 = vunpack.c.h.b16 %v3963
      %v4293 = vunpack.c.l.b16 %v3964
      %v4294 = vunpack.c.h.b16 %v3964
      %v4295 = vunpack.c.l.b16 %v3965
      %v4296 = vunpack.c.h.b16 %v3965
      %v4297 = vunpack.c.l.b16 %v3966
      %v4298 = vunpack.c.h.b16 %v3966
      %v4299 = vunpack.c.l.b16 %v3967
      %v4300 = vunpack.c.h.b16 %v3967
      %v4301 = vunpack.c.l.b16 %v3968
      %v4302 = vunpack.c.h.b16 %v3968
      %v4303 = vunpack.c.l.b16 %v3969
      %v4304 = vunpack.c.h.b16 %v3969
      %v4305 = vunpack.c.l.b16 %v3970
      %v4306 = vunpack.c.h.b16 %v3970
      %v4307 = vunpack.c.l.b16 %v3971
      %v4308 = vunpack.c.h.b16 %v3971
      %v4309 = vunpack.c.l.b16 %v3972
      %v4310 = vunpack.c.h.b16 %v3972
      %v4311 = vunpack.c.l.b16 %v3973
      %v4312 = vunpack.c.h.b16 %v3973
      %v4313 = vunpack.c.l.b16 %v3974
      %v4314 = vunpack.c.h.b16 %v3974
      %v4315 = vunpack.c.l.b16 %v3975
      %v4316 = vunpack.c.h.b16 %v3975
      %v4317 = vunpack.c.l.b16 %v3976
      %v4318 = vunpack.c.h.b16 %v3976
      %v4319 = vunpack.c.l.b16 %v3977
      %v4320 = vunpack.c.h.b16 %v3977
      %v4321 = vunpack.c.l.b16 %v3978
      %v4322 = vunpack.c.h.b16 %v3978
      %v4323 = vunpack.c.l.b16 %v3979
      %v4324 = vunpack.c.h.b16 %v3979
      %v4325 = vunpack.c.l.b16 %v3980
      %v4326 = vunpack.c.h.b16 %v3980
      %v4327 = vunpack.c.l.b16 %v3981
      %v4328 = vunpack.c.h.b16 %v3981
      %v4329 = vunpack.c.l.b16 %v3982
      %v4330 = vunpack.c.h.b16 %v3982
      %v4331 = vunpack.c.l.b16 %v3983
      %v4332 = vunpack.c.h.b16 %v3983
      %v4333 = vunpack.c.l.b16 %v3984
      %v4334 = vunpack.c.h.b16 %v3984
      %v4335 = vunpack.c.l.b16 %v3985
      %v4336 = vunpack.c.h.b16 %v3985
      %v4337 = vunpack.c.l.b16 %v3986
      %v4338 = vunpack.c.h.b16 %v3986
      %v4339 = vunpack.c.l.b16 %v3987
      %v4340 = vunpack.c.h.b16 %v3987
      %v4341 = vunpack.c.l.b16 %v3988
      %v4342 = vunpack.c.h.b16 %v3988
      %v4343 = vunpack.c.l.b16 %v3989
      %v4344 = vunpack.c.h.b16 %v3989
      %v4345 = vunpack.c.l.b16 %v3990
      %v4346 = vunpack.c.h.b16 %v3990
      %v4347 = vunpack.c.l.b16 %v3991
      %v4348 = vunpack.c.h.b16 %v3991
      %v4349 = vunpack.c.l.b16 %v3992
      %v4350 = vunpack.c.h.b16 %v3992
      %v4351 = vunpack.c.l.b16 %v3993
      %v4352 = vunpack.c.h.b16 %v3993
      %v4353 = vunpack.c.l.b16 %v3994
      %v4354 = vunpack.c.h.b16 %v3994
      %v4355 = vunpack.c.l.b16 %v3995
      %v4356 = vunpack.c.h.b16 %v3995
      %v4357 = vunpack.c.l.b16 %v3996
      %v4358 = vunpack.c.h.b16 %v3996
      %v4359 = vunpack.c.l.b16 %v3997
      %v4360 = vunpack.c.h.b16 %v3997
      %v4361 = vunpack.c.l.b16 %v3998
      %v4362 = vunpack.c.h.b16 %v3998
      %v4363 = vunpack.c.l.b16 %v3999
      %v4364 = vunpack.c.h.b16 %v3999
      %v4365 = vunpack.c.l.b16 %v4000
      %v4366 = vunpack.c.h.b16 %v4000
      %v4367 = vunpack.c.l.b16 %v4001
      %v4368 = vunpack.c.h.b16 %v4001
      %v4369 = vunpack.c.l.b16 %v4002
      %v4370 = vunpack.c.h.b16 %v4002
      %v4371 = vunpack.c.l.b16 %v4003
      %v4372 = vunpack.c.h.b16 %v4003
      %v4373 = vunpack.c.l.b16 %v4004
      %v4374 = vunpack.c.h.b16 %v4004
      %v4375 = vunpack.c.l.b16 %v4005
      %v4376 = vunpack.c.h.b16 %v4005
      %v4377 = vunpack.c.l.b16 %v4006
      %v4378 = vunpack.c.h.b16 %v4006
      %v4379 = vunpack.c.l.b16 %v4007
      %v4380 = vunpack.c.h.b16 %v4007
      %v4381 = vunpack.c.l.b16 %v4008
      %v4382 = vunpack.c.h.b16 %v4008
      %v4383 = vunpack.c.l.b16 %v4009
      %v4384 = vunpack.c.h.b16 %v4009
      %v4385 = vunpack.c.l.b16 %v4010
      %v4386 = vunpack.c.h.b16 %v4010
      %v4387 = vunpack.c.l.b16 %v4011
      %v4388 = vunpack.c.h.b16 %v4011
      %v4389 = vunpack.c.l.b16 %v4012
      %v4390 = vunpack.c.h.b16 %v4012
      %v4391 = vunpack.c.l.b16 %v4013
      %v4392 = vunpack.c.h.b16 %v4013
      %v4393 = vunpack.c.l.b16 %v4014
      %v4394 = vunpack.c.h.b16 %v4014
      %v4395 = vunpack.c.l.b16 %v4015
      %v4396 = vunpack.c.h.b16 %v4015
      %v4397 = vunpack.c.l.b16 %v4016
      %v4398 = vunpack.c.h.b16 %v4016
      %v4399 = vunpack.c.l.b16 %v4017
      %v4400 = vunpack.c.h.b16 %v4017
      %v4401 = vunpack.c.l.b16 %v4018
      %v4402 = vunpack.c.h.b16 %v4018
      %v4403 = vunpack.c.l.b16 %v4019
      %v4404 = vunpack.c.h.b16 %v4019
      %v4405 = vunpack.c.l.b16 %v4020
      %v4406 = vunpack.c.h.b16 %v4020
      %v4407 = vunpack.c.l.b16 %v4021
      %v4408 = vunpack.c.h.b16 %v4021
      %v4409 = vunpack.c.l.b16 %v4022
      %v4410 = vunpack.c.h.b16 %v4022
      %v4411 = vunpack.c.l.b16 %v4023
      %v4412 = vunpack.c.h.b16 %v4023
      %v4413 = vunpack.c.l.b16 %v4024
      %v4414 = vunpack.c.h.b16 %v4024
      %v4415 = vunpack.c.l.b16 %v4025
      %v4416 = vunpack.c.h.b16 %v4025
      %v4417 = vunpack.c.l.b16 %v4026
      %v4418 = vunpack.c.h.b16 %v4026
      %v4419 = vunpack.c.l.b16 %v4027
      %v4420 = vunpack.c.h.b16 %v4027
      %v4421 = vunpack.c.l.b16 %v4028
      %v4422 = vunpack.c.h.b16 %v4028
      %v4423 = vunpack.c.l.b16 %v4029
      %v4424 = vunpack.c.h.b16 %v4029
      %v4425 = vunpack.c.l.b16 %v4030
      %v4426 = vunpack.c.h.b16 %v4030
      %v4427 = vunpack.c.l.b16 %v4031
      %v4428 = vunpack.c.h.b16 %v4031
      %v4429 = vunpack.c.l.b16 %v4032
      %v4430 = vunpack.c.h.b16 %v4032
      %v4431 = vunpack.c.l.b16 %v4033
      %v4432 = vunpack.c.h.b16 %v4033
      %v4433 = vunpack.c.l.b16 %v4034
      %v4434 = vunpack.c.h.b16 %v4034
      %v4435 = vunpack.c.l.b16 %v4035
      %v4436 = vunpack.c.h.b16 %v4035
      %v4437 = vunpack.c.l.b16 %v4036
      %v4438 = vunpack.c.h.b16 %v4036
      %v4439 = vunpack.c.l.b16 %v4037
      %v4440 = vunpack.c.h.b16 %v4037
      %v4441 = vunpack.c.l.b16 %v4038
      %v4442 = vunpack.c.h.b16 %v4038
      %v4443 = vunpack.c.l.b16 %v4039
      %v4444 = vunpack.c.h.b16 %v4039
      %v4445 = vunpack.c.l.b16 %v4040
      %v4446 = vunpack.c.h.b16 %v4040
      %v4447 = vunpack.c.l.b16 %v4041
      %v4448 = vunpack.c.h.b16 %v4041
      %v4449 = vunpack.c.l.b16 %v4042
      %v4450 = vunpack.c.h.b16 %v4042
      %v4451 = vunpack.c.l.b16 %v4043
      %v4452 = vunpack.c.h.b16 %v4043
      %v4453 = vunpack.c.l.b16 %v4044
      %v4454 = vunpack.c.h.b16 %v4044
      %v4455 = vunpack.c.l.b16 %v4045
      %v4456 = vunpack.c.h.b16 %v4045
      %v4457 = vunpack.c.l.b16 %v4046
      %v4458 = vunpack.c.h.b16 %v4046
      %v4459 = vunpack.c.l.b16 %v4047
      %v4460 = vunpack.c.h.b16 %v4047
      %v4461 = vunpack.c.l.b16 %v4048
      %v4462 = vunpack.c.h.b16 %v4048
      %v4463 = vunpack.c.l.b16 %v4049
      %v4464 = vunpack.c.h.b16 %v4049
      %v4465 = vunpack.c.l.b16 %v4050
      %v4466 = vunpack.c.h.b16 %v4050
      %v4467 = vunpack.c.l.b16 %v4051
      %v4468 = vunpack.c.h.b16 %v4051
      %v4469 = vunpack.c.l.b16 %v4052
      %v4470 = vunpack.c.h.b16 %v4052
      %v4471 = vunpack.c.l.b16 %v4053
      %v4472 = vunpack.c.h.b16 %v4053
      %v4473 = vunpack.c.l.b16 %v4054
      %v4474 = vunpack.c.h.b16 %v4054
      %v4475 = vunpack.c.l.b16 %v4055
      %v4476 = vunpack.c.h.b16 %v4055
      %v4477 = vunpack.c.l.b16 %v4056
      %v4478 = vunpack.c.h.b16 %v4056
      %v4479 = vunpack.c.l.b16 %v4057
      %v4480 = vunpack.c.h.b16 %v4057
      %v4481 = vunpack.c.l.b16 %v4058
      %v4482 = vunpack.c.h.b16 %v4058
      %v4483 = vunpack.c.l.b16 %v4059
      %v4484 = vunpack.c.h.b16 %v4059
      %v4485 = vunpack.c.l.b16 %v4060
      %v4486 = vunpack.c.h.b16 %v4060
      %v4487 = vunpack.c.l.b16 %v4061
      %v4488 = vunpack.c.h.b16 %v4061
      %v4489 = vunpack.c.l.b16 %v4062
      %v4490 = vunpack.c.h.b16 %v4062
      %v4491 = vpack.c.b16 %v4243, %v4235
      %v4492 = vpack.c.b16 %v4244, %v4236
      %v4493 = vpack.c.b16 %v4245, %v4237
      %v4494 = vpack.c.b16 %v4246, %v4238
      %v4495 = vpack.c.b16 %v4247, %v4239
      %v4496 = vpack.c.b16 %v4248, %v4240
      %v4497 = vpack.c.b16 %v4249, %v4241
      %v4498 = vpack.c.b16 %v4250, %v4242
      %v4499 = vpack.c.b16 %v4259, %v4251
      %v4500 = vpack.c.b16 %v4260, %v4252
      %v4501 = vpack.c.b16 %v4261, %v4253
      %v4502 = vpack.c.b16 %v4262, %v4254
      %v4503 = vpack.c.b16 %v4263, %v4255
      %v4504 = vpack.c.b16 %v4264, %v4256
      %v4505 = vpack.c.b16 %v4265, %v4257
      %v4506 = vpack.c.b16 %v4266, %v4258
      %v4507 = vpack.c.b16 %v4275, %v4267
      %v4508 = vpack.c.b16 %v4276, %v4268
      %v4509 = vpack.c.b16 %v4277, %v4269
      %v4510 = vpack.c.b16 %v4278, %v4270
      %v4511 = vpack.c.b16 %v4279, %v4271
      %v4512 = vpack.c.b16 %v4280, %v4272
      %v4513 = vpack.c.b16 %v4281, %v4273
      %v4514 = vpack.c.b16 %v4282, %v4274
      %v4515 = vpack.c.b16 %v4291, %v4283
      %v4516 = vpack.c.b16 %v4292, %v4284
      %v4517 = vpack.c.b16 %v4293, %v4285
      %v4518 = vpack.c.b16 %v4294, %v4286
      %v4519 = vpack.c.b16 %v4295, %v4287
      %v4520 = vpack.c.b16 %v4296, %v4288
      %v4521 = vpack.c.b16 %v4297, %v4289
      %v4522 = vpack.c.b16 %v4298, %v4290
      %v4523 = vpack.c.b16 %v4307, %v4299
      %v4524 = vpack.c.b16 %v4308, %v4300
      %v4525 = vpack.c.b16 %v4309, %v4301
      %v4526 = vpack.c.b16 %v4310, %v4302
      %v4527 = vpack.c.b16 %v4311, %v4303
      %v4528 = vpack.c.b16 %v4312, %v4304
      %v4529 = vpack.c.b16 %v4313, %v4305
      %v4530 = vpack.c.b16 %v4314, %v4306
      %v4531 = vpack.c.b16 %v4323, %v4315
      %v4532 = vpack.c.b16 %v4324, %v4316
      %v4533 = vpack.c.b16 %v4325, %v4317
      %v4534 = vpack.c.b16 %v4326, %v4318
      %v4535 = vpack.c.b16 %v4327, %v4319
      %v4536 = vpack.c.b16 %v4328, %v4320
      %v4537 = vpack.c.b16 %v4329, %v4321
      %v4538 = vpack.c.b16 %v4330, %v4322
      %v4539 = vpack.c.b16 %v4339, %v4331
      %v4540 = vpack.c.b16 %v4340, %v4332
      %v4541 = vpack.c.b16 %v4341, %v4333
      %v4542 = vpack.c.b16 %v4342, %v4334
      %v4543 = vpack.c.b16 %v4343, %v4335
      %v4544 = vpack.c.b16 %v4344, %v4336
      %v4545 = vpack.c.b16 %v4345, %v4337
      %v4546 = vpack.c.b16 %v4346, %v4338
      %v4547 = vpack.c.b16 %v4355, %v4347
      %v4548 = vpack.c.b16 %v4356, %v4348
      %v4549 = vpack.c.b16 %v4357, %v4349
      %v4550 = vpack.c.b16 %v4358, %v4350
      %v4551 = vpack.c.b16 %v4359, %v4351
      %v4552 = vpack.c.b16 %v4360, %v4352
      %v4553 = vpack.c.b16 %v4361, %v4353
      %v4554 = vpack.c.b16 %v4362, %v4354
      %v4555 = vpack.c.b16 %v4371, %v4363
      %v4556 = vpack.c.b16 %v4372, %v4364
      %v4557 = vpack.c.b16 %v4373, %v4365
      %v4558 = vpack.c.b16 %v4374, %v4366
      %v4559 = vpack.c.b16 %v4375, %v4367
      %v4560 = vpack.c.b16 %v4376, %v4368
      %v4561 = vpack.c.b16 %v4377, %v4369
      %v4562 = vpack.c.b16 %v4378, %v4370
      %v4563 = vpack.c.b16 %v4387, %v4379
      %v4564 = vpack.c.b16 %v4388, %v4380
      %v4565 = vpack.c.b16 %v4389, %v4381
      %v4566 = vpack.c.b16 %v4390, %v4382
      %v4567 = vpack.c.b16 %v4391, %v4383
      %v4568 = vpack.c.b16 %v4392, %v4384
      %v4569 = vpack.c.b16 %v4393, %v4385
      %v4570 = vpack.c.b16 %v4394, %v4386
      %v4571 = vpack.c.b16 %v4403, %v4395
      %v4572 = vpack.c.b16 %v4404, %v4396
      %v4573 = vpack.c.b16 %v4405, %v4397
      %v4574 = vpack.c.b16 %v4406, %v4398
      %v4575 = vpack.c.b16 %v4407, %v4399
      %v4576 = vpack.c.b16 %v4408, %v4400
      %v4577 = vpack.c.b16 %v4409, %v4401
      %v4578 = vpack.c.b16 %v4410, %v4402
      %v4579 = vpack.c.b16 %v4419, %v4411
      %v4580 = vpack.c.b16 %v4420, %v4412
      %v4581 = vpack.c.b16 %v4421, %v4413
      %v4582 = vpack.c.b16 %v4422, %v4414
      %v4583 = vpack.c.b16 %v4423, %v4415
      %v4584 = vpack.c.b16 %v4424, %v4416
      %v4585 = vpack.c.b16 %v4425, %v4417
      %v4586 = vpack.c.b16 %v4426, %v4418
      %v4587 = vpack.c.b16 %v4435, %v4427
      %v4588 = vpack.c.b16 %v4436, %v4428
      %v4589 = vpack.c.b16 %v4437, %v4429
      %v4590 = vpack.c.b16 %v4438, %v4430
      %v4591 = vpack.c.b16 %v4439, %v4431
      %v4592 = vpack.c.b16 %v4440, %v4432
      %v4593 = vpack.c.b16 %v4441, %v4433
      %v4594 = vpack.c.b16 %v4442, %v4434
      %v4595 = vpack.c.b16 %v4451, %v4443
      %v4596 = vpack.c.b16 %v4452, %v4444
      %v4597 = vpack.c.b16 %v4453, %v4445
      %v4598 = vpack.c.b16 %v4454, %v4446
      %v4599 = vpack.c.b16 %v4455, %v4447
      %v4600 = vpack.c.b16 %v4456, %v4448
      %v4601 = vpack.c.b16 %v4457, %v4449
      %v4602 = vpack.c.b16 %v4458, %v4450
      %v4603 = vpack.c.b16 %v4467, %v4459
      %v4604 = vpack.c.b16 %v4468, %v4460
      %v4605 = vpack.c.b16 %v4469, %v4461
      %v4606 = vpack.c.b16 %v4470, %v4462
      %v4607 = vpack.c.b16 %v4471, %v4463
      %v4608 = vpack.c.b16 %v4472, %v4464
      %v4609 = vpack.c.b16 %v4473, %v4465
      %v4610 = vpack.c.b16 %v4474, %v4466
      %v4611 = vpack.c.b16 %v4483, %v4475
      %v4612 = vpack.c.b16 %v4484, %v4476
      %v4613 = vpack.c.b16 %v4485, %v4477
      %v4614 = vpack.c.b16 %v4486, %v4478
      %v4615 = vpack.c.b16 %v4487, %v4479
      %v4616 = vpack.c.b16 %v4488, %v4480
      %v4617 = vpack.c.b16 %v4489, %v4481
      %v4618 = vpack.c.b16 %v4490, %v4482
      %4747 = vmatprep.subr.bf16.mxu0 %v4548
      %4748 = vmatpush1.bf16.msra.mxu0 %v4547
      %4749 = vmatprep.subr.bf16.mxu0 %v4540
      %4750 = vmatpush1.bf16.msra.mxu0 %v4539
      %4751 = vmatprep.subr.bf16.mxu0 %v4532
      %4752 = vmatpush1.bf16.msra.mxu0 %v4531
      %4753 = vmatprep.subr.bf16.mxu0 %v4524
      %4754 = vmatpush1.bf16.msra.mxu0 %v4523
      %4755 = vmatprep.subr.bf16.mxu0 %v4516
      %4756 = vmatpush1.bf16.msra.mxu0 %v4515
      %4757 = vmatprep.subr.bf16.mxu0 %v4508
      %4758 = vmatpush1.bf16.msra.mxu0 %v4507
      %4759 = vmatprep.subr.bf16.mxu0 %v4500
      %4760 = vmatpush1.bf16.msra.mxu0 %v4499
      %4761 = vmatprep.subr.bf16.mxu0 %v4492
      %4762 = vmatpush1.bf16.msra.mxu0 %v4491
      %4763 = vmatprep.subr.bf16.mxu0 %v4612
      %4764 = vmatpush2.bf16.msra.mxu0 %v4611
      %4765 = vmatprep.subr.bf16.mxu0 %v4604
      %4766 = vmatpush2.bf16.msra.mxu0 %v4603
      %4767 = vmatprep.subr.bf16.mxu0 %v4596
      %4768 = vmatpush2.bf16.msra.mxu0 %v4595
      %4769 = vmatprep.subr.bf16.mxu0 %v4588
      %4770 = vmatpush2.bf16.msra.mxu0 %v4587
      %4771 = vmatprep.subr.bf16.mxu0 %v4580
      %4772 = vmatpush2.bf16.msra.mxu0 %v4579
      %4773 = vmatprep.subr.bf16.mxu0 %v4572
      %4774 = vmatpush2.bf16.msra.mxu0 %v4571
      %4775 = vmatprep.subr.bf16.mxu0 %v4564
      %4776 = vmatpush2.bf16.msra.mxu0 %v4563
      %4777 = vmatprep.subr.bf16.mxu0 %v4556
      %4778 = vmatpush2.bf16.msra.mxu0 %v4555
      %4779 = vmatprep.mubr.bf16.mxu0 %v3929
      %4780 = vmatmul.mubr.bf16.gmra.mxu0 %v3928
      %v4781 = vpop.f32.mrf.mxu0
      %v4782 = vadd.f32 %v4070, %v4781
      %v4783 = vpop.f32.mrf.mxu0
      %v4784 = vadd.f32 %v4074, %v4783
      %v4785 = vpop.f32.mrf.mxu0
      %v4786 = vadd.f32 %v4070, %v4785
      %v4787 = vpop.f32.mrf.mxu0
      %v4788 = vadd.f32 %v4074, %v4787
      %4789 = vmatprep.mubr.bf16.mxu0 %v3931
      %4790 = vmatmul.mubr.bf16.gmra.mxu0 %v3930
      %v4791 = vpop.f32.mrf.mxu0
      %v4792 = vadd.f32 %v4070, %v4791
      %v4793 = vpop.f32.mrf.mxu0
      %v4794 = vadd.f32 %v4074, %v4793
      %v4795 = vpop.f32.mrf.mxu0
      %v4796 = vadd.f32 %v4070, %v4795
      %v4797 = vpop.f32.mrf.mxu0
      %v4798 = vadd.f32 %v4074, %v4797
      %4799 = vdwg.mxu0
      %4800 = vmatprep.subr.bf16.mxu0 %v4550
      %4801 = vmatpush1.bf16.msra.mxu0 %v4549
      %4802 = vmatprep.subr.bf16.mxu0 %v4542
      %4803 = vmatpush1.bf16.msra.mxu0 %v4541
      %4804 = vmatprep.subr.bf16.mxu0 %v4534
      %4805 = vmatpush1.bf16.msra.mxu0 %v4533
      %4806 = vmatprep.subr.bf16.mxu0 %v4526
      %4807 = vmatpush1.bf16.msra.mxu0 %v4525
      %4808 = vmatprep.subr.bf16.mxu0 %v4518
      %4809 = vmatpush1.bf16.msra.mxu0 %v4517
      %4810 = vmatprep.subr.bf16.mxu0 %v4510
      %4811 = vmatpush1.bf16.msra.mxu0 %v4509
      %4812 = vmatprep.subr.bf16.mxu0 %v4502
      %4813 = vmatpush1.bf16.msra.mxu0 %v4501
      %4814 = vmatprep.subr.bf16.mxu0 %v4494
      %4815 = vmatpush1.bf16.msra.mxu0 %v4493
      %4816 = vmatprep.subr.bf16.mxu0 %v4614
      %4817 = vmatpush2.bf16.msra.mxu0 %v4613
      %4818 = vmatprep.subr.bf16.mxu0 %v4606
      %4819 = vmatpush2.bf16.msra.mxu0 %v4605
      %4820 = vmatprep.subr.bf16.mxu0 %v4598
      %4821 = vmatpush2.bf16.msra.mxu0 %v4597
      %4822 = vmatprep.subr.bf16.mxu0 %v4590
      %4823 = vmatpush2.bf16.msra.mxu0 %v4589
      %4824 = vmatprep.subr.bf16.mxu0 %v4582
      %4825 = vmatpush2.bf16.msra.mxu0 %v4581
      %4826 = vmatprep.subr.bf16.mxu0 %v4574
      %4827 = vmatpush2.bf16.msra.mxu0 %v4573
      %4828 = vmatprep.subr.bf16.mxu0 %v4566
      %4829 = vmatpush2.bf16.msra.mxu0 %v4565
      %4830 = vmatprep.subr.bf16.mxu0 %v4558
      %4831 = vmatpush2.bf16.msra.mxu0 %v4557
      %4832 = vmatprep.mubr.bf16.mxu0 %v3929
      %4833 = vmatmul.mubr.bf16.gmra.mxu0 %v3928
      %v4834 = vpop.f32.mrf.mxu0
      %v4835 = vadd.f32 %v4078, %v4834
      %v4836 = vpop.f32.mrf.mxu0
      %v4837 = vadd.f32 %v4082, %v4836
      %v4838 = vpop.f32.mrf.mxu0
      %v4839 = vadd.f32 %v4078, %v4838
      %v4840 = vpop.f32.mrf.mxu0
      %v4841 = vadd.f32 %v4082, %v4840
      %4842 = vmatprep.mubr.bf16.mxu0 %v3931
      %4843 = vmatmul.mubr.bf16.gmra.mxu0 %v3930
      %v4844 = vpop.f32.mrf.mxu0
      %v4845 = vadd.f32 %v4078, %v4844
      %v4846 = vpop.f32.mrf.mxu0
      %v4847 = vadd.f32 %v4082, %v4846
      %v4848 = vpop.f32.mrf.mxu0
      %v4849 = vadd.f32 %v4078, %v4848
      %v4850 = vpop.f32.mrf.mxu0
      %v4851 = vadd.f32 %v4082, %v4850
      %4852 = vdwg.mxu0
      %4853 = vmatprep.subr.bf16.mxu0 %v4552
      %4854 = vmatpush1.bf16.msra.mxu0 %v4551
      %4855 = vmatprep.subr.bf16.mxu0 %v4544
      %4856 = vmatpush1.bf16.msra.mxu0 %v4543
      %4857 = vmatprep.subr.bf16.mxu0 %v4536
      %4858 = vmatpush1.bf16.msra.mxu0 %v4535
      %4859 = vmatprep.subr.bf16.mxu0 %v4528
      %4860 = vmatpush1.bf16.msra.mxu0 %v4527
      %4861 = vmatprep.subr.bf16.mxu0 %v4520
      %4862 = vmatpush1.bf16.msra.mxu0 %v4519
      %4863 = vmatprep.subr.bf16.mxu0 %v4512
      %4864 = vmatpush1.bf16.msra.mxu0 %v4511
      %4865 = vmatprep.subr.bf16.mxu0 %v4504
      %4866 = vmatpush1.bf16.msra.mxu0 %v4503
      %4867 = vmatprep.subr.bf16.mxu0 %v4496
      %4868 = vmatpush1.bf16.msra.mxu0 %v4495
      %4869 = vmatprep.subr.bf16.mxu0 %v4616
      %4870 = vmatpush2.bf16.msra.mxu0 %v4615
      %4871 = vmatprep.subr.bf16.mxu0 %v4608
      %4872 = vmatpush2.bf16.msra.mxu0 %v4607
      %4873 = vmatprep.subr.bf16.mxu0 %v4600
      %4874 = vmatpush2.bf16.msra.mxu0 %v4599
      %4875 = vmatprep.subr.bf16.mxu0 %v4592
      %4876 = vmatpush2.bf16.msra.mxu0 %v4591
      %4877 = vmatprep.subr.bf16.mxu0 %v4584
      %4878 = vmatpush2.bf16.msra.mxu0 %v4583
      %4879 = vmatprep.subr.bf16.mxu0 %v4576
      %4880 = vmatpush2.bf16.msra.mxu0 %v4575
      %4881 = vmatprep.subr.bf16.mxu0 %v4568
      %4882 = vmatpush2.bf16.msra.mxu0 %v4567
      %4883 = vmatprep.subr.bf16.mxu0 %v4560
      %4884 = vmatpush2.bf16.msra.mxu0 %v4559
      %4885 = vmatprep.mubr.bf16.mxu0 %v3929
      %4886 = vmatmul.mubr.bf16.gmra.mxu0 %v3928
      %v4887 = vpop.f32.mrf.mxu0
      %v4888 = vadd.f32 %v4086, %v4887
      %v4889 = vpop.f32.mrf.mxu0
      %v4890 = vadd.f32 %v4090, %v4889
      %v4891 = vpop.f32.mrf.mxu0
      %v4892 = vadd.f32 %v4086, %v4891
      %v4893 = vpop.f32.mrf.mxu0
      %v4894 = vadd.f32 %v4090, %v4893
      %4895 = vmatprep.mubr.bf16.mxu0 %v3931
      %4896 = vmatmul.mubr.bf16.gmra.mxu0 %v3930
      %v4897 = vpop.f32.mrf.mxu0
      %v4898 = vadd.f32 %v4086, %v4897
      %v4899 = vpop.f32.mrf.mxu0
      %v4900 = vadd.f32 %v4090, %v4899
      %v4901 = vpop.f32.mrf.mxu0
      %v4902 = vadd.f32 %v4086, %v4901
      %v4903 = vpop.f32.mrf.mxu0
      %v4904 = vadd.f32 %v4090, %v4903
      %4905 = vdwg.mxu0
      %4906 = vmatprep.subr.bf16.mxu0 %v4554
      %4907 = vmatpush1.bf16.msra.mxu0 %v4553
      %4908 = vmatprep.subr.bf16.mxu0 %v4546
      %4909 = vmatpush1.bf16.msra.mxu0 %v4545
      %4910 = vmatprep.subr.bf16.mxu0 %v4538
      %4911 = vmatpush1.bf16.msra.mxu0 %v4537
      %4912 = vmatprep.subr.bf16.mxu0 %v4530
      %4913 = vmatpush1.bf16.msra.mxu0 %v4529
      %4914 = vmatprep.subr.bf16.mxu0 %v4522
      %4915 = vmatpush1.bf16.msra.mxu0 %v4521
      %4916 = vmatprep.subr.bf16.mxu0 %v4514
      %4917 = vmatpush1.bf16.msra.mxu0 %v4513
      %4918 = vmatprep.subr.bf16.mxu0 %v4506
      %4919 = vmatpush1.bf16.msra.mxu0 %v4505
      %4920 = vmatprep.subr.bf16.mxu0 %v4498
      %4921 = vmatpush1.bf16.msra.mxu0 %v4497
      %4922 = vmatprep.subr.bf16.mxu0 %v4618
      %4923 = vmatpush2.bf16.msra.mxu0 %v4617
      %4924 = vmatprep.subr.bf16.mxu0 %v4610
      %4925 = vmatpush2.bf16.msra.mxu0 %v4609
      %4926 = vmatprep.subr.bf16.mxu0 %v4602
      %4927 = vmatpush2.bf16.msra.mxu0 %v4601
      %4928 = vmatprep.subr.bf16.mxu0 %v4594
      %4929 = vmatpush2.bf16.msra.mxu0 %v4593
      %4930 = vmatprep.subr.bf16.mxu0 %v4586
      %4931 = vmatpush2.bf16.msra.mxu0 %v4585
      %4932 = vmatprep.subr.bf16.mxu0 %v4578
      %4933 = vmatpush2.bf16.msra.mxu0 %v4577
      %4934 = vmatprep.subr.bf16.mxu0 %v4570
      %4935 = vmatpush2.bf16.msra.mxu0 %v4569
      %4936 = vmatprep.subr.bf16.mxu0 %v4562
      %4937 = vmatpush2.bf16.msra.mxu0 %v4561
      %4938 = vmatprep.mubr.bf16.mxu0 %v3929
      %4939 = vmatmul.mubr.bf16.gmra.mxu0 %v3928
      %v4940 = vpop.f32.mrf.mxu0
      %v4941 = vadd.f32 %v4094, %v4940
      %v4942 = vpop.f32.mrf.mxu0
      %v4943 = vadd.f32 %v4098, %v4942
      %v4944 = vpop.f32.mrf.mxu0
      %v4945 = vadd.f32 %v4094, %v4944
      %v4946 = vpop.f32.mrf.mxu0
      %v4947 = vadd.f32 %v4098, %v4946
      %4948 = vmatprep.mubr.bf16.mxu0 %v3931
      %4949 = vmatmul.mubr.bf16.gmra.mxu0 %v3930
      %v4950 = vpop.f32.mrf.mxu0
      %v4951 = vadd.f32 %v4094, %v4950
      %v4952 = vpop.f32.mrf.mxu0
      %v4953 = vadd.f32 %v4098, %v4952
      %v4954 = vpop.f32.mrf.mxu0
      %v4955 = vadd.f32 %v4094, %v4954
      %v4956 = vpop.f32.mrf.mxu0
      %v4957 = vadd.f32 %v4098, %v4956
      %4958 = vdwg.mxu0
      %v4959 = vmul.f32 %v4782, 0.5
      %v4960 = vmul.f32 %v4784, 0.5
      %v4961 = vmul.f32 %v4835, 0.5
      %v4962 = vmul.f32 %v4837, 0.5
      %v4963 = vmul.f32 %v4888, 0.5
      %v4964 = vmul.f32 %v4890, 0.5
      %v4965 = vmul.f32 %v4941, 0.5
      %v4966 = vmul.f32 %v4943, 0.5
      %v4967 = vmul.f32 %v4786, 0.5
      %v4968 = vmul.f32 %v4788, 0.5
      %v4969 = vmul.f32 %v4839, 0.5
      %v4970 = vmul.f32 %v4841, 0.5
      %v4971 = vmul.f32 %v4892, 0.5
      %v4972 = vmul.f32 %v4894, 0.5
      %v4973 = vmul.f32 %v4945, 0.5
      %v4974 = vmul.f32 %v4947, 0.5
      %v4975 = vmul.f32 %v4792, 0.5
      %v4976 = vmul.f32 %v4794, 0.5
      %v4977 = vmul.f32 %v4845, 0.5
      %v4978 = vmul.f32 %v4847, 0.5
      %v4979 = vmul.f32 %v4898, 0.5
      %v4980 = vmul.f32 %v4900, 0.5
      %v4981 = vmul.f32 %v4951, 0.5
      %v4982 = vmul.f32 %v4953, 0.5
      %v4983 = vmul.f32 %v4796, 0.5
      %v4984 = vmul.f32 %v4798, 0.5
      %v4985 = vmul.f32 %v4849, 0.5
      %v4986 = vmul.f32 %v4851, 0.5
      %v4987 = vmul.f32 %v4902, 0.5
      %v4988 = vmul.f32 %v4904, 0.5
      %v4989 = vmul.f32 %v4955, 0.5
      %v4990 = vmul.f32 %v4957, 0.5
      %v4991 = vmul.f32 %v4782, 0.044715
      %v4992 = vmul.f32 %v4784, 0.044715
      %v4993 = vmul.f32 %v4835, 0.044715
      %v4994 = vmul.f32 %v4837, 0.044715
      %v4995 = vmul.f32 %v4888, 0.044715
      %v4996 = vmul.f32 %v4890, 0.044715
      %v4997 = vmul.f32 %v4941, 0.044715
      %v4998 = vmul.f32 %v4943, 0.044715
      %v4999 = vmul.f32 %v4786, 0.044715
      %v5000 = vmul.f32 %v4788, 0.044715
      %v5001 = vmul.f32 %v4839, 0.044715
      %v5002 = vmul.f32 %v4841, 0.044715
      %v5003 = vmul.f32 %v4892, 0.044715
      %v5004 = vmul.f32 %v4894, 0.044715
      %v5005 = vmul.f32 %v4945, 0.044715
      %v5006 = vmul.f32 %v4947, 0.044715
      %v5007 = vmul.f32 %v4792, 0.044715
      %v5008 = vmul.f32 %v4794, 0.044715
      %v5009 = vmul.f32 %v4845, 0.044715
      %v5010 = vmul.f32 %v4847, 0.044715
      %v5011 = vmul.f32 %v4898, 0.044715
      %v5012 = vmul.f32 %v4900, 0.044715
      %v5013 = vmul.f32 %v4951, 0.044715
      %v5014 = vmul.f32 %v4953, 0.044715
      %v5015 = vmul.f32 %v4796, 0.044715
      %v5016 = vmul.f32 %v4798, 0.044715
      %v5017 = vmul.f32 %v4849, 0.044715
      %v5018 = vmul.f32 %v4851, 0.044715
      %v5019 = vmul.f32 %v4902, 0.044715
      %v5020 = vmul.f32 %v4904, 0.044715
      %v5021 = vmul.f32 %v4955, 0.044715
      %v5022 = vmul.f32 %v4957, 0.044715
      %v5023 = vmul.f32 %v4991, %v4782
      %v5024 = vmul.f32 %v4992, %v4784
      %v5025 = vmul.f32 %v4993, %v4835
      %v5026 = vmul.f32 %v4994, %v4837
      %v5027 = vmul.f32 %v4995, %v4888
      %v5028 = vmul.f32 %v4996, %v4890
      %v5029 = vmul.f32 %v4997, %v4941
      %v5030 = vmul.f32 %v4998, %v4943
      %v5031 = vmul.f32 %v4999, %v4786
      %v5032 = vmul.f32 %v5000, %v4788
      %v5033 = vmul.f32 %v5001, %v4839
      %v5034 = vmul.f32 %v5002, %v4841
      %v5035 = vmul.f32 %v5003, %v4892
      %v5036 = vmul.f32 %v5004, %v4894
      %v5037 = vmul.f32 %v5005, %v4945
      %v5038 = vmul.f32 %v5006, %v4947
      %v5039 = vmul.f32 %v5007, %v4792
      %v5040 = vmul.f32 %v5008, %v4794
      %v5041 = vmul.f32 %v5009, %v4845
      %v5042 = vmul.f32 %v5010, %v4847
      %v5043 = vmul.f32 %v5011, %v4898
      %v5044 = vmul.f32 %v5012, %v4900
      %v5045 = vmul.f32 %v5013, %v4951
      %v5046 = vmul.f32 %v5014, %v4953
      %v5047 = vmul.f32 %v5015, %v4796
      %v5048 = vmul.f32 %v5016, %v4798
      %v5049 = vmul.f32 %v5017, %v4849
      %v5050 = vmul.f32 %v5018, %v4851
      %v5051 = vmul.f32 %v5019, %v4902
      %v5052 = vmul.f32 %v5020, %v4904
      %v5053 = vmul.f32 %v5021, %v4955
      %v5054 = vmul.f32 %v5022, %v4957
      %v5055 = vmul.f32 %v5023, %v4782
      %v5056 = vmul.f32 %v5024, %v4784
      %v5057 = vmul.f32 %v5025, %v4835
      %v5058 = vmul.f32 %v5026, %v4837
      %v5059 = vmul.f32 %v5027, %v4888
      %v5060 = vmul.f32 %v5028, %v4890
      %v5061 = vmul.f32 %v5029, %v4941
      %v5062 = vmul.f32 %v5030, %v4943
      %v5063 = vmul.f32 %v5031, %v4786
      %v5064 = vmul.f32 %v5032, %v4788
      %v5065 = vmul.f32 %v5033, %v4839
      %v5066 = vmul.f32 %v5034, %v4841
      %v5067 = vmul.f32 %v5035, %v4892
      %v5068 = vmul.f32 %v5036, %v4894
      %v5069 = vmul.f32 %v5037, %v4945
      %v5070 = vmul.f32 %v5038, %v4947
      %v5071 = vmul.f32 %v5039, %v4792
      %v5072 = vmul.f32 %v5040, %v4794
      %v5073 = vmul.f32 %v5041, %v4845
      %v5074 = vmul.f32 %v5042, %v4847
      %v5075 = vmul.f32 %v5043, %v4898
      %v5076 = vmul.f32 %v5044, %v4900
      %v5077 = vmul.f32 %v5045, %v4951
      %v5078 = vmul.f32 %v5046, %v4953
      %v5079 = vmul.f32 %v5047, %v4796
      %v5080 = vmul.f32 %v5048, %v4798
      %v5081 = vmul.f32 %v5049, %v4849
      %v5082 = vmul.f32 %v5050, %v4851
      %v5083 = vmul.f32 %v5051, %v4902
      %v5084 = vmul.f32 %v5052, %v4904
      %v5085 = vmul.f32 %v5053, %v4955
      %v5086 = vmul.f32 %v5054, %v4957
      %v5087 = vadd.f32 %v4782, %v5055
      %v5088 = vadd.f32 %v4784, %v5056
      %v5089 = vadd.f32 %v4835, %v5057
      %v5090 = vadd.f32 %v4837, %v5058
      %v5091 = vadd.f32 %v4888, %v5059
      %v5092 = vadd.f32 %v4890, %v5060
      %v5093 = vadd.f32 %v4941, %v5061
      %v5094 = vadd.f32 %v4943, %v5062
      %v5095 = vadd.f32 %v4786, %v5063
      %v5096 = vadd.f32 %v4788, %v5064
      %v5097 = vadd.f32 %v4839, %v5065
      %v5098 = vadd.f32 %v4841, %v5066
      %v5099 = vadd.f32 %v4892, %v5067
      %v5100 = vadd.f32 %v4894, %v5068
      %v5101 = vadd.f32 %v4945, %v5069
      %v5102 = vadd.f32 %v4947, %v5070
      %v5103 = vadd.f32 %v4792, %v5071
      %v5104 = vadd.f32 %v4794, %v5072
      %v5105 = vadd.f32 %v4845, %v5073
      %v5106 = vadd.f32 %v4847, %v5074
      %v5107 = vadd.f32 %v4898, %v5075
      %v5108 = vadd.f32 %v4900, %v5076
      %v5109 = vadd.f32 %v4951, %v5077
      %v5110 = vadd.f32 %v4953, %v5078
      %v5111 = vadd.f32 %v4796, %v5079
      %v5112 = vadd.f32 %v4798, %v5080
      %v5113 = vadd.f32 %v4849, %v5081
      %v5114 = vadd.f32 %v4851, %v5082
      %v5115 = vadd.f32 %v4902, %v5083
      %v5116 = vadd.f32 %v4904, %v5084
      %v5117 = vadd.f32 %v4955, %v5085
      %v5118 = vadd.f32 %v4957, %v5086
      %v5119 = vmul.f32 %v5087, 0.7978846
      %v5120 = vmul.f32 %v5088, 0.7978846
      %v5121 = vmul.f32 %v5089, 0.7978846
      %v5122 = vmul.f32 %v5090, 0.7978846
      %v5123 = vmul.f32 %v5091, 0.7978846
      %v5124 = vmul.f32 %v5092, 0.7978846
      %v5125 = vmul.f32 %v5093, 0.7978846
      %v5126 = vmul.f32 %v5094, 0.7978846
      %v5127 = vmul.f32 %v5095, 0.7978846
      %v5128 = vmul.f32 %v5096, 0.7978846
      %v5129 = vmul.f32 %v5097, 0.7978846
      %v5130 = vmul.f32 %v5098, 0.7978846
      %v5131 = vmul.f32 %v5099, 0.7978846
      %v5132 = vmul.f32 %v5100, 0.7978846
      %v5133 = vmul.f32 %v5101, 0.7978846
      %v5134 = vmul.f32 %v5102, 0.7978846
      %v5135 = vmul.f32 %v5103, 0.7978846
      %v5136 = vmul.f32 %v5104, 0.7978846
      %v5137 = vmul.f32 %v5105, 0.7978846
      %v5138 = vmul.f32 %v5106, 0.7978846
      %v5139 = vmul.f32 %v5107, 0.7978846
      %v5140 = vmul.f32 %v5108, 0.7978846
      %v5141 = vmul.f32 %v5109, 0.7978846
      %v5142 = vmul.f32 %v5110, 0.7978846
      %v5143 = vmul.f32 %v5111, 0.7978846
      %v5144 = vmul.f32 %v5112, 0.7978846
      %v5145 = vmul.f32 %v5113, 0.7978846
      %v5146 = vmul.f32 %v5114, 0.7978846
      %v5147 = vmul.f32 %v5115, 0.7978846
      %v5148 = vmul.f32 %v5116, 0.7978846
      %v5149 = vmul.f32 %v5117, 0.7978846
      %v5150 = vmul.f32 %v5118, 0.7978846
      %v5151 = vtanh.pop %v5119
      %v5152 = vtanh.pop %v5120
      %v5153 = vtanh.pop %v5121
      %v5154 = vtanh.pop %v5122
      %v5155 = vtanh.pop %v5123
      %v5156 = vtanh.pop %v5124
      %v5157 = vtanh.pop %v5125
      %v5158 = vtanh.pop %v5126
      %v5159 = vtanh.pop %v5127
      %v5160 = vtanh.pop %v5128
      %v5161 = vtanh.pop %v5129
      %v5162 = vtanh.pop %v5130
      %v5163 = vtanh.pop %v5131
      %v5164 = vtanh.pop %v5132
      %v5165 = vtanh.pop %v5133
      %v5166 = vtanh.pop %v5134
      %v5167 = vtanh.pop %v5135
      %v5168 = vtanh.pop %v5136
      %v5169 = vtanh.pop %v5137
      %v5170 = vtanh.pop %v5138
      %v5171 = vtanh.pop %v5139
      %v5172 = vtanh.pop %v5140
      %v5173 = vtanh.pop %v5141
      %v5174 = vtanh.pop %v5142
      %v5175 = vtanh.pop %v5143
      %v5176 = vtanh.pop %v5144
      %v5177 = vtanh.pop %v5145
      %v5178 = vtanh.pop %v5146
      %v5179 = vtanh.pop %v5147
      %v5180 = vtanh.pop %v5148
      %v5181 = vtanh.pop %v5149
      %v5182 = vtanh.pop %v5150
      %v5183 = vadd.f32 %v5151, 1.0
      %v5184 = vadd.f32 %v5152, 1.0
      %v5185 = vadd.f32 %v5153, 1.0
      %v5186 = vadd.f32 %v5154, 1.0
      %v5187 = vadd.f32 %v5155, 1.0
      %v5188 = vadd.f32 %v5156, 1.0
      %v5189 = vadd.f32 %v5157, 1.0
      %v5190 = vadd.f32 %v5158, 1.0
      %v5191 = vadd.f32 %v5159, 1.0
      %v5192 = vadd.f32 %v5160, 1.0
      %v5193 = vadd.f32 %v5161, 1.0
      %v5194 = vadd.f32 %v5162, 1.0
      %v5195 = vadd.f32 %v5163, 1.0
      %v5196 = vadd.f32 %v5164, 1.0
      %v5197 = vadd.f32 %v5165, 1.0
      %v5198 = vadd.f32 %v5166, 1.0
      %v5199 = vadd.f32 %v5167, 1.0
      %v5200 = vadd.f32 %v5168, 1.0
      %v5201 = vadd.f32 %v5169, 1.0
      %v5202 = vadd.f32 %v5170, 1.0
      %v5203 = vadd.f32 %v5171, 1.0
      %v5204 = vadd.f32 %v5172, 1.0
      %v5205 = vadd.f32 %v5173, 1.0
      %v5206 = vadd.f32 %v5174, 1.0
      %v5207 = vadd.f32 %v5175, 1.0
      %v5208 = vadd.f32 %v5176, 1.0
      %v5209 = vadd.f32 %v5177, 1.0
      %v5210 = vadd.f32 %v5178, 1.0
      %v5211 = vadd.f32 %v5179, 1.0
      %v5212 = vadd.f32 %v5180, 1.0
      %v5213 = vadd.f32 %v5181, 1.0
      %v5214 = vadd.f32 %v5182, 1.0
      %v5215 = vmul.f32 %v4959, %v5183
      %v5216 = vmul.f32 %v4960, %v5184
      %v5217 = vmul.f32 %v4961, %v5185
      %v5218 = vmul.f32 %v4962, %v5186
      %v5219 = vmul.f32 %v4963, %v5187
      %v5220 = vmul.f32 %v4964, %v5188
      %v5221 = vmul.f32 %v4965, %v5189
      %v5222 = vmul.f32 %v4966, %v5190
      %v5223 = vmul.f32 %v4967, %v5191
      %v5224 = vmul.f32 %v4968, %v5192
      %v5225 = vmul.f32 %v4969, %v5193
      %v5226 = vmul.f32 %v4970, %v5194
      %v5227 = vmul.f32 %v4971, %v5195
      %v5228 = vmul.f32 %v4972, %v5196
      %v5229 = vmul.f32 %v4973, %v5197
      %v5230 = vmul.f32 %v4974, %v5198
      %v5231 = vmul.f32 %v4975, %v5199
      %v5232 = vmul.f32 %v4976, %v5200
      %v5233 = vmul.f32 %v4977, %v5201
      %v5234 = vmul.f32 %v4978, %v5202
      %v5235 = vmul.f32 %v4979, %v5203
      %v5236 = vmul.f32 %v4980, %v5204
      %v5237 = vmul.f32 %v4981, %v5205
      %v5238 = vmul.f32 %v4982, %v5206
      %v5239 = vmul.f32 %v4983, %v5207
      %v5240 = vmul.f32 %v4984, %v5208
      %v5241 = vmul.f32 %v4985, %v5209
      %v5242 = vmul.f32 %v4986, %v5210
      %v5243 = vmul.f32 %v4987, %v5211
      %v5244 = vmul.f32 %v4988, %v5212
      %v5245 = vmul.f32 %v4989, %v5213
      %v5246 = vmul.f32 %v4990, %v5214
      %v5247 = vpack.c.bf16 %v5223, %v5215
      %v5248 = vpack.c.bf16 %v5224, %v5216
      %v5249 = vpack.c.bf16 %v5225, %v5217
      %v5250 = vpack.c.bf16 %v5226, %v5218
      %v5251 = vpack.c.bf16 %v5227, %v5219
      %v5252 = vpack.c.bf16 %v5228, %v5220
      %v5253 = vpack.c.bf16 %v5229, %v5221
      %v5254 = vpack.c.bf16 %v5230, %v5222
      %v5255 = vpack.c.bf16 %v5239, %v5231
      %v5256 = vpack.c.bf16 %v5240, %v5232
      %v5257 = vpack.c.bf16 %v5241, %v5233
      %v5258 = vpack.c.bf16 %v5242, %v5234
      %v5259 = vpack.c.bf16 %v5243, %v5235
      %v5260 = vpack.c.bf16 %v5244, %v5236
      %v5261 = vpack.c.bf16 %v5245, %v5237
      %v5262 = vpack.c.bf16 %v5246, %v5238
      %s5263 = smul.addr %s3932, 4
      %s5264 = scalar_lea.vmem [#allocation20], %s5263
      %v5265 = vld [vmem:[%s5264] sm:$0xff]
      %v5266 = vld [vmem:[%s5264 + $0x8] sm:$0xff]
      %v5267 = vld [vmem:[%s5264 + $0x10] sm:$0xff]
      %v5268 = vld [vmem:[%s5264 + $0x18] sm:$0xff]
      %v5269 = vld [vmem:[%s5264 + $0x20] sm:$0xff]
      %v5270 = vld [vmem:[%s5264 + $0x28] sm:$0xff]
      %v5271 = vld [vmem:[%s5264 + $0x30] sm:$0xff]
      %v5272 = vld [vmem:[%s5264 + $0x38] sm:$0xff]
      %v5273 = vld [vmem:[%s5264 + $0x40] sm:$0xff]
      %v5274 = vld [vmem:[%s5264 + $0x48] sm:$0xff]
      %v5275 = vld [vmem:[%s5264 + $0x50] sm:$0xff]
      %v5276 = vld [vmem:[%s5264 + $0x58] sm:$0xff]
      %v5277 = vld [vmem:[%s5264 + $0x60] sm:$0xff]
      %v5278 = vld [vmem:[%s5264 + $0x68] sm:$0xff]
      %v5279 = vld [vmem:[%s5264 + $0x70] sm:$0xff]
      %v5280 = vld [vmem:[%s5264 + $0x78] sm:$0xff]
      %v5281 = vld [vmem:[%s5264 + $0x80] sm:$0xff]
      %v5282 = vld [vmem:[%s5264 + $0x88] sm:$0xff]
      %v5283 = vld [vmem:[%s5264 + $0x90] sm:$0xff]
      %v5284 = vld [vmem:[%s5264 + $0x98] sm:$0xff]
      %v5285 = vld [vmem:[%s5264 + $0xa0] sm:$0xff]
      %v5286 = vld [vmem:[%s5264 + $0xa8] sm:$0xff]
      %v5287 = vld [vmem:[%s5264 + $0xb0] sm:$0xff]
      %v5288 = vld [vmem:[%s5264 + $0xb8] sm:$0xff]
      %v5289 = vld [vmem:[%s5264 + $0xc0] sm:$0xff]
      %v5290 = vld [vmem:[%s5264 + $0xc8] sm:$0xff]
      %v5291 = vld [vmem:[%s5264 + $0xd0] sm:$0xff]
      %v5292 = vld [vmem:[%s5264 + $0xd8] sm:$0xff]
      %v5293 = vld [vmem:[%s5264 + $0xe0] sm:$0xff]
      %v5294 = vld [vmem:[%s5264 + $0xe8] sm:$0xff]
      %v5295 = vld [vmem:[%s5264 + $0xf0] sm:$0xff]
      %v5296 = vld [vmem:[%s5264 + $0xf8] sm:$0xff]
      %v5297 = vld [vmem:[%s5264 + $0x100] sm:$0xff]
      %v5298 = vld [vmem:[%s5264 + $0x108] sm:$0xff]
      %v5299 = vld [vmem:[%s5264 + $0x110] sm:$0xff]
      %v5300 = vld [vmem:[%s5264 + $0x118] sm:$0xff]
      %v5301 = vld [vmem:[%s5264 + $0x120] sm:$0xff]
      %v5302 = vld [vmem:[%s5264 + $0x128] sm:$0xff]
      %v5303 = vld [vmem:[%s5264 + $0x130] sm:$0xff]
      %v5304 = vld [vmem:[%s5264 + $0x138] sm:$0xff]
      %v5305 = vld [vmem:[%s5264 + $0x140] sm:$0xff]
      %v5306 = vld [vmem:[%s5264 + $0x148] sm:$0xff]
      %v5307 = vld [vmem:[%s5264 + $0x150] sm:$0xff]
      %v5308 = vld [vmem:[%s5264 + $0x158] sm:$0xff]
      %v5309 = vld [vmem:[%s5264 + $0x160] sm:$0xff]
      %v5310 = vld [vmem:[%s5264 + $0x168] sm:$0xff]
      %v5311 = vld [vmem:[%s5264 + $0x170] sm:$0xff]
      %v5312 = vld [vmem:[%s5264 + $0x178] sm:$0xff]
      %v5313 = vld [vmem:[%s5264 + $0x180] sm:$0xff]
      %v5314 = vld [vmem:[%s5264 + $0x188] sm:$0xff]
      %v5315 = vld [vmem:[%s5264 + $0x190] sm:$0xff]
      %v5316 = vld [vmem:[%s5264 + $0x198] sm:$0xff]
      %v5317 = vld [vmem:[%s5264 + $0x1a0] sm:$0xff]
      %v5318 = vld [vmem:[%s5264 + $0x1a8] sm:$0xff]
      %v5319 = vld [vmem:[%s5264 + $0x1b0] sm:$0xff]
      %v5320 = vld [vmem:[%s5264 + $0x1b8] sm:$0xff]
      %v5321 = vld [vmem:[%s5264 + $0x1c0] sm:$0xff]
      %v5322 = vld [vmem:[%s5264 + $0x1c8] sm:$0xff]
      %v5323 = vld [vmem:[%s5264 + $0x1d0] sm:$0xff]
      %v5324 = vld [vmem:[%s5264 + $0x1d8] sm:$0xff]
      %v5325 = vld [vmem:[%s5264 + $0x1e0] sm:$0xff]
      %v5326 = vld [vmem:[%s5264 + $0x1e8] sm:$0xff]
      %v5327 = vld [vmem:[%s5264 + $0x1f0] sm:$0xff]
      %v5328 = vld [vmem:[%s5264 + $0x1f8] sm:$0xff]
      %v5329 = vld [vmem:[%s5264 + $0x200] sm:$0xff]
      %v5330 = vld [vmem:[%s5264 + $0x208] sm:$0xff]
      %v5331 = vld [vmem:[%s5264 + $0x210] sm:$0xff]
      %v5332 = vld [vmem:[%s5264 + $0x218] sm:$0xff]
      %v5333 = vld [vmem:[%s5264 + $0x220] sm:$0xff]
      %v5334 = vld [vmem:[%s5264 + $0x228] sm:$0xff]
      %v5335 = vld [vmem:[%s5264 + $0x230] sm:$0xff]
      %v5336 = vld [vmem:[%s5264 + $0x238] sm:$0xff]
      %v5337 = vld [vmem:[%s5264 + $0x240] sm:$0xff]
      %v5338 = vld [vmem:[%s5264 + $0x248] sm:$0xff]
      %v5339 = vld [vmem:[%s5264 + $0x250] sm:$0xff]
      %v5340 = vld [vmem:[%s5264 + $0x258] sm:$0xff]
      %v5341 = vld [vmem:[%s5264 + $0x260] sm:$0xff]
      %v5342 = vld [vmem:[%s5264 + $0x268] sm:$0xff]
      %v5343 = vld [vmem:[%s5264 + $0x270] sm:$0xff]
      %v5344 = vld [vmem:[%s5264 + $0x278] sm:$0xff]
      %v5345 = vld [vmem:[%s5264 + $0x280] sm:$0xff]
      %v5346 = vld [vmem:[%s5264 + $0x288] sm:$0xff]
      %v5347 = vld [vmem:[%s5264 + $0x290] sm:$0xff]
      %v5348 = vld [vmem:[%s5264 + $0x298] sm:$0xff]
      %v5349 = vld [vmem:[%s5264 + $0x2a0] sm:$0xff]
      %v5350 = vld [vmem:[%s5264 + $0x2a8] sm:$0xff]
      %v5351 = vld [vmem:[%s5264 + $0x2b0] sm:$0xff]
      %v5352 = vld [vmem:[%s5264 + $0x2b8] sm:$0xff]
      %v5353 = vld [vmem:[%s5264 + $0x2c0] sm:$0xff]
      %v5354 = vld [vmem:[%s5264 + $0x2c8] sm:$0xff]
      %v5355 = vld [vmem:[%s5264 + $0x2d0] sm:$0xff]
      %v5356 = vld [vmem:[%s5264 + $0x2d8] sm:$0xff]
      %v5357 = vld [vmem:[%s5264 + $0x2e0] sm:$0xff]
      %v5358 = vld [vmem:[%s5264 + $0x2e8] sm:$0xff]
      %v5359 = vld [vmem:[%s5264 + $0x2f0] sm:$0xff]
      %v5360 = vld [vmem:[%s5264 + $0x2f8] sm:$0xff]
      %v5361 = vld [vmem:[%s5264 + $0x300] sm:$0xff]
      %v5362 = vld [vmem:[%s5264 + $0x308] sm:$0xff]
      %v5363 = vld [vmem:[%s5264 + $0x310] sm:$0xff]
      %v5364 = vld [vmem:[%s5264 + $0x318] sm:$0xff]
      %v5365 = vld [vmem:[%s5264 + $0x320] sm:$0xff]
      %v5366 = vld [vmem:[%s5264 + $0x328] sm:$0xff]
      %v5367 = vld [vmem:[%s5264 + $0x330] sm:$0xff]
      %v5368 = vld [vmem:[%s5264 + $0x338] sm:$0xff]
      %v5369 = vld [vmem:[%s5264 + $0x340] sm:$0xff]
      %v5370 = vld [vmem:[%s5264 + $0x348] sm:$0xff]
      %v5371 = vld [vmem:[%s5264 + $0x350] sm:$0xff]
      %v5372 = vld [vmem:[%s5264 + $0x358] sm:$0xff]
      %v5373 = vld [vmem:[%s5264 + $0x360] sm:$0xff]
      %v5374 = vld [vmem:[%s5264 + $0x368] sm:$0xff]
      %v5375 = vld [vmem:[%s5264 + $0x370] sm:$0xff]
      %v5376 = vld [vmem:[%s5264 + $0x378] sm:$0xff]
      %v5377 = vld [vmem:[%s5264 + $0x380] sm:$0xff]
      %v5378 = vld [vmem:[%s5264 + $0x388] sm:$0xff]
      %v5379 = vld [vmem:[%s5264 + $0x390] sm:$0xff]
      %v5380 = vld [vmem:[%s5264 + $0x398] sm:$0xff]
      %v5381 = vld [vmem:[%s5264 + $0x3a0] sm:$0xff]
      %v5382 = vld [vmem:[%s5264 + $0x3a8] sm:$0xff]
      %v5383 = vld [vmem:[%s5264 + $0x3b0] sm:$0xff]
      %v5384 = vld [vmem:[%s5264 + $0x3b8] sm:$0xff]
      %v5385 = vld [vmem:[%s5264 + $0x3c0] sm:$0xff]
      %v5386 = vld [vmem:[%s5264 + $0x3c8] sm:$0xff]
      %v5387 = vld [vmem:[%s5264 + $0x3d0] sm:$0xff]
      %v5388 = vld [vmem:[%s5264 + $0x3d8] sm:$0xff]
      %v5389 = vld [vmem:[%s5264 + $0x3e0] sm:$0xff]
      %v5390 = vld [vmem:[%s5264 + $0x3e8] sm:$0xff]
      %v5391 = vld [vmem:[%s5264 + $0x3f0] sm:$0xff]
      %v5392 = vld [vmem:[%s5264 + $0x3f8] sm:$0xff]
      %s5393 = scalar_lea.vmem [#allocation22], %s244
      %v5394 = vld [vmem:[%s5393] sm:$0x3]
      %v5396 = vlaneseq
      %v5397 = vshrl.u32 %v5396, 7
      %v5398 = vsub.s32 0, %v5397
      %v5399 = vrot.slane %v5394, %v5398
      %v5400 = vlaneseq
      %v5401 = vshrl.u32 %v5400, 7
      %v5402 = vsub.s32 1, %v5401
      %v5403 = vrot.slane %v5394, %v5402
      %v5534 = vunpack.c.l.b16 %v5265
      %v5535 = vunpack.c.h.b16 %v5265
      %v5536 = vunpack.c.l.b16 %v5266
      %v5537 = vunpack.c.h.b16 %v5266
      %v5538 = vunpack.c.l.b16 %v5267
      %v5539 = vunpack.c.h.b16 %v5267
      %v5540 = vunpack.c.l.b16 %v5268
      %v5541 = vunpack.c.h.b16 %v5268
      %v5542 = vunpack.c.l.b16 %v5269
      %v5543 = vunpack.c.h.b16 %v5269
      %v5544 = vunpack.c.l.b16 %v5270
      %v5545 = vunpack.c.h.b16 %v5270
      %v5546 = vunpack.c.l.b16 %v5271
      %v5547 = vunpack.c.h.b16 %v5271
      %v5548 = vunpack.c.l.b16 %v5272
      %v5549 = vunpack.c.h.b16 %v5272
      %v5550 = vunpack.c.l.b16 %v5273
      %v5551 = vunpack.c.h.b16 %v5273
      %v5552 = vunpack.c.l.b16 %v5274
      %v5553 = vunpack.c.h.b16 %v5274
      %v5554 = vunpack.c.l.b16 %v5275
      %v5555 = vunpack.c.h.b16 %v5275
      %v5556 = vunpack.c.l.b16 %v5276
      %v5557 = vunpack.c.h.b16 %v5276
      %v5558 = vunpack.c.l.b16 %v5277
      %v5559 = vunpack.c.h.b16 %v5277
      %v5560 = vunpack.c.l.b16 %v5278
      %v5561 = vunpack.c.h.b16 %v5278
      %v5562 = vunpack.c.l.b16 %v5279
      %v5563 = vunpack.c.h.b16 %v5279
      %v5564 = vunpack.c.l.b16 %v5280
      %v5565 = vunpack.c.h.b16 %v5280
      %v5566 = vunpack.c.l.b16 %v5281
      %v5567 = vunpack.c.h.b16 %v5281
      %v5568 = vunpack.c.l.b16 %v5282
      %v5569 = vunpack.c.h.b16 %v5282
      %v5570 = vunpack.c.l.b16 %v5283
      %v5571 = vunpack.c.h.b16 %v5283
      %v5572 = vunpack.c.l.b16 %v5284
      %v5573 = vunpack.c.h.b16 %v5284
      %v5574 = vunpack.c.l.b16 %v5285
      %v5575 = vunpack.c.h.b16 %v5285
      %v5576 = vunpack.c.l.b16 %v5286
      %v5577 = vunpack.c.h.b16 %v5286
      %v5578 = vunpack.c.l.b16 %v5287
      %v5579 = vunpack.c.h.b16 %v5287
      %v5580 = vunpack.c.l.b16 %v5288
      %v5581 = vunpack.c.h.b16 %v5288
      %v5582 = vunpack.c.l.b16 %v5289
      %v5583 = vunpack.c.h.b16 %v5289
      %v5584 = vunpack.c.l.b16 %v5290
      %v5585 = vunpack.c.h.b16 %v5290
      %v5586 = vunpack.c.l.b16 %v5291
      %v5587 = vunpack.c.h.b16 %v5291
      %v5588 = vunpack.c.l.b16 %v5292
      %v5589 = vunpack.c.h.b16 %v5292
      %v5590 = vunpack.c.l.b16 %v5293
      %v5591 = vunpack.c.h.b16 %v5293
      %v5592 = vunpack.c.l.b16 %v5294
      %v5593 = vunpack.c.h.b16 %v5294
      %v5594 = vunpack.c.l.b16 %v5295
      %v5595 = vunpack.c.h.b16 %v5295
      %v5596 = vunpack.c.l.b16 %v5296
      %v5597 = vunpack.c.h.b16 %v5296
      %v5598 = vunpack.c.l.b16 %v5297
      %v5599 = vunpack.c.h.b16 %v5297
      %v5600 = vunpack.c.l.b16 %v5298
      %v5601 = vunpack.c.h.b16 %v5298
      %v5602 = vunpack.c.l.b16 %v5299
      %v5603 = vunpack.c.h.b16 %v5299
      %v5604 = vunpack.c.l.b16 %v5300
      %v5605 = vunpack.c.h.b16 %v5300
      %v5606 = vunpack.c.l.b16 %v5301
      %v5607 = vunpack.c.h.b16 %v5301
      %v5608 = vunpack.c.l.b16 %v5302
      %v5609 = vunpack.c.h.b16 %v5302
      %v5610 = vunpack.c.l.b16 %v5303
      %v5611 = vunpack.c.h.b16 %v5303
      %v5612 = vunpack.c.l.b16 %v5304
      %v5613 = vunpack.c.h.b16 %v5304
      %v5614 = vunpack.c.l.b16 %v5305
      %v5615 = vunpack.c.h.b16 %v5305
      %v5616 = vunpack.c.l.b16 %v5306
      %v5617 = vunpack.c.h.b16 %v5306
      %v5618 = vunpack.c.l.b16 %v5307
      %v5619 = vunpack.c.h.b16 %v5307
      %v5620 = vunpack.c.l.b16 %v5308
      %v5621 = vunpack.c.h.b16 %v5308
      %v5622 = vunpack.c.l.b16 %v5309
      %v5623 = vunpack.c.h.b16 %v5309
      %v5624 = vunpack.c.l.b16 %v5310
      %v5625 = vunpack.c.h.b16 %v5310
      %v5626 = vunpack.c.l.b16 %v5311
      %v5627 = vunpack.c.h.b16 %v5311
      %v5628 = vunpack.c.l.b16 %v5312
      %v5629 = vunpack.c.h.b16 %v5312
      %v5630 = vunpack.c.l.b16 %v5313
      %v5631 = vunpack.c.h.b16 %v5313
      %v5632 = vunpack.c.l.b16 %v5314
      %v5633 = vunpack.c.h.b16 %v5314
      %v5634 = vunpack.c.l.b16 %v5315
      %v5635 = vunpack.c.h.b16 %v5315
      %v5636 = vunpack.c.l.b16 %v5316
      %v5637 = vunpack.c.h.b16 %v5316
      %v5638 = vunpack.c.l.b16 %v5317
      %v5639 = vunpack.c.h.b16 %v5317
      %v5640 = vunpack.c.l.b16 %v5318
      %v5641 = vunpack.c.h.b16 %v5318
      %v5642 = vunpack.c.l.b16 %v5319
      %v5643 = vunpack.c.h.b16 %v5319
      %v5644 = vunpack.c.l.b16 %v5320
      %v5645 = vunpack.c.h.b16 %v5320
      %v5646 = vunpack.c.l.b16 %v5321
      %v5647 = vunpack.c.h.b16 %v5321
      %v5648 = vunpack.c.l.b16 %v5322
      %v5649 = vunpack.c.h.b16 %v5322
      %v5650 = vunpack.c.l.b16 %v5323
      %v5651 = vunpack.c.h.b16 %v5323
      %v5652 = vunpack.c.l.b16 %v5324
      %v5653 = vunpack.c.h.b16 %v5324
      %v5654 = vunpack.c.l.b16 %v5325
      %v5655 = vunpack.c.h.b16 %v5325
      %v5656 = vunpack.c.l.b16 %v5326
      %v5657 = vunpack.c.h.b16 %v5326
      %v5658 = vunpack.c.l.b16 %v5327
      %v5659 = vunpack.c.h.b16 %v5327
      %v5660 = vunpack.c.l.b16 %v5328
      %v5661 = vunpack.c.h.b16 %v5328
      %v5662 = vunpack.c.l.b16 %v5329
      %v5663 = vunpack.c.h.b16 %v5329
      %v5664 = vunpack.c.l.b16 %v5330
      %v5665 = vunpack.c.h.b16 %v5330
      %v5666 = vunpack.c.l.b16 %v5331
      %v5667 = vunpack.c.h.b16 %v5331
      %v5668 = vunpack.c.l.b16 %v5332
      %v5669 = vunpack.c.h.b16 %v5332
      %v5670 = vunpack.c.l.b16 %v5333
      %v5671 = vunpack.c.h.b16 %v5333
      %v5672 = vunpack.c.l.b16 %v5334
      %v5673 = vunpack.c.h.b16 %v5334
      %v5674 = vunpack.c.l.b16 %v5335
      %v5675 = vunpack.c.h.b16 %v5335
      %v5676 = vunpack.c.l.b16 %v5336
      %v5677 = vunpack.c.h.b16 %v5336
      %v5678 = vunpack.c.l.b16 %v5337
      %v5679 = vunpack.c.h.b16 %v5337
      %v5680 = vunpack.c.l.b16 %v5338
      %v5681 = vunpack.c.h.b16 %v5338
      %v5682 = vunpack.c.l.b16 %v5339
      %v5683 = vunpack.c.h.b16 %v5339
      %v5684 = vunpack.c.l.b16 %v5340
      %v5685 = vunpack.c.h.b16 %v5340
      %v5686 = vunpack.c.l.b16 %v5341
      %v5687 = vunpack.c.h.b16 %v5341
      %v5688 = vunpack.c.l.b16 %v5342
      %v5689 = vunpack.c.h.b16 %v5342
      %v5690 = vunpack.c.l.b16 %v5343
      %v5691 = vunpack.c.h.b16 %v5343
      %v5692 = vunpack.c.l.b16 %v5344
      %v5693 = vunpack.c.h.b16 %v5344
      %v5694 = vunpack.c.l.b16 %v5345
      %v5695 = vunpack.c.h.b16 %v5345
      %v5696 = vunpack.c.l.b16 %v5346
      %v5697 = vunpack.c.h.b16 %v5346
      %v5698 = vunpack.c.l.b16 %v5347
      %v5699 = vunpack.c.h.b16 %v5347
      %v5700 = vunpack.c.l.b16 %v5348
      %v5701 = vunpack.c.h.b16 %v5348
      %v5702 = vunpack.c.l.b16 %v5349
      %v5703 = vunpack.c.h.b16 %v5349
      %v5704 = vunpack.c.l.b16 %v5350
      %v5705 = vunpack.c.h.b16 %v5350
      %v5706 = vunpack.c.l.b16 %v5351
      %v5707 = vunpack.c.h.b16 %v5351
      %v5708 = vunpack.c.l.b16 %v5352
      %v5709 = vunpack.c.h.b16 %v5352
      %v5710 = vunpack.c.l.b16 %v5353
      %v5711 = vunpack.c.h.b16 %v5353
      %v5712 = vunpack.c.l.b16 %v5354
      %v5713 = vunpack.c.h.b16 %v5354
      %v5714 = vunpack.c.l.b16 %v5355
      %v5715 = vunpack.c.h.b16 %v5355
      %v5716 = vunpack.c.l.b16 %v5356
      %v5717 = vunpack.c.h.b16 %v5356
      %v5718 = vunpack.c.l.b16 %v5357
      %v5719 = vunpack.c.h.b16 %v5357
      %v5720 = vunpack.c.l.b16 %v5358
      %v5721 = vunpack.c.h.b16 %v5358
      %v5722 = vunpack.c.l.b16 %v5359
      %v5723 = vunpack.c.h.b16 %v5359
      %v5724 = vunpack.c.l.b16 %v5360
      %v5725 = vunpack.c.h.b16 %v5360
      %v5726 = vunpack.c.l.b16 %v5361
      %v5727 = vunpack.c.h.b16 %v5361
      %v5728 = vunpack.c.l.b16 %v5362
      %v5729 = vunpack.c.h.b16 %v5362
      %v5730 = vunpack.c.l.b16 %v5363
      %v5731 = vunpack.c.h.b16 %v5363
      %v5732 = vunpack.c.l.b16 %v5364
      %v5733 = vunpack.c.h.b16 %v5364
      %v5734 = vunpack.c.l.b16 %v5365
      %v5735 = vunpack.c.h.b16 %v5365
      %v5736 = vunpack.c.l.b16 %v5366
      %v5737 = vunpack.c.h.b16 %v5366
      %v5738 = vunpack.c.l.b16 %v5367
      %v5739 = vunpack.c.h.b16 %v5367
      %v5740 = vunpack.c.l.b16 %v5368
      %v5741 = vunpack.c.h.b16 %v5368
      %v5742 = vunpack.c.l.b16 %v5369
      %v5743 = vunpack.c.h.b16 %v5369
      %v5744 = vunpack.c.l.b16 %v5370
      %v5745 = vunpack.c.h.b16 %v5370
      %v5746 = vunpack.c.l.b16 %v5371
      %v5747 = vunpack.c.h.b16 %v5371
      %v5748 = vunpack.c.l.b16 %v5372
      %v5749 = vunpack.c.h.b16 %v5372
      %v5750 = vunpack.c.l.b16 %v5373
      %v5751 = vunpack.c.h.b16 %v5373
      %v5752 = vunpack.c.l.b16 %v5374
      %v5753 = vunpack.c.h.b16 %v5374
      %v5754 = vunpack.c.l.b16 %v5375
      %v5755 = vunpack.c.h.b16 %v5375
      %v5756 = vunpack.c.l.b16 %v5376
      %v5757 = vunpack.c.h.b16 %v5376
      %v5758 = vunpack.c.l.b16 %v5377
      %v5759 = vunpack.c.h.b16 %v5377
      %v5760 = vunpack.c.l.b16 %v5378
      %v5761 = vunpack.c.h.b16 %v5378
      %v5762 = vunpack.c.l.b16 %v5379
      %v5763 = vunpack.c.h.b16 %v5379
      %v5764 = vunpack.c.l.b16 %v5380
      %v5765 = vunpack.c.h.b16 %v5380
      %v5766 = vunpack.c.l.b16 %v5381
      %v5767 = vunpack.c.h.b16 %v5381
      %v5768 = vunpack.c.l.b16 %v5382
      %v5769 = vunpack.c.h.b16 %v5382
      %v5770 = vunpack.c.l.b16 %v5383
      %v5771 = vunpack.c.h.b16 %v5383
      %v5772 = vunpack.c.l.b16 %v5384
      %v5773 = vunpack.c.h.b16 %v5384
      %v5774 = vunpack.c.l.b16 %v5385
      %v5775 = vunpack.c.h.b16 %v5385
      %v5776 = vunpack.c.l.b16 %v5386
      %v5777 = vunpack.c.h.b16 %v5386
      %v5778 = vunpack.c.l.b16 %v5387
      %v5779 = vunpack.c.h.b16 %v5387
      %v5780 = vunpack.c.l.b16 %v5388
      %v5781 = vunpack.c.h.b16 %v5388
      %v5782 = vunpack.c.l.b16 %v5389
      %v5783 = vunpack.c.h.b16 %v5389
      %v5784 = vunpack.c.l.b16 %v5390
      %v5785 = vunpack.c.h.b16 %v5390
      %v5786 = vunpack.c.l.b16 %v5391
      %v5787 = vunpack.c.h.b16 %v5391
      %v5788 = vunpack.c.l.b16 %v5392
      %v5789 = vunpack.c.h.b16 %v5392
      %v5790 = vpack.c.b16 %v5536, %v5534
      %v5791 = vpack.c.b16 %v5537, %v5535
      %v5792 = vpack.c.b16 %v5540, %v5538
      %v5793 = vpack.c.b16 %v5541, %v5539
      %v5794 = vpack.c.b16 %v5544, %v5542
      %v5795 = vpack.c.b16 %v5545, %v5543
      %v5796 = vpack.c.b16 %v5548, %v5546
      %v5797 = vpack.c.b16 %v5549, %v5547
      %v5798 = vpack.c.b16 %v5552, %v5550
      %v5799 = vpack.c.b16 %v5553, %v5551
      %v5800 = vpack.c.b16 %v5556, %v5554
      %v5801 = vpack.c.b16 %v5557, %v5555
      %v5802 = vpack.c.b16 %v5560, %v5558
      %v5803 = vpack.c.b16 %v5561, %v5559
      %v5804 = vpack.c.b16 %v5564, %v5562
      %v5805 = vpack.c.b16 %v5565, %v5563
      %v5806 = vpack.c.b16 %v5568, %v5566
      %v5807 = vpack.c.b16 %v5569, %v5567
      %v5808 = vpack.c.b16 %v5572, %v5570
      %v5809 = vpack.c.b16 %v5573, %v5571
      %v5810 = vpack.c.b16 %v5576, %v5574
      %v5811 = vpack.c.b16 %v5577, %v5575
      %v5812 = vpack.c.b16 %v5580, %v5578
      %v5813 = vpack.c.b16 %v5581, %v5579
      %v5814 = vpack.c.b16 %v5584, %v5582
      %v5815 = vpack.c.b16 %v5585, %v5583
      %v5816 = vpack.c.b16 %v5588, %v5586
      %v5817 = vpack.c.b16 %v5589, %v5587
      %v5818 = vpack.c.b16 %v5592, %v5590
      %v5819 = vpack.c.b16 %v5593, %v5591
      %v5820 = vpack.c.b16 %v5596, %v5594
      %v5821 = vpack.c.b16 %v5597, %v5595
      %v5822 = vpack.c.b16 %v5600, %v5598
      %v5823 = vpack.c.b16 %v5601, %v5599
      %v5824 = vpack.c.b16 %v5604, %v5602
      %v5825 = vpack.c.b16 %v5605, %v5603
      %v5826 = vpack.c.b16 %v5608, %v5606
      %v5827 = vpack.c.b16 %v5609, %v5607
      %v5828 = vpack.c.b16 %v5612, %v5610
      %v5829 = vpack.c.b16 %v5613, %v5611
      %v5830 = vpack.c.b16 %v5616, %v5614
      %v5831 = vpack.c.b16 %v5617, %v5615
      %v5832 = vpack.c.b16 %v5620, %v5618
      %v5833 = vpack.c.b16 %v5621, %v5619
      %v5834 = vpack.c.b16 %v5624, %v5622
      %v5835 = vpack.c.b16 %v5625, %v5623
      %v5836 = vpack.c.b16 %v5628, %v5626
      %v5837 = vpack.c.b16 %v5629, %v5627
      %v5838 = vpack.c.b16 %v5632, %v5630
      %v5839 = vpack.c.b16 %v5633, %v5631
      %v5840 = vpack.c.b16 %v5636, %v5634
      %v5841 = vpack.c.b16 %v5637, %v5635
      %v5842 = vpack.c.b16 %v5640, %v5638
      %v5843 = vpack.c.b16 %v5641, %v5639
      %v5844 = vpack.c.b16 %v5644, %v5642
      %v5845 = vpack.c.b16 %v5645, %v5643
      %v5846 = vpack.c.b16 %v5648, %v5646
      %v5847 = vpack.c.b16 %v5649, %v5647
      %v5848 = vpack.c.b16 %v5652, %v5650
      %v5849 = vpack.c.b16 %v5653, %v5651
      %v5850 = vpack.c.b16 %v5656, %v5654
      %v5851 = vpack.c.b16 %v5657, %v5655
      %v5852 = vpack.c.b16 %v5660, %v5658
      %v5853 = vpack.c.b16 %v5661, %v5659
      %v5854 = vpack.c.b16 %v5664, %v5662
      %v5855 = vpack.c.b16 %v5665, %v5663
      %v5856 = vpack.c.b16 %v5668, %v5666
      %v5857 = vpack.c.b16 %v5669, %v5667
      %v5858 = vpack.c.b16 %v5672, %v5670
      %v5859 = vpack.c.b16 %v5673, %v5671
      %v5860 = vpack.c.b16 %v5676, %v5674
      %v5861 = vpack.c.b16 %v5677, %v5675
      %v5862 = vpack.c.b16 %v5680, %v5678
      %v5863 = vpack.c.b16 %v5681, %v5679
      %v5864 = vpack.c.b16 %v5684, %v5682
      %v5865 = vpack.c.b16 %v5685, %v5683
      %v5866 = vpack.c.b16 %v5688, %v5686
      %v5867 = vpack.c.b16 %v5689, %v5687
      %v5868 = vpack.c.b16 %v5692, %v5690
      %v5869 = vpack.c.b16 %v5693, %v5691
      %v5870 = vpack.c.b16 %v5696, %v5694
      %v5871 = vpack.c.b16 %v5697, %v5695
      %v5872 = vpack.c.b16 %v5700, %v5698
      %v5873 = vpack.c.b16 %v5701, %v5699
      %v5874 = vpack.c.b16 %v5704, %v5702
      %v5875 = vpack.c.b16 %v5705, %v5703
      %v5876 = vpack.c.b16 %v5708, %v5706
      %v5877 = vpack.c.b16 %v5709, %v5707
      %v5878 = vpack.c.b16 %v5712, %v5710
      %v5879 = vpack.c.b16 %v5713, %v5711
      %v5880 = vpack.c.b16 %v5716, %v5714
      %v5881 = vpack.c.b16 %v5717, %v5715
      %v5882 = vpack.c.b16 %v5720, %v5718
      %v5883 = vpack.c.b16 %v5721, %v5719
      %v5884 = vpack.c.b16 %v5724, %v5722
      %v5885 = vpack.c.b16 %v5725, %v5723
      %v5886 = vpack.c.b16 %v5728, %v5726
      %v5887 = vpack.c.b16 %v5729, %v5727
      %v5888 = vpack.c.b16 %v5732, %v5730
      %v5889 = vpack.c.b16 %v5733, %v5731
      %v5890 = vpack.c.b16 %v5736, %v5734
      %v5891 = vpack.c.b16 %v5737, %v5735
      %v5892 = vpack.c.b16 %v5740, %v5738
      %v5893 = vpack.c.b16 %v5741, %v5739
      %v5894 = vpack.c.b16 %v5744, %v5742
      %v5895 = vpack.c.b16 %v5745, %v5743
      %v5896 = vpack.c.b16 %v5748, %v5746
      %v5897 = vpack.c.b16 %v5749, %v5747
      %v5898 = vpack.c.b16 %v5752, %v5750
      %v5899 = vpack.c.b16 %v5753, %v5751
      %v5900 = vpack.c.b16 %v5756, %v5754
      %v5901 = vpack.c.b16 %v5757, %v5755
      %v5902 = vpack.c.b16 %v5760, %v5758
      %v5903 = vpack.c.b16 %v5761, %v5759
      %v5904 = vpack.c.b16 %v5764, %v5762
      %v5905 = vpack.c.b16 %v5765, %v5763
      %v5906 = vpack.c.b16 %v5768, %v5766
      %v5907 = vpack.c.b16 %v5769, %v5767
      %v5908 = vpack.c.b16 %v5772, %v5770
      %v5909 = vpack.c.b16 %v5773, %v5771
      %v5910 = vpack.c.b16 %v5776, %v5774
      %v5911 = vpack.c.b16 %v5777, %v5775
      %v5912 = vpack.c.b16 %v5780, %v5778
      %v5913 = vpack.c.b16 %v5781, %v5779
      %v5914 = vpack.c.b16 %v5784, %v5782
      %v5915 = vpack.c.b16 %v5785, %v5783
      %v5916 = vpack.c.b16 %v5788, %v5786
      %v5917 = vpack.c.b16 %v5789, %v5787
      %6046 = vmatprep.subr.bf16.mxu0 %v5805
      %6047 = vmatpush1.bf16.msra.mxu0 %v5804
      %6048 = vmatprep.subr.bf16.mxu0 %v5803
      %6049 = vmatpush1.bf16.msra.mxu0 %v5802
      %6050 = vmatprep.subr.bf16.mxu0 %v5801
      %6051 = vmatpush1.bf16.msra.mxu0 %v5800
      %6052 = vmatprep.subr.bf16.mxu0 %v5799
      %6053 = vmatpush1.bf16.msra.mxu0 %v5798
      %6054 = vmatprep.subr.bf16.mxu0 %v5797
      %6055 = vmatpush1.bf16.msra.mxu0 %v5796
      %6056 = vmatprep.subr.bf16.mxu0 %v5795
      %6057 = vmatpush1.bf16.msra.mxu0 %v5794
      %6058 = vmatprep.subr.bf16.mxu0 %v5793
      %6059 = vmatpush1.bf16.msra.mxu0 %v5792
      %6060 = vmatprep.subr.bf16.mxu0 %v5791
      %6061 = vmatpush1.bf16.msra.mxu0 %v5790
      %6062 = vmatprep.subr.bf16.mxu0 %v5821
      %6063 = vmatpush2.bf16.msra.mxu0 %v5820
      %6064 = vmatprep.subr.bf16.mxu0 %v5819
      %6065 = vmatpush2.bf16.msra.mxu0 %v5818
      %6066 = vmatprep.subr.bf16.mxu0 %v5817
      %6067 = vmatpush2.bf16.msra.mxu0 %v5816
      %6068 = vmatprep.subr.bf16.mxu0 %v5815
      %6069 = vmatpush2.bf16.msra.mxu0 %v5814
      %6070 = vmatprep.subr.bf16.mxu0 %v5813
      %6071 = vmatpush2.bf16.msra.mxu0 %v5812
      %6072 = vmatprep.subr.bf16.mxu0 %v5811
      %6073 = vmatpush2.bf16.msra.mxu0 %v5810
      %6074 = vmatprep.subr.bf16.mxu0 %v5809
      %6075 = vmatpush2.bf16.msra.mxu0 %v5808
      %6076 = vmatprep.subr.bf16.mxu0 %v5807
      %6077 = vmatpush2.bf16.msra.mxu0 %v5806
      %6078 = vmatprep.mubr.bf16.mxu0 %v5248
      %6079 = vmatmul.mubr.bf16.gmra.mxu0 %v5247
      %v6080 = vpop.f32.mrf.mxu0
      %v6081 = vadd.f32 %v5399, %v6080
      %v6082 = vpop.f32.mrf.mxu0
      %v6083 = vadd.f32 %v5403, %v6082
      %v6084 = vpop.f32.mrf.mxu0
      %v6085 = vadd.f32 %v5399, %v6084
      %v6086 = vpop.f32.mrf.mxu0
      %v6087 = vadd.f32 %v5403, %v6086
      %6088 = vmatprep.mubr.bf16.mxu0 %v5256
      %6089 = vmatmul.mubr.bf16.gmra.mxu0 %v5255
      %v6090 = vpop.f32.mrf.mxu0
      %v6091 = vadd.f32 %v5399, %v6090
      %v6092 = vpop.f32.mrf.mxu0
      %v6093 = vadd.f32 %v5403, %v6092
      %v6094 = vpop.f32.mrf.mxu0
      %v6095 = vadd.f32 %v5399, %v6094
      %v6096 = vpop.f32.mrf.mxu0
      %v6097 = vadd.f32 %v5403, %v6096
      %6098 = vdwg.mxu0
      %6099 = vmatprep.subr.bf16.mxu0 %v5837
      %6100 = vmatpush1.bf16.msra.mxu0 %v5836
      %6101 = vmatprep.subr.bf16.mxu0 %v5835
      %6102 = vmatpush1.bf16.msra.mxu0 %v5834
      %6103 = vmatprep.subr.bf16.mxu0 %v5833
      %6104 = vmatpush1.bf16.msra.mxu0 %v5832
      %6105 = vmatprep.subr.bf16.mxu0 %v5831
      %6106 = vmatpush1.bf16.msra.mxu0 %v5830
      %6107 = vmatprep.subr.bf16.mxu0 %v5829
      %6108 = vmatpush1.bf16.msra.mxu0 %v5828
      %6109 = vmatprep.subr.bf16.mxu0 %v5827
      %6110 = vmatpush1.bf16.msra.mxu0 %v5826
      %6111 = vmatprep.subr.bf16.mxu0 %v5825
      %6112 = vmatpush1.bf16.msra.mxu0 %v5824
      %6113 = vmatprep.subr.bf16.mxu0 %v5823
      %6114 = vmatpush1.bf16.msra.mxu0 %v5822
      %6115 = vmatprep.subr.bf16.mxu0 %v5853
      %6116 = vmatpush2.bf16.msra.mxu0 %v5852
      %6117 = vmatprep.subr.bf16.mxu0 %v5851
      %6118 = vmatpush2.bf16.msra.mxu0 %v5850
      %6119 = vmatprep.subr.bf16.mxu0 %v5849
      %6120 = vmatpush2.bf16.msra.mxu0 %v5848
      %6121 = vmatprep.subr.bf16.mxu0 %v5847
      %6122 = vmatpush2.bf16.msra.mxu0 %v5846
      %6123 = vmatprep.subr.bf16.mxu0 %v5845
      %6124 = vmatpush2.bf16.msra.mxu0 %v5844
      %6125 = vmatprep.subr.bf16.mxu0 %v5843
      %6126 = vmatpush2.bf16.msra.mxu0 %v5842
      %6127 = vmatprep.subr.bf16.mxu0 %v5841
      %6128 = vmatpush2.bf16.msra.mxu0 %v5840
      %6129 = vmatprep.subr.bf16.mxu0 %v5839
      %6130 = vmatpush2.bf16.msra.mxu0 %v5838
      %6131 = vmatprep.mubr.bf16.mxu0 %v5250
      %6132 = vmatmul.mubr.bf16.gmra.mxu0 %v5249
      %v6133 = vpop.f32.mrf.mxu0
      %v6134 = vadd.f32 %v6081, %v6133
      %v6135 = vpop.f32.mrf.mxu0
      %v6136 = vadd.f32 %v6083, %v6135
      %v6137 = vpop.f32.mrf.mxu0
      %v6138 = vadd.f32 %v6085, %v6137
      %v6139 = vpop.f32.mrf.mxu0
      %v6140 = vadd.f32 %v6087, %v6139
      %6141 = vmatprep.mubr.bf16.mxu0 %v5258
      %6142 = vmatmul.mubr.bf16.gmra.mxu0 %v5257
      %v6143 = vpop.f32.mrf.mxu0
      %v6144 = vadd.f32 %v6091, %v6143
      %v6145 = vpop.f32.mrf.mxu0
      %v6146 = vadd.f32 %v6093, %v6145
      %v6147 = vpop.f32.mrf.mxu0
      %v6148 = vadd.f32 %v6095, %v6147
      %v6149 = vpop.f32.mrf.mxu0
      %v6150 = vadd.f32 %v6097, %v6149
      %6151 = vdwg.mxu0
      %6152 = vmatprep.subr.bf16.mxu0 %v5869
      %6153 = vmatpush1.bf16.msra.mxu0 %v5868
      %6154 = vmatprep.subr.bf16.mxu0 %v5867
      %6155 = vmatpush1.bf16.msra.mxu0 %v5866
      %6156 = vmatprep.subr.bf16.mxu0 %v5865
      %6157 = vmatpush1.bf16.msra.mxu0 %v5864
      %6158 = vmatprep.subr.bf16.mxu0 %v5863
      %6159 = vmatpush1.bf16.msra.mxu0 %v5862
      %6160 = vmatprep.subr.bf16.mxu0 %v5861
      %6161 = vmatpush1.bf16.msra.mxu0 %v5860
      %6162 = vmatprep.subr.bf16.mxu0 %v5859
      %6163 = vmatpush1.bf16.msra.mxu0 %v5858
      %6164 = vmatprep.subr.bf16.mxu0 %v5857
      %6165 = vmatpush1.bf16.msra.mxu0 %v5856
      %6166 = vmatprep.subr.bf16.mxu0 %v5855
      %6167 = vmatpush1.bf16.msra.mxu0 %v5854
      %6168 = vmatprep.subr.bf16.mxu0 %v5885
      %6169 = vmatpush2.bf16.msra.mxu0 %v5884
      %6170 = vmatprep.subr.bf16.mxu0 %v5883
      %6171 = vmatpush2.bf16.msra.mxu0 %v5882
      %6172 = vmatprep.subr.bf16.mxu0 %v5881
      %6173 = vmatpush2.bf16.msra.mxu0 %v5880
      %6174 = vmatprep.subr.bf16.mxu0 %v5879
      %6175 = vmatpush2.bf16.msra.mxu0 %v5878
      %6176 = vmatprep.subr.bf16.mxu0 %v5877
      %6177 = vmatpush2.bf16.msra.mxu0 %v5876
      %6178 = vmatprep.subr.bf16.mxu0 %v5875
      %6179 = vmatpush2.bf16.msra.mxu0 %v5874
      %6180 = vmatprep.subr.bf16.mxu0 %v5873
      %6181 = vmatpush2.bf16.msra.mxu0 %v5872
      %6182 = vmatprep.subr.bf16.mxu0 %v5871
      %6183 = vmatpush2.bf16.msra.mxu0 %v5870
      %6184 = vmatprep.mubr.bf16.mxu0 %v5252
      %6185 = vmatmul.mubr.bf16.gmra.mxu0 %v5251
      %v6186 = vpop.f32.mrf.mxu0
      %v6187 = vadd.f32 %v6134, %v6186
      %v6188 = vpop.f32.mrf.mxu0
      %v6189 = vadd.f32 %v6136, %v6188
      %v6190 = vpop.f32.mrf.mxu0
      %v6191 = vadd.f32 %v6138, %v6190
      %v6192 = vpop.f32.mrf.mxu0
      %v6193 = vadd.f32 %v6140, %v6192
      %6194 = vmatprep.mubr.bf16.mxu0 %v5260
      %6195 = vmatmul.mubr.bf16.gmra.mxu0 %v5259
      %v6196 = vpop.f32.mrf.mxu0
      %v6197 = vadd.f32 %v6144, %v6196
      %v6198 = vpop.f32.mrf.mxu0
      %v6199 = vadd.f32 %v6146, %v6198
      %v6200 = vpop.f32.mrf.mxu0
      %v6201 = vadd.f32 %v6148, %v6200
      %v6202 = vpop.f32.mrf.mxu0
      %v6203 = vadd.f32 %v6150, %v6202
      %6204 = vdwg.mxu0
      %6205 = vmatprep.subr.bf16.mxu0 %v5901
      %6206 = vmatpush1.bf16.msra.mxu0 %v5900
      %6207 = vmatprep.subr.bf16.mxu0 %v5899
      %6208 = vmatpush1.bf16.msra.mxu0 %v5898
      %6209 = vmatprep.subr.bf16.mxu0 %v5897
      %6210 = vmatpush1.bf16.msra.mxu0 %v5896
      %6211 = vmatprep.subr.bf16.mxu0 %v5895
      %6212 = vmatpush1.bf16.msra.mxu0 %v5894
      %6213 = vmatprep.subr.bf16.mxu0 %v5893
      %6214 = vmatpush1.bf16.msra.mxu0 %v5892
      %6215 = vmatprep.subr.bf16.mxu0 %v5891
      %6216 = vmatpush1.bf16.msra.mxu0 %v5890
      %6217 = vmatprep.subr.bf16.mxu0 %v5889
      %6218 = vmatpush1.bf16.msra.mxu0 %v5888
      %6219 = vmatprep.subr.bf16.mxu0 %v5887
      %6220 = vmatpush1.bf16.msra.mxu0 %v5886
      %6221 = vmatprep.subr.bf16.mxu0 %v5917
      %6222 = vmatpush2.bf16.msra.mxu0 %v5916
      %6223 = vmatprep.subr.bf16.mxu0 %v5915
      %6224 = vmatpush2.bf16.msra.mxu0 %v5914
      %6225 = vmatprep.subr.bf16.mxu0 %v5913
      %6226 = vmatpush2.bf16.msra.mxu0 %v5912
      %6227 = vmatprep.subr.bf16.mxu0 %v5911
      %6228 = vmatpush2.bf16.msra.mxu0 %v5910
      %6229 = vmatprep.subr.bf16.mxu0 %v5909
      %6230 = vmatpush2.bf16.msra.mxu0 %v5908
      %6231 = vmatprep.subr.bf16.mxu0 %v5907
      %6232 = vmatpush2.bf16.msra.mxu0 %v5906
      %6233 = vmatprep.subr.bf16.mxu0 %v5905
      %6234 = vmatpush2.bf16.msra.mxu0 %v5904
      %6235 = vmatprep.subr.bf16.mxu0 %v5903
      %6236 = vmatpush2.bf16.msra.mxu0 %v5902
      %6237 = vmatprep.mubr.bf16.mxu0 %v5254
      %6238 = vmatmul.mubr.bf16.gmra.mxu0 %v5253
      %v6239 = vpop.f32.mrf.mxu0
      %v6240 = vadd.f32 %v6187, %v6239
      %v6241 = vpop.f32.mrf.mxu0
      %v6242 = vadd.f32 %v6189, %v6241
      %v6243 = vpop.f32.mrf.mxu0
      %v6244 = vadd.f32 %v6191, %v6243
      %v6245 = vpop.f32.mrf.mxu0
      %v6246 = vadd.f32 %v6193, %v6245
      %6247 = vmatprep.mubr.bf16.mxu0 %v5262
      %6248 = vmatmul.mubr.bf16.gmra.mxu0 %v5261
      %v6249 = vpop.f32.mrf.mxu0
      %v6250 = vadd.f32 %v6197, %v6249
      %v6251 = vpop.f32.mrf.mxu0
      %v6252 = vadd.f32 %v6199, %v6251
      %v6253 = vpop.f32.mrf.mxu0
      %v6254 = vadd.f32 %v6201, %v6253
      %v6255 = vpop.f32.mrf.mxu0
      %v6256 = vadd.f32 %v6203, %v6255
      %6257 = vdwg.mxu0
      %v6258 = vadd.f32 %v3814, %v6240
      %v6259 = vadd.f32 %v3815, %v6242
      %v6260 = vadd.f32 %v3816, %v6244
      %v6261 = vadd.f32 %v3817, %v6246
      %v6262 = vadd.f32 %v3818, %v6250
      %v6263 = vadd.f32 %v3819, %v6252
      %v6264 = vadd.f32 %v3820, %v6254
      %v6265 = vadd.f32 %v3821, %v6256
    $region110: #{self_attention_block_forward.1} parent=1 // loop_footer
      %s235 = sadd.s32 1, %s231
    $region111: #{self_attention_block_forward.1} parent=1 // loop_footer_branch
      %230 = sbr.rel target = $region107
    $region112: #{self_attention_block_forward.1} parent=1 // loop_exit
      _
    %6266 = vst [vmem:[#allocation23] sm:$0xff] %v236
    %6267 = vst [vmem:[#allocation23 + $0x8] sm:$0xff] %v237
    %6268 = vst [vmem:[#allocation23 + $0x10] sm:$0xff] %v238
    %6269 = vst [vmem:[#allocation23 + $0x18] sm:$0xff] %v239
    %6270 = vst [vmem:[#allocation23 + $0x20] sm:$0xff] %v240
    %6271 = vst [vmem:[#allocation23 + $0x28] sm:$0xff] %v241
    %6272 = vst [vmem:[#allocation23 + $0x30] sm:$0xff] %v242
    %6273 = vst [vmem:[#allocation23 + $0x38] sm:$0xff] %v243
    // Predicated region
    $region113: #{self_attention_block_forward.1} parent=1 // pred_check
      _
    $region114: #{self_attention_block_forward.1} parent=1 // pred_check_branch
      %6275 = sbr.rel (0) target = $region116
    $region115: #{self_attention_block_forward.1} parent=1 // pred_region
      %s6277 = ssub.s32 1024, 1024
      %6278 = vsyncadd [#allocation4], %s6277
      %s6279 = sshll.u32 [#allocation23], 4
      %s6280 = int_to_ptr.vmem [resolvable:$true] %s6279
      %6285 = dma.vmem_to_hbm [thread:$0]  %s6280, 1024, %s13, [#allocation4], 256, 256, 16
    $region116: #{self_attention_block_forward.1} parent=1 // pred_fallthru
      _
    // Predicated region
    $region117: #{self_attention_block_forward.1} parent=1 // pred_check
      _
    $region118: #{self_attention_block_forward.1} parent=1 // pred_check_branch
      %6287 = sbr.rel (0) target = $region120
    $region119: #{self_attention_block_forward.1} parent=1 // pred_region
      %6288 = dma.done [#allocation4], 1024
    $region120: #{self_attention_block_forward.1} parent=1 // pred_fallthru
      _
    %6289 = vsyncpa [#allocation3], 1
    %6290 = vsyncpa [#allocation6], 1
    %6291 = vsyncpa [#allocation9], 1
    %6292 = vsyncpa [#allocation12], 1
    %6293 = vsyncpa [#allocation15], 1
    %6294 = vsyncpa [#allocation18], 1
    %6295 = vsyncpa [#allocation21], 1
    %6296 = vsyncpa [#allocation4], 1

</llo_original>
